<compile_context>
chip_gen: v7x
topology: tpu7x:2x2x1
jax: 0.10.0
libtpu: 0.0.40
codegen_flags: <defaults>
</compile_context>

<pallas_src>
import numpy as np
import jax
import jax.numpy as jnp
from jax.experimental import pallas as pl
from jax.experimental.pallas import tpu as pltpu

# ----------------------------- configuration ------------------------------
B = 2                 # batch
MOCAP_FRAMES = 40     # skeleton frames
ACC_FRAMES = 16       # accelerometer frames
NUM_JOINTS = 25       # joints (>= 17 for the two (1,9) convs)
IN_CHANS = 3
ACC_COORDS = 3
NUM_PATCH = 8
EMBED = 32            # spatial_embed == temp_embed == acc_embed
DEPTH = 2             # adepth == tdepth
NUM_HEADS = 4
HEAD_DIM = EMBED // NUM_HEADS
MLP_RATIO = 2
NUM_CLASSES = 11

SKL_PATCH_SIZE = MOCAP_FRAMES // NUM_PATCH          # 5
ACC_PATCH_SIZE = ACC_FRAMES // NUM_PATCH            # 2
J1 = NUM_JOINTS - 8                                 # 17 (after first (1,9) conv)
J2 = NUM_JOINTS - 16                                # 9  (after second (1,9) conv)
SKL_PATCH = SKL_PATCH_SIZE * J2                     # 45
SKL_ENCODE = SKL_PATCH // (EMBED // 8) * EMBED      # 352
SEQ = NUM_PATCH + 1                                 # 9 tokens per branch
ROWS = B * SEQ                                      # 18
ROWS_PT = B * NUM_PATCH                             # 16
SKL_IN = SKL_PATCH_SIZE * NUM_JOINTS * IN_CHANS     # 375
SC1_OUT = SKL_PATCH_SIZE * J1 * IN_CHANS            # 255
SC2_OUT = SKL_PATCH_SIZE * J2                       # 45
ACC_IN = ACC_PATCH_SIZE * ACC_COORDS                # 6
NB = 2 * DEPTH                                      # stacked blocks: [acc..., temp...]


# ---------------------- constant structural matrices -----------------------
def _banded_spatial_conv1(w, bias):
    """Fold Conv2d(3,3,(1,9)) over the joint axis into one block-banded matmul.
    Input lanes (f_local, joint, cin) -> output lanes (f_local, joint_out, cout)."""
    m = np.zeros((SKL_IN, SC1_OUT), np.float32)
    for fl in range(SKL_PATCH_SIZE):
        for jo in range(J1):
            for k in range(9):
                for ci in range(IN_CHANS):
                    for co in range(IN_CHANS):
                        m[fl * NUM_JOINTS * IN_CHANS + (jo + k) * IN_CHANS + ci,
                          fl * J1 * IN_CHANS + jo * IN_CHANS + co] = w[co, ci, k]
    b = np.tile(np.asarray(bias, np.float32), SKL_PATCH_SIZE * J1).reshape(1, SC1_OUT)
    return jnp.asarray(m), jnp.asarray(b)


def _banded_spatial_conv2(w, bias):
    """Fold Conv2d(3,1,(1,9)) into one block-banded matmul (output lanes (f_local, joint))."""
    m = np.zeros((SC1_OUT, SC2_OUT), np.float32)
    for fl in range(SKL_PATCH_SIZE):
        for jo in range(J2):
            for k in range(9):
                for ci in range(IN_CHANS):
                    m[fl * J1 * IN_CHANS + (jo + k) * IN_CHANS + ci,
                      fl * J2 + jo] = w[0, ci, k]
    b = np.full((1, SC2_OUT), float(bias[0]), np.float32)
    return jnp.asarray(m), jnp.asarray(b)


def _shift_mat():
    """(32,16) stacked row-shift matrices for 'same'-padded Conv1d over the patch
    axis: rows 0..15 select the previous patch (zero at t==0), rows 16..31 the
    next patch (zero at t==NUM_PATCH-1). Rows of x are (batch, patch)."""
    s = np.zeros((2 * ROWS_PT, ROWS_PT), np.float32)
    for r in range(ROWS_PT):
        if r % NUM_PATCH != 0:
            s[r, r - 1] = 1.0
        if r % NUM_PATCH != NUM_PATCH - 1:
            s[ROWS_PT + r, r + 1] = 1.0
    return s


def _place_mats():
    """(ROWS, ROWS_PT) placement matrices: scatter per-patch tokens into the
    per-batch 9-token sequences (acc branch: class token last; temporal: first)."""
    pa = np.zeros((ROWS, ROWS_PT), np.float32)
    pt = np.zeros((ROWS, ROWS_PT), np.float32)
    for bi in range(B):
        for t in range(NUM_PATCH):
            pa[bi * SEQ + t, bi * NUM_PATCH + t] = 1.0
            pt[bi * SEQ + 1 + t, bi * NUM_PATCH + t] = 1.0
    return pa, pt


def _attn_bias():
    """(ROWS, ROWS) additive mask: 0 within a batch's 9 tokens, -1e30 across batches."""
    m = np.full((ROWS, ROWS), -1e30, np.float32)
    for bi in range(B):
        m[bi * SEQ:(bi + 1) * SEQ, bi * SEQ:(bi + 1) * SEQ] = 0.0
    return m


def _pool_mat():
    """(B, ROWS) mean-pool over the first NUM_PATCH token positions of each sequence."""
    pm = np.zeros((B, ROWS), np.float32)
    for bi in range(B):
        pm[bi, bi * SEQ: bi * SEQ + NUM_PATCH] = 1.0 / NUM_PATCH
    return pm


# ------------------------------ parameters ---------------------------------
def init_params(key):
    ks = jax.random.split(key, 16)
    bn_s = float(1.0 / np.sqrt(1.0 + 1e-5))  # BatchNorm (default running stats) folded in

    def nrm(k, shape, s=0.02):
        return jax.random.normal(k, shape, jnp.float32) * s

    p = {}

    # spatial_conv: Conv2d(3,3,(1,9))+BN+ReLU, Conv2d(3,1,(1,9))+BN+ReLU -> banded matmuls
    w1 = np.asarray(nrm(ks[0], (IN_CHANS, IN_CHANS, 9))) * bn_s
    b1 = np.asarray(nrm(ks[1], (IN_CHANS,))) * bn_s
    w2 = np.asarray(nrm(ks[2], (1, IN_CHANS, 9))) * bn_s
    b2 = np.asarray(nrm(ks[3], (1,))) * bn_s
    p["sc1_w"], p["sc1_b"] = _banded_spatial_conv1(w1, b1)
    p["sc2_w"], p["sc2_b"] = _banded_spatial_conv2(w2, b2)

    # Spatial_encoder: three Conv1d(k=3, pad=1)+BN+ReLU; the 3 taps are stacked (3,Cin,Cout)
    def conv1d_bn(k, cin, cout):
        k1, k2 = jax.random.split(k)
        return nrm(k1, (3, cin, cout)) * bn_s, nrm(k2, (1, cout)) * bn_s

    p["se1_w"], p["se1_b"] = conv1d_bn(ks[4], SKL_PATCH, SKL_ENCODE)
    p["se2_w"], p["se2_b"] = conv1d_bn(ks[5], SKL_ENCODE, SKL_ENCODE // 2)
    p["se3_w"], p["se3_b"] = conv1d_bn(ks[6], SKL_ENCODE // 2, EMBED)

    # Acc_encoder: Linear(acc_patch_size*acc_coords, embed) + ReLU
    p["acc_enc_w"] = nrm(ks[7], (ACC_IN, EMBED))
    p["acc_enc_b"] = nrm(ks[8], (1, EMBED))

    # tokens / positional embeddings, folded into per-row additive slabs
    acc_token = nrm(ks[9], (1, EMBED))
    acc_pos = nrm(ks[10], (1, EMBED))
    temp_token = nrm(ks[11], (1, EMBED))
    temp_pos = nrm(ks[12], (SEQ, EMBED))
    add_acc = jnp.tile(acc_pos, (ROWS, 1))                                  # Acc_pos_embed on every token
    add_acc = add_acc.at[np.array([bi * SEQ + NUM_PATCH for bi in range(B)])].add(acc_token)
    add_temp = jnp.tile(temp_pos, (B, 1))                                   # Temporal_pos_embed per position
    add_temp = add_temp.at[np.array([bi * SEQ for bi in range(B)])].add(temp_token)
    p["add_acc"], p["add_temp"] = add_acc, add_temp

    # transformer blocks, stacked on a leading axis: [acc_0..acc_{D-1}, temp_0..temp_{D-1}]
    kb = jax.random.split(ks[13], 8)
    scale = float(HEAD_DIM) ** -0.5
    qkv_w = nrm(kb[0], (NB, EMBED, 3 * EMBED))
    qkv_b = nrm(kb[1], (NB, 1, 3 * EMBED))
    p["blk_qkv_w"] = qkv_w.at[:, :, :EMBED].multiply(scale)   # fold qk scale into Q
    p["blk_qkv_b"] = qkv_b.at[:, :, :EMBED].multiply(scale)
    p["blk_proj_w"] = nrm(kb[2], (NB, EMBED, EMBED))
    p["blk_proj_b"] = nrm(kb[3], (NB, 1, EMBED))
    p["blk_fc1_w"] = nrm(kb[4], (NB, EMBED, EMBED * MLP_RATIO))
    p["blk_fc1_b"] = nrm(kb[5], (NB, 1, EMBED * MLP_RATIO))
    p["blk_fc2_w"] = nrm(kb[6], (NB, EMBED * MLP_RATIO, EMBED))
    p["blk_fc2_b"] = nrm(kb[7], (NB, 1, EMBED))
    ln_rows = np.stack([np.ones(EMBED), np.zeros(EMBED),
                        np.ones(EMBED), np.zeros(EMBED)]).astype(np.float32)
    p["blk_ln"] = jnp.asarray(np.broadcast_to(ln_rows, (NB, 4, EMBED)).copy())  # [ln1_g,ln1_b,ln2_g,ln2_b]

    # branch norms + class head (LayerNorm eps=1e-6 branches, eps=1e-5 head LN)
    gb = np.stack([np.ones(EMBED), np.zeros(EMBED)]).astype(np.float32)
    p["acc_norm"] = jnp.asarray(gb)
    p["temp_norm"] = jnp.asarray(gb)
    p["head_ln"] = jnp.asarray(gb)
    p["head_w"] = nrm(ks[14], (EMBED, NUM_CLASSES))
    p["head_b"] = nrm(ks[15], (1, NUM_CLASSES))

    # constant structural matrices
    p["shift"] = jnp.asarray(_shift_mat())
    pa, pt = _place_mats()
    p["place_acc"], p["place_temp"] = jnp.asarray(pa), jnp.asarray(pt)
    p["pool"] = jnp.asarray(_pool_mat())
    p["attn_bias"] = jnp.asarray(_attn_bias())
    return p


# -------------------------------- forward ----------------------------------
def mm_transformer_forward(params, acc_data, skl_data):
    b = skl_data.shape[0]
    assert b == B
    # Pure-layout, contiguous reshapes of the raw inputs (free in XLA):
    #   skl rows = (batch, patch), lanes = (frame_in_patch, joint, coord)
    #   acc rows = (batch, patch), lanes = (frame_in_patch, coord)
    skl2d = skl_data.reshape(b * NUM_PATCH, SKL_IN)
    acc2d = acc_data.reshape(b * NUM_PATCH, ACC_IN)

    flat, treedef = jax.tree_util.tree_flatten(params)
    n_params = len(flat)

    def kernel(*refs):
        skl_ref, acc_ref = refs[0], refs[1]
        p = jax.tree_util.tree_unflatten(treedef, refs[2:2 + n_params])
        feat_ref, logits_ref, logp_ref = refs[2 + n_params:]

        def mm(a, w):
            return jnp.dot(a, w, preferred_element_type=jnp.float32)

        def mm_nt(a, c):  # a @ c.T without materializing the transpose
            return jax.lax.dot_general(a, c, (((1,), (1,)), ((), ())),
                                       preferred_element_type=jnp.float32)

        def layer_norm(x, g, bb, eps):
            mu = jnp.mean(x, axis=-1, keepdims=True)
            xc = x - mu
            var = jnp.mean(xc * xc, axis=-1, keepdims=True)
            return xc * jax.lax.rsqrt(var + eps) * g + bb

        shifts = p["shift"][...]           # (32,16): rows 0..15 prev-patch, 16..31 next-patch
        attn_bias = p["attn_bias"][...]    # (18,18) block-diagonal additive mask

        def conv1d_same_relu(x, w_ref, b_ref):   # Conv1d(k=3, pad=1) + folded BN + ReLU
            sh = mm(shifts, x)                   # (32, C): [x_prev ; x_next]
            xp = sh[0:ROWS_PT]
            xn = sh[ROWS_PT:2 * ROWS_PT]
            y = (mm(xp, w_ref[0]) + mm(x, w_ref[1]) + mm(xn, w_ref[2]) + b_ref[...])
            return jnp.maximum(y, 0.0)

        def vit_block(x, bidx):                  # x: (ROWS, EMBED), rows batch-major
            lnp = p["blk_ln"][bidx]              # (4, EMBED)
            h = layer_norm(x, lnp[0:1], lnp[1:2], 1e-6)
            qkv = mm(h, p["blk_qkv_w"][bidx]) + p["blk_qkv_b"][bidx]       # (18, 96)
            heads = []
            for hh in range(NUM_HEADS):
                c0 = hh * HEAD_DIM
                q = qkv[:, c0:c0 + HEAD_DIM]                               # qk scale pre-folded
                k = qkv[:, EMBED + c0:EMBED + c0 + HEAD_DIM]
                v = qkv[:, 2 * EMBED + c0:2 * EMBED + c0 + HEAD_DIM]
                s = mm_nt(q, k) + attn_bias                                # (18, 18), batch-masked
                s = s - jnp.max(s, axis=-1, keepdims=True)
                e = jnp.exp(s)
                inv = pl.reciprocal(jnp.sum(e, axis=-1, keepdims=True), approx=True)
                heads.append(mm(e * inv, v))                               # (18, 8)
            o = jnp.concatenate(heads, axis=-1)                            # (18, 32)
            x = x + mm(o, p["blk_proj_w"][bidx]) + p["blk_proj_b"][bidx]
            h2 = layer_norm(x, lnp[2:3], lnp[3:4], 1e-6)
            hm = mm(h2, p["blk_fc1_w"][bidx]) + p["blk_fc1_b"][bidx]
            hm = jax.nn.gelu(hm)   # TODO(synk): tanh approx vs PyTorch exact-erf GELU
            return x + mm(hm, p["blk_fc2_w"][bidx]) + p["blk_fc2_b"][bidx]

        # ---------------- skeleton branch ----------------
        x = skl_ref[...]                                                        # (16, 375)
        x = jnp.maximum(mm(x, p["sc1_w"][...]) + p["sc1_b"][...], 0.0)          # (16, 255)
        x = jnp.maximum(mm(x, p["sc2_w"][...]) + p["sc2_b"][...], 0.0)          # (16, 45)
        x = conv1d_same_relu(x, p["se1_w"], p["se1_b"])                         # (16, 352)
        x = conv1d_same_relu(x, p["se2_w"], p["se2_b"])                         # (16, 176)
        x = conv1d_same_relu(x, p["se3_w"], p["se3_b"])                         # (16, 32)
        # (reference computes an avg-pooled spatial_out here but never uses it -> skipped)

        # ---------------- accelerometer branch ----------------
        sx = jnp.maximum(mm(acc_ref[...], p["acc_enc_w"][...])
                         + p["acc_enc_b"][...], 0.0)                            # (16, 32)
        # placement matmul inserts the class token rows; add_acc carries token + pos embed
        ax = mm(p["place_acc"][...], sx) + p["add_acc"][...]                    # (18, 32)
        cv_signals = []
        for i in range(DEPTH):
            ax = vit_block(ax, i)
            cv_signals.append(ax)
        an = p["acc_norm"][...]
        axn = layer_norm(ax, an[0:1], an[1:2], 1e-6)

        # ---------------- temporal branch ----------------
        tx = mm(p["place_temp"][...], x) + p["add_temp"][...]                   # (18, 32)
        for i in range(DEPTH):
            tx = vit_block(tx, DEPTH + i)
            tx = tx + cv_signals[i]                 # cross-branch residual
        tn = p["temp_norm"][...]
        txn = layer_norm(tx, tn[0:1], tn[1:2], 1e-6)

        # ---------------- pooling, fusion, head ----------------
        pool = p["pool"][...]                                                   # (2, 18)
        feat = mm(pool, txn) + mm(pool, axn)                                    # (2, 32)
        hl = p["head_ln"][...]
        h = layer_norm(feat, hl[0:1], hl[1:2], 1e-5)
        logits = mm(h, p["head_w"][...]) + p["head_b"][...]                     # (2, 11)
        mx = jnp.max(logits, axis=-1, keepdims=True)
        lse = mx + jnp.log(jnp.sum(jnp.exp(logits - mx), axis=-1, keepdims=True))

        feat_ref[...] = feat
        logits_ref[...] = logits
        logp_ref[...] = logits - lse

    inputs = [skl2d, acc2d] + list(flat)
    in_specs = [pl.BlockSpec(tuple(a.shape), lambda i, nd=a.ndim: (0,) * nd)
                for a in inputs]
    out_shape = (jax.ShapeDtypeStruct((b, EMBED), jnp.float32),
                 jax.ShapeDtypeStruct((b, NUM_CLASSES), jnp.float32),
                 jax.ShapeDtypeStruct((b, NUM_CLASSES), jnp.float32))
    out_specs = (pl.BlockSpec((b, EMBED), lambda i: (0, 0)),
                 pl.BlockSpec((b, NUM_CLASSES), lambda i: (0, 0)),
                 pl.BlockSpec((b, NUM_CLASSES), lambda i: (0, 0)))
    return pl.pallas_call(
        kernel,
        grid=(1,),
        in_specs=in_specs,
        out_specs=out_specs,
        out_shape=out_shape,
        compiler_params=pltpu.CompilerParams(dimension_semantics=("arbitrary",)),
    )(*inputs)


# ---------------------------------- main ------------------------------------
if __name__ == "__main__":
    key = jax.random.PRNGKey(0)
    kp, ka, kskl = jax.random.split(key, 3)
    params = init_params(kp)
    acc_data = jax.random.normal(ka, (B, ACC_FRAMES, ACC_COORDS), jnp.float32)
    skl_data = jax.random.normal(kskl, (B, MOCAP_FRAMES, NUM_JOINTS, IN_CHANS), jnp.float32)

    fwd = jax.jit(mm_transformer_forward)
    feat, logits, log_probs = fwd(params, acc_data, skl_data)
    jax.block_until_ready((feat, logits, log_probs))

    assert feat.shape == (B, EMBED)
    assert logits.shape == (B, NUM_CLASSES)
    assert log_probs.shape == (B, NUM_CLASSES)
    assert bool(jnp.all(jnp.isfinite(feat)))
    assert bool(jnp.all(jnp.isfinite(log_probs)))
    print("KERNEL_OK")
</pallas_src>

<mosaic_0001>
module attributes {stable_mosaic.version = 11 : i64} {
  func.func @kernel(%arg0: i32, %arg1: memref<16x375xf32, #tpu.memory_space<vmem>>, %arg2: memref<16x6xf32, #tpu.memory_space<vmem>>, %arg3: memref<1x32xf32, #tpu.memory_space<vmem>>, %arg4: memref<6x32xf32, #tpu.memory_space<vmem>>, %arg5: memref<2x32xf32, #tpu.memory_space<vmem>>, %arg6: memref<18x32xf32, #tpu.memory_space<vmem>>, %arg7: memref<18x32xf32, #tpu.memory_space<vmem>>, %arg8: memref<18x18xf32, #tpu.memory_space<vmem>>, %arg9: memref<4x1x64xf32, #tpu.memory_space<vmem>>, %arg10: memref<4x32x64xf32, #tpu.memory_space<vmem>>, %arg11: memref<4x1x32xf32, #tpu.memory_space<vmem>>, %arg12: memref<4x64x32xf32, #tpu.memory_space<vmem>>, %arg13: memref<4x4x32xf32, #tpu.memory_space<vmem>>, %arg14: memref<4x1x32xf32, #tpu.memory_space<vmem>>, %arg15: memref<4x32x32xf32, #tpu.memory_space<vmem>>, %arg16: memref<4x1x96xf32, #tpu.memory_space<vmem>>, %arg17: memref<4x32x96xf32, #tpu.memory_space<vmem>>, %arg18: memref<1x11xf32, #tpu.memory_space<vmem>>, %arg19: memref<2x32xf32, #tpu.memory_space<vmem>>, %arg20: memref<32x11xf32, #tpu.memory_space<vmem>>, %arg21: memref<18x16xf32, #tpu.memory_space<vmem>>, %arg22: memref<18x16xf32, #tpu.memory_space<vmem>>, %arg23: memref<2x18xf32, #tpu.memory_space<vmem>>, %arg24: memref<1x255xf32, #tpu.memory_space<vmem>>, %arg25: memref<375x255xf32, #tpu.memory_space<vmem>>, %arg26: memref<1x45xf32, #tpu.memory_space<vmem>>, %arg27: memref<255x45xf32, #tpu.memory_space<vmem>>, %arg28: memref<1x352xf32, #tpu.memory_space<vmem>>, %arg29: memref<3x45x352xf32, #tpu.memory_space<vmem>>, %arg30: memref<1x176xf32, #tpu.memory_space<vmem>>, %arg31: memref<3x352x176xf32, #tpu.memory_space<vmem>>, %arg32: memref<1x32xf32, #tpu.memory_space<vmem>>, %arg33: memref<3x176x32xf32, #tpu.memory_space<vmem>>, %arg34: memref<32x16xf32, #tpu.memory_space<vmem>>, %arg35: memref<2x32xf32, #tpu.memory_space<vmem>>, %arg36: memref<2x32xf32, #tpu.memory_space<vmem>>, %arg37: memref<2x11xf32, #tpu.memory_space<vmem>>, %arg38: memref<2x11xf32, #tpu.memory_space<vmem>>) attributes {dimension_semantics = [#tpu.dimension_semantics<arbitrary>], iteration_bounds = array<i64: 1>, scalar_prefetch = 0 : i64, scratch_operands = 0 : i64, tpu.core_type = #tpu.core_type<tc>, window_params = [{pipeline_mode = #tpu.pipeline_mode<synchronous>, transform_indices = @transform_0, window_bounds = array<i64: 16, 375>}, {pipeline_mode = #tpu.pipeline_mode<synchronous>, transform_indices = @transform_1, window_bounds = array<i64: 16, 6>}, {pipeline_mode = #tpu.pipeline_mode<synchronous>, transform_indices = @transform_2, window_bounds = array<i64: 1, 32>}, {pipeline_mode = #tpu.pipeline_mode<synchronous>, transform_indices = @transform_3, window_bounds = array<i64: 6, 32>}, {pipeline_mode = #tpu.pipeline_mode<synchronous>, transform_indices = @transform_4, window_bounds = array<i64: 2, 32>}, {pipeline_mode = #tpu.pipeline_mode<synchronous>, transform_indices = @transform_5, window_bounds = array<i64: 18, 32>}, {pipeline_mode = #tpu.pipeline_mode<synchronous>, transform_indices = @transform_6, window_bounds = array<i64: 18, 32>}, {pipeline_mode = #tpu.pipeline_mode<synchronous>, transform_indices = @transform_7, window_bounds = array<i64: 18, 18>}, {pipeline_mode = #tpu.pipeline_mode<synchronous>, transform_indices = @transform_8, window_bounds = array<i64: 4, 1, 64>}, {pipeline_mode = #tpu.pipeline_mode<synchronous>, transform_indices = @transform_9, window_bounds = array<i64: 4, 32, 64>}, {pipeline_mode = #tpu.pipeline_mode<synchronous>, transform_indices = @transform_10, window_bounds = array<i64: 4, 1, 32>}, {pipeline_mode = #tpu.pipeline_mode<synchronous>, transform_indices = @transform_11, window_bounds = array<i64: 4, 64, 32>}, {pipeline_mode = #tpu.pipeline_mode<synchronous>, transform_indices = @transform_12, window_bounds = array<i64: 4, 4, 32>}, {pipeline_mode = #tpu.pipeline_mode<synchronous>, transform_indices = @transform_13, window_bounds = array<i64: 4, 1, 32>}, {pipeline_mode = #tpu.pipeline_mode<synchronous>, transform_indices = @transform_14, window_bounds = array<i64: 4, 32, 32>}, {pipeline_mode = #tpu.pipeline_mode<synchronous>, transform_indices = @transform_15, window_bounds = array<i64: 4, 1, 96>}, {pipeline_mode = #tpu.pipeline_mode<synchronous>, transform_indices = @transform_16, window_bounds = array<i64: 4, 32, 96>}, {pipeline_mode = #tpu.pipeline_mode<synchronous>, transform_indices = @transform_17, window_bounds = array<i64: 1, 11>}, {pipeline_mode = #tpu.pipeline_mode<synchronous>, transform_indices = @transform_18, window_bounds = array<i64: 2, 32>}, {pipeline_mode = #tpu.pipeline_mode<synchronous>, transform_indices = @transform_19, window_bounds = array<i64: 32, 11>}, {pipeline_mode = #tpu.pipeline_mode<synchronous>, transform_indices = @transform_20, window_bounds = array<i64: 18, 16>}, {pipeline_mode = #tpu.pipeline_mode<synchronous>, transform_indices = @transform_21, window_bounds = array<i64: 18, 16>}, {pipeline_mode = #tpu.pipeline_mode<synchronous>, transform_indices = @transform_22, window_bounds = array<i64: 2, 18>}, {pipeline_mode = #tpu.pipeline_mode<synchronous>, transform_indices = @transform_23, window_bounds = array<i64: 1, 255>}, {pipeline_mode = #tpu.pipeline_mode<synchronous>, transform_indices = @transform_24, window_bounds = array<i64: 375, 255>}, {pipeline_mode = #tpu.pipeline_mode<synchronous>, transform_indices = @transform_25, window_bounds = array<i64: 1, 45>}, {pipeline_mode = #tpu.pipeline_mode<synchronous>, transform_indices = @transform_26, window_bounds = array<i64: 255, 45>}, {pipeline_mode = #tpu.pipeline_mode<synchronous>, transform_indices = @transform_27, window_bounds = array<i64: 1, 352>}, {pipeline_mode = #tpu.pipeline_mode<synchronous>, transform_indices = @transform_28, window_bounds = array<i64: 3, 45, 352>}, {pipeline_mode = #tpu.pipeline_mode<synchronous>, transform_indices = @transform_29, window_bounds = array<i64: 1, 176>}, {pipeline_mode = #tpu.pipeline_mode<synchronous>, transform_indices = @transform_30, window_bounds = array<i64: 3, 352, 176>}, {pipeline_mode = #tpu.pipeline_mode<synchronous>, transform_indices = @transform_31, window_bounds = array<i64: 1, 32>}, {pipeline_mode = #tpu.pipeline_mode<synchronous>, transform_indices = @transform_32, window_bounds = array<i64: 3, 176, 32>}, {pipeline_mode = #tpu.pipeline_mode<synchronous>, transform_indices = @transform_33, window_bounds = array<i64: 32, 16>}, {pipeline_mode = #tpu.pipeline_mode<synchronous>, transform_indices = @transform_34, window_bounds = array<i64: 2, 32>}, {pipeline_mode = #tpu.pipeline_mode<synchronous>, transform_indices = @transform_35, window_bounds = array<i64: 2, 32>}, {pipeline_mode = #tpu.pipeline_mode<synchronous>, transform_indices = @transform_36, window_bounds = array<i64: 2, 11>}, {pipeline_mode = #tpu.pipeline_mode<synchronous>, transform_indices = @transform_37, window_bounds = array<i64: 2, 11>}]} {
    %c0 = arith.constant 0 : index
    %c0_0 = arith.constant 0 : index
    %0 = vector.load %arg34[%c0, %c0_0] : memref<32x16xf32, #tpu.memory_space<vmem>>, vector<32x16xf32>
    %c0_1 = arith.constant 0 : index
    %c0_2 = arith.constant 0 : index
    %1 = vector.load %arg8[%c0_1, %c0_2] : memref<18x18xf32, #tpu.memory_space<vmem>>, vector<18x18xf32>
    %c0_3 = arith.constant 0 : index
    %c0_4 = arith.constant 0 : index
    %2 = vector.load %arg1[%c0_3, %c0_4] : memref<16x375xf32, #tpu.memory_space<vmem>>, vector<16x375xf32>
    %c0_5 = arith.constant 0 : index
    %c0_6 = arith.constant 0 : index
    %3 = vector.load %arg25[%c0_5, %c0_6] : memref<375x255xf32, #tpu.memory_space<vmem>>, vector<375x255xf32>
    %cst = arith.constant dense<0.000000e+00> : vector<16x255xf32>
    %4 = tpu.matmul %2, %3, %cst {dimension_numbers = #tpu.dot_dimension_numbers<[1], [0], [0], [1], [0, 0, 1, 1], [], []>} : vector<16x375xf32>, vector<375x255xf32>, vector<16x255xf32> -> vector<16x255xf32>
    %c0_7 = arith.constant 0 : index
    %c0_8 = arith.constant 0 : index
    %5 = vector.load %arg24[%c0_7, %c0_8] : memref<1x255xf32, #tpu.memory_space<vmem>>, vector<1x255xf32>
    %6 = vector.broadcast %5 : vector<1x255xf32> to vector<16x255xf32>
    %7 = arith.addf %4, %6 : vector<16x255xf32>
    %cst_9 = arith.constant 0.000000e+00 : f32
    %8 = vector.broadcast %cst_9 : f32 to vector<16x255xf32>
    %9 = arith.maximumf %7, %8 : vector<16x255xf32>
    %c0_10 = arith.constant 0 : index
    %c0_11 = arith.constant 0 : index
    %10 = vector.load %arg27[%c0_10, %c0_11] : memref<255x45xf32, #tpu.memory_space<vmem>>, vector<255x45xf32>
    %cst_12 = arith.constant dense<0.000000e+00> : vector<16x45xf32>
    %11 = tpu.matmul %9, %10, %cst_12 {dimension_numbers = #tpu.dot_dimension_numbers<[1], [0], [0], [1], [0, 0, 1, 1], [], []>} : vector<16x255xf32>, vector<255x45xf32>, vector<16x45xf32> -> vector<16x45xf32>
    %c0_13 = arith.constant 0 : index
    %c0_14 = arith.constant 0 : index
    %12 = vector.load %arg26[%c0_13, %c0_14] : memref<1x45xf32, #tpu.memory_space<vmem>>, vector<1x45xf32>
    %13 = vector.broadcast %12 : vector<1x45xf32> to vector<16x45xf32>
    %14 = arith.addf %11, %13 : vector<16x45xf32>
    %cst_15 = arith.constant 0.000000e+00 : f32
    %15 = vector.broadcast %cst_15 : f32 to vector<16x45xf32>
    %16 = arith.maximumf %14, %15 : vector<16x45xf32>
    %cst_16 = arith.constant dense<0.000000e+00> : vector<32x45xf32>
    %17 = tpu.matmul %0, %16, %cst_16 {dimension_numbers = #tpu.dot_dimension_numbers<[1], [0], [0], [1], [0, 0, 1, 1], [], []>} : vector<32x16xf32>, vector<16x45xf32>, vector<32x45xf32> -> vector<32x45xf32>
    %18 = vector.extract_strided_slice %17 {offsets = [0, 0], sizes = [16, 45], strides = [1, 1]} : vector<32x45xf32> to vector<16x45xf32>
    %19 = vector.extract_strided_slice %17 {offsets = [16, 0], sizes = [16, 45], strides = [1, 1]} : vector<32x45xf32> to vector<16x45xf32>
    %c0_17 = arith.constant 0 : index
    %c0_18 = arith.constant 0 : index
    %c0_19 = arith.constant 0 : index
    %20 = vector.load %arg29[%c0_17, %c0_18, %c0_19] : memref<3x45x352xf32, #tpu.memory_space<vmem>>, vector<1x45x352xf32>
    %21 = vector.shape_cast %20 : vector<1x45x352xf32> to vector<45x352xf32>
    %cst_20 = arith.constant dense<0.000000e+00> : vector<16x352xf32>
    %22 = tpu.matmul %18, %21, %cst_20 {dimension_numbers = #tpu.dot_dimension_numbers<[1], [0], [0], [1], [0, 0, 1, 1], [], []>} : vector<16x45xf32>, vector<45x352xf32>, vector<16x352xf32> -> vector<16x352xf32>
    %c1 = arith.constant 1 : index
    %c0_21 = arith.constant 0 : index
    %c0_22 = arith.constant 0 : index
    %23 = vector.load %arg29[%c1, %c0_21, %c0_22] : memref<3x45x352xf32, #tpu.memory_space<vmem>>, vector<1x45x352xf32>
    %24 = vector.shape_cast %23 : vector<1x45x352xf32> to vector<45x352xf32>
    %cst_23 = arith.constant dense<0.000000e+00> : vector<16x352xf32>
    %25 = tpu.matmul %16, %24, %cst_23 {dimension_numbers = #tpu.dot_dimension_numbers<[1], [0], [0], [1], [0, 0, 1, 1], [], []>} : vector<16x45xf32>, vector<45x352xf32>, vector<16x352xf32> -> vector<16x352xf32>
    %26 = arith.addf %22, %25 : vector<16x352xf32>
    %c2 = arith.constant 2 : index
    %c0_24 = arith.constant 0 : index
    %c0_25 = arith.constant 0 : index
    %27 = vector.load %arg29[%c2, %c0_24, %c0_25] : memref<3x45x352xf32, #tpu.memory_space<vmem>>, vector<1x45x352xf32>
    %28 = vector.shape_cast %27 : vector<1x45x352xf32> to vector<45x352xf32>
    %cst_26 = arith.constant dense<0.000000e+00> : vector<16x352xf32>
    %29 = tpu.matmul %19, %28, %cst_26 {dimension_numbers = #tpu.dot_dimension_numbers<[1], [0], [0], [1], [0, 0, 1, 1], [], []>} : vector<16x45xf32>, vector<45x352xf32>, vector<16x352xf32> -> vector<16x352xf32>
    %30 = arith.addf %26, %29 : vector<16x352xf32>
    %c0_27 = arith.constant 0 : index
    %c0_28 = arith.constant 0 : index
    %31 = vector.load %arg28[%c0_27, %c0_28] : memref<1x352xf32, #tpu.memory_space<vmem>>, vector<1x352xf32>
    %32 = vector.broadcast %31 : vector<1x352xf32> to vector<16x352xf32>
    %33 = arith.addf %30, %32 : vector<16x352xf32>
    %cst_29 = arith.constant 0.000000e+00 : f32
    %34 = vector.broadcast %cst_29 : f32 to vector<16x352xf32>
    %35 = arith.maximumf %33, %34 : vector<16x352xf32>
    %cst_30 = arith.constant dense<0.000000e+00> : vector<32x352xf32>
    %36 = tpu.matmul %0, %35, %cst_30 {dimension_numbers = #tpu.dot_dimension_numbers<[1], [0], [0], [1], [0, 0, 1, 1], [], []>} : vector<32x16xf32>, vector<16x352xf32>, vector<32x352xf32> -> vector<32x352xf32>
    %37 = vector.extract_strided_slice %36 {offsets = [0, 0], sizes = [16, 352], strides = [1, 1]} : vector<32x352xf32> to vector<16x352xf32>
    %38 = vector.extract_strided_slice %36 {offsets = [16, 0], sizes = [16, 352], strides = [1, 1]} : vector<32x352xf32> to vector<16x352xf32>
    %c0_31 = arith.constant 0 : index
    %c0_32 = arith.constant 0 : index
    %c0_33 = arith.constant 0 : index
    %39 = vector.load %arg31[%c0_31, %c0_32, %c0_33] : memref<3x352x176xf32, #tpu.memory_space<vmem>>, vector<1x352x176xf32>
    %40 = vector.shape_cast %39 : vector<1x352x176xf32> to vector<352x176xf32>
    %cst_34 = arith.constant dense<0.000000e+00> : vector<16x176xf32>
    %41 = tpu.matmul %37, %40, %cst_34 {dimension_numbers = #tpu.dot_dimension_numbers<[1], [0], [0], [1], [0, 0, 1, 1], [], []>} : vector<16x352xf32>, vector<352x176xf32>, vector<16x176xf32> -> vector<16x176xf32>
    %c1_35 = arith.constant 1 : index
    %c0_36 = arith.constant 0 : index
    %c0_37 = arith.constant 0 : index
    %42 = vector.load %arg31[%c1_35, %c0_36, %c0_37] : memref<3x352x176xf32, #tpu.memory_space<vmem>>, vector<1x352x176xf32>
    %43 = vector.shape_cast %42 : vector<1x352x176xf32> to vector<352x176xf32>
    %cst_38 = arith.constant dense<0.000000e+00> : vector<16x176xf32>
    %44 = tpu.matmul %35, %43, %cst_38 {dimension_numbers = #tpu.dot_dimension_numbers<[1], [0], [0], [1], [0, 0, 1, 1], [], []>} : vector<16x352xf32>, vector<352x176xf32>, vector<16x176xf32> -> vector<16x176xf32>
    %45 = arith.addf %41, %44 : vector<16x176xf32>
    %c2_39 = arith.constant 2 : index
    %c0_40 = arith.constant 0 : index
    %c0_41 = arith.constant 0 : index
    %46 = vector.load %arg31[%c2_39, %c0_40, %c0_41] : memref<3x352x176xf32, #tpu.memory_space<vmem>>, vector<1x352x176xf32>
    %47 = vector.shape_cast %46 : vector<1x352x176xf32> to vector<352x176xf32>
    %cst_42 = arith.constant dense<0.000000e+00> : vector<16x176xf32>
    %48 = tpu.matmul %38, %47, %cst_42 {dimension_numbers = #tpu.dot_dimension_numbers<[1], [0], [0], [1], [0, 0, 1, 1], [], []>} : vector<16x352xf32>, vector<352x176xf32>, vector<16x176xf32> -> vector<16x176xf32>
    %49 = arith.addf %45, %48 : vector<16x176xf32>
    %c0_43 = arith.constant 0 : index
    %c0_44 = arith.constant 0 : index
    %50 = vector.load %arg30[%c0_43, %c0_44] : memref<1x176xf32, #tpu.memory_space<vmem>>, vector<1x176xf32>
    %51 = vector.broadcast %50 : vector<1x176xf32> to vector<16x176xf32>
    %52 = arith.addf %49, %51 : vector<16x176xf32>
    %cst_45 = arith.constant 0.000000e+00 : f32
    %53 = vector.broadcast %cst_45 : f32 to vector<16x176xf32>
    %54 = arith.maximumf %52, %53 : vector<16x176xf32>
    %cst_46 = arith.constant dense<0.000000e+00> : vector<32x176xf32>
    %55 = tpu.matmul %0, %54, %cst_46 {dimension_numbers = #tpu.dot_dimension_numbers<[1], [0], [0], [1], [0, 0, 1, 1], [], []>} : vector<32x16xf32>, vector<16x176xf32>, vector<32x176xf32> -> vector<32x176xf32>
    %56 = vector.extract_strided_slice %55 {offsets = [0, 0], sizes = [16, 176], strides = [1, 1]} : vector<32x176xf32> to vector<16x176xf32>
    %57 = vector.extract_strided_slice %55 {offsets = [16, 0], sizes = [16, 176], strides = [1, 1]} : vector<32x176xf32> to vector<16x176xf32>
    %c0_47 = arith.constant 0 : index
    %c0_48 = arith.constant 0 : index
    %c0_49 = arith.constant 0 : index
    %58 = vector.load %arg33[%c0_47, %c0_48, %c0_49] : memref<3x176x32xf32, #tpu.memory_space<vmem>>, vector<1x176x32xf32>
    %59 = vector.shape_cast %58 : vector<1x176x32xf32> to vector<176x32xf32>
    %cst_50 = arith.constant dense<0.000000e+00> : vector<16x32xf32>
    %60 = tpu.matmul %56, %59, %cst_50 {dimension_numbers = #tpu.dot_dimension_numbers<[1], [0], [0], [1], [0, 0, 1, 1], [], []>} : vector<16x176xf32>, vector<176x32xf32>, vector<16x32xf32> -> vector<16x32xf32>
    %c1_51 = arith.constant 1 : index
    %c0_52 = arith.constant 0 : index
    %c0_53 = arith.constant 0 : index
    %61 = vector.load %arg33[%c1_51, %c0_52, %c0_53] : memref<3x176x32xf32, #tpu.memory_space<vmem>>, vector<1x176x32xf32>
    %62 = vector.shape_cast %61 : vector<1x176x32xf32> to vector<176x32xf32>
    %cst_54 = arith.constant dense<0.000000e+00> : vector<16x32xf32>
    %63 = tpu.matmul %54, %62, %cst_54 {dimension_numbers = #tpu.dot_dimension_numbers<[1], [0], [0], [1], [0, 0, 1, 1], [], []>} : vector<16x176xf32>, vector<176x32xf32>, vector<16x32xf32> -> vector<16x32xf32>
    %64 = arith.addf %60, %63 : vector<16x32xf32>
    %c2_55 = arith.constant 2 : index
    %c0_56 = arith.constant 0 : index
    %c0_57 = arith.constant 0 : index
    %65 = vector.load %arg33[%c2_55, %c0_56, %c0_57] : memref<3x176x32xf32, #tpu.memory_space<vmem>>, vector<1x176x32xf32>
    %66 = vector.shape_cast %65 : vector<1x176x32xf32> to vector<176x32xf32>
    %cst_58 = arith.constant dense<0.000000e+00> : vector<16x32xf32>
    %67 = tpu.matmul %57, %66, %cst_58 {dimension_numbers = #tpu.dot_dimension_numbers<[1], [0], [0], [1], [0, 0, 1, 1], [], []>} : vector<16x176xf32>, vector<176x32xf32>, vector<16x32xf32> -> vector<16x32xf32>
    %68 = arith.addf %64, %67 : vector<16x32xf32>
    %c0_59 = arith.constant 0 : index
    %c0_60 = arith.constant 0 : index
    %69 = vector.load %arg32[%c0_59, %c0_60] : memref<1x32xf32, #tpu.memory_space<vmem>>, vector<1x32xf32>
    %70 = vector.broadcast %69 : vector<1x32xf32> to vector<16x32xf32>
    %71 = arith.addf %68, %70 : vector<16x32xf32>
    %cst_61 = arith.constant 0.000000e+00 : f32
    %72 = vector.broadcast %cst_61 : f32 to vector<16x32xf32>
    %73 = arith.maximumf %71, %72 : vector<16x32xf32>
    %c0_62 = arith.constant 0 : index
    %c0_63 = arith.constant 0 : index
    %74 = vector.load %arg2[%c0_62, %c0_63] : memref<16x6xf32, #tpu.memory_space<vmem>>, vector<16x6xf32>
    %c0_64 = arith.constant 0 : index
    %c0_65 = arith.constant 0 : index
    %75 = vector.load %arg4[%c0_64, %c0_65] : memref<6x32xf32, #tpu.memory_space<vmem>>, vector<6x32xf32>
    %cst_66 = arith.constant dense<0.000000e+00> : vector<16x32xf32>
    %76 = tpu.matmul %74, %75, %cst_66 {dimension_numbers = #tpu.dot_dimension_numbers<[1], [0], [0], [1], [0, 0, 1, 1], [], []>} : vector<16x6xf32>, vector<6x32xf32>, vector<16x32xf32> -> vector<16x32xf32>
    %c0_67 = arith.constant 0 : index
    %c0_68 = arith.constant 0 : index
    %77 = vector.load %arg3[%c0_67, %c0_68] : memref<1x32xf32, #tpu.memory_space<vmem>>, vector<1x32xf32>
    %78 = vector.broadcast %77 : vector<1x32xf32> to vector<16x32xf32>
    %79 = arith.addf %76, %78 : vector<16x32xf32>
    %cst_69 = arith.constant 0.000000e+00 : f32
    %80 = vector.broadcast %cst_69 : f32 to vector<16x32xf32>
    %81 = arith.maximumf %79, %80 : vector<16x32xf32>
    %c0_70 = arith.constant 0 : index
    %c0_71 = arith.constant 0 : index
    %82 = vector.load %arg21[%c0_70, %c0_71] : memref<18x16xf32, #tpu.memory_space<vmem>>, vector<18x16xf32>
    %cst_72 = arith.constant dense<0.000000e+00> : vector<18x32xf32>
    %83 = tpu.matmul %82, %81, %cst_72 {dimension_numbers = #tpu.dot_dimension_numbers<[1], [0], [0], [1], [0, 0, 1, 1], [], []>} : vector<18x16xf32>, vector<16x32xf32>, vector<18x32xf32> -> vector<18x32xf32>
    %c0_73 = arith.constant 0 : index
    %c0_74 = arith.constant 0 : index
    %84 = vector.load %arg6[%c0_73, %c0_74] : memref<18x32xf32, #tpu.memory_space<vmem>>, vector<18x32xf32>
    %85 = arith.addf %83, %84 : vector<18x32xf32>
    %c0_75 = arith.constant 0 : index
    %c0_76 = arith.constant 0 : index
    %c0_77 = arith.constant 0 : index
    %86 = vector.load %arg13[%c0_75, %c0_76, %c0_77] : memref<4x4x32xf32, #tpu.memory_space<vmem>>, vector<1x4x32xf32>
    %87 = vector.shape_cast %86 : vector<1x4x32xf32> to vector<4x32xf32>
    %88 = vector.extract_strided_slice %87 {offsets = [0, 0], sizes = [1, 32], strides = [1, 1]} : vector<4x32xf32> to vector<1x32xf32>
    %89 = vector.extract_strided_slice %87 {offsets = [1, 0], sizes = [1, 32], strides = [1, 1]} : vector<4x32xf32> to vector<1x32xf32>
    %cst_78 = arith.constant dense<0.000000e+00> : vector<18xf32>
    %90 = vector.multi_reduction <add>, %85, %cst_78 [1] : vector<18x32xf32> to vector<18xf32>
    %91 = vector.shape_cast %90 : vector<18xf32> to vector<18x1xf32>
    %cst_79 = arith.constant 3.200000e+01 : f32
    %92 = vector.broadcast %cst_79 : f32 to vector<18x1xf32>
    %93 = arith.divf %91, %92 : vector<18x1xf32>
    %94 = vector.broadcast %93 : vector<18x1xf32> to vector<18x32xf32>
    %95 = arith.subf %85, %94 : vector<18x32xf32>
    %96 = arith.mulf %95, %95 : vector<18x32xf32>
    %cst_80 = arith.constant dense<0.000000e+00> : vector<18xf32>
    %97 = vector.multi_reduction <add>, %96, %cst_80 [1] : vector<18x32xf32> to vector<18xf32>
    %98 = vector.shape_cast %97 : vector<18xf32> to vector<18x1xf32>
    %cst_81 = arith.constant 3.200000e+01 : f32
    %99 = vector.broadcast %cst_81 : f32 to vector<18x1xf32>
    %100 = arith.divf %98, %99 : vector<18x1xf32>
    %cst_82 = arith.constant 9.99999997E-7 : f32
    %101 = vector.broadcast %cst_82 : f32 to vector<18x1xf32>
    %102 = arith.addf %100, %101 : vector<18x1xf32>
    %103 = math.rsqrt %102 : vector<18x1xf32>
    %104 = vector.broadcast %103 : vector<18x1xf32> to vector<18x32xf32>
    %105 = arith.mulf %95, %104 : vector<18x32xf32>
    %106 = vector.broadcast %88 : vector<1x32xf32> to vector<18x32xf32>
    %107 = arith.mulf %105, %106 : vector<18x32xf32>
    %108 = vector.broadcast %89 : vector<1x32xf32> to vector<18x32xf32>
    %109 = arith.addf %107, %108 : vector<18x32xf32>
    %c0_83 = arith.constant 0 : index
    %c0_84 = arith.constant 0 : index
    %c0_85 = arith.constant 0 : index
    %110 = vector.load %arg17[%c0_83, %c0_84, %c0_85] : memref<4x32x96xf32, #tpu.memory_space<vmem>>, vector<1x32x96xf32>
    %111 = vector.shape_cast %110 : vector<1x32x96xf32> to vector<32x96xf32>
    %cst_86 = arith.constant dense<0.000000e+00> : vector<18x96xf32>
    %112 = tpu.matmul %109, %111, %cst_86 {dimension_numbers = #tpu.dot_dimension_numbers<[1], [0], [0], [1], [0, 0, 1, 1], [], []>} : vector<18x32xf32>, vector<32x96xf32>, vector<18x96xf32> -> vector<18x96xf32>
    %c0_87 = arith.constant 0 : index
    %c0_88 = arith.constant 0 : index
    %c0_89 = arith.constant 0 : index
    %113 = vector.load %arg16[%c0_87, %c0_88, %c0_89] : memref<4x1x96xf32, #tpu.memory_space<vmem>>, vector<1x1x96xf32>
    %114 = vector.shape_cast %113 : vector<1x1x96xf32> to vector<1x96xf32>
    %115 = vector.broadcast %114 : vector<1x96xf32> to vector<18x96xf32>
    %116 = arith.addf %112, %115 : vector<18x96xf32>
    %117 = vector.extract_strided_slice %116 {offsets = [0, 0], sizes = [18, 8], strides = [1, 1]} : vector<18x96xf32> to vector<18x8xf32>
    %118 = vector.extract_strided_slice %116 {offsets = [0, 32], sizes = [18, 8], strides = [1, 1]} : vector<18x96xf32> to vector<18x8xf32>
    %119 = vector.extract_strided_slice %116 {offsets = [0, 64], sizes = [18, 8], strides = [1, 1]} : vector<18x96xf32> to vector<18x8xf32>
    %cst_90 = arith.constant dense<0.000000e+00> : vector<18x18xf32>
    %120 = tpu.matmul %117, %118, %cst_90 {dimension_numbers = #tpu.dot_dimension_numbers<[1], [1], [0], [0], [0, 0, 1, 0], [], []>} : vector<18x8xf32>, vector<18x8xf32>, vector<18x18xf32> -> vector<18x18xf32>
    %121 = arith.addf %120, %1 : vector<18x18xf32>
    %cst_91 = arith.constant dense<0xFF800000> : vector<18xf32>
    %122 = vector.multi_reduction <maximumf>, %121, %cst_91 [1] : vector<18x18xf32> to vector<18xf32>
    %123 = vector.shape_cast %122 : vector<18xf32> to vector<18x1xf32>
    %124 = vector.broadcast %123 : vector<18x1xf32> to vector<18x18xf32>
    %125 = arith.subf %121, %124 : vector<18x18xf32>
    %126 = math.exp %125 : vector<18x18xf32>
    %cst_92 = arith.constant dense<0.000000e+00> : vector<18xf32>
    %127 = vector.multi_reduction <add>, %126, %cst_92 [1] : vector<18x18xf32> to vector<18xf32>
    %128 = vector.shape_cast %127 : vector<18xf32> to vector<18x1xf32>
    %129 = tpu.reciprocal %128 {approx = true} : vector<18x1xf32> -> vector<18x1xf32>
    %130 = vector.broadcast %129 : vector<18x1xf32> to vector<18x18xf32>
    %131 = arith.mulf %126, %130 : vector<18x18xf32>
    %cst_93 = arith.constant dense<0.000000e+00> : vector<18x8xf32>
    %132 = tpu.matmul %131, %119, %cst_93 {dimension_numbers = #tpu.dot_dimension_numbers<[1], [0], [0], [1], [0, 0, 1, 1], [], []>} : vector<18x18xf32>, vector<18x8xf32>, vector<18x8xf32> -> vector<18x8xf32>
    %133 = vector.extract_strided_slice %116 {offsets = [0, 8], sizes = [18, 8], strides = [1, 1]} : vector<18x96xf32> to vector<18x8xf32>
    %134 = vector.extract_strided_slice %116 {offsets = [0, 40], sizes = [18, 8], strides = [1, 1]} : vector<18x96xf32> to vector<18x8xf32>
    %135 = vector.extract_strided_slice %116 {offsets = [0, 72], sizes = [18, 8], strides = [1, 1]} : vector<18x96xf32> to vector<18x8xf32>
    %cst_94 = arith.constant dense<0.000000e+00> : vector<18x18xf32>
    %136 = tpu.matmul %133, %134, %cst_94 {dimension_numbers = #tpu.dot_dimension_numbers<[1], [1], [0], [0], [0, 0, 1, 0], [], []>} : vector<18x8xf32>, vector<18x8xf32>, vector<18x18xf32> -> vector<18x18xf32>
    %137 = arith.addf %136, %1 : vector<18x18xf32>
    %cst_95 = arith.constant dense<0xFF800000> : vector<18xf32>
    %138 = vector.multi_reduction <maximumf>, %137, %cst_95 [1] : vector<18x18xf32> to vector<18xf32>
    %139 = vector.shape_cast %138 : vector<18xf32> to vector<18x1xf32>
    %140 = vector.broadcast %139 : vector<18x1xf32> to vector<18x18xf32>
    %141 = arith.subf %137, %140 : vector<18x18xf32>
    %142 = math.exp %141 : vector<18x18xf32>
    %cst_96 = arith.constant dense<0.000000e+00> : vector<18xf32>
    %143 = vector.multi_reduction <add>, %142, %cst_96 [1] : vector<18x18xf32> to vector<18xf32>
    %144 = vector.shape_cast %143 : vector<18xf32> to vector<18x1xf32>
    %145 = tpu.reciprocal %144 {approx = true} : vector<18x1xf32> -> vector<18x1xf32>
    %146 = vector.broadcast %145 : vector<18x1xf32> to vector<18x18xf32>
    %147 = arith.mulf %142, %146 : vector<18x18xf32>
    %cst_97 = arith.constant dense<0.000000e+00> : vector<18x8xf32>
    %148 = tpu.matmul %147, %135, %cst_97 {dimension_numbers = #tpu.dot_dimension_numbers<[1], [0], [0], [1], [0, 0, 1, 1], [], []>} : vector<18x18xf32>, vector<18x8xf32>, vector<18x8xf32> -> vector<18x8xf32>
    %149 = vector.extract_strided_slice %116 {offsets = [0, 16], sizes = [18, 8], strides = [1, 1]} : vector<18x96xf32> to vector<18x8xf32>
    %150 = vector.extract_strided_slice %116 {offsets = [0, 48], sizes = [18, 8], strides = [1, 1]} : vector<18x96xf32> to vector<18x8xf32>
    %151 = vector.extract_strided_slice %116 {offsets = [0, 80], sizes = [18, 8], strides = [1, 1]} : vector<18x96xf32> to vector<18x8xf32>
    %cst_98 = arith.constant dense<0.000000e+00> : vector<18x18xf32>
    %152 = tpu.matmul %149, %150, %cst_98 {dimension_numbers = #tpu.dot_dimension_numbers<[1], [1], [0], [0], [0, 0, 1, 0], [], []>} : vector<18x8xf32>, vector<18x8xf32>, vector<18x18xf32> -> vector<18x18xf32>
    %153 = arith.addf %152, %1 : vector<18x18xf32>
    %cst_99 = arith.constant dense<0xFF800000> : vector<18xf32>
    %154 = vector.multi_reduction <maximumf>, %153, %cst_99 [1] : vector<18x18xf32> to vector<18xf32>
    %155 = vector.shape_cast %154 : vector<18xf32> to vector<18x1xf32>
    %156 = vector.broadcast %155 : vector<18x1xf32> to vector<18x18xf32>
    %157 = arith.subf %153, %156 : vector<18x18xf32>
    %158 = math.exp %157 : vector<18x18xf32>
    %cst_100 = arith.constant dense<0.000000e+00> : vector<18xf32>
    %159 = vector.multi_reduction <add>, %158, %cst_100 [1] : vector<18x18xf32> to vector<18xf32>
    %160 = vector.shape_cast %159 : vector<18xf32> to vector<18x1xf32>
    %161 = tpu.reciprocal %160 {approx = true} : vector<18x1xf32> -> vector<18x1xf32>
    %162 = vector.broadcast %161 : vector<18x1xf32> to vector<18x18xf32>
    %163 = arith.mulf %158, %162 : vector<18x18xf32>
    %cst_101 = arith.constant dense<0.000000e+00> : vector<18x8xf32>
    %164 = tpu.matmul %163, %151, %cst_101 {dimension_numbers = #tpu.dot_dimension_numbers<[1], [0], [0], [1], [0, 0, 1, 1], [], []>} : vector<18x18xf32>, vector<18x8xf32>, vector<18x8xf32> -> vector<18x8xf32>
    %165 = vector.extract_strided_slice %116 {offsets = [0, 24], sizes = [18, 8], strides = [1, 1]} : vector<18x96xf32> to vector<18x8xf32>
    %166 = vector.extract_strided_slice %116 {offsets = [0, 56], sizes = [18, 8], strides = [1, 1]} : vector<18x96xf32> to vector<18x8xf32>
    %167 = vector.extract_strided_slice %116 {offsets = [0, 88], sizes = [18, 8], strides = [1, 1]} : vector<18x96xf32> to vector<18x8xf32>
    %cst_102 = arith.constant dense<0.000000e+00> : vector<18x18xf32>
    %168 = tpu.matmul %165, %166, %cst_102 {dimension_numbers = #tpu.dot_dimension_numbers<[1], [1], [0], [0], [0, 0, 1, 0], [], []>} : vector<18x8xf32>, vector<18x8xf32>, vector<18x18xf32> -> vector<18x18xf32>
    %169 = arith.addf %168, %1 : vector<18x18xf32>
    %cst_103 = arith.constant dense<0xFF800000> : vector<18xf32>
    %170 = vector.multi_reduction <maximumf>, %169, %cst_103 [1] : vector<18x18xf32> to vector<18xf32>
    %171 = vector.shape_cast %170 : vector<18xf32> to vector<18x1xf32>
    %172 = vector.broadcast %171 : vector<18x1xf32> to vector<18x18xf32>
    %173 = arith.subf %169, %172 : vector<18x18xf32>
    %174 = math.exp %173 : vector<18x18xf32>
    %cst_104 = arith.constant dense<0.000000e+00> : vector<18xf32>
    %175 = vector.multi_reduction <add>, %174, %cst_104 [1] : vector<18x18xf32> to vector<18xf32>
    %176 = vector.shape_cast %175 : vector<18xf32> to vector<18x1xf32>
    %177 = tpu.reciprocal %176 {approx = true} : vector<18x1xf32> -> vector<18x1xf32>
    %178 = vector.broadcast %177 : vector<18x1xf32> to vector<18x18xf32>
    %179 = arith.mulf %174, %178 : vector<18x18xf32>
    %cst_105 = arith.constant dense<0.000000e+00> : vector<18x8xf32>
    %180 = tpu.matmul %179, %167, %cst_105 {dimension_numbers = #tpu.dot_dimension_numbers<[1], [0], [0], [1], [0, 0, 1, 1], [], []>} : vector<18x18xf32>, vector<18x8xf32>, vector<18x8xf32> -> vector<18x8xf32>
    %181 = tpu.concatenate %132, %148, %164, %180 in 1 : vector<18x8xf32>, vector<18x8xf32>, vector<18x8xf32>, vector<18x8xf32> -> vector<18x32xf32>
    %c0_106 = arith.constant 0 : index
    %c0_107 = arith.constant 0 : index
    %c0_108 = arith.constant 0 : index
    %182 = vector.load %arg15[%c0_106, %c0_107, %c0_108] : memref<4x32x32xf32, #tpu.memory_space<vmem>>, vector<1x32x32xf32>
    %183 = vector.shape_cast %182 : vector<1x32x32xf32> to vector<32x32xf32>
    %cst_109 = arith.constant dense<0.000000e+00> : vector<18x32xf32>
    %184 = tpu.matmul %181, %183, %cst_109 {dimension_numbers = #tpu.dot_dimension_numbers<[1], [0], [0], [1], [0, 0, 1, 1], [], []>} : vector<18x32xf32>, vector<32x32xf32>, vector<18x32xf32> -> vector<18x32xf32>
    %185 = arith.addf %85, %184 : vector<18x32xf32>
    %c0_110 = arith.constant 0 : index
    %c0_111 = arith.constant 0 : index
    %c0_112 = arith.constant 0 : index
    %186 = vector.load %arg14[%c0_110, %c0_111, %c0_112] : memref<4x1x32xf32, #tpu.memory_space<vmem>>, vector<1x1x32xf32>
    %187 = vector.shape_cast %186 : vector<1x1x32xf32> to vector<1x32xf32>
    %188 = vector.broadcast %187 : vector<1x32xf32> to vector<18x32xf32>
    %189 = arith.addf %185, %188 : vector<18x32xf32>
    %190 = vector.extract_strided_slice %87 {offsets = [2, 0], sizes = [1, 32], strides = [1, 1]} : vector<4x32xf32> to vector<1x32xf32>
    %191 = vector.extract_strided_slice %87 {offsets = [3, 0], sizes = [1, 32], strides = [1, 1]} : vector<4x32xf32> to vector<1x32xf32>
    %cst_113 = arith.constant dense<0.000000e+00> : vector<18xf32>
    %192 = vector.multi_reduction <add>, %189, %cst_113 [1] : vector<18x32xf32> to vector<18xf32>
    %193 = vector.shape_cast %192 : vector<18xf32> to vector<18x1xf32>
    %cst_114 = arith.constant 3.200000e+01 : f32
    %194 = vector.broadcast %cst_114 : f32 to vector<18x1xf32>
    %195 = arith.divf %193, %194 : vector<18x1xf32>
    %196 = vector.broadcast %195 : vector<18x1xf32> to vector<18x32xf32>
    %197 = arith.subf %189, %196 : vector<18x32xf32>
    %198 = arith.mulf %197, %197 : vector<18x32xf32>
    %cst_115 = arith.constant dense<0.000000e+00> : vector<18xf32>
    %199 = vector.multi_reduction <add>, %198, %cst_115 [1] : vector<18x32xf32> to vector<18xf32>
    %200 = vector.shape_cast %199 : vector<18xf32> to vector<18x1xf32>
    %cst_116 = arith.constant 3.200000e+01 : f32
    %201 = vector.broadcast %cst_116 : f32 to vector<18x1xf32>
    %202 = arith.divf %200, %201 : vector<18x1xf32>
    %cst_117 = arith.constant 9.99999997E-7 : f32
    %203 = vector.broadcast %cst_117 : f32 to vector<18x1xf32>
    %204 = arith.addf %202, %203 : vector<18x1xf32>
    %205 = math.rsqrt %204 : vector<18x1xf32>
    %206 = vector.broadcast %205 : vector<18x1xf32> to vector<18x32xf32>
    %207 = arith.mulf %197, %206 : vector<18x32xf32>
    %208 = vector.broadcast %190 : vector<1x32xf32> to vector<18x32xf32>
    %209 = arith.mulf %207, %208 : vector<18x32xf32>
    %210 = vector.broadcast %191 : vector<1x32xf32> to vector<18x32xf32>
    %211 = arith.addf %209, %210 : vector<18x32xf32>
    %c0_118 = arith.constant 0 : index
    %c0_119 = arith.constant 0 : index
    %c0_120 = arith.constant 0 : index
    %212 = vector.load %arg10[%c0_118, %c0_119, %c0_120] : memref<4x32x64xf32, #tpu.memory_space<vmem>>, vector<1x32x64xf32>
    %213 = vector.shape_cast %212 : vector<1x32x64xf32> to vector<32x64xf32>
    %cst_121 = arith.constant dense<0.000000e+00> : vector<18x64xf32>
    %214 = tpu.matmul %211, %213, %cst_121 {dimension_numbers = #tpu.dot_dimension_numbers<[1], [0], [0], [1], [0, 0, 1, 1], [], []>} : vector<18x32xf32>, vector<32x64xf32>, vector<18x64xf32> -> vector<18x64xf32>
    %c0_122 = arith.constant 0 : index
    %c0_123 = arith.constant 0 : index
    %c0_124 = arith.constant 0 : index
    %215 = vector.load %arg9[%c0_122, %c0_123, %c0_124] : memref<4x1x64xf32, #tpu.memory_space<vmem>>, vector<1x1x64xf32>
    %216 = vector.shape_cast %215 : vector<1x1x64xf32> to vector<1x64xf32>
    %217 = vector.broadcast %216 : vector<1x64xf32> to vector<18x64xf32>
    %218 = arith.addf %214, %217 : vector<18x64xf32>
    %219 = arith.mulf %218, %218 : vector<18x64xf32>
    %220 = arith.mulf %218, %219 : vector<18x64xf32>
    %cst_125 = arith.constant 4.471500e-02 : f32
    %221 = vector.broadcast %cst_125 : f32 to vector<18x64xf32>
    %222 = arith.mulf %221, %220 : vector<18x64xf32>
    %223 = arith.addf %218, %222 : vector<18x64xf32>
    %cst_126 = arith.constant 0.797884583 : f32
    %224 = vector.broadcast %cst_126 : f32 to vector<18x64xf32>
    %225 = arith.mulf %224, %223 : vector<18x64xf32>
    %226 = math.tanh %225 : vector<18x64xf32>
    %cst_127 = arith.constant 1.000000e+00 : f32
    %227 = vector.broadcast %cst_127 : f32 to vector<18x64xf32>
    %228 = arith.addf %227, %226 : vector<18x64xf32>
    %cst_128 = arith.constant 5.000000e-01 : f32
    %229 = vector.broadcast %cst_128 : f32 to vector<18x64xf32>
    %230 = arith.mulf %229, %228 : vector<18x64xf32>
    %231 = arith.mulf %218, %230 : vector<18x64xf32>
    %c0_129 = arith.constant 0 : index
    %c0_130 = arith.constant 0 : index
    %c0_131 = arith.constant 0 : index
    %232 = vector.load %arg12[%c0_129, %c0_130, %c0_131] : memref<4x64x32xf32, #tpu.memory_space<vmem>>, vector<1x64x32xf32>
    %233 = vector.shape_cast %232 : vector<1x64x32xf32> to vector<64x32xf32>
    %cst_132 = arith.constant dense<0.000000e+00> : vector<18x32xf32>
    %234 = tpu.matmul %231, %233, %cst_132 {dimension_numbers = #tpu.dot_dimension_numbers<[1], [0], [0], [1], [0, 0, 1, 1], [], []>} : vector<18x64xf32>, vector<64x32xf32>, vector<18x32xf32> -> vector<18x32xf32>
    %235 = arith.addf %189, %234 : vector<18x32xf32>
    %c0_133 = arith.constant 0 : index
    %c0_134 = arith.constant 0 : index
    %c0_135 = arith.constant 0 : index
    %236 = vector.load %arg11[%c0_133, %c0_134, %c0_135] : memref<4x1x32xf32, #tpu.memory_space<vmem>>, vector<1x1x32xf32>
    %237 = vector.shape_cast %236 : vector<1x1x32xf32> to vector<1x32xf32>
    %238 = vector.broadcast %237 : vector<1x32xf32> to vector<18x32xf32>
    %239 = arith.addf %235, %238 : vector<18x32xf32>
    %c1_136 = arith.constant 1 : index
    %c0_137 = arith.constant 0 : index
    %c0_138 = arith.constant 0 : index
    %240 = vector.load %arg13[%c1_136, %c0_137, %c0_138] : memref<4x4x32xf32, #tpu.memory_space<vmem>>, vector<1x4x32xf32>
    %241 = vector.shape_cast %240 : vector<1x4x32xf32> to vector<4x32xf32>
    %242 = vector.extract_strided_slice %241 {offsets = [0, 0], sizes = [1, 32], strides = [1, 1]} : vector<4x32xf32> to vector<1x32xf32>
    %243 = vector.extract_strided_slice %241 {offsets = [1, 0], sizes = [1, 32], strides = [1, 1]} : vector<4x32xf32> to vector<1x32xf32>
    %cst_139 = arith.constant dense<0.000000e+00> : vector<18xf32>
    %244 = vector.multi_reduction <add>, %239, %cst_139 [1] : vector<18x32xf32> to vector<18xf32>
    %245 = vector.shape_cast %244 : vector<18xf32> to vector<18x1xf32>
    %cst_140 = arith.constant 3.200000e+01 : f32
    %246 = vector.broadcast %cst_140 : f32 to vector<18x1xf32>
    %247 = arith.divf %245, %246 : vector<18x1xf32>
    %248 = vector.broadcast %247 : vector<18x1xf32> to vector<18x32xf32>
    %249 = arith.subf %239, %248 : vector<18x32xf32>
    %250 = arith.mulf %249, %249 : vector<18x32xf32>
    %cst_141 = arith.constant dense<0.000000e+00> : vector<18xf32>
    %251 = vector.multi_reduction <add>, %250, %cst_141 [1] : vector<18x32xf32> to vector<18xf32>
    %252 = vector.shape_cast %251 : vector<18xf32> to vector<18x1xf32>
    %cst_142 = arith.constant 3.200000e+01 : f32
    %253 = vector.broadcast %cst_142 : f32 to vector<18x1xf32>
    %254 = arith.divf %252, %253 : vector<18x1xf32>
    %cst_143 = arith.constant 9.99999997E-7 : f32
    %255 = vector.broadcast %cst_143 : f32 to vector<18x1xf32>
    %256 = arith.addf %254, %255 : vector<18x1xf32>
    %257 = math.rsqrt %256 : vector<18x1xf32>
    %258 = vector.broadcast %257 : vector<18x1xf32> to vector<18x32xf32>
    %259 = arith.mulf %249, %258 : vector<18x32xf32>
    %260 = vector.broadcast %242 : vector<1x32xf32> to vector<18x32xf32>
    %261 = arith.mulf %259, %260 : vector<18x32xf32>
    %262 = vector.broadcast %243 : vector<1x32xf32> to vector<18x32xf32>
    %263 = arith.addf %261, %262 : vector<18x32xf32>
    %c1_144 = arith.constant 1 : index
    %c0_145 = arith.constant 0 : index
    %c0_146 = arith.constant 0 : index
    %264 = vector.load %arg17[%c1_144, %c0_145, %c0_146] : memref<4x32x96xf32, #tpu.memory_space<vmem>>, vector<1x32x96xf32>
    %265 = vector.shape_cast %264 : vector<1x32x96xf32> to vector<32x96xf32>
    %cst_147 = arith.constant dense<0.000000e+00> : vector<18x96xf32>
    %266 = tpu.matmul %263, %265, %cst_147 {dimension_numbers = #tpu.dot_dimension_numbers<[1], [0], [0], [1], [0, 0, 1, 1], [], []>} : vector<18x32xf32>, vector<32x96xf32>, vector<18x96xf32> -> vector<18x96xf32>
    %c1_148 = arith.constant 1 : index
    %c0_149 = arith.constant 0 : index
    %c0_150 = arith.constant 0 : index
    %267 = vector.load %arg16[%c1_148, %c0_149, %c0_150] : memref<4x1x96xf32, #tpu.memory_space<vmem>>, vector<1x1x96xf32>
    %268 = vector.shape_cast %267 : vector<1x1x96xf32> to vector<1x96xf32>
    %269 = vector.broadcast %268 : vector<1x96xf32> to vector<18x96xf32>
    %270 = arith.addf %266, %269 : vector<18x96xf32>
    %271 = vector.extract_strided_slice %270 {offsets = [0, 0], sizes = [18, 8], strides = [1, 1]} : vector<18x96xf32> to vector<18x8xf32>
    %272 = vector.extract_strided_slice %270 {offsets = [0, 32], sizes = [18, 8], strides = [1, 1]} : vector<18x96xf32> to vector<18x8xf32>
    %273 = vector.extract_strided_slice %270 {offsets = [0, 64], sizes = [18, 8], strides = [1, 1]} : vector<18x96xf32> to vector<18x8xf32>
    %cst_151 = arith.constant dense<0.000000e+00> : vector<18x18xf32>
    %274 = tpu.matmul %271, %272, %cst_151 {dimension_numbers = #tpu.dot_dimension_numbers<[1], [1], [0], [0], [0, 0, 1, 0], [], []>} : vector<18x8xf32>, vector<18x8xf32>, vector<18x18xf32> -> vector<18x18xf32>
    %275 = arith.addf %274, %1 : vector<18x18xf32>
    %cst_152 = arith.constant dense<0xFF800000> : vector<18xf32>
    %276 = vector.multi_reduction <maximumf>, %275, %cst_152 [1] : vector<18x18xf32> to vector<18xf32>
    %277 = vector.shape_cast %276 : vector<18xf32> to vector<18x1xf32>
    %278 = vector.broadcast %277 : vector<18x1xf32> to vector<18x18xf32>
    %279 = arith.subf %275, %278 : vector<18x18xf32>
    %280 = math.exp %279 : vector<18x18xf32>
    %cst_153 = arith.constant dense<0.000000e+00> : vector<18xf32>
    %281 = vector.multi_reduction <add>, %280, %cst_153 [1] : vector<18x18xf32> to vector<18xf32>
    %282 = vector.shape_cast %281 : vector<18xf32> to vector<18x1xf32>
    %283 = tpu.reciprocal %282 {approx = true} : vector<18x1xf32> -> vector<18x1xf32>
    %284 = vector.broadcast %283 : vector<18x1xf32> to vector<18x18xf32>
    %285 = arith.mulf %280, %284 : vector<18x18xf32>
    %cst_154 = arith.constant dense<0.000000e+00> : vector<18x8xf32>
    %286 = tpu.matmul %285, %273, %cst_154 {dimension_numbers = #tpu.dot_dimension_numbers<[1], [0], [0], [1], [0, 0, 1, 1], [], []>} : vector<18x18xf32>, vector<18x8xf32>, vector<18x8xf32> -> vector<18x8xf32>
    %287 = vector.extract_strided_slice %270 {offsets = [0, 8], sizes = [18, 8], strides = [1, 1]} : vector<18x96xf32> to vector<18x8xf32>
    %288 = vector.extract_strided_slice %270 {offsets = [0, 40], sizes = [18, 8], strides = [1, 1]} : vector<18x96xf32> to vector<18x8xf32>
    %289 = vector.extract_strided_slice %270 {offsets = [0, 72], sizes = [18, 8], strides = [1, 1]} : vector<18x96xf32> to vector<18x8xf32>
    %cst_155 = arith.constant dense<0.000000e+00> : vector<18x18xf32>
    %290 = tpu.matmul %287, %288, %cst_155 {dimension_numbers = #tpu.dot_dimension_numbers<[1], [1], [0], [0], [0, 0, 1, 0], [], []>} : vector<18x8xf32>, vector<18x8xf32>, vector<18x18xf32> -> vector<18x18xf32>
    %291 = arith.addf %290, %1 : vector<18x18xf32>
    %cst_156 = arith.constant dense<0xFF800000> : vector<18xf32>
    %292 = vector.multi_reduction <maximumf>, %291, %cst_156 [1] : vector<18x18xf32> to vector<18xf32>
    %293 = vector.shape_cast %292 : vector<18xf32> to vector<18x1xf32>
    %294 = vector.broadcast %293 : vector<18x1xf32> to vector<18x18xf32>
    %295 = arith.subf %291, %294 : vector<18x18xf32>
    %296 = math.exp %295 : vector<18x18xf32>
    %cst_157 = arith.constant dense<0.000000e+00> : vector<18xf32>
    %297 = vector.multi_reduction <add>, %296, %cst_157 [1] : vector<18x18xf32> to vector<18xf32>
    %298 = vector.shape_cast %297 : vector<18xf32> to vector<18x1xf32>
    %299 = tpu.reciprocal %298 {approx = true} : vector<18x1xf32> -> vector<18x1xf32>
    %300 = vector.broadcast %299 : vector<18x1xf32> to vector<18x18xf32>
    %301 = arith.mulf %296, %300 : vector<18x18xf32>
    %cst_158 = arith.constant dense<0.000000e+00> : vector<18x8xf32>
    %302 = tpu.matmul %301, %289, %cst_158 {dimension_numbers = #tpu.dot_dimension_numbers<[1], [0], [0], [1], [0, 0, 1, 1], [], []>} : vector<18x18xf32>, vector<18x8xf32>, vector<18x8xf32> -> vector<18x8xf32>
    %303 = vector.extract_strided_slice %270 {offsets = [0, 16], sizes = [18, 8], strides = [1, 1]} : vector<18x96xf32> to vector<18x8xf32>
    %304 = vector.extract_strided_slice %270 {offsets = [0, 48], sizes = [18, 8], strides = [1, 1]} : vector<18x96xf32> to vector<18x8xf32>
    %305 = vector.extract_strided_slice %270 {offsets = [0, 80], sizes = [18, 8], strides = [1, 1]} : vector<18x96xf32> to vector<18x8xf32>
    %cst_159 = arith.constant dense<0.000000e+00> : vector<18x18xf32>
    %306 = tpu.matmul %303, %304, %cst_159 {dimension_numbers = #tpu.dot_dimension_numbers<[1], [1], [0], [0], [0, 0, 1, 0], [], []>} : vector<18x8xf32>, vector<18x8xf32>, vector<18x18xf32> -> vector<18x18xf32>
    %307 = arith.addf %306, %1 : vector<18x18xf32>
    %cst_160 = arith.constant dense<0xFF800000> : vector<18xf32>
    %308 = vector.multi_reduction <maximumf>, %307, %cst_160 [1] : vector<18x18xf32> to vector<18xf32>
    %309 = vector.shape_cast %308 : vector<18xf32> to vector<18x1xf32>
    %310 = vector.broadcast %309 : vector<18x1xf32> to vector<18x18xf32>
    %311 = arith.subf %307, %310 : vector<18x18xf32>
    %312 = math.exp %311 : vector<18x18xf32>
    %cst_161 = arith.constant dense<0.000000e+00> : vector<18xf32>
    %313 = vector.multi_reduction <add>, %312, %cst_161 [1] : vector<18x18xf32> to vector<18xf32>
    %314 = vector.shape_cast %313 : vector<18xf32> to vector<18x1xf32>
    %315 = tpu.reciprocal %314 {approx = true} : vector<18x1xf32> -> vector<18x1xf32>
    %316 = vector.broadcast %315 : vector<18x1xf32> to vector<18x18xf32>
    %317 = arith.mulf %312, %316 : vector<18x18xf32>
    %cst_162 = arith.constant dense<0.000000e+00> : vector<18x8xf32>
    %318 = tpu.matmul %317, %305, %cst_162 {dimension_numbers = #tpu.dot_dimension_numbers<[1], [0], [0], [1], [0, 0, 1, 1], [], []>} : vector<18x18xf32>, vector<18x8xf32>, vector<18x8xf32> -> vector<18x8xf32>
    %319 = vector.extract_strided_slice %270 {offsets = [0, 24], sizes = [18, 8], strides = [1, 1]} : vector<18x96xf32> to vector<18x8xf32>
    %320 = vector.extract_strided_slice %270 {offsets = [0, 56], sizes = [18, 8], strides = [1, 1]} : vector<18x96xf32> to vector<18x8xf32>
    %321 = vector.extract_strided_slice %270 {offsets = [0, 88], sizes = [18, 8], strides = [1, 1]} : vector<18x96xf32> to vector<18x8xf32>
    %cst_163 = arith.constant dense<0.000000e+00> : vector<18x18xf32>
    %322 = tpu.matmul %319, %320, %cst_163 {dimension_numbers = #tpu.dot_dimension_numbers<[1], [1], [0], [0], [0, 0, 1, 0], [], []>} : vector<18x8xf32>, vector<18x8xf32>, vector<18x18xf32> -> vector<18x18xf32>
    %323 = arith.addf %322, %1 : vector<18x18xf32>
    %cst_164 = arith.constant dense<0xFF800000> : vector<18xf32>
    %324 = vector.multi_reduction <maximumf>, %323, %cst_164 [1] : vector<18x18xf32> to vector<18xf32>
    %325 = vector.shape_cast %324 : vector<18xf32> to vector<18x1xf32>
    %326 = vector.broadcast %325 : vector<18x1xf32> to vector<18x18xf32>
    %327 = arith.subf %323, %326 : vector<18x18xf32>
    %328 = math.exp %327 : vector<18x18xf32>
    %cst_165 = arith.constant dense<0.000000e+00> : vector<18xf32>
    %329 = vector.multi_reduction <add>, %328, %cst_165 [1] : vector<18x18xf32> to vector<18xf32>
    %330 = vector.shape_cast %329 : vector<18xf32> to vector<18x1xf32>
    %331 = tpu.reciprocal %330 {approx = true} : vector<18x1xf32> -> vector<18x1xf32>
    %332 = vector.broadcast %331 : vector<18x1xf32> to vector<18x18xf32>
    %333 = arith.mulf %328, %332 : vector<18x18xf32>
    %cst_166 = arith.constant dense<0.000000e+00> : vector<18x8xf32>
    %334 = tpu.matmul %333, %321, %cst_166 {dimension_numbers = #tpu.dot_dimension_numbers<[1], [0], [0], [1], [0, 0, 1, 1], [], []>} : vector<18x18xf32>, vector<18x8xf32>, vector<18x8xf32> -> vector<18x8xf32>
    %335 = tpu.concatenate %286, %302, %318, %334 in 1 : vector<18x8xf32>, vector<18x8xf32>, vector<18x8xf32>, vector<18x8xf32> -> vector<18x32xf32>
    %c1_167 = arith.constant 1 : index
    %c0_168 = arith.constant 0 : index
    %c0_169 = arith.constant 0 : index
    %336 = vector.load %arg15[%c1_167, %c0_168, %c0_169] : memref<4x32x32xf32, #tpu.memory_space<vmem>>, vector<1x32x32xf32>
    %337 = vector.shape_cast %336 : vector<1x32x32xf32> to vector<32x32xf32>
    %cst_170 = arith.constant dense<0.000000e+00> : vector<18x32xf32>
    %338 = tpu.matmul %335, %337, %cst_170 {dimension_numbers = #tpu.dot_dimension_numbers<[1], [0], [0], [1], [0, 0, 1, 1], [], []>} : vector<18x32xf32>, vector<32x32xf32>, vector<18x32xf32> -> vector<18x32xf32>
    %339 = arith.addf %239, %338 : vector<18x32xf32>
    %c1_171 = arith.constant 1 : index
    %c0_172 = arith.constant 0 : index
    %c0_173 = arith.constant 0 : index
    %340 = vector.load %arg14[%c1_171, %c0_172, %c0_173] : memref<4x1x32xf32, #tpu.memory_space<vmem>>, vector<1x1x32xf32>
    %341 = vector.shape_cast %340 : vector<1x1x32xf32> to vector<1x32xf32>
    %342 = vector.broadcast %341 : vector<1x32xf32> to vector<18x32xf32>
    %343 = arith.addf %339, %342 : vector<18x32xf32>
    %344 = vector.extract_strided_slice %241 {offsets = [2, 0], sizes = [1, 32], strides = [1, 1]} : vector<4x32xf32> to vector<1x32xf32>
    %345 = vector.extract_strided_slice %241 {offsets = [3, 0], sizes = [1, 32], strides = [1, 1]} : vector<4x32xf32> to vector<1x32xf32>
    %cst_174 = arith.constant dense<0.000000e+00> : vector<18xf32>
    %346 = vector.multi_reduction <add>, %343, %cst_174 [1] : vector<18x32xf32> to vector<18xf32>
    %347 = vector.shape_cast %346 : vector<18xf32> to vector<18x1xf32>
    %cst_175 = arith.constant 3.200000e+01 : f32
    %348 = vector.broadcast %cst_175 : f32 to vector<18x1xf32>
    %349 = arith.divf %347, %348 : vector<18x1xf32>
    %350 = vector.broadcast %349 : vector<18x1xf32> to vector<18x32xf32>
    %351 = arith.subf %343, %350 : vector<18x32xf32>
    %352 = arith.mulf %351, %351 : vector<18x32xf32>
    %cst_176 = arith.constant dense<0.000000e+00> : vector<18xf32>
    %353 = vector.multi_reduction <add>, %352, %cst_176 [1] : vector<18x32xf32> to vector<18xf32>
    %354 = vector.shape_cast %353 : vector<18xf32> to vector<18x1xf32>
    %cst_177 = arith.constant 3.200000e+01 : f32
    %355 = vector.broadcast %cst_177 : f32 to vector<18x1xf32>
    %356 = arith.divf %354, %355 : vector<18x1xf32>
    %cst_178 = arith.constant 9.99999997E-7 : f32
    %357 = vector.broadcast %cst_178 : f32 to vector<18x1xf32>
    %358 = arith.addf %356, %357 : vector<18x1xf32>
    %359 = math.rsqrt %358 : vector<18x1xf32>
    %360 = vector.broadcast %359 : vector<18x1xf32> to vector<18x32xf32>
    %361 = arith.mulf %351, %360 : vector<18x32xf32>
    %362 = vector.broadcast %344 : vector<1x32xf32> to vector<18x32xf32>
    %363 = arith.mulf %361, %362 : vector<18x32xf32>
    %364 = vector.broadcast %345 : vector<1x32xf32> to vector<18x32xf32>
    %365 = arith.addf %363, %364 : vector<18x32xf32>
    %c1_179 = arith.constant 1 : index
    %c0_180 = arith.constant 0 : index
    %c0_181 = arith.constant 0 : index
    %366 = vector.load %arg10[%c1_179, %c0_180, %c0_181] : memref<4x32x64xf32, #tpu.memory_space<vmem>>, vector<1x32x64xf32>
    %367 = vector.shape_cast %366 : vector<1x32x64xf32> to vector<32x64xf32>
    %cst_182 = arith.constant dense<0.000000e+00> : vector<18x64xf32>
    %368 = tpu.matmul %365, %367, %cst_182 {dimension_numbers = #tpu.dot_dimension_numbers<[1], [0], [0], [1], [0, 0, 1, 1], [], []>} : vector<18x32xf32>, vector<32x64xf32>, vector<18x64xf32> -> vector<18x64xf32>
    %c1_183 = arith.constant 1 : index
    %c0_184 = arith.constant 0 : index
    %c0_185 = arith.constant 0 : index
    %369 = vector.load %arg9[%c1_183, %c0_184, %c0_185] : memref<4x1x64xf32, #tpu.memory_space<vmem>>, vector<1x1x64xf32>
    %370 = vector.shape_cast %369 : vector<1x1x64xf32> to vector<1x64xf32>
    %371 = vector.broadcast %370 : vector<1x64xf32> to vector<18x64xf32>
    %372 = arith.addf %368, %371 : vector<18x64xf32>
    %373 = arith.mulf %372, %372 : vector<18x64xf32>
    %374 = arith.mulf %372, %373 : vector<18x64xf32>
    %cst_186 = arith.constant 4.471500e-02 : f32
    %375 = vector.broadcast %cst_186 : f32 to vector<18x64xf32>
    %376 = arith.mulf %375, %374 : vector<18x64xf32>
    %377 = arith.addf %372, %376 : vector<18x64xf32>
    %cst_187 = arith.constant 0.797884583 : f32
    %378 = vector.broadcast %cst_187 : f32 to vector<18x64xf32>
    %379 = arith.mulf %378, %377 : vector<18x64xf32>
    %380 = math.tanh %379 : vector<18x64xf32>
    %cst_188 = arith.constant 1.000000e+00 : f32
    %381 = vector.broadcast %cst_188 : f32 to vector<18x64xf32>
    %382 = arith.addf %381, %380 : vector<18x64xf32>
    %cst_189 = arith.constant 5.000000e-01 : f32
    %383 = vector.broadcast %cst_189 : f32 to vector<18x64xf32>
    %384 = arith.mulf %383, %382 : vector<18x64xf32>
    %385 = arith.mulf %372, %384 : vector<18x64xf32>
    %c1_190 = arith.constant 1 : index
    %c0_191 = arith.constant 0 : index
    %c0_192 = arith.constant 0 : index
    %386 = vector.load %arg12[%c1_190, %c0_191, %c0_192] : memref<4x64x32xf32, #tpu.memory_space<vmem>>, vector<1x64x32xf32>
    %387 = vector.shape_cast %386 : vector<1x64x32xf32> to vector<64x32xf32>
    %cst_193 = arith.constant dense<0.000000e+00> : vector<18x32xf32>
    %388 = tpu.matmul %385, %387, %cst_193 {dimension_numbers = #tpu.dot_dimension_numbers<[1], [0], [0], [1], [0, 0, 1, 1], [], []>} : vector<18x64xf32>, vector<64x32xf32>, vector<18x32xf32> -> vector<18x32xf32>
    %389 = arith.addf %343, %388 : vector<18x32xf32>
    %c1_194 = arith.constant 1 : index
    %c0_195 = arith.constant 0 : index
    %c0_196 = arith.constant 0 : index
    %390 = vector.load %arg11[%c1_194, %c0_195, %c0_196] : memref<4x1x32xf32, #tpu.memory_space<vmem>>, vector<1x1x32xf32>
    %391 = vector.shape_cast %390 : vector<1x1x32xf32> to vector<1x32xf32>
    %392 = vector.broadcast %391 : vector<1x32xf32> to vector<18x32xf32>
    %393 = arith.addf %389, %392 : vector<18x32xf32>
    %c0_197 = arith.constant 0 : index
    %c0_198 = arith.constant 0 : index
    %394 = vector.load %arg5[%c0_197, %c0_198] : memref<2x32xf32, #tpu.memory_space<vmem>>, vector<2x32xf32>
    %395 = vector.extract_strided_slice %394 {offsets = [0, 0], sizes = [1, 32], strides = [1, 1]} : vector<2x32xf32> to vector<1x32xf32>
    %396 = vector.extract_strided_slice %394 {offsets = [1, 0], sizes = [1, 32], strides = [1, 1]} : vector<2x32xf32> to vector<1x32xf32>
    %cst_199 = arith.constant dense<0.000000e+00> : vector<18xf32>
    %397 = vector.multi_reduction <add>, %393, %cst_199 [1] : vector<18x32xf32> to vector<18xf32>
    %398 = vector.shape_cast %397 : vector<18xf32> to vector<18x1xf32>
    %cst_200 = arith.constant 3.200000e+01 : f32
    %399 = vector.broadcast %cst_200 : f32 to vector<18x1xf32>
    %400 = arith.divf %398, %399 : vector<18x1xf32>
    %401 = vector.broadcast %400 : vector<18x1xf32> to vector<18x32xf32>
    %402 = arith.subf %393, %401 : vector<18x32xf32>
    %403 = arith.mulf %402, %402 : vector<18x32xf32>
    %cst_201 = arith.constant dense<0.000000e+00> : vector<18xf32>
    %404 = vector.multi_reduction <add>, %403, %cst_201 [1] : vector<18x32xf32> to vector<18xf32>
    %405 = vector.shape_cast %404 : vector<18xf32> to vector<18x1xf32>
    %cst_202 = arith.constant 3.200000e+01 : f32
    %406 = vector.broadcast %cst_202 : f32 to vector<18x1xf32>
    %407 = arith.divf %405, %406 : vector<18x1xf32>
    %cst_203 = arith.constant 9.99999997E-7 : f32
    %408 = vector.broadcast %cst_203 : f32 to vector<18x1xf32>
    %409 = arith.addf %407, %408 : vector<18x1xf32>
    %410 = math.rsqrt %409 : vector<18x1xf32>
    %411 = vector.broadcast %410 : vector<18x1xf32> to vector<18x32xf32>
    %412 = arith.mulf %402, %411 : vector<18x32xf32>
    %413 = vector.broadcast %395 : vector<1x32xf32> to vector<18x32xf32>
    %414 = arith.mulf %412, %413 : vector<18x32xf32>
    %415 = vector.broadcast %396 : vector<1x32xf32> to vector<18x32xf32>
    %416 = arith.addf %414, %415 : vector<18x32xf32>
    %c0_204 = arith.constant 0 : index
    %c0_205 = arith.constant 0 : index
    %417 = vector.load %arg22[%c0_204, %c0_205] : memref<18x16xf32, #tpu.memory_space<vmem>>, vector<18x16xf32>
    %cst_206 = arith.constant dense<0.000000e+00> : vector<18x32xf32>
    %418 = tpu.matmul %417, %73, %cst_206 {dimension_numbers = #tpu.dot_dimension_numbers<[1], [0], [0], [1], [0, 0, 1, 1], [], []>} : vector<18x16xf32>, vector<16x32xf32>, vector<18x32xf32> -> vector<18x32xf32>
    %c0_207 = arith.constant 0 : index
    %c0_208 = arith.constant 0 : index
    %419 = vector.load %arg7[%c0_207, %c0_208] : memref<18x32xf32, #tpu.memory_space<vmem>>, vector<18x32xf32>
    %420 = arith.addf %418, %419 : vector<18x32xf32>
    %c2_209 = arith.constant 2 : index
    %c0_210 = arith.constant 0 : index
    %c0_211 = arith.constant 0 : index
    %421 = vector.load %arg13[%c2_209, %c0_210, %c0_211] : memref<4x4x32xf32, #tpu.memory_space<vmem>>, vector<1x4x32xf32>
    %422 = vector.shape_cast %421 : vector<1x4x32xf32> to vector<4x32xf32>
    %423 = vector.extract_strided_slice %422 {offsets = [0, 0], sizes = [1, 32], strides = [1, 1]} : vector<4x32xf32> to vector<1x32xf32>
    %424 = vector.extract_strided_slice %422 {offsets = [1, 0], sizes = [1, 32], strides = [1, 1]} : vector<4x32xf32> to vector<1x32xf32>
    %cst_212 = arith.constant dense<0.000000e+00> : vector<18xf32>
    %425 = vector.multi_reduction <add>, %420, %cst_212 [1] : vector<18x32xf32> to vector<18xf32>
    %426 = vector.shape_cast %425 : vector<18xf32> to vector<18x1xf32>
    %cst_213 = arith.constant 3.200000e+01 : f32
    %427 = vector.broadcast %cst_213 : f32 to vector<18x1xf32>
    %428 = arith.divf %426, %427 : vector<18x1xf32>
    %429 = vector.broadcast %428 : vector<18x1xf32> to vector<18x32xf32>
    %430 = arith.subf %420, %429 : vector<18x32xf32>
    %431 = arith.mulf %430, %430 : vector<18x32xf32>
    %cst_214 = arith.constant dense<0.000000e+00> : vector<18xf32>
    %432 = vector.multi_reduction <add>, %431, %cst_214 [1] : vector<18x32xf32> to vector<18xf32>
    %433 = vector.shape_cast %432 : vector<18xf32> to vector<18x1xf32>
    %cst_215 = arith.constant 3.200000e+01 : f32
    %434 = vector.broadcast %cst_215 : f32 to vector<18x1xf32>
    %435 = arith.divf %433, %434 : vector<18x1xf32>
    %cst_216 = arith.constant 9.99999997E-7 : f32
    %436 = vector.broadcast %cst_216 : f32 to vector<18x1xf32>
    %437 = arith.addf %435, %436 : vector<18x1xf32>
    %438 = math.rsqrt %437 : vector<18x1xf32>
    %439 = vector.broadcast %438 : vector<18x1xf32> to vector<18x32xf32>
    %440 = arith.mulf %430, %439 : vector<18x32xf32>
    %441 = vector.broadcast %423 : vector<1x32xf32> to vector<18x32xf32>
    %442 = arith.mulf %440, %441 : vector<18x32xf32>
    %443 = vector.broadcast %424 : vector<1x32xf32> to vector<18x32xf32>
    %444 = arith.addf %442, %443 : vector<18x32xf32>
    %c2_217 = arith.constant 2 : index
    %c0_218 = arith.constant 0 : index
    %c0_219 = arith.constant 0 : index
    %445 = vector.load %arg17[%c2_217, %c0_218, %c0_219] : memref<4x32x96xf32, #tpu.memory_space<vmem>>, vector<1x32x96xf32>
    %446 = vector.shape_cast %445 : vector<1x32x96xf32> to vector<32x96xf32>
    %cst_220 = arith.constant dense<0.000000e+00> : vector<18x96xf32>
    %447 = tpu.matmul %444, %446, %cst_220 {dimension_numbers = #tpu.dot_dimension_numbers<[1], [0], [0], [1], [0, 0, 1, 1], [], []>} : vector<18x32xf32>, vector<32x96xf32>, vector<18x96xf32> -> vector<18x96xf32>
    %c2_221 = arith.constant 2 : index
    %c0_222 = arith.constant 0 : index
    %c0_223 = arith.constant 0 : index
    %448 = vector.load %arg16[%c2_221, %c0_222, %c0_223] : memref<4x1x96xf32, #tpu.memory_space<vmem>>, vector<1x1x96xf32>
    %449 = vector.shape_cast %448 : vector<1x1x96xf32> to vector<1x96xf32>
    %450 = vector.broadcast %449 : vector<1x96xf32> to vector<18x96xf32>
    %451 = arith.addf %447, %450 : vector<18x96xf32>
    %452 = vector.extract_strided_slice %451 {offsets = [0, 0], sizes = [18, 8], strides = [1, 1]} : vector<18x96xf32> to vector<18x8xf32>
    %453 = vector.extract_strided_slice %451 {offsets = [0, 32], sizes = [18, 8], strides = [1, 1]} : vector<18x96xf32> to vector<18x8xf32>
    %454 = vector.extract_strided_slice %451 {offsets = [0, 64], sizes = [18, 8], strides = [1, 1]} : vector<18x96xf32> to vector<18x8xf32>
    %cst_224 = arith.constant dense<0.000000e+00> : vector<18x18xf32>
    %455 = tpu.matmul %452, %453, %cst_224 {dimension_numbers = #tpu.dot_dimension_numbers<[1], [1], [0], [0], [0, 0, 1, 0], [], []>} : vector<18x8xf32>, vector<18x8xf32>, vector<18x18xf32> -> vector<18x18xf32>
    %456 = arith.addf %455, %1 : vector<18x18xf32>
    %cst_225 = arith.constant dense<0xFF800000> : vector<18xf32>
    %457 = vector.multi_reduction <maximumf>, %456, %cst_225 [1] : vector<18x18xf32> to vector<18xf32>
    %458 = vector.shape_cast %457 : vector<18xf32> to vector<18x1xf32>
    %459 = vector.broadcast %458 : vector<18x1xf32> to vector<18x18xf32>
    %460 = arith.subf %456, %459 : vector<18x18xf32>
    %461 = math.exp %460 : vector<18x18xf32>
    %cst_226 = arith.constant dense<0.000000e+00> : vector<18xf32>
    %462 = vector.multi_reduction <add>, %461, %cst_226 [1] : vector<18x18xf32> to vector<18xf32>
    %463 = vector.shape_cast %462 : vector<18xf32> to vector<18x1xf32>
    %464 = tpu.reciprocal %463 {approx = true} : vector<18x1xf32> -> vector<18x1xf32>
    %465 = vector.broadcast %464 : vector<18x1xf32> to vector<18x18xf32>
    %466 = arith.mulf %461, %465 : vector<18x18xf32>
    %cst_227 = arith.constant dense<0.000000e+00> : vector<18x8xf32>
    %467 = tpu.matmul %466, %454, %cst_227 {dimension_numbers = #tpu.dot_dimension_numbers<[1], [0], [0], [1], [0, 0, 1, 1], [], []>} : vector<18x18xf32>, vector<18x8xf32>, vector<18x8xf32> -> vector<18x8xf32>
    %468 = vector.extract_strided_slice %451 {offsets = [0, 8], sizes = [18, 8], strides = [1, 1]} : vector<18x96xf32> to vector<18x8xf32>
    %469 = vector.extract_strided_slice %451 {offsets = [0, 40], sizes = [18, 8], strides = [1, 1]} : vector<18x96xf32> to vector<18x8xf32>
    %470 = vector.extract_strided_slice %451 {offsets = [0, 72], sizes = [18, 8], strides = [1, 1]} : vector<18x96xf32> to vector<18x8xf32>
    %cst_228 = arith.constant dense<0.000000e+00> : vector<18x18xf32>
    %471 = tpu.matmul %468, %469, %cst_228 {dimension_numbers = #tpu.dot_dimension_numbers<[1], [1], [0], [0], [0, 0, 1, 0], [], []>} : vector<18x8xf32>, vector<18x8xf32>, vector<18x18xf32> -> vector<18x18xf32>
    %472 = arith.addf %471, %1 : vector<18x18xf32>
    %cst_229 = arith.constant dense<0xFF800000> : vector<18xf32>
    %473 = vector.multi_reduction <maximumf>, %472, %cst_229 [1] : vector<18x18xf32> to vector<18xf32>
    %474 = vector.shape_cast %473 : vector<18xf32> to vector<18x1xf32>
    %475 = vector.broadcast %474 : vector<18x1xf32> to vector<18x18xf32>
    %476 = arith.subf %472, %475 : vector<18x18xf32>
    %477 = math.exp %476 : vector<18x18xf32>
    %cst_230 = arith.constant dense<0.000000e+00> : vector<18xf32>
    %478 = vector.multi_reduction <add>, %477, %cst_230 [1] : vector<18x18xf32> to vector<18xf32>
    %479 = vector.shape_cast %478 : vector<18xf32> to vector<18x1xf32>
    %480 = tpu.reciprocal %479 {approx = true} : vector<18x1xf32> -> vector<18x1xf32>
    %481 = vector.broadcast %480 : vector<18x1xf32> to vector<18x18xf32>
    %482 = arith.mulf %477, %481 : vector<18x18xf32>
    %cst_231 = arith.constant dense<0.000000e+00> : vector<18x8xf32>
    %483 = tpu.matmul %482, %470, %cst_231 {dimension_numbers = #tpu.dot_dimension_numbers<[1], [0], [0], [1], [0, 0, 1, 1], [], []>} : vector<18x18xf32>, vector<18x8xf32>, vector<18x8xf32> -> vector<18x8xf32>
    %484 = vector.extract_strided_slice %451 {offsets = [0, 16], sizes = [18, 8], strides = [1, 1]} : vector<18x96xf32> to vector<18x8xf32>
    %485 = vector.extract_strided_slice %451 {offsets = [0, 48], sizes = [18, 8], strides = [1, 1]} : vector<18x96xf32> to vector<18x8xf32>
    %486 = vector.extract_strided_slice %451 {offsets = [0, 80], sizes = [18, 8], strides = [1, 1]} : vector<18x96xf32> to vector<18x8xf32>
    %cst_232 = arith.constant dense<0.000000e+00> : vector<18x18xf32>
    %487 = tpu.matmul %484, %485, %cst_232 {dimension_numbers = #tpu.dot_dimension_numbers<[1], [1], [0], [0], [0, 0, 1, 0], [], []>} : vector<18x8xf32>, vector<18x8xf32>, vector<18x18xf32> -> vector<18x18xf32>
    %488 = arith.addf %487, %1 : vector<18x18xf32>
    %cst_233 = arith.constant dense<0xFF800000> : vector<18xf32>
    %489 = vector.multi_reduction <maximumf>, %488, %cst_233 [1] : vector<18x18xf32> to vector<18xf32>
    %490 = vector.shape_cast %489 : vector<18xf32> to vector<18x1xf32>
    %491 = vector.broadcast %490 : vector<18x1xf32> to vector<18x18xf32>
    %492 = arith.subf %488, %491 : vector<18x18xf32>
    %493 = math.exp %492 : vector<18x18xf32>
    %cst_234 = arith.constant dense<0.000000e+00> : vector<18xf32>
    %494 = vector.multi_reduction <add>, %493, %cst_234 [1] : vector<18x18xf32> to vector<18xf32>
    %495 = vector.shape_cast %494 : vector<18xf32> to vector<18x1xf32>
    %496 = tpu.reciprocal %495 {approx = true} : vector<18x1xf32> -> vector<18x1xf32>
    %497 = vector.broadcast %496 : vector<18x1xf32> to vector<18x18xf32>
    %498 = arith.mulf %493, %497 : vector<18x18xf32>
    %cst_235 = arith.constant dense<0.000000e+00> : vector<18x8xf32>
    %499 = tpu.matmul %498, %486, %cst_235 {dimension_numbers = #tpu.dot_dimension_numbers<[1], [0], [0], [1], [0, 0, 1, 1], [], []>} : vector<18x18xf32>, vector<18x8xf32>, vector<18x8xf32> -> vector<18x8xf32>
    %500 = vector.extract_strided_slice %451 {offsets = [0, 24], sizes = [18, 8], strides = [1, 1]} : vector<18x96xf32> to vector<18x8xf32>
    %501 = vector.extract_strided_slice %451 {offsets = [0, 56], sizes = [18, 8], strides = [1, 1]} : vector<18x96xf32> to vector<18x8xf32>
    %502 = vector.extract_strided_slice %451 {offsets = [0, 88], sizes = [18, 8], strides = [1, 1]} : vector<18x96xf32> to vector<18x8xf32>
    %cst_236 = arith.constant dense<0.000000e+00> : vector<18x18xf32>
    %503 = tpu.matmul %500, %501, %cst_236 {dimension_numbers = #tpu.dot_dimension_numbers<[1], [1], [0], [0], [0, 0, 1, 0], [], []>} : vector<18x8xf32>, vector<18x8xf32>, vector<18x18xf32> -> vector<18x18xf32>
    %504 = arith.addf %503, %1 : vector<18x18xf32>
    %cst_237 = arith.constant dense<0xFF800000> : vector<18xf32>
    %505 = vector.multi_reduction <maximumf>, %504, %cst_237 [1] : vector<18x18xf32> to vector<18xf32>
    %506 = vector.shape_cast %505 : vector<18xf32> to vector<18x1xf32>
    %507 = vector.broadcast %506 : vector<18x1xf32> to vector<18x18xf32>
    %508 = arith.subf %504, %507 : vector<18x18xf32>
    %509 = math.exp %508 : vector<18x18xf32>
    %cst_238 = arith.constant dense<0.000000e+00> : vector<18xf32>
    %510 = vector.multi_reduction <add>, %509, %cst_238 [1] : vector<18x18xf32> to vector<18xf32>
    %511 = vector.shape_cast %510 : vector<18xf32> to vector<18x1xf32>
    %512 = tpu.reciprocal %511 {approx = true} : vector<18x1xf32> -> vector<18x1xf32>
    %513 = vector.broadcast %512 : vector<18x1xf32> to vector<18x18xf32>
    %514 = arith.mulf %509, %513 : vector<18x18xf32>
    %cst_239 = arith.constant dense<0.000000e+00> : vector<18x8xf32>
    %515 = tpu.matmul %514, %502, %cst_239 {dimension_numbers = #tpu.dot_dimension_numbers<[1], [0], [0], [1], [0, 0, 1, 1], [], []>} : vector<18x18xf32>, vector<18x8xf32>, vector<18x8xf32> -> vector<18x8xf32>
    %516 = tpu.concatenate %467, %483, %499, %515 in 1 : vector<18x8xf32>, vector<18x8xf32>, vector<18x8xf32>, vector<18x8xf32> -> vector<18x32xf32>
    %c2_240 = arith.constant 2 : index
    %c0_241 = arith.constant 0 : index
    %c0_242 = arith.constant 0 : index
    %517 = vector.load %arg15[%c2_240, %c0_241, %c0_242] : memref<4x32x32xf32, #tpu.memory_space<vmem>>, vector<1x32x32xf32>
    %518 = vector.shape_cast %517 : vector<1x32x32xf32> to vector<32x32xf32>
    %cst_243 = arith.constant dense<0.000000e+00> : vector<18x32xf32>
    %519 = tpu.matmul %516, %518, %cst_243 {dimension_numbers = #tpu.dot_dimension_numbers<[1], [0], [0], [1], [0, 0, 1, 1], [], []>} : vector<18x32xf32>, vector<32x32xf32>, vector<18x32xf32> -> vector<18x32xf32>
    %520 = arith.addf %420, %519 : vector<18x32xf32>
    %c2_244 = arith.constant 2 : index
    %c0_245 = arith.constant 0 : index
    %c0_246 = arith.constant 0 : index
    %521 = vector.load %arg14[%c2_244, %c0_245, %c0_246] : memref<4x1x32xf32, #tpu.memory_space<vmem>>, vector<1x1x32xf32>
    %522 = vector.shape_cast %521 : vector<1x1x32xf32> to vector<1x32xf32>
    %523 = vector.broadcast %522 : vector<1x32xf32> to vector<18x32xf32>
    %524 = arith.addf %520, %523 : vector<18x32xf32>
    %525 = vector.extract_strided_slice %422 {offsets = [2, 0], sizes = [1, 32], strides = [1, 1]} : vector<4x32xf32> to vector<1x32xf32>
    %526 = vector.extract_strided_slice %422 {offsets = [3, 0], sizes = [1, 32], strides = [1, 1]} : vector<4x32xf32> to vector<1x32xf32>
    %cst_247 = arith.constant dense<0.000000e+00> : vector<18xf32>
    %527 = vector.multi_reduction <add>, %524, %cst_247 [1] : vector<18x32xf32> to vector<18xf32>
    %528 = vector.shape_cast %527 : vector<18xf32> to vector<18x1xf32>
    %cst_248 = arith.constant 3.200000e+01 : f32
    %529 = vector.broadcast %cst_248 : f32 to vector<18x1xf32>
    %530 = arith.divf %528, %529 : vector<18x1xf32>
    %531 = vector.broadcast %530 : vector<18x1xf32> to vector<18x32xf32>
    %532 = arith.subf %524, %531 : vector<18x32xf32>
    %533 = arith.mulf %532, %532 : vector<18x32xf32>
    %cst_249 = arith.constant dense<0.000000e+00> : vector<18xf32>
    %534 = vector.multi_reduction <add>, %533, %cst_249 [1] : vector<18x32xf32> to vector<18xf32>
    %535 = vector.shape_cast %534 : vector<18xf32> to vector<18x1xf32>
    %cst_250 = arith.constant 3.200000e+01 : f32
    %536 = vector.broadcast %cst_250 : f32 to vector<18x1xf32>
    %537 = arith.divf %535, %536 : vector<18x1xf32>
    %cst_251 = arith.constant 9.99999997E-7 : f32
    %538 = vector.broadcast %cst_251 : f32 to vector<18x1xf32>
    %539 = arith.addf %537, %538 : vector<18x1xf32>
    %540 = math.rsqrt %539 : vector<18x1xf32>
    %541 = vector.broadcast %540 : vector<18x1xf32> to vector<18x32xf32>
    %542 = arith.mulf %532, %541 : vector<18x32xf32>
    %543 = vector.broadcast %525 : vector<1x32xf32> to vector<18x32xf32>
    %544 = arith.mulf %542, %543 : vector<18x32xf32>
    %545 = vector.broadcast %526 : vector<1x32xf32> to vector<18x32xf32>
    %546 = arith.addf %544, %545 : vector<18x32xf32>
    %c2_252 = arith.constant 2 : index
    %c0_253 = arith.constant 0 : index
    %c0_254 = arith.constant 0 : index
    %547 = vector.load %arg10[%c2_252, %c0_253, %c0_254] : memref<4x32x64xf32, #tpu.memory_space<vmem>>, vector<1x32x64xf32>
    %548 = vector.shape_cast %547 : vector<1x32x64xf32> to vector<32x64xf32>
    %cst_255 = arith.constant dense<0.000000e+00> : vector<18x64xf32>
    %549 = tpu.matmul %546, %548, %cst_255 {dimension_numbers = #tpu.dot_dimension_numbers<[1], [0], [0], [1], [0, 0, 1, 1], [], []>} : vector<18x32xf32>, vector<32x64xf32>, vector<18x64xf32> -> vector<18x64xf32>
    %c2_256 = arith.constant 2 : index
    %c0_257 = arith.constant 0 : index
    %c0_258 = arith.constant 0 : index
    %550 = vector.load %arg9[%c2_256, %c0_257, %c0_258] : memref<4x1x64xf32, #tpu.memory_space<vmem>>, vector<1x1x64xf32>
    %551 = vector.shape_cast %550 : vector<1x1x64xf32> to vector<1x64xf32>
    %552 = vector.broadcast %551 : vector<1x64xf32> to vector<18x64xf32>
    %553 = arith.addf %549, %552 : vector<18x64xf32>
    %554 = arith.mulf %553, %553 : vector<18x64xf32>
    %555 = arith.mulf %553, %554 : vector<18x64xf32>
    %cst_259 = arith.constant 4.471500e-02 : f32
    %556 = vector.broadcast %cst_259 : f32 to vector<18x64xf32>
    %557 = arith.mulf %556, %555 : vector<18x64xf32>
    %558 = arith.addf %553, %557 : vector<18x64xf32>
    %cst_260 = arith.constant 0.797884583 : f32
    %559 = vector.broadcast %cst_260 : f32 to vector<18x64xf32>
    %560 = arith.mulf %559, %558 : vector<18x64xf32>
    %561 = math.tanh %560 : vector<18x64xf32>
    %cst_261 = arith.constant 1.000000e+00 : f32
    %562 = vector.broadcast %cst_261 : f32 to vector<18x64xf32>
    %563 = arith.addf %562, %561 : vector<18x64xf32>
    %cst_262 = arith.constant 5.000000e-01 : f32
    %564 = vector.broadcast %cst_262 : f32 to vector<18x64xf32>
    %565 = arith.mulf %564, %563 : vector<18x64xf32>
    %566 = arith.mulf %553, %565 : vector<18x64xf32>
    %c2_263 = arith.constant 2 : index
    %c0_264 = arith.constant 0 : index
    %c0_265 = arith.constant 0 : index
    %567 = vector.load %arg12[%c2_263, %c0_264, %c0_265] : memref<4x64x32xf32, #tpu.memory_space<vmem>>, vector<1x64x32xf32>
    %568 = vector.shape_cast %567 : vector<1x64x32xf32> to vector<64x32xf32>
    %cst_266 = arith.constant dense<0.000000e+00> : vector<18x32xf32>
    %569 = tpu.matmul %566, %568, %cst_266 {dimension_numbers = #tpu.dot_dimension_numbers<[1], [0], [0], [1], [0, 0, 1, 1], [], []>} : vector<18x64xf32>, vector<64x32xf32>, vector<18x32xf32> -> vector<18x32xf32>
    %570 = arith.addf %524, %569 : vector<18x32xf32>
    %c2_267 = arith.constant 2 : index
    %c0_268 = arith.constant 0 : index
    %c0_269 = arith.constant 0 : index
    %571 = vector.load %arg11[%c2_267, %c0_268, %c0_269] : memref<4x1x32xf32, #tpu.memory_space<vmem>>, vector<1x1x32xf32>
    %572 = vector.shape_cast %571 : vector<1x1x32xf32> to vector<1x32xf32>
    %573 = vector.broadcast %572 : vector<1x32xf32> to vector<18x32xf32>
    %574 = arith.addf %570, %573 : vector<18x32xf32>
    %575 = arith.addf %574, %239 : vector<18x32xf32>
    %c3 = arith.constant 3 : index
    %c0_270 = arith.constant 0 : index
    %c0_271 = arith.constant 0 : index
    %576 = vector.load %arg13[%c3, %c0_270, %c0_271] : memref<4x4x32xf32, #tpu.memory_space<vmem>>, vector<1x4x32xf32>
    %577 = vector.shape_cast %576 : vector<1x4x32xf32> to vector<4x32xf32>
    %578 = vector.extract_strided_slice %577 {offsets = [0, 0], sizes = [1, 32], strides = [1, 1]} : vector<4x32xf32> to vector<1x32xf32>
    %579 = vector.extract_strided_slice %577 {offsets = [1, 0], sizes = [1, 32], strides = [1, 1]} : vector<4x32xf32> to vector<1x32xf32>
    %cst_272 = arith.constant dense<0.000000e+00> : vector<18xf32>
    %580 = vector.multi_reduction <add>, %575, %cst_272 [1] : vector<18x32xf32> to vector<18xf32>
    %581 = vector.shape_cast %580 : vector<18xf32> to vector<18x1xf32>
    %cst_273 = arith.constant 3.200000e+01 : f32
    %582 = vector.broadcast %cst_273 : f32 to vector<18x1xf32>
    %583 = arith.divf %581, %582 : vector<18x1xf32>
    %584 = vector.broadcast %583 : vector<18x1xf32> to vector<18x32xf32>
    %585 = arith.subf %575, %584 : vector<18x32xf32>
    %586 = arith.mulf %585, %585 : vector<18x32xf32>
    %cst_274 = arith.constant dense<0.000000e+00> : vector<18xf32>
    %587 = vector.multi_reduction <add>, %586, %cst_274 [1] : vector<18x32xf32> to vector<18xf32>
    %588 = vector.shape_cast %587 : vector<18xf32> to vector<18x1xf32>
    %cst_275 = arith.constant 3.200000e+01 : f32
    %589 = vector.broadcast %cst_275 : f32 to vector<18x1xf32>
    %590 = arith.divf %588, %589 : vector<18x1xf32>
    %cst_276 = arith.constant 9.99999997E-7 : f32
    %591 = vector.broadcast %cst_276 : f32 to vector<18x1xf32>
    %592 = arith.addf %590, %591 : vector<18x1xf32>
    %593 = math.rsqrt %592 : vector<18x1xf32>
    %594 = vector.broadcast %593 : vector<18x1xf32> to vector<18x32xf32>
    %595 = arith.mulf %585, %594 : vector<18x32xf32>
    %596 = vector.broadcast %578 : vector<1x32xf32> to vector<18x32xf32>
    %597 = arith.mulf %595, %596 : vector<18x32xf32>
    %598 = vector.broadcast %579 : vector<1x32xf32> to vector<18x32xf32>
    %599 = arith.addf %597, %598 : vector<18x32xf32>
    %c3_277 = arith.constant 3 : index
    %c0_278 = arith.constant 0 : index
    %c0_279 = arith.constant 0 : index
    %600 = vector.load %arg17[%c3_277, %c0_278, %c0_279] : memref<4x32x96xf32, #tpu.memory_space<vmem>>, vector<1x32x96xf32>
    %601 = vector.shape_cast %600 : vector<1x32x96xf32> to vector<32x96xf32>
    %cst_280 = arith.constant dense<0.000000e+00> : vector<18x96xf32>
    %602 = tpu.matmul %599, %601, %cst_280 {dimension_numbers = #tpu.dot_dimension_numbers<[1], [0], [0], [1], [0, 0, 1, 1], [], []>} : vector<18x32xf32>, vector<32x96xf32>, vector<18x96xf32> -> vector<18x96xf32>
    %c3_281 = arith.constant 3 : index
    %c0_282 = arith.constant 0 : index
    %c0_283 = arith.constant 0 : index
    %603 = vector.load %arg16[%c3_281, %c0_282, %c0_283] : memref<4x1x96xf32, #tpu.memory_space<vmem>>, vector<1x1x96xf32>
    %604 = vector.shape_cast %603 : vector<1x1x96xf32> to vector<1x96xf32>
    %605 = vector.broadcast %604 : vector<1x96xf32> to vector<18x96xf32>
    %606 = arith.addf %602, %605 : vector<18x96xf32>
    %607 = vector.extract_strided_slice %606 {offsets = [0, 0], sizes = [18, 8], strides = [1, 1]} : vector<18x96xf32> to vector<18x8xf32>
    %608 = vector.extract_strided_slice %606 {offsets = [0, 32], sizes = [18, 8], strides = [1, 1]} : vector<18x96xf32> to vector<18x8xf32>
    %609 = vector.extract_strided_slice %606 {offsets = [0, 64], sizes = [18, 8], strides = [1, 1]} : vector<18x96xf32> to vector<18x8xf32>
    %cst_284 = arith.constant dense<0.000000e+00> : vector<18x18xf32>
    %610 = tpu.matmul %607, %608, %cst_284 {dimension_numbers = #tpu.dot_dimension_numbers<[1], [1], [0], [0], [0, 0, 1, 0], [], []>} : vector<18x8xf32>, vector<18x8xf32>, vector<18x18xf32> -> vector<18x18xf32>
    %611 = arith.addf %610, %1 : vector<18x18xf32>
    %cst_285 = arith.constant dense<0xFF800000> : vector<18xf32>
    %612 = vector.multi_reduction <maximumf>, %611, %cst_285 [1] : vector<18x18xf32> to vector<18xf32>
    %613 = vector.shape_cast %612 : vector<18xf32> to vector<18x1xf32>
    %614 = vector.broadcast %613 : vector<18x1xf32> to vector<18x18xf32>
    %615 = arith.subf %611, %614 : vector<18x18xf32>
    %616 = math.exp %615 : vector<18x18xf32>
    %cst_286 = arith.constant dense<0.000000e+00> : vector<18xf32>
    %617 = vector.multi_reduction <add>, %616, %cst_286 [1] : vector<18x18xf32> to vector<18xf32>
    %618 = vector.shape_cast %617 : vector<18xf32> to vector<18x1xf32>
    %619 = tpu.reciprocal %618 {approx = true} : vector<18x1xf32> -> vector<18x1xf32>
    %620 = vector.broadcast %619 : vector<18x1xf32> to vector<18x18xf32>
    %621 = arith.mulf %616, %620 : vector<18x18xf32>
    %cst_287 = arith.constant dense<0.000000e+00> : vector<18x8xf32>
    %622 = tpu.matmul %621, %609, %cst_287 {dimension_numbers = #tpu.dot_dimension_numbers<[1], [0], [0], [1], [0, 0, 1, 1], [], []>} : vector<18x18xf32>, vector<18x8xf32>, vector<18x8xf32> -> vector<18x8xf32>
    %623 = vector.extract_strided_slice %606 {offsets = [0, 8], sizes = [18, 8], strides = [1, 1]} : vector<18x96xf32> to vector<18x8xf32>
    %624 = vector.extract_strided_slice %606 {offsets = [0, 40], sizes = [18, 8], strides = [1, 1]} : vector<18x96xf32> to vector<18x8xf32>
    %625 = vector.extract_strided_slice %606 {offsets = [0, 72], sizes = [18, 8], strides = [1, 1]} : vector<18x96xf32> to vector<18x8xf32>
    %cst_288 = arith.constant dense<0.000000e+00> : vector<18x18xf32>
    %626 = tpu.matmul %623, %624, %cst_288 {dimension_numbers = #tpu.dot_dimension_numbers<[1], [1], [0], [0], [0, 0, 1, 0], [], []>} : vector<18x8xf32>, vector<18x8xf32>, vector<18x18xf32> -> vector<18x18xf32>
    %627 = arith.addf %626, %1 : vector<18x18xf32>
    %cst_289 = arith.constant dense<0xFF800000> : vector<18xf32>
    %628 = vector.multi_reduction <maximumf>, %627, %cst_289 [1] : vector<18x18xf32> to vector<18xf32>
    %629 = vector.shape_cast %628 : vector<18xf32> to vector<18x1xf32>
    %630 = vector.broadcast %629 : vector<18x1xf32> to vector<18x18xf32>
    %631 = arith.subf %627, %630 : vector<18x18xf32>
    %632 = math.exp %631 : vector<18x18xf32>
    %cst_290 = arith.constant dense<0.000000e+00> : vector<18xf32>
    %633 = vector.multi_reduction <add>, %632, %cst_290 [1] : vector<18x18xf32> to vector<18xf32>
    %634 = vector.shape_cast %633 : vector<18xf32> to vector<18x1xf32>
    %635 = tpu.reciprocal %634 {approx = true} : vector<18x1xf32> -> vector<18x1xf32>
    %636 = vector.broadcast %635 : vector<18x1xf32> to vector<18x18xf32>
    %637 = arith.mulf %632, %636 : vector<18x18xf32>
    %cst_291 = arith.constant dense<0.000000e+00> : vector<18x8xf32>
    %638 = tpu.matmul %637, %625, %cst_291 {dimension_numbers = #tpu.dot_dimension_numbers<[1], [0], [0], [1], [0, 0, 1, 1], [], []>} : vector<18x18xf32>, vector<18x8xf32>, vector<18x8xf32> -> vector<18x8xf32>
    %639 = vector.extract_strided_slice %606 {offsets = [0, 16], sizes = [18, 8], strides = [1, 1]} : vector<18x96xf32> to vector<18x8xf32>
    %640 = vector.extract_strided_slice %606 {offsets = [0, 48], sizes = [18, 8], strides = [1, 1]} : vector<18x96xf32> to vector<18x8xf32>
    %641 = vector.extract_strided_slice %606 {offsets = [0, 80], sizes = [18, 8], strides = [1, 1]} : vector<18x96xf32> to vector<18x8xf32>
    %cst_292 = arith.constant dense<0.000000e+00> : vector<18x18xf32>
    %642 = tpu.matmul %639, %640, %cst_292 {dimension_numbers = #tpu.dot_dimension_numbers<[1], [1], [0], [0], [0, 0, 1, 0], [], []>} : vector<18x8xf32>, vector<18x8xf32>, vector<18x18xf32> -> vector<18x18xf32>
    %643 = arith.addf %642, %1 : vector<18x18xf32>
    %cst_293 = arith.constant dense<0xFF800000> : vector<18xf32>
    %644 = vector.multi_reduction <maximumf>, %643, %cst_293 [1] : vector<18x18xf32> to vector<18xf32>
    %645 = vector.shape_cast %644 : vector<18xf32> to vector<18x1xf32>
    %646 = vector.broadcast %645 : vector<18x1xf32> to vector<18x18xf32>
    %647 = arith.subf %643, %646 : vector<18x18xf32>
    %648 = math.exp %647 : vector<18x18xf32>
    %cst_294 = arith.constant dense<0.000000e+00> : vector<18xf32>
    %649 = vector.multi_reduction <add>, %648, %cst_294 [1] : vector<18x18xf32> to vector<18xf32>
    %650 = vector.shape_cast %649 : vector<18xf32> to vector<18x1xf32>
    %651 = tpu.reciprocal %650 {approx = true} : vector<18x1xf32> -> vector<18x1xf32>
    %652 = vector.broadcast %651 : vector<18x1xf32> to vector<18x18xf32>
    %653 = arith.mulf %648, %652 : vector<18x18xf32>
    %cst_295 = arith.constant dense<0.000000e+00> : vector<18x8xf32>
    %654 = tpu.matmul %653, %641, %cst_295 {dimension_numbers = #tpu.dot_dimension_numbers<[1], [0], [0], [1], [0, 0, 1, 1], [], []>} : vector<18x18xf32>, vector<18x8xf32>, vector<18x8xf32> -> vector<18x8xf32>
    %655 = vector.extract_strided_slice %606 {offsets = [0, 24], sizes = [18, 8], strides = [1, 1]} : vector<18x96xf32> to vector<18x8xf32>
    %656 = vector.extract_strided_slice %606 {offsets = [0, 56], sizes = [18, 8], strides = [1, 1]} : vector<18x96xf32> to vector<18x8xf32>
    %657 = vector.extract_strided_slice %606 {offsets = [0, 88], sizes = [18, 8], strides = [1, 1]} : vector<18x96xf32> to vector<18x8xf32>
    %cst_296 = arith.constant dense<0.000000e+00> : vector<18x18xf32>
    %658 = tpu.matmul %655, %656, %cst_296 {dimension_numbers = #tpu.dot_dimension_numbers<[1], [1], [0], [0], [0, 0, 1, 0], [], []>} : vector<18x8xf32>, vector<18x8xf32>, vector<18x18xf32> -> vector<18x18xf32>
    %659 = arith.addf %658, %1 : vector<18x18xf32>
    %cst_297 = arith.constant dense<0xFF800000> : vector<18xf32>
    %660 = vector.multi_reduction <maximumf>, %659, %cst_297 [1] : vector<18x18xf32> to vector<18xf32>
    %661 = vector.shape_cast %660 : vector<18xf32> to vector<18x1xf32>
    %662 = vector.broadcast %661 : vector<18x1xf32> to vector<18x18xf32>
    %663 = arith.subf %659, %662 : vector<18x18xf32>
    %664 = math.exp %663 : vector<18x18xf32>
    %cst_298 = arith.constant dense<0.000000e+00> : vector<18xf32>
    %665 = vector.multi_reduction <add>, %664, %cst_298 [1] : vector<18x18xf32> to vector<18xf32>
    %666 = vector.shape_cast %665 : vector<18xf32> to vector<18x1xf32>
    %667 = tpu.reciprocal %666 {approx = true} : vector<18x1xf32> -> vector<18x1xf32>
    %668 = vector.broadcast %667 : vector<18x1xf32> to vector<18x18xf32>
    %669 = arith.mulf %664, %668 : vector<18x18xf32>
    %cst_299 = arith.constant dense<0.000000e+00> : vector<18x8xf32>
    %670 = tpu.matmul %669, %657, %cst_299 {dimension_numbers = #tpu.dot_dimension_numbers<[1], [0], [0], [1], [0, 0, 1, 1], [], []>} : vector<18x18xf32>, vector<18x8xf32>, vector<18x8xf32> -> vector<18x8xf32>
    %671 = tpu.concatenate %622, %638, %654, %670 in 1 : vector<18x8xf32>, vector<18x8xf32>, vector<18x8xf32>, vector<18x8xf32> -> vector<18x32xf32>
    %c3_300 = arith.constant 3 : index
    %c0_301 = arith.constant 0 : index
    %c0_302 = arith.constant 0 : index
    %672 = vector.load %arg15[%c3_300, %c0_301, %c0_302] : memref<4x32x32xf32, #tpu.memory_space<vmem>>, vector<1x32x32xf32>
    %673 = vector.shape_cast %672 : vector<1x32x32xf32> to vector<32x32xf32>
    %cst_303 = arith.constant dense<0.000000e+00> : vector<18x32xf32>
    %674 = tpu.matmul %671, %673, %cst_303 {dimension_numbers = #tpu.dot_dimension_numbers<[1], [0], [0], [1], [0, 0, 1, 1], [], []>} : vector<18x32xf32>, vector<32x32xf32>, vector<18x32xf32> -> vector<18x32xf32>
    %675 = arith.addf %575, %674 : vector<18x32xf32>
    %c3_304 = arith.constant 3 : index
    %c0_305 = arith.constant 0 : index
    %c0_306 = arith.constant 0 : index
    %676 = vector.load %arg14[%c3_304, %c0_305, %c0_306] : memref<4x1x32xf32, #tpu.memory_space<vmem>>, vector<1x1x32xf32>
    %677 = vector.shape_cast %676 : vector<1x1x32xf32> to vector<1x32xf32>
    %678 = vector.broadcast %677 : vector<1x32xf32> to vector<18x32xf32>
    %679 = arith.addf %675, %678 : vector<18x32xf32>
    %680 = vector.extract_strided_slice %577 {offsets = [2, 0], sizes = [1, 32], strides = [1, 1]} : vector<4x32xf32> to vector<1x32xf32>
    %681 = vector.extract_strided_slice %577 {offsets = [3, 0], sizes = [1, 32], strides = [1, 1]} : vector<4x32xf32> to vector<1x32xf32>
    %cst_307 = arith.constant dense<0.000000e+00> : vector<18xf32>
    %682 = vector.multi_reduction <add>, %679, %cst_307 [1] : vector<18x32xf32> to vector<18xf32>
    %683 = vector.shape_cast %682 : vector<18xf32> to vector<18x1xf32>
    %cst_308 = arith.constant 3.200000e+01 : f32
    %684 = vector.broadcast %cst_308 : f32 to vector<18x1xf32>
    %685 = arith.divf %683, %684 : vector<18x1xf32>
    %686 = vector.broadcast %685 : vector<18x1xf32> to vector<18x32xf32>
    %687 = arith.subf %679, %686 : vector<18x32xf32>
    %688 = arith.mulf %687, %687 : vector<18x32xf32>
    %cst_309 = arith.constant dense<0.000000e+00> : vector<18xf32>
    %689 = vector.multi_reduction <add>, %688, %cst_309 [1] : vector<18x32xf32> to vector<18xf32>
    %690 = vector.shape_cast %689 : vector<18xf32> to vector<18x1xf32>
    %cst_310 = arith.constant 3.200000e+01 : f32
    %691 = vector.broadcast %cst_310 : f32 to vector<18x1xf32>
    %692 = arith.divf %690, %691 : vector<18x1xf32>
    %cst_311 = arith.constant 9.99999997E-7 : f32
    %693 = vector.broadcast %cst_311 : f32 to vector<18x1xf32>
    %694 = arith.addf %692, %693 : vector<18x1xf32>
    %695 = math.rsqrt %694 : vector<18x1xf32>
    %696 = vector.broadcast %695 : vector<18x1xf32> to vector<18x32xf32>
    %697 = arith.mulf %687, %696 : vector<18x32xf32>
    %698 = vector.broadcast %680 : vector<1x32xf32> to vector<18x32xf32>
    %699 = arith.mulf %697, %698 : vector<18x32xf32>
    %700 = vector.broadcast %681 : vector<1x32xf32> to vector<18x32xf32>
    %701 = arith.addf %699, %700 : vector<18x32xf32>
    %c3_312 = arith.constant 3 : index
    %c0_313 = arith.constant 0 : index
    %c0_314 = arith.constant 0 : index
    %702 = vector.load %arg10[%c3_312, %c0_313, %c0_314] : memref<4x32x64xf32, #tpu.memory_space<vmem>>, vector<1x32x64xf32>
    %703 = vector.shape_cast %702 : vector<1x32x64xf32> to vector<32x64xf32>
    %cst_315 = arith.constant dense<0.000000e+00> : vector<18x64xf32>
    %704 = tpu.matmul %701, %703, %cst_315 {dimension_numbers = #tpu.dot_dimension_numbers<[1], [0], [0], [1], [0, 0, 1, 1], [], []>} : vector<18x32xf32>, vector<32x64xf32>, vector<18x64xf32> -> vector<18x64xf32>
    %c3_316 = arith.constant 3 : index
    %c0_317 = arith.constant 0 : index
    %c0_318 = arith.constant 0 : index
    %705 = vector.load %arg9[%c3_316, %c0_317, %c0_318] : memref<4x1x64xf32, #tpu.memory_space<vmem>>, vector<1x1x64xf32>
    %706 = vector.shape_cast %705 : vector<1x1x64xf32> to vector<1x64xf32>
    %707 = vector.broadcast %706 : vector<1x64xf32> to vector<18x64xf32>
    %708 = arith.addf %704, %707 : vector<18x64xf32>
    %709 = arith.mulf %708, %708 : vector<18x64xf32>
    %710 = arith.mulf %708, %709 : vector<18x64xf32>
    %cst_319 = arith.constant 4.471500e-02 : f32
    %711 = vector.broadcast %cst_319 : f32 to vector<18x64xf32>
    %712 = arith.mulf %711, %710 : vector<18x64xf32>
    %713 = arith.addf %708, %712 : vector<18x64xf32>
    %cst_320 = arith.constant 0.797884583 : f32
    %714 = vector.broadcast %cst_320 : f32 to vector<18x64xf32>
    %715 = arith.mulf %714, %713 : vector<18x64xf32>
    %716 = math.tanh %715 : vector<18x64xf32>
    %cst_321 = arith.constant 1.000000e+00 : f32
    %717 = vector.broadcast %cst_321 : f32 to vector<18x64xf32>
    %718 = arith.addf %717, %716 : vector<18x64xf32>
    %cst_322 = arith.constant 5.000000e-01 : f32
    %719 = vector.broadcast %cst_322 : f32 to vector<18x64xf32>
    %720 = arith.mulf %719, %718 : vector<18x64xf32>
    %721 = arith.mulf %708, %720 : vector<18x64xf32>
    %c3_323 = arith.constant 3 : index
    %c0_324 = arith.constant 0 : index
    %c0_325 = arith.constant 0 : index
    %722 = vector.load %arg12[%c3_323, %c0_324, %c0_325] : memref<4x64x32xf32, #tpu.memory_space<vmem>>, vector<1x64x32xf32>
    %723 = vector.shape_cast %722 : vector<1x64x32xf32> to vector<64x32xf32>
    %cst_326 = arith.constant dense<0.000000e+00> : vector<18x32xf32>
    %724 = tpu.matmul %721, %723, %cst_326 {dimension_numbers = #tpu.dot_dimension_numbers<[1], [0], [0], [1], [0, 0, 1, 1], [], []>} : vector<18x64xf32>, vector<64x32xf32>, vector<18x32xf32> -> vector<18x32xf32>
    %725 = arith.addf %679, %724 : vector<18x32xf32>
    %c3_327 = arith.constant 3 : index
    %c0_328 = arith.constant 0 : index
    %c0_329 = arith.constant 0 : index
    %726 = vector.load %arg11[%c3_327, %c0_328, %c0_329] : memref<4x1x32xf32, #tpu.memory_space<vmem>>, vector<1x1x32xf32>
    %727 = vector.shape_cast %726 : vector<1x1x32xf32> to vector<1x32xf32>
    %728 = vector.broadcast %727 : vector<1x32xf32> to vector<18x32xf32>
    %729 = arith.addf %725, %728 : vector<18x32xf32>
    %730 = arith.addf %729, %393 : vector<18x32xf32>
    %c0_330 = arith.constant 0 : index
    %c0_331 = arith.constant 0 : index
    %731 = vector.load %arg35[%c0_330, %c0_331] : memref<2x32xf32, #tpu.memory_space<vmem>>, vector<2x32xf32>
    %732 = vector.extract_strided_slice %731 {offsets = [0, 0], sizes = [1, 32], strides = [1, 1]} : vector<2x32xf32> to vector<1x32xf32>
    %733 = vector.extract_strided_slice %731 {offsets = [1, 0], sizes = [1, 32], strides = [1, 1]} : vector<2x32xf32> to vector<1x32xf32>
    %cst_332 = arith.constant dense<0.000000e+00> : vector<18xf32>
    %734 = vector.multi_reduction <add>, %730, %cst_332 [1] : vector<18x32xf32> to vector<18xf32>
    %735 = vector.shape_cast %734 : vector<18xf32> to vector<18x1xf32>
    %cst_333 = arith.constant 3.200000e+01 : f32
    %736 = vector.broadcast %cst_333 : f32 to vector<18x1xf32>
    %737 = arith.divf %735, %736 : vector<18x1xf32>
    %738 = vector.broadcast %737 : vector<18x1xf32> to vector<18x32xf32>
    %739 = arith.subf %730, %738 : vector<18x32xf32>
    %740 = arith.mulf %739, %739 : vector<18x32xf32>
    %cst_334 = arith.constant dense<0.000000e+00> : vector<18xf32>
    %741 = vector.multi_reduction <add>, %740, %cst_334 [1] : vector<18x32xf32> to vector<18xf32>
    %742 = vector.shape_cast %741 : vector<18xf32> to vector<18x1xf32>
    %cst_335 = arith.constant 3.200000e+01 : f32
    %743 = vector.broadcast %cst_335 : f32 to vector<18x1xf32>
    %744 = arith.divf %742, %743 : vector<18x1xf32>
    %cst_336 = arith.constant 9.99999997E-7 : f32
    %745 = vector.broadcast %cst_336 : f32 to vector<18x1xf32>
    %746 = arith.addf %744, %745 : vector<18x1xf32>
    %747 = math.rsqrt %746 : vector<18x1xf32>
    %748 = vector.broadcast %747 : vector<18x1xf32> to vector<18x32xf32>
    %749 = arith.mulf %739, %748 : vector<18x32xf32>
    %750 = vector.broadcast %732 : vector<1x32xf32> to vector<18x32xf32>
    %751 = arith.mulf %749, %750 : vector<18x32xf32>
    %752 = vector.broadcast %733 : vector<1x32xf32> to vector<18x32xf32>
    %753 = arith.addf %751, %752 : vector<18x32xf32>
    %c0_337 = arith.constant 0 : index
    %c0_338 = arith.constant 0 : index
    %754 = vector.load %arg23[%c0_337, %c0_338] : memref<2x18xf32, #tpu.memory_space<vmem>>, vector<2x18xf32>
    %cst_339 = arith.constant dense<0.000000e+00> : vector<2x32xf32>
    %755 = tpu.matmul %754, %753, %cst_339 {dimension_numbers = #tpu.dot_dimension_numbers<[1], [0], [0], [1], [0, 0, 1, 1], [], []>} : vector<2x18xf32>, vector<18x32xf32>, vector<2x32xf32> -> vector<2x32xf32>
    %cst_340 = arith.constant dense<0.000000e+00> : vector<2x32xf32>
    %756 = tpu.matmul %754, %416, %cst_340 {dimension_numbers = #tpu.dot_dimension_numbers<[1], [0], [0], [1], [0, 0, 1, 1], [], []>} : vector<2x18xf32>, vector<18x32xf32>, vector<2x32xf32> -> vector<2x32xf32>
    %757 = arith.addf %755, %756 : vector<2x32xf32>
    %c0_341 = arith.constant 0 : index
    %c0_342 = arith.constant 0 : index
    %758 = vector.load %arg19[%c0_341, %c0_342] : memref<2x32xf32, #tpu.memory_space<vmem>>, vector<2x32xf32>
    %759 = vector.extract_strided_slice %758 {offsets = [0, 0], sizes = [1, 32], strides = [1, 1]} : vector<2x32xf32> to vector<1x32xf32>
    %760 = vector.extract_strided_slice %758 {offsets = [1, 0], sizes = [1, 32], strides = [1, 1]} : vector<2x32xf32> to vector<1x32xf32>
    %cst_343 = arith.constant dense<0.000000e+00> : vector<2xf32>
    %761 = vector.multi_reduction <add>, %757, %cst_343 [1] : vector<2x32xf32> to vector<2xf32>
    %762 = vector.shape_cast %761 : vector<2xf32> to vector<2x1xf32>
    %cst_344 = arith.constant 3.200000e+01 : f32
    %763 = vector.broadcast %cst_344 : f32 to vector<2x1xf32>
    %764 = arith.divf %762, %763 : vector<2x1xf32>
    %765 = vector.broadcast %764 : vector<2x1xf32> to vector<2x32xf32>
    %766 = arith.subf %757, %765 : vector<2x32xf32>
    %767 = arith.mulf %766, %766 : vector<2x32xf32>
    %cst_345 = arith.constant dense<0.000000e+00> : vector<2xf32>
    %768 = vector.multi_reduction <add>, %767, %cst_345 [1] : vector<2x32xf32> to vector<2xf32>
    %769 = vector.shape_cast %768 : vector<2xf32> to vector<2x1xf32>
    %cst_346 = arith.constant 3.200000e+01 : f32
    %770 = vector.broadcast %cst_346 : f32 to vector<2x1xf32>
    %771 = arith.divf %769, %770 : vector<2x1xf32>
    %cst_347 = arith.constant 9.99999974E-6 : f32
    %772 = vector.broadcast %cst_347 : f32 to vector<2x1xf32>
    %773 = arith.addf %771, %772 : vector<2x1xf32>
    %774 = math.rsqrt %773 : vector<2x1xf32>
    %775 = vector.broadcast %774 : vector<2x1xf32> to vector<2x32xf32>
    %776 = arith.mulf %766, %775 : vector<2x32xf32>
    %777 = vector.broadcast %759 : vector<1x32xf32> to vector<2x32xf32>
    %778 = arith.mulf %776, %777 : vector<2x32xf32>
    %779 = vector.broadcast %760 : vector<1x32xf32> to vector<2x32xf32>
    %780 = arith.addf %778, %779 : vector<2x32xf32>
    %c0_348 = arith.constant 0 : index
    %c0_349 = arith.constant 0 : index
    %781 = vector.load %arg20[%c0_348, %c0_349] : memref<32x11xf32, #tpu.memory_space<vmem>>, vector<32x11xf32>
    %cst_350 = arith.constant dense<0.000000e+00> : vector<2x11xf32>
    %782 = tpu.matmul %780, %781, %cst_350 {dimension_numbers = #tpu.dot_dimension_numbers<[1], [0], [0], [1], [0, 0, 1, 1], [], []>} : vector<2x32xf32>, vector<32x11xf32>, vector<2x11xf32> -> vector<2x11xf32>
    %c0_351 = arith.constant 0 : index
    %c0_352 = arith.constant 0 : index
    %783 = vector.load %arg18[%c0_351, %c0_352] : memref<1x11xf32, #tpu.memory_space<vmem>>, vector<1x11xf32>
    %784 = vector.broadcast %783 : vector<1x11xf32> to vector<2x11xf32>
    %785 = arith.addf %782, %784 : vector<2x11xf32>
    %cst_353 = arith.constant dense<0xFF800000> : vector<2xf32>
    %786 = vector.multi_reduction <maximumf>, %785, %cst_353 [1] : vector<2x11xf32> to vector<2xf32>
    %787 = vector.shape_cast %786 : vector<2xf32> to vector<2x1xf32>
    %788 = vector.broadcast %787 : vector<2x1xf32> to vector<2x11xf32>
    %789 = arith.subf %785, %788 : vector<2x11xf32>
    %790 = math.exp %789 : vector<2x11xf32>
    %cst_354 = arith.constant dense<0.000000e+00> : vector<2xf32>
    %791 = vector.multi_reduction <add>, %790, %cst_354 [1] : vector<2x11xf32> to vector<2xf32>
    %792 = vector.shape_cast %791 : vector<2xf32> to vector<2x1xf32>
    %793 = math.log %792 : vector<2x1xf32>
    %794 = arith.addf %787, %793 : vector<2x1xf32>
    %c0_355 = arith.constant 0 : index
    %c0_356 = arith.constant 0 : index
    %795 = vector.load %arg36[%c0_355, %c0_356] : memref<2x32xf32, #tpu.memory_space<vmem>>, vector<2x32xf32>
    tpu.vector_store %arg36[%c0_355, %c0_356], %757 {strides = array<i32>} : memref<2x32xf32, #tpu.memory_space<vmem>>, vector<2x32xf32>,
    %c0_357 = arith.constant 0 : index
    %c0_358 = arith.constant 0 : index
    %796 = vector.load %arg37[%c0_357, %c0_358] : memref<2x11xf32, #tpu.memory_space<vmem>>, vector<2x11xf32>
    tpu.vector_store %arg37[%c0_357, %c0_358], %785 {strides = array<i32>} : memref<2x11xf32, #tpu.memory_space<vmem>>, vector<2x11xf32>,
    %797 = vector.broadcast %794 : vector<2x1xf32> to vector<2x11xf32>
    %798 = arith.subf %785, %797 : vector<2x11xf32>
    %c0_359 = arith.constant 0 : index
    %c0_360 = arith.constant 0 : index
    %799 = vector.load %arg38[%c0_359, %c0_360] : memref<2x11xf32, #tpu.memory_space<vmem>>, vector<2x11xf32>
    tpu.vector_store %arg38[%c0_359, %c0_360], %798 {strides = array<i32>} : memref<2x11xf32, #tpu.memory_space<vmem>>, vector<2x11xf32>,
    return
  }
  func.func @transform_0(%arg0: i32) -> (i32, i32) {
    %c0_i32 = arith.constant 0 : i32
    %c0_i32_0 = arith.constant 0 : i32
    %c0_i32_1 = arith.constant 0 : i32
    return %c0_i32, %c0_i32_0 : i32, i32
  }
  func.func @transform_1(%arg0: i32) -> (i32, i32) {
    %c0_i32 = arith.constant 0 : i32
    %c0_i32_0 = arith.constant 0 : i32
    %c0_i32_1 = arith.constant 0 : i32
    return %c0_i32, %c0_i32_0 : i32, i32
  }
  func.func @transform_2(%arg0: i32) -> (i32, i32) {
    %c0_i32 = arith.constant 0 : i32
    %c0_i32_0 = arith.constant 0 : i32
    %c0_i32_1 = arith.constant 0 : i32
    return %c0_i32, %c0_i32_0 : i32, i32
  }
  func.func @transform_3(%arg0: i32) -> (i32, i32) {
    %c0_i32 = arith.constant 0 : i32
    %c0_i32_0 = arith.constant 0 : i32
    %c0_i32_1 = arith.constant 0 : i32
    return %c0_i32, %c0_i32_0 : i32, i32
  }
  func.func @transform_4(%arg0: i32) -> (i32, i32) {
    %c0_i32 = arith.constant 0 : i32
    %c0_i32_0 = arith.constant 0 : i32
    %c0_i32_1 = arith.constant 0 : i32
    return %c0_i32, %c0_i32_0 : i32, i32
  }
  func.func @transform_5(%arg0: i32) -> (i32, i32) {
    %c0_i32 = arith.constant 0 : i32
    %c0_i32_0 = arith.constant 0 : i32
    %c0_i32_1 = arith.constant 0 : i32
    return %c0_i32, %c0_i32_0 : i32, i32
  }
  func.func @transform_6(%arg0: i32) -> (i32, i32) {
    %c0_i32 = arith.constant 0 : i32
    %c0_i32_0 = arith.constant 0 : i32
    %c0_i32_1 = arith.constant 0 : i32
    return %c0_i32, %c0_i32_0 : i32, i32
  }
  func.func @transform_7(%arg0: i32) -> (i32, i32) {
    %c0_i32 = arith.constant 0 : i32
    %c0_i32_0 = arith.constant 0 : i32
    %c0_i32_1 = arith.constant 0 : i32
    return %c0_i32, %c0_i32_0 : i32, i32
  }
  func.func @transform_8(%arg0: i32) -> (i32, i32, i32) {
    %c0_i32 = arith.constant 0 : i32
    %c0_i32_0 = arith.constant 0 : i32
    %c0_i32_1 = arith.constant 0 : i32
    %c0_i32_2 = arith.constant 0 : i32
    return %c0_i32, %c0_i32_0, %c0_i32_1 : i32, i32, i32
  }
  func.func @transform_9(%arg0: i32) -> (i32, i32, i32) {
    %c0_i32 = arith.constant 0 : i32
    %c0_i32_0 = arith.constant 0 : i32
    %c0_i32_1 = arith.constant 0 : i32
    %c0_i32_2 = arith.constant 0 : i32
    return %c0_i32, %c0_i32_0, %c0_i32_1 : i32, i32, i32
  }
  func.func @transform_10(%arg0: i32) -> (i32, i32, i32) {
    %c0_i32 = arith.constant 0 : i32
    %c0_i32_0 = arith.constant 0 : i32
    %c0_i32_1 = arith.constant 0 : i32
    %c0_i32_2 = arith.constant 0 : i32
    return %c0_i32, %c0_i32_0, %c0_i32_1 : i32, i32, i32
  }
  func.func @transform_11(%arg0: i32) -> (i32, i32, i32) {
    %c0_i32 = arith.constant 0 : i32
    %c0_i32_0 = arith.constant 0 : i32
    %c0_i32_1 = arith.constant 0 : i32
    %c0_i32_2 = arith.constant 0 : i32
    return %c0_i32, %c0_i32_0, %c0_i32_1 : i32, i32, i32
  }
  func.func @transform_12(%arg0: i32) -> (i32, i32, i32) {
    %c0_i32 = arith.constant 0 : i32
    %c0_i32_0 = arith.constant 0 : i32
    %c0_i32_1 = arith.constant 0 : i32
    %c0_i32_2 = arith.constant 0 : i32
    return %c0_i32, %c0_i32_0, %c0_i32_1 : i32, i32, i32
  }
  func.func @transform_13(%arg0: i32) -> (i32, i32, i32) {
    %c0_i32 = arith.constant 0 : i32
    %c0_i32_0 = arith.constant 0 : i32
    %c0_i32_1 = arith.constant 0 : i32
    %c0_i32_2 = arith.constant 0 : i32
    return %c0_i32, %c0_i32_0, %c0_i32_1 : i32, i32, i32
  }
  func.func @transform_14(%arg0: i32) -> (i32, i32, i32) {
    %c0_i32 = arith.constant 0 : i32
    %c0_i32_0 = arith.constant 0 : i32
    %c0_i32_1 = arith.constant 0 : i32
    %c0_i32_2 = arith.constant 0 : i32
    return %c0_i32, %c0_i32_0, %c0_i32_1 : i32, i32, i32
  }
  func.func @transform_15(%arg0: i32) -> (i32, i32, i32) {
    %c0_i32 = arith.constant 0 : i32
    %c0_i32_0 = arith.constant 0 : i32
    %c0_i32_1 = arith.constant 0 : i32
    %c0_i32_2 = arith.constant 0 : i32
    return %c0_i32, %c0_i32_0, %c0_i32_1 : i32, i32, i32
  }
  func.func @transform_16(%arg0: i32) -> (i32, i32, i32) {
    %c0_i32 = arith.constant 0 : i32
    %c0_i32_0 = arith.constant 0 : i32
    %c0_i32_1 = arith.constant 0 : i32
    %c0_i32_2 = arith.constant 0 : i32
    return %c0_i32, %c0_i32_0, %c0_i32_1 : i32, i32, i32
  }
  func.func @transform_17(%arg0: i32) -> (i32, i32) {
    %c0_i32 = arith.constant 0 : i32
    %c0_i32_0 = arith.constant 0 : i32
    %c0_i32_1 = arith.constant 0 : i32
    return %c0_i32, %c0_i32_0 : i32, i32
  }
  func.func @transform_18(%arg0: i32) -> (i32, i32) {
    %c0_i32 = arith.constant 0 : i32
    %c0_i32_0 = arith.constant 0 : i32
    %c0_i32_1 = arith.constant 0 : i32
    return %c0_i32, %c0_i32_0 : i32, i32
  }
  func.func @transform_19(%arg0: i32) -> (i32, i32) {
    %c0_i32 = arith.constant 0 : i32
    %c0_i32_0 = arith.constant 0 : i32
    %c0_i32_1 = arith.constant 0 : i32
    return %c0_i32, %c0_i32_0 : i32, i32
  }
  func.func @transform_20(%arg0: i32) -> (i32, i32) {
    %c0_i32 = arith.constant 0 : i32
    %c0_i32_0 = arith.constant 0 : i32
    %c0_i32_1 = arith.constant 0 : i32
    return %c0_i32, %c0_i32_0 : i32, i32
  }
  func.func @transform_21(%arg0: i32) -> (i32, i32) {
    %c0_i32 = arith.constant 0 : i32
    %c0_i32_0 = arith.constant 0 : i32
    %c0_i32_1 = arith.constant 0 : i32
    return %c0_i32, %c0_i32_0 : i32, i32
  }
  func.func @transform_22(%arg0: i32) -> (i32, i32) {
    %c0_i32 = arith.constant 0 : i32
    %c0_i32_0 = arith.constant 0 : i32
    %c0_i32_1 = arith.constant 0 : i32
    return %c0_i32, %c0_i32_0 : i32, i32
  }
  func.func @transform_23(%arg0: i32) -> (i32, i32) {
    %c0_i32 = arith.constant 0 : i32
    %c0_i32_0 = arith.constant 0 : i32
    %c0_i32_1 = arith.constant 0 : i32
    return %c0_i32, %c0_i32_0 : i32, i32
  }
  func.func @transform_24(%arg0: i32) -> (i32, i32) {
    %c0_i32 = arith.constant 0 : i32
    %c0_i32_0 = arith.constant 0 : i32
    %c0_i32_1 = arith.constant 0 : i32
    return %c0_i32, %c0_i32_0 : i32, i32
  }
  func.func @transform_25(%arg0: i32) -> (i32, i32) {
    %c0_i32 = arith.constant 0 : i32
    %c0_i32_0 = arith.constant 0 : i32
    %c0_i32_1 = arith.constant 0 : i32
    return %c0_i32, %c0_i32_0 : i32, i32
  }
  func.func @transform_26(%arg0: i32) -> (i32, i32) {
    %c0_i32 = arith.constant 0 : i32
    %c0_i32_0 = arith.constant 0 : i32
    %c0_i32_1 = arith.constant 0 : i32
    return %c0_i32, %c0_i32_0 : i32, i32
  }
  func.func @transform_27(%arg0: i32) -> (i32, i32) {
    %c0_i32 = arith.constant 0 : i32
    %c0_i32_0 = arith.constant 0 : i32
    %c0_i32_1 = arith.constant 0 : i32
    return %c0_i32, %c0_i32_0 : i32, i32
  }
  func.func @transform_28(%arg0: i32) -> (i32, i32, i32) {
    %c0_i32 = arith.constant 0 : i32
    %c0_i32_0 = arith.constant 0 : i32
    %c0_i32_1 = arith.constant 0 : i32
    %c0_i32_2 = arith.constant 0 : i32
    return %c0_i32, %c0_i32_0, %c0_i32_1 : i32, i32, i32
  }
  func.func @transform_29(%arg0: i32) -> (i32, i32) {
    %c0_i32 = arith.constant 0 : i32
    %c0_i32_0 = arith.constant 0 : i32
    %c0_i32_1 = arith.constant 0 : i32
    return %c0_i32, %c0_i32_0 : i32, i32
  }
  func.func @transform_30(%arg0: i32) -> (i32, i32, i32) {
    %c0_i32 = arith.constant 0 : i32
    %c0_i32_0 = arith.constant 0 : i32
    %c0_i32_1 = arith.constant 0 : i32
    %c0_i32_2 = arith.constant 0 : i32
    return %c0_i32, %c0_i32_0, %c0_i32_1 : i32, i32, i32
  }
  func.func @transform_31(%arg0: i32) -> (i32, i32) {
    %c0_i32 = arith.constant 0 : i32
    %c0_i32_0 = arith.constant 0 : i32
    %c0_i32_1 = arith.constant 0 : i32
    return %c0_i32, %c0_i32_0 : i32, i32
  }
  func.func @transform_32(%arg0: i32) -> (i32, i32, i32) {
    %c0_i32 = arith.constant 0 : i32
    %c0_i32_0 = arith.constant 0 : i32
    %c0_i32_1 = arith.constant 0 : i32
    %c0_i32_2 = arith.constant 0 : i32
    return %c0_i32, %c0_i32_0, %c0_i32_1 : i32, i32, i32
  }
  func.func @transform_33(%arg0: i32) -> (i32, i32) {
    %c0_i32 = arith.constant 0 : i32
    %c0_i32_0 = arith.constant 0 : i32
    %c0_i32_1 = arith.constant 0 : i32
    return %c0_i32, %c0_i32_0 : i32, i32
  }
  func.func @transform_34(%arg0: i32) -> (i32, i32) {
    %c0_i32 = arith.constant 0 : i32
    %c0_i32_0 = arith.constant 0 : i32
    %c0_i32_1 = arith.constant 0 : i32
    return %c0_i32, %c0_i32_0 : i32, i32
  }
  func.func @transform_35(%arg0: i32) -> (i32, i32) {
    %c0_i32 = arith.constant 0 : i32
    %c0_i32_0 = arith.constant 0 : i32
    %c0_i32_1 = arith.constant 0 : i32
    return %c0_i32, %c0_i32_0 : i32, i32
  }
  func.func @transform_36(%arg0: i32) -> (i32, i32) {
    %c0_i32 = arith.constant 0 : i32
    %c0_i32_0 = arith.constant 0 : i32
    %c0_i32_1 = arith.constant 0 : i32
    return %c0_i32, %c0_i32_0 : i32, i32
  }
  func.func @transform_37(%arg0: i32) -> (i32, i32) {
    %c0_i32 = arith.constant 0 : i32
    %c0_i32_0 = arith.constant 0 : i32
    %c0_i32_1 = arith.constant 0 : i32
    return %c0_i32, %c0_i32_0 : i32, i32
  }
}

</mosaic_0001>

<llo_original>
// kernel: mm_transformer_forward.1
$region0: #{mm_transformer_forward.1}
  #allocation0 [shape = 'u32[]', space=smem, size = 0x4, offset = 0x4, fixed_abs, tag = 'smem constant byte address 0x4 - core index']
  #allocation1 [shape = 'u32[144,128]{1,0:T(1,128)}', space=vmem, size = 0x12000, scoped, tag = 'internal scratch']
  %s0 = inlined_call_operand.smem [shape: u32[38], index: -1, kind: input, shape index: {}]
  %s1 = sld [smem:[%s0]]
  %s2 = scalar_lea.smem %s0, 1
  %s3 = sld [smem:[%s2]]
  %s4 = scalar_lea.smem %s0, 2
  %s5 = sld [smem:[%s4]]
  %s6 = scalar_lea.smem %s0, 3
  %s7 = sld [smem:[%s6]]
  %s8 = scalar_lea.smem %s0, 4
  %s9 = sld [smem:[%s8]]
  %s10 = scalar_lea.smem %s0, 5
  %s11 = sld [smem:[%s10]]
  %s12 = scalar_lea.smem %s0, 6
  %s13 = sld [smem:[%s12]]
  %s14 = scalar_lea.smem %s0, 7
  %s15 = sld [smem:[%s14]]
  %s16 = scalar_lea.smem %s0, 8
  %s17 = sld [smem:[%s16]]
  %s18 = scalar_lea.smem %s0, 9
  %s19 = sld [smem:[%s18]]
  %s20 = scalar_lea.smem %s0, 10
  %s21 = sld [smem:[%s20]]
  %s22 = scalar_lea.smem %s0, 11
  %s23 = sld [smem:[%s22]]
  %s24 = scalar_lea.smem %s0, 12
  %s25 = sld [smem:[%s24]]
  %s26 = scalar_lea.smem %s0, 13
  %s27 = sld [smem:[%s26]]
  %s28 = scalar_lea.smem %s0, 14
  %s29 = sld [smem:[%s28]]
  %s30 = scalar_lea.smem %s0, 15
  %s31 = sld [smem:[%s30]]
  %s32 = scalar_lea.smem %s0, 16
  %s33 = sld [smem:[%s32]]
  %s34 = scalar_lea.smem %s0, 17
  %s35 = sld [smem:[%s34]]
  %s36 = scalar_lea.smem %s0, 18
  %s37 = sld [smem:[%s36]]
  %s38 = scalar_lea.smem %s0, 19
  %s39 = sld [smem:[%s38]]
  %s40 = scalar_lea.smem %s0, 20
  %s41 = sld [smem:[%s40]]
  %s42 = scalar_lea.smem %s0, 21
  %s43 = sld [smem:[%s42]]
  %s44 = scalar_lea.smem %s0, 22
  %s45 = sld [smem:[%s44]]
  %s46 = scalar_lea.smem %s0, 23
  %s47 = sld [smem:[%s46]]
  %s48 = scalar_lea.smem %s0, 24
  %s49 = sld [smem:[%s48]]
  %s50 = scalar_lea.smem %s0, 25
  %s51 = sld [smem:[%s50]]
  %s52 = scalar_lea.smem %s0, 26
  %s53 = sld [smem:[%s52]]
  %s54 = scalar_lea.smem %s0, 27
  %s55 = sld [smem:[%s54]]
  %s56 = scalar_lea.smem %s0, 28
  %s57 = sld [smem:[%s56]]
  %s58 = scalar_lea.smem %s0, 29
  %s59 = sld [smem:[%s58]]
  %s60 = scalar_lea.smem %s0, 30
  %s61 = sld [smem:[%s60]]
  %s62 = scalar_lea.smem %s0, 31
  %s63 = sld [smem:[%s62]]
  %s64 = scalar_lea.smem %s0, 32
  %s65 = sld [smem:[%s64]]
  %s66 = scalar_lea.smem %s0, 33
  %s67 = sld [smem:[%s66]]
  %s68 = scalar_lea.smem %s0, 34
  %s69 = sld [smem:[%s68]]
  %s70 = scalar_lea.smem %s0, 35
  %s71 = sld [smem:[%s70]]
  %s72 = scalar_lea.smem %s0, 36
  %s73 = sld [smem:[%s72]]
  %s74 = scalar_lea.smem %s0, 37
  %s75 = sld [smem:[%s74]]
  %76 = xla_tuple %s71, %s73, %s75
  %s77 = sld [smem:[#allocation0]]
  $region166: #{mm_transformer_forward.1} parent=0
    _
  %s79 = ssub.s32 1, %s77
  %s80 = scalar_select 0, %s79, %s77
  $region1: #{mm_transformer_forward.1} parent=0
    #allocation2 [shape = 'u8[1024]{0}', space=vmem, size = 0x400, scoped, tag = 'output window, operand 0, single buffered']
    #allocation3 [shape = 's32[1]{0}', space=sflag, size = 0x4, scoped, tag = 'scoped memory for mm_transformer_forward.1']
    #allocation4 [shape = 'u8[1024]{0}', space=vmem, size = 0x400, scoped, tag = 'output window, operand 1, single buffered']
    #allocation5 [shape = 's32[1]{0}', space=sflag, size = 0x4, scoped, tag = 'scoped memory for mm_transformer_forward.1']
    #allocation6 [shape = 'u8[1024]{0}', space=vmem, size = 0x400, scoped, tag = 'output window, operand 2, single buffered']
    %81 = vsyncpa [#allocation3], 0
    %82 = vsyncpa [#allocation5], 0
    // Predicated region
    $region2: #{mm_transformer_forward.1} parent=1 // pred_check
      _
    $region3: #{mm_transformer_forward.1} parent=1 // pred_check_branch
      %84 = sbr.rel (0) target = $region5
    $region4: #{mm_transformer_forward.1} parent=1 // pred_region
      _
    $region5: #{mm_transformer_forward.1} parent=1 // pred_fallthru
      _
    // Predicated region
    $region6: #{mm_transformer_forward.1} parent=1 // pred_check
      _
    $region7: #{mm_transformer_forward.1} parent=1 // pred_check_branch
      %86 = sbr.rel (0) target = $region9
    $region8: #{mm_transformer_forward.1} parent=1 // pred_region
      _
    $region9: #{mm_transformer_forward.1} parent=1 // pred_fallthru
      _
    // Predicated region
    $region10: #{mm_transformer_forward.1} parent=1 // pred_check
      _
    $region11: #{mm_transformer_forward.1} parent=1 // pred_check_branch
      %88 = sbr.rel (0) target = $region13
    $region12: #{mm_transformer_forward.1} parent=1 // pred_region
      _
    $region13: #{mm_transformer_forward.1} parent=1 // pred_fallthru
      _
    // Predicated region
    $region14: #{mm_transformer_forward.1} parent=1 // pred_check
      _
    $region15: #{mm_transformer_forward.1} parent=1 // pred_check_branch
      %90 = sbr.rel (0) target = $region17
    $region16: #{mm_transformer_forward.1} parent=1 // pred_region
      _
    $region17: #{mm_transformer_forward.1} parent=1 // pred_fallthru
      _
    // Predicated region
    $region18: #{mm_transformer_forward.1} parent=1 // pred_check
      _
    $region19: #{mm_transformer_forward.1} parent=1 // pred_check_branch
      %92 = sbr.rel (0) target = $region21
    $region20: #{mm_transformer_forward.1} parent=1 // pred_region
      _
    $region21: #{mm_transformer_forward.1} parent=1 // pred_fallthru
      _
    // Predicated region
    $region22: #{mm_transformer_forward.1} parent=1 // pred_check
      _
    $region23: #{mm_transformer_forward.1} parent=1 // pred_check_branch
      %94 = sbr.rel (0) target = $region25
    $region24: #{mm_transformer_forward.1} parent=1 // pred_region
      _
    $region25: #{mm_transformer_forward.1} parent=1 // pred_fallthru
      _
    // Predicated region
    $region26: #{mm_transformer_forward.1} parent=1 // pred_check
      _
    $region27: #{mm_transformer_forward.1} parent=1 // pred_check_branch
      %96 = sbr.rel (0) target = $region29
    $region28: #{mm_transformer_forward.1} parent=1 // pred_region
      _
    $region29: #{mm_transformer_forward.1} parent=1 // pred_fallthru
      _
    // Predicated region
    $region30: #{mm_transformer_forward.1} parent=1 // pred_check
      _
    $region31: #{mm_transformer_forward.1} parent=1 // pred_check_branch
      %98 = sbr.rel (0) target = $region33
    $region32: #{mm_transformer_forward.1} parent=1 // pred_region
      _
    $region33: #{mm_transformer_forward.1} parent=1 // pred_fallthru
      _
    // Predicated region
    $region34: #{mm_transformer_forward.1} parent=1 // pred_check
      _
    $region35: #{mm_transformer_forward.1} parent=1 // pred_check_branch
      %100 = sbr.rel (0) target = $region37
    $region36: #{mm_transformer_forward.1} parent=1 // pred_region
      _
    $region37: #{mm_transformer_forward.1} parent=1 // pred_fallthru
      _
    // Predicated region
    $region38: #{mm_transformer_forward.1} parent=1 // pred_check
      _
    $region39: #{mm_transformer_forward.1} parent=1 // pred_check_branch
      %102 = sbr.rel (0) target = $region41
    $region40: #{mm_transformer_forward.1} parent=1 // pred_region
      _
    $region41: #{mm_transformer_forward.1} parent=1 // pred_fallthru
      _
    // Predicated region
    $region42: #{mm_transformer_forward.1} parent=1 // pred_check
      _
    $region43: #{mm_transformer_forward.1} parent=1 // pred_check_branch
      %104 = sbr.rel (0) target = $region45
    $region44: #{mm_transformer_forward.1} parent=1 // pred_region
      _
    $region45: #{mm_transformer_forward.1} parent=1 // pred_fallthru
      _
    // Predicated region
    $region46: #{mm_transformer_forward.1} parent=1 // pred_check
      _
    $region47: #{mm_transformer_forward.1} parent=1 // pred_check_branch
      %106 = sbr.rel (0) target = $region49
    $region48: #{mm_transformer_forward.1} parent=1 // pred_region
      _
    $region49: #{mm_transformer_forward.1} parent=1 // pred_fallthru
      _
    // Predicated region
    $region50: #{mm_transformer_forward.1} parent=1 // pred_check
      _
    $region51: #{mm_transformer_forward.1} parent=1 // pred_check_branch
      %108 = sbr.rel (0) target = $region53
    $region52: #{mm_transformer_forward.1} parent=1 // pred_region
      _
    $region53: #{mm_transformer_forward.1} parent=1 // pred_fallthru
      _
    // Predicated region
    $region54: #{mm_transformer_forward.1} parent=1 // pred_check
      _
    $region55: #{mm_transformer_forward.1} parent=1 // pred_check_branch
      %110 = sbr.rel (0) target = $region57
    $region56: #{mm_transformer_forward.1} parent=1 // pred_region
      _
    $region57: #{mm_transformer_forward.1} parent=1 // pred_fallthru
      _
    // Predicated region
    $region58: #{mm_transformer_forward.1} parent=1 // pred_check
      _
    $region59: #{mm_transformer_forward.1} parent=1 // pred_check_branch
      %112 = sbr.rel (0) target = $region61
    $region60: #{mm_transformer_forward.1} parent=1 // pred_region
      _
    $region61: #{mm_transformer_forward.1} parent=1 // pred_fallthru
      _
    // Predicated region
    $region62: #{mm_transformer_forward.1} parent=1 // pred_check
      _
    $region63: #{mm_transformer_forward.1} parent=1 // pred_check_branch
      %114 = sbr.rel (0) target = $region65
    $region64: #{mm_transformer_forward.1} parent=1 // pred_region
      _
    $region65: #{mm_transformer_forward.1} parent=1 // pred_fallthru
      _
    // Predicated region
    $region66: #{mm_transformer_forward.1} parent=1 // pred_check
      _
    $region67: #{mm_transformer_forward.1} parent=1 // pred_check_branch
      %116 = sbr.rel (0) target = $region69
    $region68: #{mm_transformer_forward.1} parent=1 // pred_region
      _
    $region69: #{mm_transformer_forward.1} parent=1 // pred_fallthru
      _
    // Predicated region
    $region70: #{mm_transformer_forward.1} parent=1 // pred_check
      _
    $region71: #{mm_transformer_forward.1} parent=1 // pred_check_branch
      %118 = sbr.rel (0) target = $region73
    $region72: #{mm_transformer_forward.1} parent=1 // pred_region
      _
    $region73: #{mm_transformer_forward.1} parent=1 // pred_fallthru
      _
    // Predicated region
    $region74: #{mm_transformer_forward.1} parent=1 // pred_check
      _
    $region75: #{mm_transformer_forward.1} parent=1 // pred_check_branch
      %120 = sbr.rel (0) target = $region77
    $region76: #{mm_transformer_forward.1} parent=1 // pred_region
      _
    $region77: #{mm_transformer_forward.1} parent=1 // pred_fallthru
      _
    // Predicated region
    $region78: #{mm_transformer_forward.1} parent=1 // pred_check
      _
    $region79: #{mm_transformer_forward.1} parent=1 // pred_check_branch
      %122 = sbr.rel (0) target = $region81
    $region80: #{mm_transformer_forward.1} parent=1 // pred_region
      _
    $region81: #{mm_transformer_forward.1} parent=1 // pred_fallthru
      _
    // Predicated region
    $region82: #{mm_transformer_forward.1} parent=1 // pred_check
      _
    $region83: #{mm_transformer_forward.1} parent=1 // pred_check_branch
      %124 = sbr.rel (0) target = $region85
    $region84: #{mm_transformer_forward.1} parent=1 // pred_region
      _
    $region85: #{mm_transformer_forward.1} parent=1 // pred_fallthru
      _
    // Predicated region
    $region86: #{mm_transformer_forward.1} parent=1 // pred_check
      _
    $region87: #{mm_transformer_forward.1} parent=1 // pred_check_branch
      %126 = sbr.rel (0) target = $region89
    $region88: #{mm_transformer_forward.1} parent=1 // pred_region
      _
    $region89: #{mm_transformer_forward.1} parent=1 // pred_fallthru
      _
    // Predicated region
    $region90: #{mm_transformer_forward.1} parent=1 // pred_check
      _
    $region91: #{mm_transformer_forward.1} parent=1 // pred_check_branch
      %128 = sbr.rel (0) target = $region93
    $region92: #{mm_transformer_forward.1} parent=1 // pred_region
      _
    $region93: #{mm_transformer_forward.1} parent=1 // pred_fallthru
      _
    // Predicated region
    $region94: #{mm_transformer_forward.1} parent=1 // pred_check
      _
    $region95: #{mm_transformer_forward.1} parent=1 // pred_check_branch
      %130 = sbr.rel (0) target = $region97
    $region96: #{mm_transformer_forward.1} parent=1 // pred_region
      _
    $region97: #{mm_transformer_forward.1} parent=1 // pred_fallthru
      _
    // Predicated region
    $region98: #{mm_transformer_forward.1} parent=1 // pred_check
      _
    $region99: #{mm_transformer_forward.1} parent=1 // pred_check_branch
      %132 = sbr.rel (0) target = $region101
    $region100: #{mm_transformer_forward.1} parent=1 // pred_region
      _
    $region101: #{mm_transformer_forward.1} parent=1 // pred_fallthru
      _
    // Predicated region
    $region102: #{mm_transformer_forward.1} parent=1 // pred_check
      _
    $region103: #{mm_transformer_forward.1} parent=1 // pred_check_branch
      %134 = sbr.rel (0) target = $region105
    $region104: #{mm_transformer_forward.1} parent=1 // pred_region
      _
    $region105: #{mm_transformer_forward.1} parent=1 // pred_fallthru
      _
    // Predicated region
    $region106: #{mm_transformer_forward.1} parent=1 // pred_check
      _
    $region107: #{mm_transformer_forward.1} parent=1 // pred_check_branch
      %136 = sbr.rel (0) target = $region109
    $region108: #{mm_transformer_forward.1} parent=1 // pred_region
      _
    $region109: #{mm_transformer_forward.1} parent=1 // pred_fallthru
      _
    // Predicated region
    $region110: #{mm_transformer_forward.1} parent=1 // pred_check
      _
    $region111: #{mm_transformer_forward.1} parent=1 // pred_check_branch
      %138 = sbr.rel (0) target = $region113
    $region112: #{mm_transformer_forward.1} parent=1 // pred_region
      _
    $region113: #{mm_transformer_forward.1} parent=1 // pred_fallthru
      _
    // Predicated region
    $region114: #{mm_transformer_forward.1} parent=1 // pred_check
      _
    $region115: #{mm_transformer_forward.1} parent=1 // pred_check_branch
      %140 = sbr.rel (0) target = $region117
    $region116: #{mm_transformer_forward.1} parent=1 // pred_region
      _
    $region117: #{mm_transformer_forward.1} parent=1 // pred_fallthru
      _
    // Predicated region
    $region118: #{mm_transformer_forward.1} parent=1 // pred_check
      _
    $region119: #{mm_transformer_forward.1} parent=1 // pred_check_branch
      %142 = sbr.rel (0) target = $region121
    $region120: #{mm_transformer_forward.1} parent=1 // pred_region
      _
    $region121: #{mm_transformer_forward.1} parent=1 // pred_fallthru
      _
    // Predicated region
    $region122: #{mm_transformer_forward.1} parent=1 // pred_check
      _
    $region123: #{mm_transformer_forward.1} parent=1 // pred_check_branch
      %144 = sbr.rel (0) target = $region125
    $region124: #{mm_transformer_forward.1} parent=1 // pred_region
      _
    $region125: #{mm_transformer_forward.1} parent=1 // pred_fallthru
      _
    // Predicated region
    $region126: #{mm_transformer_forward.1} parent=1 // pred_check
      _
    $region127: #{mm_transformer_forward.1} parent=1 // pred_check_branch
      %146 = sbr.rel (0) target = $region129
    $region128: #{mm_transformer_forward.1} parent=1 // pred_region
      _
    $region129: #{mm_transformer_forward.1} parent=1 // pred_fallthru
      _
    // Predicated region
    $region130: #{mm_transformer_forward.1} parent=1 // pred_check
      _
    $region131: #{mm_transformer_forward.1} parent=1 // pred_check_branch
      %148 = sbr.rel (0) target = $region133
    $region132: #{mm_transformer_forward.1} parent=1 // pred_region
      _
    $region133: #{mm_transformer_forward.1} parent=1 // pred_fallthru
      _
    // Predicated region
    $region134: #{mm_transformer_forward.1} parent=1 // pred_check
      _
    $region135: #{mm_transformer_forward.1} parent=1 // pred_check_branch
      %150 = sbr.rel (0) target = $region137
    $region136: #{mm_transformer_forward.1} parent=1 // pred_region
      _
    $region137: #{mm_transformer_forward.1} parent=1 // pred_fallthru
      _
    // Predicated region
    $region138: #{mm_transformer_forward.1} parent=1 // pred_check
      _
    $region139: #{mm_transformer_forward.1} parent=1 // pred_check_branch
      %152 = sbr.rel (0) target = $region141
    $region140: #{mm_transformer_forward.1} parent=1 // pred_region
      _
    $region141: #{mm_transformer_forward.1} parent=1 // pred_fallthru
      _
    %v153 = vld [vmem:[%s67] sm:$0xff]
    %v154 = vld [vmem:[%s67 + $0x8] sm:$0xff]
    %v155 = vld [vmem:[%s67 + $0x10] sm:$0xff]
    %v156 = vld [vmem:[%s67 + $0x18] sm:$0xff]
    %v157 = vld [vmem:[%s15] sm:$0xff]
    %v158 = vld [vmem:[%s15 + $0x8] sm:$0xff]
    %v159 = vld [vmem:[%s15 + $0x10] sm:$0x3]
    %v160 = vld [vmem:[%s1] sm:$0xff]
    %v161 = vld [vmem:[%s1 + $0x8] sm:$0xff]
    %v162 = vld [vmem:[%s1 + $0x10] sm:$0xff]
    %v163 = vld [vmem:[%s1 + $0x18] sm:$0xff]
    %v164 = vld [vmem:[%s1 + $0x20] sm:$0xff]
    %v165 = vld [vmem:[%s1 + $0x28] sm:$0xff]
    %v166 = vld [vmem:[%s49] sm:$0xff]
    %v167 = vld [vmem:[%s49 + $0x8] sm:$0xff]
    %v168 = vld [vmem:[%s49 + $0x10] sm:$0xff]
    %v169 = vld [vmem:[%s49 + $0x18] sm:$0xff]
    %v170 = vld [vmem:[%s49 + $0x20] sm:$0xff]
    %v171 = vld [vmem:[%s49 + $0x28] sm:$0xff]
    %v172 = vld [vmem:[%s49 + $0x30] sm:$0xff]
    %v173 = vld [vmem:[%s49 + $0x38] sm:$0xff]
    %v174 = vld [vmem:[%s49 + $0x40] sm:$0xff]
    %v175 = vld [vmem:[%s49 + $0x48] sm:$0xff]
    %v176 = vld [vmem:[%s49 + $0x50] sm:$0xff]
    %v177 = vld [vmem:[%s49 + $0x58] sm:$0xff]
    %v178 = vld [vmem:[%s49 + $0x60] sm:$0xff]
    %v179 = vld [vmem:[%s49 + $0x68] sm:$0xff]
    %v180 = vld [vmem:[%s49 + $0x70] sm:$0xff]
    %v181 = vld [vmem:[%s49 + $0x78] sm:$0xff]
    %v182 = vld [vmem:[%s49 + $0x80] sm:$0xff]
    %v183 = vld [vmem:[%s49 + $0x88] sm:$0xff]
    %v184 = vld [vmem:[%s49 + $0x90] sm:$0xff]
    %v185 = vld [vmem:[%s49 + $0x98] sm:$0xff]
    %v186 = vld [vmem:[%s49 + $0xa0] sm:$0xff]
    %v187 = vld [vmem:[%s49 + $0xa8] sm:$0xff]
    %v188 = vld [vmem:[%s49 + $0xb0] sm:$0xff]
    %v189 = vld [vmem:[%s49 + $0xb8] sm:$0xff]
    %v190 = vld [vmem:[%s49 + $0xc0] sm:$0xff]
    %v191 = vld [vmem:[%s49 + $0xc8] sm:$0xff]
    %v192 = vld [vmem:[%s49 + $0xd0] sm:$0xff]
    %v193 = vld [vmem:[%s49 + $0xd8] sm:$0xff]
    %v194 = vld [vmem:[%s49 + $0xe0] sm:$0xff]
    %v195 = vld [vmem:[%s49 + $0xe8] sm:$0xff]
    %v196 = vld [vmem:[%s49 + $0xf0] sm:$0xff]
    %v197 = vld [vmem:[%s49 + $0xf8] sm:$0xff]
    %v198 = vld [vmem:[%s49 + $0x100] sm:$0xff]
    %v199 = vld [vmem:[%s49 + $0x108] sm:$0xff]
    %v200 = vld [vmem:[%s49 + $0x110] sm:$0xff]
    %v201 = vld [vmem:[%s49 + $0x118] sm:$0xff]
    %v202 = vld [vmem:[%s49 + $0x120] sm:$0xff]
    %v203 = vld [vmem:[%s49 + $0x128] sm:$0xff]
    %v204 = vld [vmem:[%s49 + $0x130] sm:$0xff]
    %v205 = vld [vmem:[%s49 + $0x138] sm:$0xff]
    %v206 = vld [vmem:[%s49 + $0x140] sm:$0xff]
    %v207 = vld [vmem:[%s49 + $0x148] sm:$0xff]
    %v208 = vld [vmem:[%s49 + $0x150] sm:$0xff]
    %v209 = vld [vmem:[%s49 + $0x158] sm:$0xff]
    %v210 = vld [vmem:[%s49 + $0x160] sm:$0xff]
    %v211 = vld [vmem:[%s49 + $0x168] sm:$0xff]
    %v212 = vld [vmem:[%s49 + $0x170] sm:$0xff]
    %v213 = vld [vmem:[%s49 + $0x178] sm:$0xff]
    %v214 = vld [vmem:[%s49 + $0x180] sm:$0xff]
    %v215 = vld [vmem:[%s49 + $0x188] sm:$0xff]
    %v216 = vld [vmem:[%s49 + $0x190] sm:$0xff]
    %v217 = vld [vmem:[%s49 + $0x198] sm:$0xff]
    %v218 = vld [vmem:[%s49 + $0x1a0] sm:$0xff]
    %v219 = vld [vmem:[%s49 + $0x1a8] sm:$0xff]
    %v220 = vld [vmem:[%s49 + $0x1b0] sm:$0xff]
    %v221 = vld [vmem:[%s49 + $0x1b8] sm:$0xff]
    %v222 = vld [vmem:[%s49 + $0x1c0] sm:$0xff]
    %v223 = vld [vmem:[%s49 + $0x1c8] sm:$0xff]
    %v224 = vld [vmem:[%s49 + $0x1d0] sm:$0xff]
    %v225 = vld [vmem:[%s49 + $0x1d8] sm:$0xff]
    %v226 = vld [vmem:[%s49 + $0x1e0] sm:$0xff]
    %v227 = vld [vmem:[%s49 + $0x1e8] sm:$0xff]
    %v228 = vld [vmem:[%s49 + $0x1f0] sm:$0xff]
    %v229 = vld [vmem:[%s49 + $0x1f8] sm:$0xff]
    %v230 = vld [vmem:[%s49 + $0x200] sm:$0xff]
    %v231 = vld [vmem:[%s49 + $0x208] sm:$0xff]
    %v232 = vld [vmem:[%s49 + $0x210] sm:$0xff]
    %v233 = vld [vmem:[%s49 + $0x218] sm:$0xff]
    %v234 = vld [vmem:[%s49 + $0x220] sm:$0xff]
    %v235 = vld [vmem:[%s49 + $0x228] sm:$0xff]
    %v236 = vld [vmem:[%s49 + $0x230] sm:$0xff]
    %v237 = vld [vmem:[%s49 + $0x238] sm:$0xff]
    %v238 = vld [vmem:[%s49 + $0x240] sm:$0xff]
    %v239 = vld [vmem:[%s49 + $0x248] sm:$0xff]
    %v240 = vld [vmem:[%s49 + $0x250] sm:$0xff]
    %v241 = vld [vmem:[%s49 + $0x258] sm:$0xff]
    %v242 = vld [vmem:[%s49 + $0x260] sm:$0xff]
    %v243 = vld [vmem:[%s49 + $0x268] sm:$0xff]
    %v244 = vld [vmem:[%s49 + $0x270] sm:$0xff]
    %v245 = vld [vmem:[%s49 + $0x278] sm:$0xff]
    %v246 = vld [vmem:[%s49 + $0x280] sm:$0xff]
    %v247 = vld [vmem:[%s49 + $0x288] sm:$0xff]
    %v248 = vld [vmem:[%s49 + $0x290] sm:$0xff]
    %v249 = vld [vmem:[%s49 + $0x298] sm:$0xff]
    %v250 = vld [vmem:[%s49 + $0x2a0] sm:$0xff]
    %v251 = vld [vmem:[%s49 + $0x2a8] sm:$0xff]
    %v252 = vld [vmem:[%s49 + $0x2b0] sm:$0xff]
    %v253 = vld [vmem:[%s49 + $0x2b8] sm:$0xff]
    %v254 = vld [vmem:[%s49 + $0x2c0] sm:$0xff]
    %v255 = vld [vmem:[%s49 + $0x2c8] sm:$0xff]
    %v256 = vld [vmem:[%s49 + $0x2d0] sm:$0xff]
    %v257 = vld [vmem:[%s49 + $0x2d8] sm:$0xff]
    %v258 = vld [vmem:[%s49 + $0x2e0] sm:$0x7f]
    %v259 = vld [vmem:[%s49 + $0x2e8] sm:$0x7f]
    %v260 = vld [vmem:[%s47] sm:$0x3]
    %v262 = vlaneseq
    %v263 = vshrl.u32 %v262, 7
    %v264 = vsub.s32 0, %v263
    %v265 = vrot.slane %v260, %v264
    %v266 = vlaneseq
    %v267 = vshrl.u32 %v266, 7
    %v268 = vsub.s32 1, %v267
    %v269 = vrot.slane %v260, %v268
    %vm272 = vcmask 973824
    %v274 = vsel %vm272, %v162, 0
    %v277 = vsel %vm272, %v165, 0
    %vm279 = vcmask 1046528
    %v281 = vsel %vm279, %v258, 0
    %v284 = vsel %vm279, %v259, 0
    %286 = vmatprep.subr.mxu0 %v167
    %287 = vmatpush1.msra.mxu0 %v166
    %288 = vmatprep.subr.mxu0 %v169
    %289 = vmatpush1.msra.mxu0 %v168
    %290 = vmatprep.subr.mxu0 %v171
    %291 = vmatpush1.msra.mxu0 %v170
    %292 = vmatprep.subr.mxu0 %v173
    %293 = vmatpush1.msra.mxu0 %v172
    %294 = vmatprep.subr.mxu0 %v175
    %295 = vmatpush1.msra.mxu0 %v174
    %296 = vmatprep.subr.mxu0 %v177
    %297 = vmatpush1.msra.mxu0 %v176
    %298 = vmatprep.subr.mxu0 %v179
    %299 = vmatpush1.msra.mxu0 %v178
    %300 = vmatprep.subr.mxu0 %v181
    %301 = vmatpush1.msra.mxu0 %v180
    %302 = vmatprep.subr.mxu0 %v183
    %303 = vmatpush1.msra.mxu0 %v182
    %304 = vmatprep.subr.mxu0 %v185
    %305 = vmatpush1.msra.mxu0 %v184
    %306 = vmatprep.subr.mxu0 %v187
    %307 = vmatpush1.msra.mxu0 %v186
    %308 = vmatprep.subr.mxu0 %v189
    %309 = vmatpush1.msra.mxu0 %v188
    %310 = vmatprep.subr.mxu0 %v191
    %311 = vmatpush1.msra.mxu0 %v190
    %312 = vmatprep.subr.mxu0 %v193
    %313 = vmatpush1.msra.mxu0 %v192
    %314 = vmatprep.subr.mxu0 %v195
    %315 = vmatpush1.msra.mxu0 %v194
    %316 = vmatprep.subr.mxu0 %v197
    %317 = vmatpush1.msra.mxu0 %v196
    %318 = vmatprep.subr.mxu0 %v199
    %319 = vmatpush1.msra.mxu0 %v198
    %320 = vmatprep.subr.mxu0 %v201
    %321 = vmatpush1.msra.mxu0 %v200
    %322 = vmatprep.subr.mxu0 %v203
    %323 = vmatpush1.msra.mxu0 %v202
    %324 = vmatprep.subr.mxu0 %v205
    %325 = vmatpush1.msra.mxu0 %v204
    %326 = vmatprep.subr.mxu0 %v207
    %327 = vmatpush1.msra.mxu0 %v206
    %328 = vmatprep.subr.mxu0 %v209
    %329 = vmatpush1.msra.mxu0 %v208
    %330 = vmatprep.subr.mxu0 %v211
    %331 = vmatpush1.msra.mxu0 %v210
    %332 = vmatprep.subr.mxu0 %v213
    %333 = vmatpush1.msra.mxu0 %v212
    %334 = vmatprep.subr.mxu0 %v215
    %335 = vmatpush1.msra.mxu0 %v214
    %336 = vmatprep.subr.mxu0 %v217
    %337 = vmatpush1.msra.mxu0 %v216
    %338 = vmatprep.subr.mxu0 %v219
    %339 = vmatpush1.msra.mxu0 %v218
    %340 = vmatprep.subr.mxu0 %v221
    %341 = vmatpush1.msra.mxu0 %v220
    %342 = vmatprep.subr.mxu0 %v223
    %343 = vmatpush1.msra.mxu0 %v222
    %344 = vmatprep.subr.mxu0 %v225
    %345 = vmatpush1.msra.mxu0 %v224
    %346 = vmatprep.subr.mxu0 %v227
    %347 = vmatpush1.msra.mxu0 %v226
    %348 = vmatprep.subr.mxu0 %v229
    %349 = vmatpush1.msra.mxu0 %v228
    %350 = vmatprep.mubr.f32.mxu0 %v161
    %351 = vmatmul.mubr.f32.gmra.mrb[0].mxu0 %v160
    %v352 = vpop.f32.mrb[0].mxu0
    %v353 = vadd.f32 %v265, %v352
    %v354 = vpop.f32.mrb[0].mxu0
    %v355 = vadd.f32 %v269, %v354
    %356 = vmatprep.mubr.f32.mxu0 %v164
    %357 = vmatmul.mubr.f32.gmra.mrb[0].mxu0 %v163
    %v358 = vpop.f32.mrb[0].mxu0
    %v359 = vadd.f32 %v265, %v358
    %v360 = vpop.f32.mrb[0].mxu0
    %v361 = vadd.f32 %v269, %v360
    %362 = vdwg.mxu0
    %363 = vmatprep.subr.mxu0 %v231
    %364 = vmatpush1.msra.mxu0 %v230
    %365 = vmatprep.subr.mxu0 %v233
    %366 = vmatpush1.msra.mxu0 %v232
    %367 = vmatprep.subr.mxu0 %v235
    %368 = vmatpush1.msra.mxu0 %v234
    %369 = vmatprep.subr.mxu0 %v237
    %370 = vmatpush1.msra.mxu0 %v236
    %371 = vmatprep.subr.mxu0 %v239
    %372 = vmatpush1.msra.mxu0 %v238
    %373 = vmatprep.subr.mxu0 %v241
    %374 = vmatpush1.msra.mxu0 %v240
    %375 = vmatprep.subr.mxu0 %v243
    %376 = vmatpush1.msra.mxu0 %v242
    %377 = vmatprep.subr.mxu0 %v245
    %378 = vmatpush1.msra.mxu0 %v244
    %379 = vmatprep.subr.mxu0 %v247
    %380 = vmatpush1.msra.mxu0 %v246
    %381 = vmatprep.subr.mxu0 %v249
    %382 = vmatpush1.msra.mxu0 %v248
    %383 = vmatprep.subr.mxu0 %v251
    %384 = vmatpush1.msra.mxu0 %v250
    %385 = vmatprep.subr.mxu0 %v253
    %386 = vmatpush1.msra.mxu0 %v252
    %387 = vmatprep.subr.mxu0 %v255
    %388 = vmatpush1.msra.mxu0 %v254
    %389 = vmatprep.subr.mxu0 %v257
    %390 = vmatpush1.msra.mxu0 %v256
    %391 = vmatprep.subr.mxu0 %v284
    %392 = vmatpush1.msra.mxu0 %v281
    %393 = vmatprep.subr.mxu0 0.0
    %394 = vmatpush1.msra.mxu0 0.0
    %395 = vmatprep.subr.mxu0 0.0
    %396 = vmatpush1.msra.mxu0 0.0
    %397 = vmatprep.subr.mxu0 0.0
    %398 = vmatpush1.msra.mxu0 0.0
    %399 = vmatprep.subr.mxu0 0.0
    %400 = vmatpush1.msra.mxu0 0.0
    %401 = vmatprep.subr.mxu0 0.0
    %402 = vmatpush1.msra.mxu0 0.0
    %403 = vmatprep.subr.mxu0 0.0
    %404 = vmatpush1.msra.mxu0 0.0
    %405 = vmatprep.subr.mxu0 0.0
    %406 = vmatpush1.msra.mxu0 0.0
    %407 = vmatprep.subr.mxu0 0.0
    %408 = vmatpush1.msra.mxu0 0.0
    %409 = vmatprep.subr.mxu0 0.0
    %410 = vmatpush1.msra.mxu0 0.0
    %411 = vmatprep.subr.mxu0 0.0
    %412 = vmatpush1.msra.mxu0 0.0
    %413 = vmatprep.subr.mxu0 0.0
    %414 = vmatpush1.msra.mxu0 0.0
    %415 = vmatprep.subr.mxu0 0.0
    %416 = vmatpush1.msra.mxu0 0.0
    %417 = vmatprep.subr.mxu0 0.0
    %418 = vmatpush1.msra.mxu0 0.0
    %419 = vmatprep.subr.mxu0 0.0
    %420 = vmatpush1.msra.mxu0 0.0
    %421 = vmatprep.subr.mxu0 0.0
    %422 = vmatpush1.msra.mxu0 0.0
    %423 = vmatprep.subr.mxu0 0.0
    %424 = vmatpush1.msra.mxu0 0.0
    %425 = vmatprep.subr.mxu0 0.0
    %426 = vmatpush1.msra.mxu0 0.0
    %427 = vmatprep.mubr.f32.mxu0 0.0
    %428 = vmatmul.mubr.f32.gmra.mrb[0].mxu0 %v274
    %v429 = vpop.f32.mrb[0].mxu0
    %v430 = vadd.f32 %v353, %v429
    %v431 = vpop.f32.mrb[0].mxu0
    %v432 = vadd.f32 %v355, %v431
    %433 = vmatprep.mubr.f32.mxu0 0.0
    %434 = vmatmul.mubr.f32.gmra.mrb[0].mxu0 %v277
    %v435 = vpop.f32.mrb[0].mxu0
    %v436 = vadd.f32 %v359, %v435
    %v437 = vpop.f32.mrb[0].mxu0
    %v438 = vadd.f32 %v361, %v437
    %439 = vdwg.mxu0
    %v440 = vmax.f32 %v430, 0.0
    %v441 = vmax.f32 %v432, 0.0
    %v442 = vmax.f32 %v436, 0.0
    %v443 = vmax.f32 %v438, 0.0
    %v444 = vld [vmem:[%s53] sm:$0xff]
    %v445 = vld [vmem:[%s53 + $0x8] sm:$0xff]
    %v446 = vld [vmem:[%s53 + $0x10] sm:$0xff]
    %v447 = vld [vmem:[%s53 + $0x18] sm:$0xff]
    %v448 = vld [vmem:[%s53 + $0x20] sm:$0xff]
    %v449 = vld [vmem:[%s53 + $0x28] sm:$0xff]
    %v450 = vld [vmem:[%s53 + $0x30] sm:$0xff]
    %v451 = vld [vmem:[%s53 + $0x38] sm:$0xff]
    %v452 = vld [vmem:[%s53 + $0x40] sm:$0xff]
    %v453 = vld [vmem:[%s53 + $0x48] sm:$0xff]
    %v454 = vld [vmem:[%s53 + $0x50] sm:$0xff]
    %v455 = vld [vmem:[%s53 + $0x58] sm:$0xff]
    %v456 = vld [vmem:[%s53 + $0x60] sm:$0xff]
    %v457 = vld [vmem:[%s53 + $0x68] sm:$0xff]
    %v458 = vld [vmem:[%s53 + $0x70] sm:$0xff]
    %v459 = vld [vmem:[%s53 + $0x78] sm:$0xff]
    %v460 = vld [vmem:[%s53 + $0x80] sm:$0xff]
    %v461 = vld [vmem:[%s53 + $0x88] sm:$0xff]
    %v462 = vld [vmem:[%s53 + $0x90] sm:$0xff]
    %v463 = vld [vmem:[%s53 + $0x98] sm:$0xff]
    %v464 = vld [vmem:[%s53 + $0xa0] sm:$0xff]
    %v465 = vld [vmem:[%s53 + $0xa8] sm:$0xff]
    %v466 = vld [vmem:[%s53 + $0xb0] sm:$0xff]
    %v467 = vld [vmem:[%s53 + $0xb8] sm:$0xff]
    %v468 = vld [vmem:[%s53 + $0xc0] sm:$0xff]
    %v469 = vld [vmem:[%s53 + $0xc8] sm:$0xff]
    %v470 = vld [vmem:[%s53 + $0xd0] sm:$0xff]
    %v471 = vld [vmem:[%s53 + $0xd8] sm:$0xff]
    %v472 = vld [vmem:[%s53 + $0xe0] sm:$0xff]
    %v473 = vld [vmem:[%s53 + $0xe8] sm:$0xff]
    %v474 = vld [vmem:[%s53 + $0xf0] sm:$0xff]
    %v475 = vld [vmem:[%s53 + $0xf8] sm:$0x7f]
    %v476 = vld [vmem:[%s51] sm:$0x1]
    %v478 = vlaneseq
    %v479 = vshrl.u32 %v478, 7
    %v480 = vsub.s32 0, %v479
    %v481 = vrot.slane %v476, %v480
    %vm483 = vcmask 1039360
    %v485 = vsel %vm483, %v441, 0
    %v488 = vsel %vm483, %v443, 0
    %v491 = vsel %vm279, %v475, 0
    %493 = vmatprep.subr.mxu0 0.0
    %494 = vmatpush1.msra.mxu0 %v444
    %495 = vmatprep.subr.mxu0 0.0
    %496 = vmatpush1.msra.mxu0 %v445
    %497 = vmatprep.subr.mxu0 0.0
    %498 = vmatpush1.msra.mxu0 %v446
    %499 = vmatprep.subr.mxu0 0.0
    %500 = vmatpush1.msra.mxu0 %v447
    %501 = vmatprep.subr.mxu0 0.0
    %502 = vmatpush1.msra.mxu0 %v448
    %503 = vmatprep.subr.mxu0 0.0
    %504 = vmatpush1.msra.mxu0 %v449
    %505 = vmatprep.subr.mxu0 0.0
    %506 = vmatpush1.msra.mxu0 %v450
    %507 = vmatprep.subr.mxu0 0.0
    %508 = vmatpush1.msra.mxu0 %v451
    %509 = vmatprep.subr.mxu0 0.0
    %510 = vmatpush1.msra.mxu0 %v452
    %511 = vmatprep.subr.mxu0 0.0
    %512 = vmatpush1.msra.mxu0 %v453
    %513 = vmatprep.subr.mxu0 0.0
    %514 = vmatpush1.msra.mxu0 %v454
    %515 = vmatprep.subr.mxu0 0.0
    %516 = vmatpush1.msra.mxu0 %v455
    %517 = vmatprep.subr.mxu0 0.0
    %518 = vmatpush1.msra.mxu0 %v456
    %519 = vmatprep.subr.mxu0 0.0
    %520 = vmatpush1.msra.mxu0 %v457
    %521 = vmatprep.subr.mxu0 0.0
    %522 = vmatpush1.msra.mxu0 %v458
    %523 = vmatprep.subr.mxu0 0.0
    %524 = vmatpush1.msra.mxu0 %v459
    %525 = vmatprep.subr.mxu0 0.0
    %526 = vmatpush1.msra.mxu0 %v460
    %527 = vmatprep.subr.mxu0 0.0
    %528 = vmatpush1.msra.mxu0 %v461
    %529 = vmatprep.subr.mxu0 0.0
    %530 = vmatpush1.msra.mxu0 %v462
    %531 = vmatprep.subr.mxu0 0.0
    %532 = vmatpush1.msra.mxu0 %v463
    %533 = vmatprep.subr.mxu0 0.0
    %534 = vmatpush1.msra.mxu0 %v464
    %535 = vmatprep.subr.mxu0 0.0
    %536 = vmatpush1.msra.mxu0 %v465
    %537 = vmatprep.subr.mxu0 0.0
    %538 = vmatpush1.msra.mxu0 %v466
    %539 = vmatprep.subr.mxu0 0.0
    %540 = vmatpush1.msra.mxu0 %v467
    %541 = vmatprep.subr.mxu0 0.0
    %542 = vmatpush1.msra.mxu0 %v468
    %543 = vmatprep.subr.mxu0 0.0
    %544 = vmatpush1.msra.mxu0 %v469
    %545 = vmatprep.subr.mxu0 0.0
    %546 = vmatpush1.msra.mxu0 %v470
    %547 = vmatprep.subr.mxu0 0.0
    %548 = vmatpush1.msra.mxu0 %v471
    %549 = vmatprep.subr.mxu0 0.0
    %550 = vmatpush1.msra.mxu0 %v472
    %551 = vmatprep.subr.mxu0 0.0
    %552 = vmatpush1.msra.mxu0 %v473
    %553 = vmatprep.subr.mxu0 0.0
    %554 = vmatpush1.msra.mxu0 %v474
    %555 = vmatprep.subr.mxu0 0.0
    %556 = vmatpush1.msra.mxu0 %v491
    %557 = vmatprep.mubr.f32.mxu0 %v485
    %558 = vmatmul.mubr.f32.gmra.mrb[0].mxu0 %v440
    %v559 = vpop.f32.mrb[0].mxu0
    %v560 = vadd.f32 %v481, %v559
    %v561 = vpop.f32.mrb[0].mxu0
    %562 = vmatprep.mubr.f32.mxu0 %v488
    %563 = vmatmul.mubr.f32.gmra.mrb[0].mxu0 %v442
    %v564 = vpop.f32.mrb[0].mxu0
    %v565 = vadd.f32 %v481, %v564
    %v566 = vpop.f32.mrb[0].mxu0
    %567 = vdwg.mxu0
    %v568 = vmax.f32 %v560, 0.0
    %v569 = vmax.f32 %v565, 0.0
    %vm570 = vcmask 130048
    %v572 = vsel %vm570, %v153, 0
    %v575 = vsel %vm570, %v154, 0
    %v578 = vsel %vm570, %v155, 0
    %v581 = vsel %vm570, %v156, 0
    %583 = vmatprep.subr.mxu0 0.0
    %584 = vmatpush1.msra.mxu0 %v568
    %585 = vmatprep.subr.mxu0 0.0
    %586 = vmatpush1.msra.mxu0 %v569
    %587 = vmatprep.subr.mxu0 0.0
    %588 = vmatpush1.msra.mxu0 0.0
    %589 = vmatprep.subr.mxu0 0.0
    %590 = vmatpush1.msra.mxu0 0.0
    %591 = vmatprep.subr.mxu0 0.0
    %592 = vmatpush1.msra.mxu0 0.0
    %593 = vmatprep.subr.mxu0 0.0
    %594 = vmatpush1.msra.mxu0 0.0
    %595 = vmatprep.subr.mxu0 0.0
    %596 = vmatpush1.msra.mxu0 0.0
    %597 = vmatprep.subr.mxu0 0.0
    %598 = vmatpush1.msra.mxu0 0.0
    %599 = vmatprep.subr.mxu0 0.0
    %600 = vmatpush1.msra.mxu0 0.0
    %601 = vmatprep.subr.mxu0 0.0
    %602 = vmatpush1.msra.mxu0 0.0
    %603 = vmatprep.subr.mxu0 0.0
    %604 = vmatpush1.msra.mxu0 0.0
    %605 = vmatprep.subr.mxu0 0.0
    %606 = vmatpush1.msra.mxu0 0.0
    %607 = vmatprep.subr.mxu0 0.0
    %608 = vmatpush1.msra.mxu0 0.0
    %609 = vmatprep.subr.mxu0 0.0
    %610 = vmatpush1.msra.mxu0 0.0
    %611 = vmatprep.subr.mxu0 0.0
    %612 = vmatpush1.msra.mxu0 0.0
    %613 = vmatprep.subr.mxu0 0.0
    %614 = vmatpush1.msra.mxu0 0.0
    %615 = vmatprep.subr.mxu0 0.0
    %616 = vmatpush1.msra.mxu0 0.0
    %617 = vmatprep.subr.mxu0 0.0
    %618 = vmatpush1.msra.mxu0 0.0
    %619 = vmatprep.subr.mxu0 0.0
    %620 = vmatpush1.msra.mxu0 0.0
    %621 = vmatprep.subr.mxu0 0.0
    %622 = vmatpush1.msra.mxu0 0.0
    %623 = vmatprep.subr.mxu0 0.0
    %624 = vmatpush1.msra.mxu0 0.0
    %625 = vmatprep.subr.mxu0 0.0
    %626 = vmatpush1.msra.mxu0 0.0
    %627 = vmatprep.subr.mxu0 0.0
    %628 = vmatpush1.msra.mxu0 0.0
    %629 = vmatprep.subr.mxu0 0.0
    %630 = vmatpush1.msra.mxu0 0.0
    %631 = vmatprep.subr.mxu0 0.0
    %632 = vmatpush1.msra.mxu0 0.0
    %633 = vmatprep.subr.mxu0 0.0
    %634 = vmatpush1.msra.mxu0 0.0
    %635 = vmatprep.subr.mxu0 0.0
    %636 = vmatpush1.msra.mxu0 0.0
    %637 = vmatprep.subr.mxu0 0.0
    %638 = vmatpush1.msra.mxu0 0.0
    %639 = vmatprep.subr.mxu0 0.0
    %640 = vmatpush1.msra.mxu0 0.0
    %641 = vmatprep.subr.mxu0 0.0
    %642 = vmatpush1.msra.mxu0 0.0
    %643 = vmatprep.subr.mxu0 0.0
    %644 = vmatpush1.msra.mxu0 0.0
    %645 = vmatprep.subr.mxu0 0.0
    %646 = vmatpush1.msra.mxu0 0.0
    %647 = vmatprep.mubr.f32.mxu0 0.0
    %648 = vmatmul.mubr.f32.gmra.mrb[0].mxu0 %v572
    %v649 = vpop.f32.mrb[0].mxu0
    %v650 = vadd.f32 0.0, %v649
    %v651 = vpop.f32.mrb[0].mxu0
    %652 = vmatprep.mubr.f32.mxu0 0.0
    %653 = vmatmul.mubr.f32.gmra.mrb[0].mxu0 %v575
    %v654 = vpop.f32.mrb[0].mxu0
    %v655 = vadd.f32 0.0, %v654
    %v656 = vpop.f32.mrb[0].mxu0
    %657 = vmatprep.mubr.f32.mxu0 0.0
    %658 = vmatmul.mubr.f32.gmra.mrb[0].mxu0 %v578
    %v659 = vpop.f32.mrb[0].mxu0
    %v660 = vadd.f32 0.0, %v659
    %v661 = vpop.f32.mrb[0].mxu0
    %662 = vmatprep.mubr.f32.mxu0 0.0
    %663 = vmatmul.mubr.f32.gmra.mrb[0].mxu0 %v581
    %v664 = vpop.f32.mrb[0].mxu0
    %v665 = vadd.f32 0.0, %v664
    %v666 = vpop.f32.mrb[0].mxu0
    %667 = vdwg.mxu0
    %v668 = vld [vmem:[%s57] sm:$0xff]
    %v669 = vld [vmem:[%s57 + $0x8] sm:$0xff]
    %v670 = vld [vmem:[%s57 + $0x10] sm:$0xff]
    %v671 = vld [vmem:[%s57 + $0x18] sm:$0xff]
    %v672 = vld [vmem:[%s57 + $0x20] sm:$0xff]
    %v673 = vld [vmem:[%s57 + $0x28] sm:$0xff]
    %v674 = vld [vmem:[%s57 + $0x30] sm:$0xff]
    %v675 = vld [vmem:[%s57 + $0x38] sm:$0xff]
    %v676 = vld [vmem:[%s57 + $0x40] sm:$0xff]
    %v677 = vld [vmem:[%s57 + $0x48] sm:$0xff]
    %v678 = vld [vmem:[%s57 + $0x50] sm:$0xff]
    %v679 = vld [vmem:[%s57 + $0x58] sm:$0xff]
    %v680 = vld [vmem:[%s57 + $0x60] sm:$0xff]
    %v681 = vld [vmem:[%s57 + $0x68] sm:$0xff]
    %v682 = vld [vmem:[%s57 + $0x70] sm:$0xff]
    %v683 = vld [vmem:[%s57 + $0x78] sm:$0x1f]
    %v684 = vld [vmem:[%s57 + $0x80] sm:$0x1f]
    %v685 = vld [vmem:[%s57 + $0x88] sm:$0x1f]
    %s686 = scalar_lea.vmem %s57, 144
    %v687 = vld [vmem:[%s686] sm:$0xff]
    %v688 = vld [vmem:[%s686 + $0x8] sm:$0xff]
    %v689 = vld [vmem:[%s686 + $0x10] sm:$0xff]
    %v690 = vld [vmem:[%s686 + $0x18] sm:$0xff]
    %v691 = vld [vmem:[%s686 + $0x20] sm:$0xff]
    %v692 = vld [vmem:[%s686 + $0x28] sm:$0xff]
    %v693 = vld [vmem:[%s686 + $0x30] sm:$0xff]
    %v694 = vld [vmem:[%s686 + $0x38] sm:$0xff]
    %v695 = vld [vmem:[%s686 + $0x40] sm:$0xff]
    %v696 = vld [vmem:[%s686 + $0x48] sm:$0xff]
    %v697 = vld [vmem:[%s686 + $0x50] sm:$0xff]
    %v698 = vld [vmem:[%s686 + $0x58] sm:$0xff]
    %v699 = vld [vmem:[%s686 + $0x60] sm:$0xff]
    %v700 = vld [vmem:[%s686 + $0x68] sm:$0xff]
    %v701 = vld [vmem:[%s686 + $0x70] sm:$0xff]
    %v702 = vld [vmem:[%s686 + $0x78] sm:$0x1f]
    %v703 = vld [vmem:[%s686 + $0x80] sm:$0x1f]
    %v704 = vld [vmem:[%s686 + $0x88] sm:$0x1f]
    %vm705 = vcmask 367616
    %v707 = vsel %vm705, %v568, 0
    %v710 = vsel %vm705, %v569, 0
    %vm712 = vcmask 1044480
    %v714 = vsel %vm712, %v702, 0
    %v717 = vsel %vm712, %v703, 0
    %v720 = vsel %vm712, %v704, 0
    %722 = vmatprep.subr.mxu0 %v688
    %723 = vmatpush1.msra.mxu0 %v687
    %724 = vmatprep.subr.mxu0 %v691
    %725 = vmatpush1.msra.mxu0 %v690
    %726 = vmatprep.subr.mxu0 %v694
    %727 = vmatpush1.msra.mxu0 %v693
    %728 = vmatprep.subr.mxu0 %v697
    %729 = vmatpush1.msra.mxu0 %v696
    %730 = vmatprep.subr.mxu0 %v700
    %731 = vmatpush1.msra.mxu0 %v699
    %732 = vmatprep.subr.mxu0 %v717
    %733 = vmatpush1.msra.mxu0 %v714
    %734 = vmatprep.subr.mxu0 0.0
    %735 = vmatpush1.msra.mxu0 0.0
    %736 = vmatprep.subr.mxu0 0.0
    %737 = vmatpush1.msra.mxu0 0.0
    %738 = vmatprep.subr.mxu0 0.0
    %739 = vmatpush1.msra.mxu0 0.0
    %740 = vmatprep.subr.mxu0 0.0
    %741 = vmatpush1.msra.mxu0 0.0
    %742 = vmatprep.subr.mxu0 0.0
    %743 = vmatpush1.msra.mxu0 0.0
    %744 = vmatprep.subr.mxu0 0.0
    %745 = vmatpush1.msra.mxu0 0.0
    %746 = vmatprep.subr.mxu0 0.0
    %747 = vmatpush1.msra.mxu0 0.0
    %748 = vmatprep.subr.mxu0 0.0
    %749 = vmatpush1.msra.mxu0 0.0
    %750 = vmatprep.subr.mxu0 0.0
    %751 = vmatpush1.msra.mxu0 0.0
    %752 = vmatprep.subr.mxu0 0.0
    %753 = vmatpush1.msra.mxu0 0.0
    %754 = vmatprep.subr.mxu0 0.0
    %755 = vmatpush1.msra.mxu0 0.0
    %756 = vmatprep.subr.mxu0 0.0
    %757 = vmatpush1.msra.mxu0 0.0
    %758 = vmatprep.subr.mxu0 0.0
    %759 = vmatpush1.msra.mxu0 0.0
    %760 = vmatprep.subr.mxu0 0.0
    %761 = vmatpush1.msra.mxu0 0.0
    %762 = vmatprep.subr.mxu0 0.0
    %763 = vmatpush1.msra.mxu0 0.0
    %764 = vmatprep.subr.mxu0 0.0
    %765 = vmatpush1.msra.mxu0 0.0
    %766 = vmatprep.subr.mxu0 0.0
    %767 = vmatpush1.msra.mxu0 0.0
    %768 = vmatprep.subr.mxu0 0.0
    %769 = vmatpush1.msra.mxu0 0.0
    %770 = vmatprep.subr.mxu0 0.0
    %771 = vmatpush1.msra.mxu0 0.0
    %772 = vmatprep.subr.mxu0 0.0
    %773 = vmatpush1.msra.mxu0 0.0
    %774 = vmatprep.subr.mxu0 0.0
    %775 = vmatpush1.msra.mxu0 0.0
    %776 = vmatprep.subr.mxu0 0.0
    %777 = vmatpush1.msra.mxu0 0.0
    %778 = vmatprep.subr.mxu0 0.0
    %779 = vmatpush1.msra.mxu0 0.0
    %780 = vmatprep.subr.mxu0 0.0
    %781 = vmatpush1.msra.mxu0 0.0
    %782 = vmatprep.subr.mxu0 0.0
    %783 = vmatpush1.msra.mxu0 0.0
    %784 = vmatprep.subr.mxu0 0.0
    %785 = vmatpush1.msra.mxu0 0.0
    %786 = vmatprep.mubr.f32.mxu0 0.0
    %787 = vmatmul.mubr.f32.gmra.mrb[0].mxu0 %v707
    %v788 = vpop.f32.mrb[0].mxu0
    %v789 = vadd.f32 0.0, %v788
    %v790 = vpop.f32.mrb[0].mxu0
    %v791 = vadd.f32 0.0, %v790
    %792 = vmatprep.mubr.f32.mxu0 0.0
    %793 = vmatmul.mubr.f32.gmra.mrb[0].mxu0 %v710
    %v794 = vpop.f32.mrb[0].mxu0
    %v795 = vadd.f32 0.0, %v794
    %v796 = vpop.f32.mrb[0].mxu0
    %v797 = vadd.f32 0.0, %v796
    %798 = vdwg.mxu0
    %799 = vmatprep.subr.mxu0 0.0
    %800 = vmatpush1.msra.mxu0 %v689
    %801 = vmatprep.subr.mxu0 0.0
    %802 = vmatpush1.msra.mxu0 %v692
    %803 = vmatprep.subr.mxu0 0.0
    %804 = vmatpush1.msra.mxu0 %v695
    %805 = vmatprep.subr.mxu0 0.0
    %806 = vmatpush1.msra.mxu0 %v698
    %807 = vmatprep.subr.mxu0 0.0
    %808 = vmatpush1.msra.mxu0 %v701
    %809 = vmatprep.subr.mxu0 0.0
    %810 = vmatpush1.msra.mxu0 %v720
    %811 = vmatprep.subr.mxu0 0.0
    %812 = vmatpush1.msra.mxu0 0.0
    %813 = vmatprep.subr.mxu0 0.0
    %814 = vmatpush1.msra.mxu0 0.0
    %815 = vmatprep.subr.mxu0 0.0
    %816 = vmatpush1.msra.mxu0 0.0
    %817 = vmatprep.subr.mxu0 0.0
    %818 = vmatpush1.msra.mxu0 0.0
    %819 = vmatprep.subr.mxu0 0.0
    %820 = vmatpush1.msra.mxu0 0.0
    %821 = vmatprep.subr.mxu0 0.0
    %822 = vmatpush1.msra.mxu0 0.0
    %823 = vmatprep.subr.mxu0 0.0
    %824 = vmatpush1.msra.mxu0 0.0
    %825 = vmatprep.subr.mxu0 0.0
    %826 = vmatpush1.msra.mxu0 0.0
    %827 = vmatprep.subr.mxu0 0.0
    %828 = vmatpush1.msra.mxu0 0.0
    %829 = vmatprep.subr.mxu0 0.0
    %830 = vmatpush1.msra.mxu0 0.0
    %831 = vmatprep.subr.mxu0 0.0
    %832 = vmatpush1.msra.mxu0 0.0
    %833 = vmatprep.subr.mxu0 0.0
    %834 = vmatpush1.msra.mxu0 0.0
    %835 = vmatprep.subr.mxu0 0.0
    %836 = vmatpush1.msra.mxu0 0.0
    %837 = vmatprep.subr.mxu0 0.0
    %838 = vmatpush1.msra.mxu0 0.0
    %839 = vmatprep.subr.mxu0 0.0
    %840 = vmatpush1.msra.mxu0 0.0
    %841 = vmatprep.subr.mxu0 0.0
    %842 = vmatpush1.msra.mxu0 0.0
    %843 = vmatprep.subr.mxu0 0.0
    %844 = vmatpush1.msra.mxu0 0.0
    %845 = vmatprep.subr.mxu0 0.0
    %846 = vmatpush1.msra.mxu0 0.0
    %847 = vmatprep.subr.mxu0 0.0
    %848 = vmatpush1.msra.mxu0 0.0
    %849 = vmatprep.subr.mxu0 0.0
    %850 = vmatpush1.msra.mxu0 0.0
    %851 = vmatprep.subr.mxu0 0.0
    %852 = vmatpush1.msra.mxu0 0.0
    %853 = vmatprep.subr.mxu0 0.0
    %854 = vmatpush1.msra.mxu0 0.0
    %855 = vmatprep.subr.mxu0 0.0
    %856 = vmatpush1.msra.mxu0 0.0
    %857 = vmatprep.subr.mxu0 0.0
    %858 = vmatpush1.msra.mxu0 0.0
    %859 = vmatprep.subr.mxu0 0.0
    %860 = vmatpush1.msra.mxu0 0.0
    %861 = vmatprep.subr.mxu0 0.0
    %862 = vmatpush1.msra.mxu0 0.0
    %863 = vmatprep.mubr.f32.mxu0 0.0
    %864 = vmatmul.mubr.f32.gmra.mrb[0].mxu0 %v707
    %v865 = vpop.f32.mrb[0].mxu0
    %v866 = vadd.f32 0.0, %v865
    %v867 = vpop.f32.mrb[0].mxu0
    %868 = vmatprep.mubr.f32.mxu0 0.0
    %869 = vmatmul.mubr.f32.gmra.mrb[0].mxu0 %v710
    %v870 = vpop.f32.mrb[0].mxu0
    %v871 = vadd.f32 0.0, %v870
    %v872 = vpop.f32.mrb[0].mxu0
    %873 = vdwg.mxu0
    %v875 = vsel %vm705, %v650, 0
    %v878 = vsel %vm705, %v655, 0
    %v881 = vsel %vm712, %v683, 0
    %v884 = vsel %vm712, %v684, 0
    %v887 = vsel %vm712, %v685, 0
    %889 = vmatprep.subr.mxu0 %v669
    %890 = vmatpush1.msra.mxu0 %v668
    %891 = vmatprep.subr.mxu0 %v672
    %892 = vmatpush1.msra.mxu0 %v671
    %893 = vmatprep.subr.mxu0 %v675
    %894 = vmatpush1.msra.mxu0 %v674
    %895 = vmatprep.subr.mxu0 %v678
    %896 = vmatpush1.msra.mxu0 %v677
    %897 = vmatprep.subr.mxu0 %v681
    %898 = vmatpush1.msra.mxu0 %v680
    %899 = vmatprep.subr.mxu0 %v884
    %900 = vmatpush1.msra.mxu0 %v881
    %901 = vmatprep.subr.mxu0 0.0
    %902 = vmatpush1.msra.mxu0 0.0
    %903 = vmatprep.subr.mxu0 0.0
    %904 = vmatpush1.msra.mxu0 0.0
    %905 = vmatprep.subr.mxu0 0.0
    %906 = vmatpush1.msra.mxu0 0.0
    %907 = vmatprep.subr.mxu0 0.0
    %908 = vmatpush1.msra.mxu0 0.0
    %909 = vmatprep.subr.mxu0 0.0
    %910 = vmatpush1.msra.mxu0 0.0
    %911 = vmatprep.subr.mxu0 0.0
    %912 = vmatpush1.msra.mxu0 0.0
    %913 = vmatprep.subr.mxu0 0.0
    %914 = vmatpush1.msra.mxu0 0.0
    %915 = vmatprep.subr.mxu0 0.0
    %916 = vmatpush1.msra.mxu0 0.0
    %917 = vmatprep.subr.mxu0 0.0
    %918 = vmatpush1.msra.mxu0 0.0
    %919 = vmatprep.subr.mxu0 0.0
    %920 = vmatpush1.msra.mxu0 0.0
    %921 = vmatprep.subr.mxu0 0.0
    %922 = vmatpush1.msra.mxu0 0.0
    %923 = vmatprep.subr.mxu0 0.0
    %924 = vmatpush1.msra.mxu0 0.0
    %925 = vmatprep.subr.mxu0 0.0
    %926 = vmatpush1.msra.mxu0 0.0
    %927 = vmatprep.subr.mxu0 0.0
    %928 = vmatpush1.msra.mxu0 0.0
    %929 = vmatprep.subr.mxu0 0.0
    %930 = vmatpush1.msra.mxu0 0.0
    %931 = vmatprep.subr.mxu0 0.0
    %932 = vmatpush1.msra.mxu0 0.0
    %933 = vmatprep.subr.mxu0 0.0
    %934 = vmatpush1.msra.mxu0 0.0
    %935 = vmatprep.subr.mxu0 0.0
    %936 = vmatpush1.msra.mxu0 0.0
    %937 = vmatprep.subr.mxu0 0.0
    %938 = vmatpush1.msra.mxu0 0.0
    %939 = vmatprep.subr.mxu0 0.0
    %940 = vmatpush1.msra.mxu0 0.0
    %941 = vmatprep.subr.mxu0 0.0
    %942 = vmatpush1.msra.mxu0 0.0
    %943 = vmatprep.subr.mxu0 0.0
    %944 = vmatpush1.msra.mxu0 0.0
    %945 = vmatprep.subr.mxu0 0.0
    %946 = vmatpush1.msra.mxu0 0.0
    %947 = vmatprep.subr.mxu0 0.0
    %948 = vmatpush1.msra.mxu0 0.0
    %949 = vmatprep.subr.mxu0 0.0
    %950 = vmatpush1.msra.mxu0 0.0
    %951 = vmatprep.subr.mxu0 0.0
    %952 = vmatpush1.msra.mxu0 0.0
    %953 = vmatprep.mubr.f32.mxu0 0.0
    %954 = vmatmul.mubr.f32.gmra.mrb[0].mxu0 %v875
    %v955 = vpop.f32.mrb[0].mxu0
    %v956 = vadd.f32 %v789, %v955
    %v957 = vpop.f32.mrb[0].mxu0
    %v958 = vadd.f32 %v791, %v957
    %959 = vmatprep.mubr.f32.mxu0 0.0
    %960 = vmatmul.mubr.f32.gmra.mrb[0].mxu0 %v878
    %v961 = vpop.f32.mrb[0].mxu0
    %v962 = vadd.f32 %v795, %v961
    %v963 = vpop.f32.mrb[0].mxu0
    %v964 = vadd.f32 %v797, %v963
    %965 = vdwg.mxu0
    %966 = vmatprep.subr.mxu0 0.0
    %967 = vmatpush1.msra.mxu0 %v670
    %968 = vmatprep.subr.mxu0 0.0
    %969 = vmatpush1.msra.mxu0 %v673
    %970 = vmatprep.subr.mxu0 0.0
    %971 = vmatpush1.msra.mxu0 %v676
    %972 = vmatprep.subr.mxu0 0.0
    %973 = vmatpush1.msra.mxu0 %v679
    %974 = vmatprep.subr.mxu0 0.0
    %975 = vmatpush1.msra.mxu0 %v682
    %976 = vmatprep.subr.mxu0 0.0
    %977 = vmatpush1.msra.mxu0 %v887
    %978 = vmatprep.subr.mxu0 0.0
    %979 = vmatpush1.msra.mxu0 0.0
    %980 = vmatprep.subr.mxu0 0.0
    %981 = vmatpush1.msra.mxu0 0.0
    %982 = vmatprep.subr.mxu0 0.0
    %983 = vmatpush1.msra.mxu0 0.0
    %984 = vmatprep.subr.mxu0 0.0
    %985 = vmatpush1.msra.mxu0 0.0
    %986 = vmatprep.subr.mxu0 0.0
    %987 = vmatpush1.msra.mxu0 0.0
    %988 = vmatprep.subr.mxu0 0.0
    %989 = vmatpush1.msra.mxu0 0.0
    %990 = vmatprep.subr.mxu0 0.0
    %991 = vmatpush1.msra.mxu0 0.0
    %992 = vmatprep.subr.mxu0 0.0
    %993 = vmatpush1.msra.mxu0 0.0
    %994 = vmatprep.subr.mxu0 0.0
    %995 = vmatpush1.msra.mxu0 0.0
    %996 = vmatprep.subr.mxu0 0.0
    %997 = vmatpush1.msra.mxu0 0.0
    %998 = vmatprep.subr.mxu0 0.0
    %999 = vmatpush1.msra.mxu0 0.0
    %1000 = vmatprep.subr.mxu0 0.0
    %1001 = vmatpush1.msra.mxu0 0.0
    %1002 = vmatprep.subr.mxu0 0.0
    %1003 = vmatpush1.msra.mxu0 0.0
    %1004 = vmatprep.subr.mxu0 0.0
    %1005 = vmatpush1.msra.mxu0 0.0
    %1006 = vmatprep.subr.mxu0 0.0
    %1007 = vmatpush1.msra.mxu0 0.0
    %1008 = vmatprep.subr.mxu0 0.0
    %1009 = vmatpush1.msra.mxu0 0.0
    %1010 = vmatprep.subr.mxu0 0.0
    %1011 = vmatpush1.msra.mxu0 0.0
    %1012 = vmatprep.subr.mxu0 0.0
    %1013 = vmatpush1.msra.mxu0 0.0
    %1014 = vmatprep.subr.mxu0 0.0
    %1015 = vmatpush1.msra.mxu0 0.0
    %1016 = vmatprep.subr.mxu0 0.0
    %1017 = vmatpush1.msra.mxu0 0.0
    %1018 = vmatprep.subr.mxu0 0.0
    %1019 = vmatpush1.msra.mxu0 0.0
    %1020 = vmatprep.subr.mxu0 0.0
    %1021 = vmatpush1.msra.mxu0 0.0
    %1022 = vmatprep.subr.mxu0 0.0
    %1023 = vmatpush1.msra.mxu0 0.0
    %1024 = vmatprep.subr.mxu0 0.0
    %1025 = vmatpush1.msra.mxu0 0.0
    %1026 = vmatprep.subr.mxu0 0.0
    %1027 = vmatpush1.msra.mxu0 0.0
    %1028 = vmatprep.subr.mxu0 0.0
    %1029 = vmatpush1.msra.mxu0 0.0
    %1030 = vmatprep.mubr.f32.mxu0 0.0
    %1031 = vmatmul.mubr.f32.gmra.mrb[0].mxu0 %v875
    %v1032 = vpop.f32.mrb[0].mxu0
    %v1033 = vadd.f32 %v866, %v1032
    %v1034 = vpop.f32.mrb[0].mxu0
    %1035 = vmatprep.mubr.f32.mxu0 0.0
    %1036 = vmatmul.mubr.f32.gmra.mrb[0].mxu0 %v878
    %v1037 = vpop.f32.mrb[0].mxu0
    %v1038 = vadd.f32 %v871, %v1037
    %v1039 = vpop.f32.mrb[0].mxu0
    %1040 = vdwg.mxu0
    %s1041 = scalar_lea.vmem %s57, 288
    %v1042 = vld [vmem:[%s1041] sm:$0xff]
    %v1043 = vld [vmem:[%s1041 + $0x8] sm:$0xff]
    %v1044 = vld [vmem:[%s1041 + $0x10] sm:$0xff]
    %v1045 = vld [vmem:[%s1041 + $0x18] sm:$0xff]
    %v1046 = vld [vmem:[%s1041 + $0x20] sm:$0xff]
    %v1047 = vld [vmem:[%s1041 + $0x28] sm:$0xff]
    %v1048 = vld [vmem:[%s1041 + $0x30] sm:$0xff]
    %v1049 = vld [vmem:[%s1041 + $0x38] sm:$0xff]
    %v1050 = vld [vmem:[%s1041 + $0x40] sm:$0xff]
    %v1051 = vld [vmem:[%s1041 + $0x48] sm:$0xff]
    %v1052 = vld [vmem:[%s1041 + $0x50] sm:$0xff]
    %v1053 = vld [vmem:[%s1041 + $0x58] sm:$0xff]
    %v1054 = vld [vmem:[%s1041 + $0x60] sm:$0xff]
    %v1055 = vld [vmem:[%s1041 + $0x68] sm:$0xff]
    %v1056 = vld [vmem:[%s1041 + $0x70] sm:$0xff]
    %v1057 = vld [vmem:[%s1041 + $0x78] sm:$0x1f]
    %v1058 = vld [vmem:[%s1041 + $0x80] sm:$0x1f]
    %v1059 = vld [vmem:[%s1041 + $0x88] sm:$0x1f]
    %v1061 = vsel %vm705, %v660, 0
    %v1064 = vsel %vm705, %v665, 0
    %v1067 = vsel %vm712, %v1057, 0
    %v1070 = vsel %vm712, %v1058, 0
    %v1073 = vsel %vm712, %v1059, 0
    %1075 = vmatprep.subr.mxu0 %v1043
    %1076 = vmatpush1.msra.mxu0 %v1042
    %1077 = vmatprep.subr.mxu0 %v1046
    %1078 = vmatpush1.msra.mxu0 %v1045
    %1079 = vmatprep.subr.mxu0 %v1049
    %1080 = vmatpush1.msra.mxu0 %v1048
    %1081 = vmatprep.subr.mxu0 %v1052
    %1082 = vmatpush1.msra.mxu0 %v1051
    %1083 = vmatprep.subr.mxu0 %v1055
    %1084 = vmatpush1.msra.mxu0 %v1054
    %1085 = vmatprep.subr.mxu0 %v1070
    %1086 = vmatpush1.msra.mxu0 %v1067
    %1087 = vmatprep.subr.mxu0 0.0
    %1088 = vmatpush1.msra.mxu0 0.0
    %1089 = vmatprep.subr.mxu0 0.0
    %1090 = vmatpush1.msra.mxu0 0.0
    %1091 = vmatprep.subr.mxu0 0.0
    %1092 = vmatpush1.msra.mxu0 0.0
    %1093 = vmatprep.subr.mxu0 0.0
    %1094 = vmatpush1.msra.mxu0 0.0
    %1095 = vmatprep.subr.mxu0 0.0
    %1096 = vmatpush1.msra.mxu0 0.0
    %1097 = vmatprep.subr.mxu0 0.0
    %1098 = vmatpush1.msra.mxu0 0.0
    %1099 = vmatprep.subr.mxu0 0.0
    %1100 = vmatpush1.msra.mxu0 0.0
    %1101 = vmatprep.subr.mxu0 0.0
    %1102 = vmatpush1.msra.mxu0 0.0
    %1103 = vmatprep.subr.mxu0 0.0
    %1104 = vmatpush1.msra.mxu0 0.0
    %1105 = vmatprep.subr.mxu0 0.0
    %1106 = vmatpush1.msra.mxu0 0.0
    %1107 = vmatprep.subr.mxu0 0.0
    %1108 = vmatpush1.msra.mxu0 0.0
    %1109 = vmatprep.subr.mxu0 0.0
    %1110 = vmatpush1.msra.mxu0 0.0
    %1111 = vmatprep.subr.mxu0 0.0
    %1112 = vmatpush1.msra.mxu0 0.0
    %1113 = vmatprep.subr.mxu0 0.0
    %1114 = vmatpush1.msra.mxu0 0.0
    %1115 = vmatprep.subr.mxu0 0.0
    %1116 = vmatpush1.msra.mxu0 0.0
    %1117 = vmatprep.subr.mxu0 0.0
    %1118 = vmatpush1.msra.mxu0 0.0
    %1119 = vmatprep.subr.mxu0 0.0
    %1120 = vmatpush1.msra.mxu0 0.0
    %1121 = vmatprep.subr.mxu0 0.0
    %1122 = vmatpush1.msra.mxu0 0.0
    %1123 = vmatprep.subr.mxu0 0.0
    %1124 = vmatpush1.msra.mxu0 0.0
    %1125 = vmatprep.subr.mxu0 0.0
    %1126 = vmatpush1.msra.mxu0 0.0
    %1127 = vmatprep.subr.mxu0 0.0
    %1128 = vmatpush1.msra.mxu0 0.0
    %1129 = vmatprep.subr.mxu0 0.0
    %1130 = vmatpush1.msra.mxu0 0.0
    %1131 = vmatprep.subr.mxu0 0.0
    %1132 = vmatpush1.msra.mxu0 0.0
    %1133 = vmatprep.subr.mxu0 0.0
    %1134 = vmatpush1.msra.mxu0 0.0
    %1135 = vmatprep.subr.mxu0 0.0
    %1136 = vmatpush1.msra.mxu0 0.0
    %1137 = vmatprep.subr.mxu0 0.0
    %1138 = vmatpush1.msra.mxu0 0.0
    %1139 = vmatprep.mubr.f32.mxu0 0.0
    %1140 = vmatmul.mubr.f32.gmra.mrb[0].mxu0 %v1061
    %v1141 = vpop.f32.mrb[0].mxu0
    %v1142 = vadd.f32 0.0, %v1141
    %v1143 = vpop.f32.mrb[0].mxu0
    %v1144 = vadd.f32 0.0, %v1143
    %1145 = vmatprep.mubr.f32.mxu0 0.0
    %1146 = vmatmul.mubr.f32.gmra.mrb[0].mxu0 %v1064
    %v1147 = vpop.f32.mrb[0].mxu0
    %v1148 = vadd.f32 0.0, %v1147
    %v1149 = vpop.f32.mrb[0].mxu0
    %v1150 = vadd.f32 0.0, %v1149
    %1151 = vdwg.mxu0
    %1152 = vmatprep.subr.mxu0 0.0
    %1153 = vmatpush1.msra.mxu0 %v1044
    %1154 = vmatprep.subr.mxu0 0.0
    %1155 = vmatpush1.msra.mxu0 %v1047
    %1156 = vmatprep.subr.mxu0 0.0
    %1157 = vmatpush1.msra.mxu0 %v1050
    %1158 = vmatprep.subr.mxu0 0.0
    %1159 = vmatpush1.msra.mxu0 %v1053
    %1160 = vmatprep.subr.mxu0 0.0
    %1161 = vmatpush1.msra.mxu0 %v1056
    %1162 = vmatprep.subr.mxu0 0.0
    %1163 = vmatpush1.msra.mxu0 %v1073
    %1164 = vmatprep.subr.mxu0 0.0
    %1165 = vmatpush1.msra.mxu0 0.0
    %1166 = vmatprep.subr.mxu0 0.0
    %1167 = vmatpush1.msra.mxu0 0.0
    %1168 = vmatprep.subr.mxu0 0.0
    %1169 = vmatpush1.msra.mxu0 0.0
    %1170 = vmatprep.subr.mxu0 0.0
    %1171 = vmatpush1.msra.mxu0 0.0
    %1172 = vmatprep.subr.mxu0 0.0
    %1173 = vmatpush1.msra.mxu0 0.0
    %1174 = vmatprep.subr.mxu0 0.0
    %1175 = vmatpush1.msra.mxu0 0.0
    %1176 = vmatprep.subr.mxu0 0.0
    %1177 = vmatpush1.msra.mxu0 0.0
    %1178 = vmatprep.subr.mxu0 0.0
    %1179 = vmatpush1.msra.mxu0 0.0
    %1180 = vmatprep.subr.mxu0 0.0
    %1181 = vmatpush1.msra.mxu0 0.0
    %1182 = vmatprep.subr.mxu0 0.0
    %1183 = vmatpush1.msra.mxu0 0.0
    %1184 = vmatprep.subr.mxu0 0.0
    %1185 = vmatpush1.msra.mxu0 0.0
    %1186 = vmatprep.subr.mxu0 0.0
    %1187 = vmatpush1.msra.mxu0 0.0
    %1188 = vmatprep.subr.mxu0 0.0
    %1189 = vmatpush1.msra.mxu0 0.0
    %1190 = vmatprep.subr.mxu0 0.0
    %1191 = vmatpush1.msra.mxu0 0.0
    %1192 = vmatprep.subr.mxu0 0.0
    %1193 = vmatpush1.msra.mxu0 0.0
    %1194 = vmatprep.subr.mxu0 0.0
    %1195 = vmatpush1.msra.mxu0 0.0
    %1196 = vmatprep.subr.mxu0 0.0
    %1197 = vmatpush1.msra.mxu0 0.0
    %1198 = vmatprep.subr.mxu0 0.0
    %1199 = vmatpush1.msra.mxu0 0.0
    %1200 = vmatprep.subr.mxu0 0.0
    %1201 = vmatpush1.msra.mxu0 0.0
    %1202 = vmatprep.subr.mxu0 0.0
    %1203 = vmatpush1.msra.mxu0 0.0
    %1204 = vmatprep.subr.mxu0 0.0
    %1205 = vmatpush1.msra.mxu0 0.0
    %1206 = vmatprep.subr.mxu0 0.0
    %1207 = vmatpush1.msra.mxu0 0.0
    %1208 = vmatprep.subr.mxu0 0.0
    %1209 = vmatpush1.msra.mxu0 0.0
    %1210 = vmatprep.subr.mxu0 0.0
    %1211 = vmatpush1.msra.mxu0 0.0
    %1212 = vmatprep.subr.mxu0 0.0
    %1213 = vmatpush1.msra.mxu0 0.0
    %1214 = vmatprep.subr.mxu0 0.0
    %1215 = vmatpush1.msra.mxu0 0.0
    %1216 = vmatprep.mubr.f32.mxu0 0.0
    %1217 = vmatmul.mubr.f32.gmra.mrb[0].mxu0 %v1061
    %v1218 = vpop.f32.mrb[0].mxu0
    %v1219 = vadd.f32 0.0, %v1218
    %v1220 = vpop.f32.mrb[0].mxu0
    %1221 = vmatprep.mubr.f32.mxu0 0.0
    %1222 = vmatmul.mubr.f32.gmra.mrb[0].mxu0 %v1064
    %v1223 = vpop.f32.mrb[0].mxu0
    %v1224 = vadd.f32 0.0, %v1223
    %v1225 = vpop.f32.mrb[0].mxu0
    %1226 = vdwg.mxu0
    %v1227 = vadd.f32 %v956, %v1142
    %v1228 = vadd.f32 %v958, %v1144
    %v1229 = vadd.f32 %v1033, %v1219
    %v1230 = vadd.f32 %v962, %v1148
    %v1231 = vadd.f32 %v964, %v1150
    %v1232 = vadd.f32 %v1038, %v1224
    %v1233 = vld [vmem:[%s55] sm:$0x7]
    %v1235 = vlaneseq
    %v1236 = vshrl.u32 %v1235, 7
    %v1237 = vsub.s32 0, %v1236
    %v1238 = vrot.slane %v1233, %v1237
    %v1239 = vlaneseq
    %v1240 = vshrl.u32 %v1239, 7
    %v1241 = vsub.s32 1, %v1240
    %v1242 = vrot.slane %v1233, %v1241
    %v1243 = vlaneseq
    %v1244 = vshrl.u32 %v1243, 7
    %v1245 = vsub.s32 2, %v1244
    %v1246 = vrot.slane %v1233, %v1245
    %v1250 = vadd.f32 %v1227, %v1238
    %v1251 = vadd.f32 %v1228, %v1242
    %v1252 = vadd.f32 %v1229, %v1246
    %v1253 = vadd.f32 %v1230, %v1238
    %v1254 = vadd.f32 %v1231, %v1242
    %v1255 = vadd.f32 %v1232, %v1246
    %v1256 = vmax.f32 %v1250, 0.0
    %v1257 = vmax.f32 %v1251, 0.0
    %v1258 = vmax.f32 %v1252, 0.0
    %v1259 = vmax.f32 %v1253, 0.0
    %v1260 = vmax.f32 %v1254, 0.0
    %v1261 = vmax.f32 %v1255, 0.0
    %1262 = vmatprep.subr.mxu0 %v1257
    %1263 = vmatpush1.msra.mxu0 %v1256
    %1264 = vmatprep.subr.mxu0 %v1260
    %1265 = vmatpush1.msra.mxu0 %v1259
    %1266 = vmatprep.subr.mxu0 0.0
    %1267 = vmatpush1.msra.mxu0 0.0
    %1268 = vmatprep.subr.mxu0 0.0
    %1269 = vmatpush1.msra.mxu0 0.0
    %1270 = vmatprep.subr.mxu0 0.0
    %1271 = vmatpush1.msra.mxu0 0.0
    %1272 = vmatprep.subr.mxu0 0.0
    %1273 = vmatpush1.msra.mxu0 0.0
    %1274 = vmatprep.subr.mxu0 0.0
    %1275 = vmatpush1.msra.mxu0 0.0
    %1276 = vmatprep.subr.mxu0 0.0
    %1277 = vmatpush1.msra.mxu0 0.0
    %1278 = vmatprep.subr.mxu0 0.0
    %1279 = vmatpush1.msra.mxu0 0.0
    %1280 = vmatprep.subr.mxu0 0.0
    %1281 = vmatpush1.msra.mxu0 0.0
    %1282 = vmatprep.subr.mxu0 0.0
    %1283 = vmatpush1.msra.mxu0 0.0
    %1284 = vmatprep.subr.mxu0 0.0
    %1285 = vmatpush1.msra.mxu0 0.0
    %1286 = vmatprep.subr.mxu0 0.0
    %1287 = vmatpush1.msra.mxu0 0.0
    %1288 = vmatprep.subr.mxu0 0.0
    %1289 = vmatpush1.msra.mxu0 0.0
    %1290 = vmatprep.subr.mxu0 0.0
    %1291 = vmatpush1.msra.mxu0 0.0
    %1292 = vmatprep.subr.mxu0 0.0
    %1293 = vmatpush1.msra.mxu0 0.0
    %1294 = vmatprep.subr.mxu0 0.0
    %1295 = vmatpush1.msra.mxu0 0.0
    %1296 = vmatprep.subr.mxu0 0.0
    %1297 = vmatpush1.msra.mxu0 0.0
    %1298 = vmatprep.subr.mxu0 0.0
    %1299 = vmatpush1.msra.mxu0 0.0
    %1300 = vmatprep.subr.mxu0 0.0
    %1301 = vmatpush1.msra.mxu0 0.0
    %1302 = vmatprep.subr.mxu0 0.0
    %1303 = vmatpush1.msra.mxu0 0.0
    %1304 = vmatprep.subr.mxu0 0.0
    %1305 = vmatpush1.msra.mxu0 0.0
    %1306 = vmatprep.subr.mxu0 0.0
    %1307 = vmatpush1.msra.mxu0 0.0
    %1308 = vmatprep.subr.mxu0 0.0
    %1309 = vmatpush1.msra.mxu0 0.0
    %1310 = vmatprep.subr.mxu0 0.0
    %1311 = vmatpush1.msra.mxu0 0.0
    %1312 = vmatprep.subr.mxu0 0.0
    %1313 = vmatpush1.msra.mxu0 0.0
    %1314 = vmatprep.subr.mxu0 0.0
    %1315 = vmatpush1.msra.mxu0 0.0
    %1316 = vmatprep.subr.mxu0 0.0
    %1317 = vmatpush1.msra.mxu0 0.0
    %1318 = vmatprep.subr.mxu0 0.0
    %1319 = vmatpush1.msra.mxu0 0.0
    %1320 = vmatprep.subr.mxu0 0.0
    %1321 = vmatpush1.msra.mxu0 0.0
    %1322 = vmatprep.subr.mxu0 0.0
    %1323 = vmatpush1.msra.mxu0 0.0
    %1324 = vmatprep.subr.mxu0 0.0
    %1325 = vmatpush1.msra.mxu0 0.0
    %1326 = vmatprep.mubr.f32.mxu0 0.0
    %1327 = vmatmul.mubr.f32.gmra.mrb[0].mxu0 %v572
    %v1328 = vpop.f32.mrb[0].mxu0
    %v1329 = vadd.f32 0.0, %v1328
    %v1330 = vpop.f32.mrb[0].mxu0
    %v1331 = vadd.f32 0.0, %v1330
    %1332 = vmatprep.mubr.f32.mxu0 0.0
    %1333 = vmatmul.mubr.f32.gmra.mrb[0].mxu0 %v575
    %v1334 = vpop.f32.mrb[0].mxu0
    %v1335 = vadd.f32 0.0, %v1334
    %v1336 = vpop.f32.mrb[0].mxu0
    %v1337 = vadd.f32 0.0, %v1336
    %1338 = vmatprep.mubr.f32.mxu0 0.0
    %1339 = vmatmul.mubr.f32.gmra.mrb[0].mxu0 %v578
    %v1340 = vpop.f32.mrb[0].mxu0
    %v1341 = vadd.f32 0.0, %v1340
    %v1342 = vpop.f32.mrb[0].mxu0
    %v1343 = vadd.f32 0.0, %v1342
    %1344 = vmatprep.mubr.f32.mxu0 0.0
    %1345 = vmatmul.mubr.f32.gmra.mrb[0].mxu0 %v581
    %v1346 = vpop.f32.mrb[0].mxu0
    %v1347 = vadd.f32 0.0, %v1346
    %v1348 = vpop.f32.mrb[0].mxu0
    %v1349 = vadd.f32 0.0, %v1348
    %1350 = vdwg.mxu0
    %1351 = vmatprep.subr.mxu0 0.0
    %1352 = vmatpush1.msra.mxu0 %v1258
    %1353 = vmatprep.subr.mxu0 0.0
    %1354 = vmatpush1.msra.mxu0 %v1261
    %1355 = vmatprep.subr.mxu0 0.0
    %1356 = vmatpush1.msra.mxu0 0.0
    %1357 = vmatprep.subr.mxu0 0.0
    %1358 = vmatpush1.msra.mxu0 0.0
    %1359 = vmatprep.subr.mxu0 0.0
    %1360 = vmatpush1.msra.mxu0 0.0
    %1361 = vmatprep.subr.mxu0 0.0
    %1362 = vmatpush1.msra.mxu0 0.0
    %1363 = vmatprep.subr.mxu0 0.0
    %1364 = vmatpush1.msra.mxu0 0.0
    %1365 = vmatprep.subr.mxu0 0.0
    %1366 = vmatpush1.msra.mxu0 0.0
    %1367 = vmatprep.subr.mxu0 0.0
    %1368 = vmatpush1.msra.mxu0 0.0
    %1369 = vmatprep.subr.mxu0 0.0
    %1370 = vmatpush1.msra.mxu0 0.0
    %1371 = vmatprep.subr.mxu0 0.0
    %1372 = vmatpush1.msra.mxu0 0.0
    %1373 = vmatprep.subr.mxu0 0.0
    %1374 = vmatpush1.msra.mxu0 0.0
    %1375 = vmatprep.subr.mxu0 0.0
    %1376 = vmatpush1.msra.mxu0 0.0
    %1377 = vmatprep.subr.mxu0 0.0
    %1378 = vmatpush1.msra.mxu0 0.0
    %1379 = vmatprep.subr.mxu0 0.0
    %1380 = vmatpush1.msra.mxu0 0.0
    %1381 = vmatprep.subr.mxu0 0.0
    %1382 = vmatpush1.msra.mxu0 0.0
    %1383 = vmatprep.subr.mxu0 0.0
    %1384 = vmatpush1.msra.mxu0 0.0
    %1385 = vmatprep.subr.mxu0 0.0
    %1386 = vmatpush1.msra.mxu0 0.0
    %1387 = vmatprep.subr.mxu0 0.0
    %1388 = vmatpush1.msra.mxu0 0.0
    %1389 = vmatprep.subr.mxu0 0.0
    %1390 = vmatpush1.msra.mxu0 0.0
    %1391 = vmatprep.subr.mxu0 0.0
    %1392 = vmatpush1.msra.mxu0 0.0
    %1393 = vmatprep.subr.mxu0 0.0
    %1394 = vmatpush1.msra.mxu0 0.0
    %1395 = vmatprep.subr.mxu0 0.0
    %1396 = vmatpush1.msra.mxu0 0.0
    %1397 = vmatprep.subr.mxu0 0.0
    %1398 = vmatpush1.msra.mxu0 0.0
    %1399 = vmatprep.subr.mxu0 0.0
    %1400 = vmatpush1.msra.mxu0 0.0
    %1401 = vmatprep.subr.mxu0 0.0
    %1402 = vmatpush1.msra.mxu0 0.0
    %1403 = vmatprep.subr.mxu0 0.0
    %1404 = vmatpush1.msra.mxu0 0.0
    %1405 = vmatprep.subr.mxu0 0.0
    %1406 = vmatpush1.msra.mxu0 0.0
    %1407 = vmatprep.subr.mxu0 0.0
    %1408 = vmatpush1.msra.mxu0 0.0
    %1409 = vmatprep.subr.mxu0 0.0
    %1410 = vmatpush1.msra.mxu0 0.0
    %1411 = vmatprep.subr.mxu0 0.0
    %1412 = vmatpush1.msra.mxu0 0.0
    %1413 = vmatprep.subr.mxu0 0.0
    %1414 = vmatpush1.msra.mxu0 0.0
    %1415 = vmatprep.mubr.f32.mxu0 0.0
    %1416 = vmatmul.mubr.f32.gmra.mrb[0].mxu0 %v572
    %v1417 = vpop.f32.mrb[0].mxu0
    %v1418 = vadd.f32 0.0, %v1417
    %v1419 = vpop.f32.mrb[0].mxu0
    %1420 = vmatprep.mubr.f32.mxu0 0.0
    %1421 = vmatmul.mubr.f32.gmra.mrb[0].mxu0 %v575
    %v1422 = vpop.f32.mrb[0].mxu0
    %v1423 = vadd.f32 0.0, %v1422
    %v1424 = vpop.f32.mrb[0].mxu0
    %1425 = vmatprep.mubr.f32.mxu0 0.0
    %1426 = vmatmul.mubr.f32.gmra.mrb[0].mxu0 %v578
    %v1427 = vpop.f32.mrb[0].mxu0
    %v1428 = vadd.f32 0.0, %v1427
    %v1429 = vpop.f32.mrb[0].mxu0
    %1430 = vmatprep.mubr.f32.mxu0 0.0
    %1431 = vmatmul.mubr.f32.gmra.mrb[0].mxu0 %v581
    %v1432 = vpop.f32.mrb[0].mxu0
    %v1433 = vadd.f32 0.0, %v1432
    %v1434 = vpop.f32.mrb[0].mxu0
    %1435 = vdwg.mxu0
    %v1436 = vld [vmem:[%s61] sm:$0xff]
    %v1437 = vld [vmem:[%s61 + $0x8] sm:$0xff]
    %v1438 = vld [vmem:[%s61 + $0x10] sm:$0xff]
    %v1439 = vld [vmem:[%s61 + $0x18] sm:$0xff]
    %v1440 = vld [vmem:[%s61 + $0x20] sm:$0xff]
    %v1441 = vld [vmem:[%s61 + $0x28] sm:$0xff]
    %v1442 = vld [vmem:[%s61 + $0x30] sm:$0xff]
    %v1443 = vld [vmem:[%s61 + $0x38] sm:$0xff]
    %v1444 = vld [vmem:[%s61 + $0x40] sm:$0xff]
    %v1445 = vld [vmem:[%s61 + $0x48] sm:$0xff]
    %v1446 = vld [vmem:[%s61 + $0x50] sm:$0xff]
    %v1447 = vld [vmem:[%s61 + $0x58] sm:$0xff]
    %v1448 = vld [vmem:[%s61 + $0x60] sm:$0xff]
    %v1449 = vld [vmem:[%s61 + $0x68] sm:$0xff]
    %v1450 = vld [vmem:[%s61 + $0x70] sm:$0xff]
    %v1451 = vld [vmem:[%s61 + $0x78] sm:$0xff]
    %v1452 = vld [vmem:[%s61 + $0x80] sm:$0xff]
    %v1453 = vld [vmem:[%s61 + $0x88] sm:$0xff]
    %v1454 = vld [vmem:[%s61 + $0x90] sm:$0xff]
    %v1455 = vld [vmem:[%s61 + $0x98] sm:$0xff]
    %v1456 = vld [vmem:[%s61 + $0xa0] sm:$0xff]
    %v1457 = vld [vmem:[%s61 + $0xa8] sm:$0xff]
    %v1458 = vld [vmem:[%s61 + $0xb0] sm:$0xff]
    %v1459 = vld [vmem:[%s61 + $0xb8] sm:$0xff]
    %v1460 = vld [vmem:[%s61 + $0xc0] sm:$0xff]
    %v1461 = vld [vmem:[%s61 + $0xc8] sm:$0xff]
    %v1462 = vld [vmem:[%s61 + $0xd0] sm:$0xff]
    %v1463 = vld [vmem:[%s61 + $0xd8] sm:$0xff]
    %v1464 = vld [vmem:[%s61 + $0xe0] sm:$0xff]
    %v1465 = vld [vmem:[%s61 + $0xe8] sm:$0xff]
    %v1466 = vld [vmem:[%s61 + $0xf0] sm:$0xff]
    %v1467 = vld [vmem:[%s61 + $0xf8] sm:$0xff]
    %v1468 = vld [vmem:[%s61 + $0x100] sm:$0xff]
    %v1469 = vld [vmem:[%s61 + $0x108] sm:$0xff]
    %v1470 = vld [vmem:[%s61 + $0x110] sm:$0xff]
    %v1471 = vld [vmem:[%s61 + $0x118] sm:$0xff]
    %v1472 = vld [vmem:[%s61 + $0x120] sm:$0xff]
    %v1473 = vld [vmem:[%s61 + $0x128] sm:$0xff]
    %v1474 = vld [vmem:[%s61 + $0x130] sm:$0xff]
    %v1475 = vld [vmem:[%s61 + $0x138] sm:$0xff]
    %v1476 = vld [vmem:[%s61 + $0x140] sm:$0xff]
    %v1477 = vld [vmem:[%s61 + $0x148] sm:$0xff]
    %v1478 = vld [vmem:[%s61 + $0x150] sm:$0xff]
    %v1479 = vld [vmem:[%s61 + $0x158] sm:$0xff]
    %v1480 = vld [vmem:[%s61 + $0x160] sm:$0xff]
    %v1481 = vld [vmem:[%s61 + $0x168] sm:$0xff]
    %v1482 = vld [vmem:[%s61 + $0x170] sm:$0xff]
    %v1483 = vld [vmem:[%s61 + $0x178] sm:$0xff]
    %v1484 = vld [vmem:[%s61 + $0x180] sm:$0xff]
    %v1485 = vld [vmem:[%s61 + $0x188] sm:$0xff]
    %v1486 = vld [vmem:[%s61 + $0x190] sm:$0xff]
    %v1487 = vld [vmem:[%s61 + $0x198] sm:$0xff]
    %v1488 = vld [vmem:[%s61 + $0x1a0] sm:$0xff]
    %v1489 = vld [vmem:[%s61 + $0x1a8] sm:$0xff]
    %v1490 = vld [vmem:[%s61 + $0x1b0] sm:$0xff]
    %v1491 = vld [vmem:[%s61 + $0x1b8] sm:$0xff]
    %v1492 = vld [vmem:[%s61 + $0x1c0] sm:$0xff]
    %v1493 = vld [vmem:[%s61 + $0x1c8] sm:$0xff]
    %v1494 = vld [vmem:[%s61 + $0x1d0] sm:$0xff]
    %v1495 = vld [vmem:[%s61 + $0x1d8] sm:$0xff]
    %v1496 = vld [vmem:[%s61 + $0x1e0] sm:$0xff]
    %v1497 = vld [vmem:[%s61 + $0x1e8] sm:$0xff]
    %v1498 = vld [vmem:[%s61 + $0x1f0] sm:$0xff]
    %v1499 = vld [vmem:[%s61 + $0x1f8] sm:$0xff]
    %v1500 = vld [vmem:[%s61 + $0x200] sm:$0xff]
    %v1501 = vld [vmem:[%s61 + $0x208] sm:$0xff]
    %v1502 = vld [vmem:[%s61 + $0x210] sm:$0xff]
    %v1503 = vld [vmem:[%s61 + $0x218] sm:$0xff]
    %v1504 = vld [vmem:[%s61 + $0x220] sm:$0xff]
    %v1505 = vld [vmem:[%s61 + $0x228] sm:$0xff]
    %v1506 = vld [vmem:[%s61 + $0x230] sm:$0xff]
    %v1507 = vld [vmem:[%s61 + $0x238] sm:$0xff]
    %v1508 = vld [vmem:[%s61 + $0x240] sm:$0xff]
    %v1509 = vld [vmem:[%s61 + $0x248] sm:$0xff]
    %v1510 = vld [vmem:[%s61 + $0x250] sm:$0xff]
    %v1511 = vld [vmem:[%s61 + $0x258] sm:$0xff]
    %v1512 = vld [vmem:[%s61 + $0x260] sm:$0xff]
    %v1513 = vld [vmem:[%s61 + $0x268] sm:$0xff]
    %v1514 = vld [vmem:[%s61 + $0x270] sm:$0xff]
    %v1515 = vld [vmem:[%s61 + $0x278] sm:$0xff]
    %v1516 = vld [vmem:[%s61 + $0x280] sm:$0xff]
    %v1517 = vld [vmem:[%s61 + $0x288] sm:$0xff]
    %v1518 = vld [vmem:[%s61 + $0x290] sm:$0xff]
    %v1519 = vld [vmem:[%s61 + $0x298] sm:$0xff]
    %v1520 = vld [vmem:[%s61 + $0x2a0] sm:$0xff]
    %v1521 = vld [vmem:[%s61 + $0x2a8] sm:$0xff]
    %v1522 = vld [vmem:[%s61 + $0x2b0] sm:$0xff]
    %v1523 = vld [vmem:[%s61 + $0x2b8] sm:$0xff]
    %s1524 = scalar_lea.vmem %s61, 704
    %v1525 = vld [vmem:[%s1524] sm:$0xff]
    %v1526 = vld [vmem:[%s1524 + $0x8] sm:$0xff]
    %v1527 = vld [vmem:[%s1524 + $0x10] sm:$0xff]
    %v1528 = vld [vmem:[%s1524 + $0x18] sm:$0xff]
    %v1529 = vld [vmem:[%s1524 + $0x20] sm:$0xff]
    %v1530 = vld [vmem:[%s1524 + $0x28] sm:$0xff]
    %v1531 = vld [vmem:[%s1524 + $0x30] sm:$0xff]
    %v1532 = vld [vmem:[%s1524 + $0x38] sm:$0xff]
    %v1533 = vld [vmem:[%s1524 + $0x40] sm:$0xff]
    %v1534 = vld [vmem:[%s1524 + $0x48] sm:$0xff]
    %v1535 = vld [vmem:[%s1524 + $0x50] sm:$0xff]
    %v1536 = vld [vmem:[%s1524 + $0x58] sm:$0xff]
    %v1537 = vld [vmem:[%s1524 + $0x60] sm:$0xff]
    %v1538 = vld [vmem:[%s1524 + $0x68] sm:$0xff]
    %v1539 = vld [vmem:[%s1524 + $0x70] sm:$0xff]
    %v1540 = vld [vmem:[%s1524 + $0x78] sm:$0xff]
    %v1541 = vld [vmem:[%s1524 + $0x80] sm:$0xff]
    %v1542 = vld [vmem:[%s1524 + $0x88] sm:$0xff]
    %v1543 = vld [vmem:[%s1524 + $0x90] sm:$0xff]
    %v1544 = vld [vmem:[%s1524 + $0x98] sm:$0xff]
    %v1545 = vld [vmem:[%s1524 + $0xa0] sm:$0xff]
    %v1546 = vld [vmem:[%s1524 + $0xa8] sm:$0xff]
    %v1547 = vld [vmem:[%s1524 + $0xb0] sm:$0xff]
    %v1548 = vld [vmem:[%s1524 + $0xb8] sm:$0xff]
    %v1549 = vld [vmem:[%s1524 + $0xc0] sm:$0xff]
    %v1550 = vld [vmem:[%s1524 + $0xc8] sm:$0xff]
    %v1551 = vld [vmem:[%s1524 + $0xd0] sm:$0xff]
    %v1552 = vld [vmem:[%s1524 + $0xd8] sm:$0xff]
    %v1553 = vld [vmem:[%s1524 + $0xe0] sm:$0xff]
    %v1554 = vld [vmem:[%s1524 + $0xe8] sm:$0xff]
    %v1555 = vld [vmem:[%s1524 + $0xf0] sm:$0xff]
    %v1556 = vld [vmem:[%s1524 + $0xf8] sm:$0xff]
    %v1557 = vld [vmem:[%s1524 + $0x100] sm:$0xff]
    %v1558 = vld [vmem:[%s1524 + $0x108] sm:$0xff]
    %v1559 = vld [vmem:[%s1524 + $0x110] sm:$0xff]
    %v1560 = vld [vmem:[%s1524 + $0x118] sm:$0xff]
    %v1561 = vld [vmem:[%s1524 + $0x120] sm:$0xff]
    %v1562 = vld [vmem:[%s1524 + $0x128] sm:$0xff]
    %v1563 = vld [vmem:[%s1524 + $0x130] sm:$0xff]
    %v1564 = vld [vmem:[%s1524 + $0x138] sm:$0xff]
    %v1565 = vld [vmem:[%s1524 + $0x140] sm:$0xff]
    %v1566 = vld [vmem:[%s1524 + $0x148] sm:$0xff]
    %v1567 = vld [vmem:[%s1524 + $0x150] sm:$0xff]
    %v1568 = vld [vmem:[%s1524 + $0x158] sm:$0xff]
    %v1569 = vld [vmem:[%s1524 + $0x160] sm:$0xff]
    %v1570 = vld [vmem:[%s1524 + $0x168] sm:$0xff]
    %v1571 = vld [vmem:[%s1524 + $0x170] sm:$0xff]
    %v1572 = vld [vmem:[%s1524 + $0x178] sm:$0xff]
    %v1573 = vld [vmem:[%s1524 + $0x180] sm:$0xff]
    %v1574 = vld [vmem:[%s1524 + $0x188] sm:$0xff]
    %v1575 = vld [vmem:[%s1524 + $0x190] sm:$0xff]
    %v1576 = vld [vmem:[%s1524 + $0x198] sm:$0xff]
    %v1577 = vld [vmem:[%s1524 + $0x1a0] sm:$0xff]
    %v1578 = vld [vmem:[%s1524 + $0x1a8] sm:$0xff]
    %v1579 = vld [vmem:[%s1524 + $0x1b0] sm:$0xff]
    %v1580 = vld [vmem:[%s1524 + $0x1b8] sm:$0xff]
    %v1581 = vld [vmem:[%s1524 + $0x1c0] sm:$0xff]
    %v1582 = vld [vmem:[%s1524 + $0x1c8] sm:$0xff]
    %v1583 = vld [vmem:[%s1524 + $0x1d0] sm:$0xff]
    %v1584 = vld [vmem:[%s1524 + $0x1d8] sm:$0xff]
    %v1585 = vld [vmem:[%s1524 + $0x1e0] sm:$0xff]
    %v1586 = vld [vmem:[%s1524 + $0x1e8] sm:$0xff]
    %v1587 = vld [vmem:[%s1524 + $0x1f0] sm:$0xff]
    %v1588 = vld [vmem:[%s1524 + $0x1f8] sm:$0xff]
    %v1589 = vld [vmem:[%s1524 + $0x200] sm:$0xff]
    %v1590 = vld [vmem:[%s1524 + $0x208] sm:$0xff]
    %v1591 = vld [vmem:[%s1524 + $0x210] sm:$0xff]
    %v1592 = vld [vmem:[%s1524 + $0x218] sm:$0xff]
    %v1593 = vld [vmem:[%s1524 + $0x220] sm:$0xff]
    %v1594 = vld [vmem:[%s1524 + $0x228] sm:$0xff]
    %v1595 = vld [vmem:[%s1524 + $0x230] sm:$0xff]
    %v1596 = vld [vmem:[%s1524 + $0x238] sm:$0xff]
    %v1597 = vld [vmem:[%s1524 + $0x240] sm:$0xff]
    %v1598 = vld [vmem:[%s1524 + $0x248] sm:$0xff]
    %v1599 = vld [vmem:[%s1524 + $0x250] sm:$0xff]
    %v1600 = vld [vmem:[%s1524 + $0x258] sm:$0xff]
    %v1601 = vld [vmem:[%s1524 + $0x260] sm:$0xff]
    %v1602 = vld [vmem:[%s1524 + $0x268] sm:$0xff]
    %v1603 = vld [vmem:[%s1524 + $0x270] sm:$0xff]
    %v1604 = vld [vmem:[%s1524 + $0x278] sm:$0xff]
    %v1605 = vld [vmem:[%s1524 + $0x280] sm:$0xff]
    %v1606 = vld [vmem:[%s1524 + $0x288] sm:$0xff]
    %v1607 = vld [vmem:[%s1524 + $0x290] sm:$0xff]
    %v1608 = vld [vmem:[%s1524 + $0x298] sm:$0xff]
    %v1609 = vld [vmem:[%s1524 + $0x2a0] sm:$0xff]
    %v1610 = vld [vmem:[%s1524 + $0x2a8] sm:$0xff]
    %v1611 = vld [vmem:[%s1524 + $0x2b0] sm:$0xff]
    %v1612 = vld [vmem:[%s1524 + $0x2b8] sm:$0xff]
    %vm1613 = vcmask 785408
    %v1615 = vsel %vm1613, %v1258, 0
    %v1618 = vsel %vm1613, %v1261, 0
    %1620 = vmatprep.subr.mxu0 %v1526
    %1621 = vmatpush1.msra.mxu0 %v1525
    %1622 = vmatprep.subr.mxu0 %v1528
    %1623 = vmatpush1.msra.mxu0 %v1527
    %1624 = vmatprep.subr.mxu0 %v1530
    %1625 = vmatpush1.msra.mxu0 %v1529
    %1626 = vmatprep.subr.mxu0 %v1532
    %1627 = vmatpush1.msra.mxu0 %v1531
    %1628 = vmatprep.subr.mxu0 %v1534
    %1629 = vmatpush1.msra.mxu0 %v1533
    %1630 = vmatprep.subr.mxu0 %v1536
    %1631 = vmatpush1.msra.mxu0 %v1535
    %1632 = vmatprep.subr.mxu0 %v1538
    %1633 = vmatpush1.msra.mxu0 %v1537
    %1634 = vmatprep.subr.mxu0 %v1540
    %1635 = vmatpush1.msra.mxu0 %v1539
    %1636 = vmatprep.subr.mxu0 %v1542
    %1637 = vmatpush1.msra.mxu0 %v1541
    %1638 = vmatprep.subr.mxu0 %v1544
    %1639 = vmatpush1.msra.mxu0 %v1543
    %1640 = vmatprep.subr.mxu0 %v1546
    %1641 = vmatpush1.msra.mxu0 %v1545
    %1642 = vmatprep.subr.mxu0 %v1548
    %1643 = vmatpush1.msra.mxu0 %v1547
    %1644 = vmatprep.subr.mxu0 %v1550
    %1645 = vmatpush1.msra.mxu0 %v1549
    %1646 = vmatprep.subr.mxu0 %v1552
    %1647 = vmatpush1.msra.mxu0 %v1551
    %1648 = vmatprep.subr.mxu0 %v1554
    %1649 = vmatpush1.msra.mxu0 %v1553
    %1650 = vmatprep.subr.mxu0 %v1556
    %1651 = vmatpush1.msra.mxu0 %v1555
    %1652 = vmatprep.subr.mxu0 %v1558
    %1653 = vmatpush1.msra.mxu0 %v1557
    %1654 = vmatprep.subr.mxu0 %v1560
    %1655 = vmatpush1.msra.mxu0 %v1559
    %1656 = vmatprep.subr.mxu0 %v1562
    %1657 = vmatpush1.msra.mxu0 %v1561
    %1658 = vmatprep.subr.mxu0 %v1564
    %1659 = vmatpush1.msra.mxu0 %v1563
    %1660 = vmatprep.subr.mxu0 %v1566
    %1661 = vmatpush1.msra.mxu0 %v1565
    %1662 = vmatprep.subr.mxu0 %v1568
    %1663 = vmatpush1.msra.mxu0 %v1567
    %1664 = vmatprep.subr.mxu0 %v1570
    %1665 = vmatpush1.msra.mxu0 %v1569
    %1666 = vmatprep.subr.mxu0 %v1572
    %1667 = vmatpush1.msra.mxu0 %v1571
    %1668 = vmatprep.subr.mxu0 %v1574
    %1669 = vmatpush1.msra.mxu0 %v1573
    %1670 = vmatprep.subr.mxu0 %v1576
    %1671 = vmatpush1.msra.mxu0 %v1575
    %1672 = vmatprep.subr.mxu0 %v1578
    %1673 = vmatpush1.msra.mxu0 %v1577
    %1674 = vmatprep.subr.mxu0 %v1580
    %1675 = vmatpush1.msra.mxu0 %v1579
    %1676 = vmatprep.subr.mxu0 %v1582
    %1677 = vmatpush1.msra.mxu0 %v1581
    %1678 = vmatprep.subr.mxu0 %v1584
    %1679 = vmatpush1.msra.mxu0 %v1583
    %1680 = vmatprep.subr.mxu0 %v1586
    %1681 = vmatpush1.msra.mxu0 %v1585
    %1682 = vmatprep.subr.mxu0 %v1588
    %1683 = vmatpush1.msra.mxu0 %v1587
    %1684 = vmatprep.mubr.f32.mxu0 %v1257
    %1685 = vmatmul.mubr.f32.gmra.mrb[0].mxu0 %v1256
    %v1686 = vpop.f32.mrb[0].mxu0
    %v1687 = vadd.f32 0.0, %v1686
    %v1688 = vpop.f32.mrb[0].mxu0
    %v1689 = vadd.f32 0.0, %v1688
    %1690 = vmatprep.mubr.f32.mxu0 %v1260
    %1691 = vmatmul.mubr.f32.gmra.mrb[0].mxu0 %v1259
    %v1692 = vpop.f32.mrb[0].mxu0
    %v1693 = vadd.f32 0.0, %v1692
    %v1694 = vpop.f32.mrb[0].mxu0
    %v1695 = vadd.f32 0.0, %v1694
    %1696 = vdwg.mxu0
    %1697 = vmatprep.subr.mxu0 %v1590
    %1698 = vmatpush1.msra.mxu0 %v1589
    %1699 = vmatprep.subr.mxu0 %v1592
    %1700 = vmatpush1.msra.mxu0 %v1591
    %1701 = vmatprep.subr.mxu0 %v1594
    %1702 = vmatpush1.msra.mxu0 %v1593
    %1703 = vmatprep.subr.mxu0 %v1596
    %1704 = vmatpush1.msra.mxu0 %v1595
    %1705 = vmatprep.subr.mxu0 %v1598
    %1706 = vmatpush1.msra.mxu0 %v1597
    %1707 = vmatprep.subr.mxu0 %v1600
    %1708 = vmatpush1.msra.mxu0 %v1599
    %1709 = vmatprep.subr.mxu0 %v1602
    %1710 = vmatpush1.msra.mxu0 %v1601
    %1711 = vmatprep.subr.mxu0 %v1604
    %1712 = vmatpush1.msra.mxu0 %v1603
    %1713 = vmatprep.subr.mxu0 %v1606
    %1714 = vmatpush1.msra.mxu0 %v1605
    %1715 = vmatprep.subr.mxu0 %v1608
    %1716 = vmatpush1.msra.mxu0 %v1607
    %1717 = vmatprep.subr.mxu0 %v1610
    %1718 = vmatpush1.msra.mxu0 %v1609
    %1719 = vmatprep.subr.mxu0 %v1612
    %1720 = vmatpush1.msra.mxu0 %v1611
    %1721 = vmatprep.subr.mxu0 0.0
    %1722 = vmatpush1.msra.mxu0 0.0
    %1723 = vmatprep.subr.mxu0 0.0
    %1724 = vmatpush1.msra.mxu0 0.0
    %1725 = vmatprep.subr.mxu0 0.0
    %1726 = vmatpush1.msra.mxu0 0.0
    %1727 = vmatprep.subr.mxu0 0.0
    %1728 = vmatpush1.msra.mxu0 0.0
    %1729 = vmatprep.subr.mxu0 0.0
    %1730 = vmatpush1.msra.mxu0 0.0
    %1731 = vmatprep.subr.mxu0 0.0
    %1732 = vmatpush1.msra.mxu0 0.0
    %1733 = vmatprep.subr.mxu0 0.0
    %1734 = vmatpush1.msra.mxu0 0.0
    %1735 = vmatprep.subr.mxu0 0.0
    %1736 = vmatpush1.msra.mxu0 0.0
    %1737 = vmatprep.subr.mxu0 0.0
    %1738 = vmatpush1.msra.mxu0 0.0
    %1739 = vmatprep.subr.mxu0 0.0
    %1740 = vmatpush1.msra.mxu0 0.0
    %1741 = vmatprep.subr.mxu0 0.0
    %1742 = vmatpush1.msra.mxu0 0.0
    %1743 = vmatprep.subr.mxu0 0.0
    %1744 = vmatpush1.msra.mxu0 0.0
    %1745 = vmatprep.subr.mxu0 0.0
    %1746 = vmatpush1.msra.mxu0 0.0
    %1747 = vmatprep.subr.mxu0 0.0
    %1748 = vmatpush1.msra.mxu0 0.0
    %1749 = vmatprep.subr.mxu0 0.0
    %1750 = vmatpush1.msra.mxu0 0.0
    %1751 = vmatprep.subr.mxu0 0.0
    %1752 = vmatpush1.msra.mxu0 0.0
    %1753 = vmatprep.subr.mxu0 0.0
    %1754 = vmatpush1.msra.mxu0 0.0
    %1755 = vmatprep.subr.mxu0 0.0
    %1756 = vmatpush1.msra.mxu0 0.0
    %1757 = vmatprep.subr.mxu0 0.0
    %1758 = vmatpush1.msra.mxu0 0.0
    %1759 = vmatprep.subr.mxu0 0.0
    %1760 = vmatpush1.msra.mxu0 0.0
    %1761 = vmatprep.mubr.f32.mxu0 0.0
    %1762 = vmatmul.mubr.f32.gmra.mrb[0].mxu0 %v1615
    %v1763 = vpop.f32.mrb[0].mxu0
    %v1764 = vadd.f32 %v1687, %v1763
    %v1765 = vpop.f32.mrb[0].mxu0
    %v1766 = vadd.f32 %v1689, %v1765
    %1767 = vmatprep.mubr.f32.mxu0 0.0
    %1768 = vmatmul.mubr.f32.gmra.mrb[0].mxu0 %v1618
    %v1769 = vpop.f32.mrb[0].mxu0
    %v1770 = vadd.f32 %v1693, %v1769
    %v1771 = vpop.f32.mrb[0].mxu0
    %v1772 = vadd.f32 %v1695, %v1771
    %1773 = vdwg.mxu0
    %v1775 = vsel %vm1613, %v1418, 0
    %v1778 = vsel %vm1613, %v1423, 0
    %1780 = vmatprep.subr.mxu0 %v1437
    %1781 = vmatpush1.msra.mxu0 %v1436
    %1782 = vmatprep.subr.mxu0 %v1439
    %1783 = vmatpush1.msra.mxu0 %v1438
    %1784 = vmatprep.subr.mxu0 %v1441
    %1785 = vmatpush1.msra.mxu0 %v1440
    %1786 = vmatprep.subr.mxu0 %v1443
    %1787 = vmatpush1.msra.mxu0 %v1442
    %1788 = vmatprep.subr.mxu0 %v1445
    %1789 = vmatpush1.msra.mxu0 %v1444
    %1790 = vmatprep.subr.mxu0 %v1447
    %1791 = vmatpush1.msra.mxu0 %v1446
    %1792 = vmatprep.subr.mxu0 %v1449
    %1793 = vmatpush1.msra.mxu0 %v1448
    %1794 = vmatprep.subr.mxu0 %v1451
    %1795 = vmatpush1.msra.mxu0 %v1450
    %1796 = vmatprep.subr.mxu0 %v1453
    %1797 = vmatpush1.msra.mxu0 %v1452
    %1798 = vmatprep.subr.mxu0 %v1455
    %1799 = vmatpush1.msra.mxu0 %v1454
    %1800 = vmatprep.subr.mxu0 %v1457
    %1801 = vmatpush1.msra.mxu0 %v1456
    %1802 = vmatprep.subr.mxu0 %v1459
    %1803 = vmatpush1.msra.mxu0 %v1458
    %1804 = vmatprep.subr.mxu0 %v1461
    %1805 = vmatpush1.msra.mxu0 %v1460
    %1806 = vmatprep.subr.mxu0 %v1463
    %1807 = vmatpush1.msra.mxu0 %v1462
    %1808 = vmatprep.subr.mxu0 %v1465
    %1809 = vmatpush1.msra.mxu0 %v1464
    %1810 = vmatprep.subr.mxu0 %v1467
    %1811 = vmatpush1.msra.mxu0 %v1466
    %1812 = vmatprep.subr.mxu0 %v1469
    %1813 = vmatpush1.msra.mxu0 %v1468
    %1814 = vmatprep.subr.mxu0 %v1471
    %1815 = vmatpush1.msra.mxu0 %v1470
    %1816 = vmatprep.subr.mxu0 %v1473
    %1817 = vmatpush1.msra.mxu0 %v1472
    %1818 = vmatprep.subr.mxu0 %v1475
    %1819 = vmatpush1.msra.mxu0 %v1474
    %1820 = vmatprep.subr.mxu0 %v1477
    %1821 = vmatpush1.msra.mxu0 %v1476
    %1822 = vmatprep.subr.mxu0 %v1479
    %1823 = vmatpush1.msra.mxu0 %v1478
    %1824 = vmatprep.subr.mxu0 %v1481
    %1825 = vmatpush1.msra.mxu0 %v1480
    %1826 = vmatprep.subr.mxu0 %v1483
    %1827 = vmatpush1.msra.mxu0 %v1482
    %1828 = vmatprep.subr.mxu0 %v1485
    %1829 = vmatpush1.msra.mxu0 %v1484
    %1830 = vmatprep.subr.mxu0 %v1487
    %1831 = vmatpush1.msra.mxu0 %v1486
    %1832 = vmatprep.subr.mxu0 %v1489
    %1833 = vmatpush1.msra.mxu0 %v1488
    %1834 = vmatprep.subr.mxu0 %v1491
    %1835 = vmatpush1.msra.mxu0 %v1490
    %1836 = vmatprep.subr.mxu0 %v1493
    %1837 = vmatpush1.msra.mxu0 %v1492
    %1838 = vmatprep.subr.mxu0 %v1495
    %1839 = vmatpush1.msra.mxu0 %v1494
    %1840 = vmatprep.subr.mxu0 %v1497
    %1841 = vmatpush1.msra.mxu0 %v1496
    %1842 = vmatprep.subr.mxu0 %v1499
    %1843 = vmatpush1.msra.mxu0 %v1498
    %1844 = vmatprep.mubr.f32.mxu0 %v1331
    %1845 = vmatmul.mubr.f32.gmra.mrb[0].mxu0 %v1329
    %v1846 = vpop.f32.mrb[0].mxu0
    %v1847 = vadd.f32 %v1764, %v1846
    %v1848 = vpop.f32.mrb[0].mxu0
    %v1849 = vadd.f32 %v1766, %v1848
    %1850 = vmatprep.mubr.f32.mxu0 %v1337
    %1851 = vmatmul.mubr.f32.gmra.mrb[0].mxu0 %v1335
    %v1852 = vpop.f32.mrb[0].mxu0
    %v1853 = vadd.f32 %v1770, %v1852
    %v1854 = vpop.f32.mrb[0].mxu0
    %v1855 = vadd.f32 %v1772, %v1854
    %1856 = vdwg.mxu0
    %1857 = vmatprep.subr.mxu0 %v1501
    %1858 = vmatpush1.msra.mxu0 %v1500
    %1859 = vmatprep.subr.mxu0 %v1503
    %1860 = vmatpush1.msra.mxu0 %v1502
    %1861 = vmatprep.subr.mxu0 %v1505
    %1862 = vmatpush1.msra.mxu0 %v1504
    %1863 = vmatprep.subr.mxu0 %v1507
    %1864 = vmatpush1.msra.mxu0 %v1506
    %1865 = vmatprep.subr.mxu0 %v1509
    %1866 = vmatpush1.msra.mxu0 %v1508
    %1867 = vmatprep.subr.mxu0 %v1511
    %1868 = vmatpush1.msra.mxu0 %v1510
    %1869 = vmatprep.subr.mxu0 %v1513
    %1870 = vmatpush1.msra.mxu0 %v1512
    %1871 = vmatprep.subr.mxu0 %v1515
    %1872 = vmatpush1.msra.mxu0 %v1514
    %1873 = vmatprep.subr.mxu0 %v1517
    %1874 = vmatpush1.msra.mxu0 %v1516
    %1875 = vmatprep.subr.mxu0 %v1519
    %1876 = vmatpush1.msra.mxu0 %v1518
    %1877 = vmatprep.subr.mxu0 %v1521
    %1878 = vmatpush1.msra.mxu0 %v1520
    %1879 = vmatprep.subr.mxu0 %v1523
    %1880 = vmatpush1.msra.mxu0 %v1522
    %1881 = vmatprep.subr.mxu0 0.0
    %1882 = vmatpush1.msra.mxu0 0.0
    %1883 = vmatprep.subr.mxu0 0.0
    %1884 = vmatpush1.msra.mxu0 0.0
    %1885 = vmatprep.subr.mxu0 0.0
    %1886 = vmatpush1.msra.mxu0 0.0
    %1887 = vmatprep.subr.mxu0 0.0
    %1888 = vmatpush1.msra.mxu0 0.0
    %1889 = vmatprep.subr.mxu0 0.0
    %1890 = vmatpush1.msra.mxu0 0.0
    %1891 = vmatprep.subr.mxu0 0.0
    %1892 = vmatpush1.msra.mxu0 0.0
    %1893 = vmatprep.subr.mxu0 0.0
    %1894 = vmatpush1.msra.mxu0 0.0
    %1895 = vmatprep.subr.mxu0 0.0
    %1896 = vmatpush1.msra.mxu0 0.0
    %1897 = vmatprep.subr.mxu0 0.0
    %1898 = vmatpush1.msra.mxu0 0.0
    %1899 = vmatprep.subr.mxu0 0.0
    %1900 = vmatpush1.msra.mxu0 0.0
    %1901 = vmatprep.subr.mxu0 0.0
    %1902 = vmatpush1.msra.mxu0 0.0
    %1903 = vmatprep.subr.mxu0 0.0
    %1904 = vmatpush1.msra.mxu0 0.0
    %1905 = vmatprep.subr.mxu0 0.0
    %1906 = vmatpush1.msra.mxu0 0.0
    %1907 = vmatprep.subr.mxu0 0.0
    %1908 = vmatpush1.msra.mxu0 0.0
    %1909 = vmatprep.subr.mxu0 0.0
    %1910 = vmatpush1.msra.mxu0 0.0
    %1911 = vmatprep.subr.mxu0 0.0
    %1912 = vmatpush1.msra.mxu0 0.0
    %1913 = vmatprep.subr.mxu0 0.0
    %1914 = vmatpush1.msra.mxu0 0.0
    %1915 = vmatprep.subr.mxu0 0.0
    %1916 = vmatpush1.msra.mxu0 0.0
    %1917 = vmatprep.subr.mxu0 0.0
    %1918 = vmatpush1.msra.mxu0 0.0
    %1919 = vmatprep.subr.mxu0 0.0
    %1920 = vmatpush1.msra.mxu0 0.0
    %1921 = vmatprep.mubr.f32.mxu0 0.0
    %1922 = vmatmul.mubr.f32.gmra.mrb[0].mxu0 %v1775
    %v1923 = vpop.f32.mrb[0].mxu0
    %v1924 = vadd.f32 %v1847, %v1923
    %v1925 = vpop.f32.mrb[0].mxu0
    %v1926 = vadd.f32 %v1849, %v1925
    %1927 = vmatprep.mubr.f32.mxu0 0.0
    %1928 = vmatmul.mubr.f32.gmra.mrb[0].mxu0 %v1778
    %v1929 = vpop.f32.mrb[0].mxu0
    %v1930 = vadd.f32 %v1853, %v1929
    %v1931 = vpop.f32.mrb[0].mxu0
    %v1932 = vadd.f32 %v1855, %v1931
    %1933 = vdwg.mxu0
    %s1934 = scalar_lea.vmem %s61, 1408
    %v1935 = vld [vmem:[%s1934] sm:$0xff]
    %v1936 = vld [vmem:[%s1934 + $0x8] sm:$0xff]
    %v1937 = vld [vmem:[%s1934 + $0x10] sm:$0xff]
    %v1938 = vld [vmem:[%s1934 + $0x18] sm:$0xff]
    %v1939 = vld [vmem:[%s1934 + $0x20] sm:$0xff]
    %v1940 = vld [vmem:[%s1934 + $0x28] sm:$0xff]
    %v1941 = vld [vmem:[%s1934 + $0x30] sm:$0xff]
    %v1942 = vld [vmem:[%s1934 + $0x38] sm:$0xff]
    %v1943 = vld [vmem:[%s1934 + $0x40] sm:$0xff]
    %v1944 = vld [vmem:[%s1934 + $0x48] sm:$0xff]
    %v1945 = vld [vmem:[%s1934 + $0x50] sm:$0xff]
    %v1946 = vld [vmem:[%s1934 + $0x58] sm:$0xff]
    %v1947 = vld [vmem:[%s1934 + $0x60] sm:$0xff]
    %v1948 = vld [vmem:[%s1934 + $0x68] sm:$0xff]
    %v1949 = vld [vmem:[%s1934 + $0x70] sm:$0xff]
    %v1950 = vld [vmem:[%s1934 + $0x78] sm:$0xff]
    %v1951 = vld [vmem:[%s1934 + $0x80] sm:$0xff]
    %v1952 = vld [vmem:[%s1934 + $0x88] sm:$0xff]
    %v1953 = vld [vmem:[%s1934 + $0x90] sm:$0xff]
    %v1954 = vld [vmem:[%s1934 + $0x98] sm:$0xff]
    %v1955 = vld [vmem:[%s1934 + $0xa0] sm:$0xff]
    %v1956 = vld [vmem:[%s1934 + $0xa8] sm:$0xff]
    %v1957 = vld [vmem:[%s1934 + $0xb0] sm:$0xff]
    %v1958 = vld [vmem:[%s1934 + $0xb8] sm:$0xff]
    %v1959 = vld [vmem:[%s1934 + $0xc0] sm:$0xff]
    %v1960 = vld [vmem:[%s1934 + $0xc8] sm:$0xff]
    %v1961 = vld [vmem:[%s1934 + $0xd0] sm:$0xff]
    %v1962 = vld [vmem:[%s1934 + $0xd8] sm:$0xff]
    %v1963 = vld [vmem:[%s1934 + $0xe0] sm:$0xff]
    %v1964 = vld [vmem:[%s1934 + $0xe8] sm:$0xff]
    %v1965 = vld [vmem:[%s1934 + $0xf0] sm:$0xff]
    %v1966 = vld [vmem:[%s1934 + $0xf8] sm:$0xff]
    %v1967 = vld [vmem:[%s1934 + $0x100] sm:$0xff]
    %v1968 = vld [vmem:[%s1934 + $0x108] sm:$0xff]
    %v1969 = vld [vmem:[%s1934 + $0x110] sm:$0xff]
    %v1970 = vld [vmem:[%s1934 + $0x118] sm:$0xff]
    %v1971 = vld [vmem:[%s1934 + $0x120] sm:$0xff]
    %v1972 = vld [vmem:[%s1934 + $0x128] sm:$0xff]
    %v1973 = vld [vmem:[%s1934 + $0x130] sm:$0xff]
    %v1974 = vld [vmem:[%s1934 + $0x138] sm:$0xff]
    %v1975 = vld [vmem:[%s1934 + $0x140] sm:$0xff]
    %v1976 = vld [vmem:[%s1934 + $0x148] sm:$0xff]
    %v1977 = vld [vmem:[%s1934 + $0x150] sm:$0xff]
    %v1978 = vld [vmem:[%s1934 + $0x158] sm:$0xff]
    %v1979 = vld [vmem:[%s1934 + $0x160] sm:$0xff]
    %v1980 = vld [vmem:[%s1934 + $0x168] sm:$0xff]
    %v1981 = vld [vmem:[%s1934 + $0x170] sm:$0xff]
    %v1982 = vld [vmem:[%s1934 + $0x178] sm:$0xff]
    %v1983 = vld [vmem:[%s1934 + $0x180] sm:$0xff]
    %v1984 = vld [vmem:[%s1934 + $0x188] sm:$0xff]
    %v1985 = vld [vmem:[%s1934 + $0x190] sm:$0xff]
    %v1986 = vld [vmem:[%s1934 + $0x198] sm:$0xff]
    %v1987 = vld [vmem:[%s1934 + $0x1a0] sm:$0xff]
    %v1988 = vld [vmem:[%s1934 + $0x1a8] sm:$0xff]
    %v1989 = vld [vmem:[%s1934 + $0x1b0] sm:$0xff]
    %v1990 = vld [vmem:[%s1934 + $0x1b8] sm:$0xff]
    %v1991 = vld [vmem:[%s1934 + $0x1c0] sm:$0xff]
    %v1992 = vld [vmem:[%s1934 + $0x1c8] sm:$0xff]
    %v1993 = vld [vmem:[%s1934 + $0x1d0] sm:$0xff]
    %v1994 = vld [vmem:[%s1934 + $0x1d8] sm:$0xff]
    %v1995 = vld [vmem:[%s1934 + $0x1e0] sm:$0xff]
    %v1996 = vld [vmem:[%s1934 + $0x1e8] sm:$0xff]
    %v1997 = vld [vmem:[%s1934 + $0x1f0] sm:$0xff]
    %v1998 = vld [vmem:[%s1934 + $0x1f8] sm:$0xff]
    %v1999 = vld [vmem:[%s1934 + $0x200] sm:$0xff]
    %v2000 = vld [vmem:[%s1934 + $0x208] sm:$0xff]
    %v2001 = vld [vmem:[%s1934 + $0x210] sm:$0xff]
    %v2002 = vld [vmem:[%s1934 + $0x218] sm:$0xff]
    %v2003 = vld [vmem:[%s1934 + $0x220] sm:$0xff]
    %v2004 = vld [vmem:[%s1934 + $0x228] sm:$0xff]
    %v2005 = vld [vmem:[%s1934 + $0x230] sm:$0xff]
    %v2006 = vld [vmem:[%s1934 + $0x238] sm:$0xff]
    %v2007 = vld [vmem:[%s1934 + $0x240] sm:$0xff]
    %v2008 = vld [vmem:[%s1934 + $0x248] sm:$0xff]
    %v2009 = vld [vmem:[%s1934 + $0x250] sm:$0xff]
    %v2010 = vld [vmem:[%s1934 + $0x258] sm:$0xff]
    %v2011 = vld [vmem:[%s1934 + $0x260] sm:$0xff]
    %v2012 = vld [vmem:[%s1934 + $0x268] sm:$0xff]
    %v2013 = vld [vmem:[%s1934 + $0x270] sm:$0xff]
    %v2014 = vld [vmem:[%s1934 + $0x278] sm:$0xff]
    %v2015 = vld [vmem:[%s1934 + $0x280] sm:$0xff]
    %v2016 = vld [vmem:[%s1934 + $0x288] sm:$0xff]
    %v2017 = vld [vmem:[%s1934 + $0x290] sm:$0xff]
    %v2018 = vld [vmem:[%s1934 + $0x298] sm:$0xff]
    %v2019 = vld [vmem:[%s1934 + $0x2a0] sm:$0xff]
    %v2020 = vld [vmem:[%s1934 + $0x2a8] sm:$0xff]
    %v2021 = vld [vmem:[%s1934 + $0x2b0] sm:$0xff]
    %v2022 = vld [vmem:[%s1934 + $0x2b8] sm:$0xff]
    %v2024 = vsel %vm1613, %v1428, 0
    %v2027 = vsel %vm1613, %v1433, 0
    %2029 = vmatprep.subr.mxu0 %v1936
    %2030 = vmatpush1.msra.mxu0 %v1935
    %2031 = vmatprep.subr.mxu0 %v1938
    %2032 = vmatpush1.msra.mxu0 %v1937
    %2033 = vmatprep.subr.mxu0 %v1940
    %2034 = vmatpush1.msra.mxu0 %v1939
    %2035 = vmatprep.subr.mxu0 %v1942
    %2036 = vmatpush1.msra.mxu0 %v1941
    %2037 = vmatprep.subr.mxu0 %v1944
    %2038 = vmatpush1.msra.mxu0 %v1943
    %2039 = vmatprep.subr.mxu0 %v1946
    %2040 = vmatpush1.msra.mxu0 %v1945
    %2041 = vmatprep.subr.mxu0 %v1948
    %2042 = vmatpush1.msra.mxu0 %v1947
    %2043 = vmatprep.subr.mxu0 %v1950
    %2044 = vmatpush1.msra.mxu0 %v1949
    %2045 = vmatprep.subr.mxu0 %v1952
    %2046 = vmatpush1.msra.mxu0 %v1951
    %2047 = vmatprep.subr.mxu0 %v1954
    %2048 = vmatpush1.msra.mxu0 %v1953
    %2049 = vmatprep.subr.mxu0 %v1956
    %2050 = vmatpush1.msra.mxu0 %v1955
    %2051 = vmatprep.subr.mxu0 %v1958
    %2052 = vmatpush1.msra.mxu0 %v1957
    %2053 = vmatprep.subr.mxu0 %v1960
    %2054 = vmatpush1.msra.mxu0 %v1959
    %2055 = vmatprep.subr.mxu0 %v1962
    %2056 = vmatpush1.msra.mxu0 %v1961
    %2057 = vmatprep.subr.mxu0 %v1964
    %2058 = vmatpush1.msra.mxu0 %v1963
    %2059 = vmatprep.subr.mxu0 %v1966
    %2060 = vmatpush1.msra.mxu0 %v1965
    %2061 = vmatprep.subr.mxu0 %v1968
    %2062 = vmatpush1.msra.mxu0 %v1967
    %2063 = vmatprep.subr.mxu0 %v1970
    %2064 = vmatpush1.msra.mxu0 %v1969
    %2065 = vmatprep.subr.mxu0 %v1972
    %2066 = vmatpush1.msra.mxu0 %v1971
    %2067 = vmatprep.subr.mxu0 %v1974
    %2068 = vmatpush1.msra.mxu0 %v1973
    %2069 = vmatprep.subr.mxu0 %v1976
    %2070 = vmatpush1.msra.mxu0 %v1975
    %2071 = vmatprep.subr.mxu0 %v1978
    %2072 = vmatpush1.msra.mxu0 %v1977
    %2073 = vmatprep.subr.mxu0 %v1980
    %2074 = vmatpush1.msra.mxu0 %v1979
    %2075 = vmatprep.subr.mxu0 %v1982
    %2076 = vmatpush1.msra.mxu0 %v1981
    %2077 = vmatprep.subr.mxu0 %v1984
    %2078 = vmatpush1.msra.mxu0 %v1983
    %2079 = vmatprep.subr.mxu0 %v1986
    %2080 = vmatpush1.msra.mxu0 %v1985
    %2081 = vmatprep.subr.mxu0 %v1988
    %2082 = vmatpush1.msra.mxu0 %v1987
    %2083 = vmatprep.subr.mxu0 %v1990
    %2084 = vmatpush1.msra.mxu0 %v1989
    %2085 = vmatprep.subr.mxu0 %v1992
    %2086 = vmatpush1.msra.mxu0 %v1991
    %2087 = vmatprep.subr.mxu0 %v1994
    %2088 = vmatpush1.msra.mxu0 %v1993
    %2089 = vmatprep.subr.mxu0 %v1996
    %2090 = vmatpush1.msra.mxu0 %v1995
    %2091 = vmatprep.subr.mxu0 %v1998
    %2092 = vmatpush1.msra.mxu0 %v1997
    %2093 = vmatprep.mubr.f32.mxu0 %v1343
    %2094 = vmatmul.mubr.f32.gmra.mrb[0].mxu0 %v1341
    %v2095 = vpop.f32.mrb[0].mxu0
    %v2096 = vadd.f32 0.0, %v2095
    %v2097 = vpop.f32.mrb[0].mxu0
    %v2098 = vadd.f32 0.0, %v2097
    %2099 = vmatprep.mubr.f32.mxu0 %v1349
    %2100 = vmatmul.mubr.f32.gmra.mrb[0].mxu0 %v1347
    %v2101 = vpop.f32.mrb[0].mxu0
    %v2102 = vadd.f32 0.0, %v2101
    %v2103 = vpop.f32.mrb[0].mxu0
    %v2104 = vadd.f32 0.0, %v2103
    %2105 = vdwg.mxu0
    %2106 = vmatprep.subr.mxu0 %v2000
    %2107 = vmatpush1.msra.mxu0 %v1999
    %2108 = vmatprep.subr.mxu0 %v2002
    %2109 = vmatpush1.msra.mxu0 %v2001
    %2110 = vmatprep.subr.mxu0 %v2004
    %2111 = vmatpush1.msra.mxu0 %v2003
    %2112 = vmatprep.subr.mxu0 %v2006
    %2113 = vmatpush1.msra.mxu0 %v2005
    %2114 = vmatprep.subr.mxu0 %v2008
    %2115 = vmatpush1.msra.mxu0 %v2007
    %2116 = vmatprep.subr.mxu0 %v2010
    %2117 = vmatpush1.msra.mxu0 %v2009
    %2118 = vmatprep.subr.mxu0 %v2012
    %2119 = vmatpush1.msra.mxu0 %v2011
    %2120 = vmatprep.subr.mxu0 %v2014
    %2121 = vmatpush1.msra.mxu0 %v2013
    %2122 = vmatprep.subr.mxu0 %v2016
    %2123 = vmatpush1.msra.mxu0 %v2015
    %2124 = vmatprep.subr.mxu0 %v2018
    %2125 = vmatpush1.msra.mxu0 %v2017
    %2126 = vmatprep.subr.mxu0 %v2020
    %2127 = vmatpush1.msra.mxu0 %v2019
    %2128 = vmatprep.subr.mxu0 %v2022
    %2129 = vmatpush1.msra.mxu0 %v2021
    %2130 = vmatprep.subr.mxu0 0.0
    %2131 = vmatpush1.msra.mxu0 0.0
    %2132 = vmatprep.subr.mxu0 0.0
    %2133 = vmatpush1.msra.mxu0 0.0
    %2134 = vmatprep.subr.mxu0 0.0
    %2135 = vmatpush1.msra.mxu0 0.0
    %2136 = vmatprep.subr.mxu0 0.0
    %2137 = vmatpush1.msra.mxu0 0.0
    %2138 = vmatprep.subr.mxu0 0.0
    %2139 = vmatpush1.msra.mxu0 0.0
    %2140 = vmatprep.subr.mxu0 0.0
    %2141 = vmatpush1.msra.mxu0 0.0
    %2142 = vmatprep.subr.mxu0 0.0
    %2143 = vmatpush1.msra.mxu0 0.0
    %2144 = vmatprep.subr.mxu0 0.0
    %2145 = vmatpush1.msra.mxu0 0.0
    %2146 = vmatprep.subr.mxu0 0.0
    %2147 = vmatpush1.msra.mxu0 0.0
    %2148 = vmatprep.subr.mxu0 0.0
    %2149 = vmatpush1.msra.mxu0 0.0
    %2150 = vmatprep.subr.mxu0 0.0
    %2151 = vmatpush1.msra.mxu0 0.0
    %2152 = vmatprep.subr.mxu0 0.0
    %2153 = vmatpush1.msra.mxu0 0.0
    %2154 = vmatprep.subr.mxu0 0.0
    %2155 = vmatpush1.msra.mxu0 0.0
    %2156 = vmatprep.subr.mxu0 0.0
    %2157 = vmatpush1.msra.mxu0 0.0
    %2158 = vmatprep.subr.mxu0 0.0
    %2159 = vmatpush1.msra.mxu0 0.0
    %2160 = vmatprep.subr.mxu0 0.0
    %2161 = vmatpush1.msra.mxu0 0.0
    %2162 = vmatprep.subr.mxu0 0.0
    %2163 = vmatpush1.msra.mxu0 0.0
    %2164 = vmatprep.subr.mxu0 0.0
    %2165 = vmatpush1.msra.mxu0 0.0
    %2166 = vmatprep.subr.mxu0 0.0
    %2167 = vmatpush1.msra.mxu0 0.0
    %2168 = vmatprep.subr.mxu0 0.0
    %2169 = vmatpush1.msra.mxu0 0.0
    %2170 = vmatprep.mubr.f32.mxu0 0.0
    %2171 = vmatmul.mubr.f32.gmra.mrb[0].mxu0 %v2024
    %v2172 = vpop.f32.mrb[0].mxu0
    %v2173 = vadd.f32 %v2096, %v2172
    %v2174 = vpop.f32.mrb[0].mxu0
    %v2175 = vadd.f32 %v2098, %v2174
    %2176 = vmatprep.mubr.f32.mxu0 0.0
    %2177 = vmatmul.mubr.f32.gmra.mrb[0].mxu0 %v2027
    %v2178 = vpop.f32.mrb[0].mxu0
    %v2179 = vadd.f32 %v2102, %v2178
    %v2180 = vpop.f32.mrb[0].mxu0
    %v2181 = vadd.f32 %v2104, %v2180
    %2182 = vdwg.mxu0
    %v2183 = vadd.f32 %v1924, %v2173
    %v2184 = vadd.f32 %v1926, %v2175
    %v2185 = vadd.f32 %v1930, %v2179
    %v2186 = vadd.f32 %v1932, %v2181
    %v2187 = vld [vmem:[%s59] sm:$0x3]
    %v2189 = vlaneseq
    %v2190 = vshrl.u32 %v2189, 7
    %v2191 = vsub.s32 0, %v2190
    %v2192 = vrot.slane %v2187, %v2191
    %v2193 = vlaneseq
    %v2194 = vshrl.u32 %v2193, 7
    %v2195 = vsub.s32 1, %v2194
    %v2196 = vrot.slane %v2187, %v2195
    %v2199 = vadd.f32 %v2183, %v2192
    %v2200 = vadd.f32 %v2184, %v2196
    %v2201 = vadd.f32 %v2185, %v2192
    %v2202 = vadd.f32 %v2186, %v2196
    %v2203 = vmax.f32 %v2199, 0.0
    %v2204 = vmax.f32 %v2200, 0.0
    %v2205 = vmax.f32 %v2201, 0.0
    %v2206 = vmax.f32 %v2202, 0.0
    %2207 = vmatprep.subr.mxu0 %v2204
    %2208 = vmatpush1.msra.mxu0 %v2203
    %2209 = vmatprep.subr.mxu0 %v2206
    %2210 = vmatpush1.msra.mxu0 %v2205
    %2211 = vmatprep.subr.mxu0 0.0
    %2212 = vmatpush1.msra.mxu0 0.0
    %2213 = vmatprep.subr.mxu0 0.0
    %2214 = vmatpush1.msra.mxu0 0.0
    %2215 = vmatprep.subr.mxu0 0.0
    %2216 = vmatpush1.msra.mxu0 0.0
    %2217 = vmatprep.subr.mxu0 0.0
    %2218 = vmatpush1.msra.mxu0 0.0
    %2219 = vmatprep.subr.mxu0 0.0
    %2220 = vmatpush1.msra.mxu0 0.0
    %2221 = vmatprep.subr.mxu0 0.0
    %2222 = vmatpush1.msra.mxu0 0.0
    %2223 = vmatprep.subr.mxu0 0.0
    %2224 = vmatpush1.msra.mxu0 0.0
    %2225 = vmatprep.subr.mxu0 0.0
    %2226 = vmatpush1.msra.mxu0 0.0
    %2227 = vmatprep.subr.mxu0 0.0
    %2228 = vmatpush1.msra.mxu0 0.0
    %2229 = vmatprep.subr.mxu0 0.0
    %2230 = vmatpush1.msra.mxu0 0.0
    %2231 = vmatprep.subr.mxu0 0.0
    %2232 = vmatpush1.msra.mxu0 0.0
    %2233 = vmatprep.subr.mxu0 0.0
    %2234 = vmatpush1.msra.mxu0 0.0
    %2235 = vmatprep.subr.mxu0 0.0
    %2236 = vmatpush1.msra.mxu0 0.0
    %2237 = vmatprep.subr.mxu0 0.0
    %2238 = vmatpush1.msra.mxu0 0.0
    %2239 = vmatprep.subr.mxu0 0.0
    %2240 = vmatpush1.msra.mxu0 0.0
    %2241 = vmatprep.subr.mxu0 0.0
    %2242 = vmatpush1.msra.mxu0 0.0
    %2243 = vmatprep.subr.mxu0 0.0
    %2244 = vmatpush1.msra.mxu0 0.0
    %2245 = vmatprep.subr.mxu0 0.0
    %2246 = vmatpush1.msra.mxu0 0.0
    %2247 = vmatprep.subr.mxu0 0.0
    %2248 = vmatpush1.msra.mxu0 0.0
    %2249 = vmatprep.subr.mxu0 0.0
    %2250 = vmatpush1.msra.mxu0 0.0
    %2251 = vmatprep.subr.mxu0 0.0
    %2252 = vmatpush1.msra.mxu0 0.0
    %2253 = vmatprep.subr.mxu0 0.0
    %2254 = vmatpush1.msra.mxu0 0.0
    %2255 = vmatprep.subr.mxu0 0.0
    %2256 = vmatpush1.msra.mxu0 0.0
    %2257 = vmatprep.subr.mxu0 0.0
    %2258 = vmatpush1.msra.mxu0 0.0
    %2259 = vmatprep.subr.mxu0 0.0
    %2260 = vmatpush1.msra.mxu0 0.0
    %2261 = vmatprep.subr.mxu0 0.0
    %2262 = vmatpush1.msra.mxu0 0.0
    %2263 = vmatprep.subr.mxu0 0.0
    %2264 = vmatpush1.msra.mxu0 0.0
    %2265 = vmatprep.subr.mxu0 0.0
    %2266 = vmatpush1.msra.mxu0 0.0
    %2267 = vmatprep.subr.mxu0 0.0
    %2268 = vmatpush1.msra.mxu0 0.0
    %2269 = vmatprep.subr.mxu0 0.0
    %2270 = vmatpush1.msra.mxu0 0.0
    %2271 = vmatprep.mubr.f32.mxu0 0.0
    %2272 = vmatmul.mubr.f32.gmra.mrb[0].mxu0 %v572
    %v2273 = vpop.f32.mrb[0].mxu0
    %v2274 = vadd.f32 0.0, %v2273
    %v2275 = vpop.f32.mrb[0].mxu0
    %v2276 = vadd.f32 0.0, %v2275
    %2277 = vmatprep.mubr.f32.mxu0 0.0
    %2278 = vmatmul.mubr.f32.gmra.mrb[0].mxu0 %v575
    %v2279 = vpop.f32.mrb[0].mxu0
    %v2280 = vadd.f32 0.0, %v2279
    %v2281 = vpop.f32.mrb[0].mxu0
    %v2282 = vadd.f32 0.0, %v2281
    %2283 = vmatprep.mubr.f32.mxu0 0.0
    %2284 = vmatmul.mubr.f32.gmra.mrb[0].mxu0 %v578
    %v2285 = vpop.f32.mrb[0].mxu0
    %v2286 = vadd.f32 0.0, %v2285
    %v2287 = vpop.f32.mrb[0].mxu0
    %v2288 = vadd.f32 0.0, %v2287
    %2289 = vmatprep.mubr.f32.mxu0 0.0
    %2290 = vmatmul.mubr.f32.gmra.mrb[0].mxu0 %v581
    %v2291 = vpop.f32.mrb[0].mxu0
    %v2292 = vadd.f32 0.0, %v2291
    %v2293 = vpop.f32.mrb[0].mxu0
    %v2294 = vadd.f32 0.0, %v2293
    %2295 = vdwg.mxu0
    %v2296 = vld [vmem:[%s65] sm:$0xff]
    %v2297 = vld [vmem:[%s65 + $0x8] sm:$0xff]
    %v2298 = vld [vmem:[%s65 + $0x10] sm:$0xff]
    %v2299 = vld [vmem:[%s65 + $0x18] sm:$0xff]
    %v2300 = vld [vmem:[%s65 + $0x20] sm:$0xff]
    %v2301 = vld [vmem:[%s65 + $0x28] sm:$0xff]
    %v2302 = vld [vmem:[%s65 + $0x30] sm:$0xff]
    %v2303 = vld [vmem:[%s65 + $0x38] sm:$0xff]
    %v2304 = vld [vmem:[%s65 + $0x40] sm:$0xff]
    %v2305 = vld [vmem:[%s65 + $0x48] sm:$0xff]
    %v2306 = vld [vmem:[%s65 + $0x50] sm:$0xff]
    %v2307 = vld [vmem:[%s65 + $0x58] sm:$0xff]
    %v2308 = vld [vmem:[%s65 + $0x60] sm:$0xff]
    %v2309 = vld [vmem:[%s65 + $0x68] sm:$0xff]
    %v2310 = vld [vmem:[%s65 + $0x70] sm:$0xff]
    %v2311 = vld [vmem:[%s65 + $0x78] sm:$0xff]
    %v2312 = vld [vmem:[%s65 + $0x80] sm:$0xff]
    %v2313 = vld [vmem:[%s65 + $0x88] sm:$0xff]
    %v2314 = vld [vmem:[%s65 + $0x90] sm:$0xff]
    %v2315 = vld [vmem:[%s65 + $0x98] sm:$0xff]
    %v2316 = vld [vmem:[%s65 + $0xa0] sm:$0xff]
    %v2317 = vld [vmem:[%s65 + $0xa8] sm:$0xff]
    %s2318 = scalar_lea.vmem %s65, 176
    %v2319 = vld [vmem:[%s2318] sm:$0xff]
    %v2320 = vld [vmem:[%s2318 + $0x8] sm:$0xff]
    %v2321 = vld [vmem:[%s2318 + $0x10] sm:$0xff]
    %v2322 = vld [vmem:[%s2318 + $0x18] sm:$0xff]
    %v2323 = vld [vmem:[%s2318 + $0x20] sm:$0xff]
    %v2324 = vld [vmem:[%s2318 + $0x28] sm:$0xff]
    %v2325 = vld [vmem:[%s2318 + $0x30] sm:$0xff]
    %v2326 = vld [vmem:[%s2318 + $0x38] sm:$0xff]
    %v2327 = vld [vmem:[%s2318 + $0x40] sm:$0xff]
    %v2328 = vld [vmem:[%s2318 + $0x48] sm:$0xff]
    %v2329 = vld [vmem:[%s2318 + $0x50] sm:$0xff]
    %v2330 = vld [vmem:[%s2318 + $0x58] sm:$0xff]
    %v2331 = vld [vmem:[%s2318 + $0x60] sm:$0xff]
    %v2332 = vld [vmem:[%s2318 + $0x68] sm:$0xff]
    %v2333 = vld [vmem:[%s2318 + $0x70] sm:$0xff]
    %v2334 = vld [vmem:[%s2318 + $0x78] sm:$0xff]
    %v2335 = vld [vmem:[%s2318 + $0x80] sm:$0xff]
    %v2336 = vld [vmem:[%s2318 + $0x88] sm:$0xff]
    %v2337 = vld [vmem:[%s2318 + $0x90] sm:$0xff]
    %v2338 = vld [vmem:[%s2318 + $0x98] sm:$0xff]
    %v2339 = vld [vmem:[%s2318 + $0xa0] sm:$0xff]
    %v2340 = vld [vmem:[%s2318 + $0xa8] sm:$0xff]
    %vm2341 = vcmask 392192
    %v2343 = vsel %vm2341, %v2204, 0
    %v2346 = vsel %vm2341, %v2206, 0
    %2348 = vmatprep.subr.mxu0 0.0
    %2349 = vmatpush1.msra.mxu0 %v2319
    %2350 = vmatprep.subr.mxu0 0.0
    %2351 = vmatpush1.msra.mxu0 %v2320
    %2352 = vmatprep.subr.mxu0 0.0
    %2353 = vmatpush1.msra.mxu0 %v2321
    %2354 = vmatprep.subr.mxu0 0.0
    %2355 = vmatpush1.msra.mxu0 %v2322
    %2356 = vmatprep.subr.mxu0 0.0
    %2357 = vmatpush1.msra.mxu0 %v2323
    %2358 = vmatprep.subr.mxu0 0.0
    %2359 = vmatpush1.msra.mxu0 %v2324
    %2360 = vmatprep.subr.mxu0 0.0
    %2361 = vmatpush1.msra.mxu0 %v2325
    %2362 = vmatprep.subr.mxu0 0.0
    %2363 = vmatpush1.msra.mxu0 %v2326
    %2364 = vmatprep.subr.mxu0 0.0
    %2365 = vmatpush1.msra.mxu0 %v2327
    %2366 = vmatprep.subr.mxu0 0.0
    %2367 = vmatpush1.msra.mxu0 %v2328
    %2368 = vmatprep.subr.mxu0 0.0
    %2369 = vmatpush1.msra.mxu0 %v2329
    %2370 = vmatprep.subr.mxu0 0.0
    %2371 = vmatpush1.msra.mxu0 %v2330
    %2372 = vmatprep.subr.mxu0 0.0
    %2373 = vmatpush1.msra.mxu0 %v2331
    %2374 = vmatprep.subr.mxu0 0.0
    %2375 = vmatpush1.msra.mxu0 %v2332
    %2376 = vmatprep.subr.mxu0 0.0
    %2377 = vmatpush1.msra.mxu0 %v2333
    %2378 = vmatprep.subr.mxu0 0.0
    %2379 = vmatpush1.msra.mxu0 %v2334
    %2380 = vmatprep.subr.mxu0 0.0
    %2381 = vmatpush1.msra.mxu0 %v2335
    %2382 = vmatprep.subr.mxu0 0.0
    %2383 = vmatpush1.msra.mxu0 %v2336
    %2384 = vmatprep.subr.mxu0 0.0
    %2385 = vmatpush1.msra.mxu0 %v2337
    %2386 = vmatprep.subr.mxu0 0.0
    %2387 = vmatpush1.msra.mxu0 %v2338
    %2388 = vmatprep.subr.mxu0 0.0
    %2389 = vmatpush1.msra.mxu0 %v2339
    %2390 = vmatprep.subr.mxu0 0.0
    %2391 = vmatpush1.msra.mxu0 %v2340
    %2392 = vmatprep.subr.mxu0 0.0
    %2393 = vmatpush1.msra.mxu0 0.0
    %2394 = vmatprep.subr.mxu0 0.0
    %2395 = vmatpush1.msra.mxu0 0.0
    %2396 = vmatprep.subr.mxu0 0.0
    %2397 = vmatpush1.msra.mxu0 0.0
    %2398 = vmatprep.subr.mxu0 0.0
    %2399 = vmatpush1.msra.mxu0 0.0
    %2400 = vmatprep.subr.mxu0 0.0
    %2401 = vmatpush1.msra.mxu0 0.0
    %2402 = vmatprep.subr.mxu0 0.0
    %2403 = vmatpush1.msra.mxu0 0.0
    %2404 = vmatprep.subr.mxu0 0.0
    %2405 = vmatpush1.msra.mxu0 0.0
    %2406 = vmatprep.subr.mxu0 0.0
    %2407 = vmatpush1.msra.mxu0 0.0
    %2408 = vmatprep.subr.mxu0 0.0
    %2409 = vmatpush1.msra.mxu0 0.0
    %2410 = vmatprep.subr.mxu0 0.0
    %2411 = vmatpush1.msra.mxu0 0.0
    %2412 = vmatprep.mubr.f32.mxu0 %v2343
    %2413 = vmatmul.mubr.f32.gmra.mrb[0].mxu0 %v2203
    %v2414 = vpop.f32.mrb[0].mxu0
    %v2415 = vadd.f32 0.0, %v2414
    %v2416 = vpop.f32.mrb[0].mxu0
    %2417 = vmatprep.mubr.f32.mxu0 %v2346
    %2418 = vmatmul.mubr.f32.gmra.mrb[0].mxu0 %v2205
    %v2419 = vpop.f32.mrb[0].mxu0
    %v2420 = vadd.f32 0.0, %v2419
    %v2421 = vpop.f32.mrb[0].mxu0
    %2422 = vdwg.mxu0
    %v2424 = vsel %vm2341, %v2276, 0
    %v2427 = vsel %vm2341, %v2282, 0
    %2429 = vmatprep.subr.mxu0 0.0
    %2430 = vmatpush1.msra.mxu0 %v2296
    %2431 = vmatprep.subr.mxu0 0.0
    %2432 = vmatpush1.msra.mxu0 %v2297
    %2433 = vmatprep.subr.mxu0 0.0
    %2434 = vmatpush1.msra.mxu0 %v2298
    %2435 = vmatprep.subr.mxu0 0.0
    %2436 = vmatpush1.msra.mxu0 %v2299
    %2437 = vmatprep.subr.mxu0 0.0
    %2438 = vmatpush1.msra.mxu0 %v2300
    %2439 = vmatprep.subr.mxu0 0.0
    %2440 = vmatpush1.msra.mxu0 %v2301
    %2441 = vmatprep.subr.mxu0 0.0
    %2442 = vmatpush1.msra.mxu0 %v2302
    %2443 = vmatprep.subr.mxu0 0.0
    %2444 = vmatpush1.msra.mxu0 %v2303
    %2445 = vmatprep.subr.mxu0 0.0
    %2446 = vmatpush1.msra.mxu0 %v2304
    %2447 = vmatprep.subr.mxu0 0.0
    %2448 = vmatpush1.msra.mxu0 %v2305
    %2449 = vmatprep.subr.mxu0 0.0
    %2450 = vmatpush1.msra.mxu0 %v2306
    %2451 = vmatprep.subr.mxu0 0.0
    %2452 = vmatpush1.msra.mxu0 %v2307
    %2453 = vmatprep.subr.mxu0 0.0
    %2454 = vmatpush1.msra.mxu0 %v2308
    %2455 = vmatprep.subr.mxu0 0.0
    %2456 = vmatpush1.msra.mxu0 %v2309
    %2457 = vmatprep.subr.mxu0 0.0
    %2458 = vmatpush1.msra.mxu0 %v2310
    %2459 = vmatprep.subr.mxu0 0.0
    %2460 = vmatpush1.msra.mxu0 %v2311
    %2461 = vmatprep.subr.mxu0 0.0
    %2462 = vmatpush1.msra.mxu0 %v2312
    %2463 = vmatprep.subr.mxu0 0.0
    %2464 = vmatpush1.msra.mxu0 %v2313
    %2465 = vmatprep.subr.mxu0 0.0
    %2466 = vmatpush1.msra.mxu0 %v2314
    %2467 = vmatprep.subr.mxu0 0.0
    %2468 = vmatpush1.msra.mxu0 %v2315
    %2469 = vmatprep.subr.mxu0 0.0
    %2470 = vmatpush1.msra.mxu0 %v2316
    %2471 = vmatprep.subr.mxu0 0.0
    %2472 = vmatpush1.msra.mxu0 %v2317
    %2473 = vmatprep.subr.mxu0 0.0
    %2474 = vmatpush1.msra.mxu0 0.0
    %2475 = vmatprep.subr.mxu0 0.0
    %2476 = vmatpush1.msra.mxu0 0.0
    %2477 = vmatprep.subr.mxu0 0.0
    %2478 = vmatpush1.msra.mxu0 0.0
    %2479 = vmatprep.subr.mxu0 0.0
    %2480 = vmatpush1.msra.mxu0 0.0
    %2481 = vmatprep.subr.mxu0 0.0
    %2482 = vmatpush1.msra.mxu0 0.0
    %2483 = vmatprep.subr.mxu0 0.0
    %2484 = vmatpush1.msra.mxu0 0.0
    %2485 = vmatprep.subr.mxu0 0.0
    %2486 = vmatpush1.msra.mxu0 0.0
    %2487 = vmatprep.subr.mxu0 0.0
    %2488 = vmatpush1.msra.mxu0 0.0
    %2489 = vmatprep.subr.mxu0 0.0
    %2490 = vmatpush1.msra.mxu0 0.0
    %2491 = vmatprep.subr.mxu0 0.0
    %2492 = vmatpush1.msra.mxu0 0.0
    %2493 = vmatprep.mubr.f32.mxu0 %v2424
    %2494 = vmatmul.mubr.f32.gmra.mrb[0].mxu0 %v2274
    %v2495 = vpop.f32.mrb[0].mxu0
    %v2496 = vadd.f32 %v2415, %v2495
    %v2497 = vpop.f32.mrb[0].mxu0
    %2498 = vmatprep.mubr.f32.mxu0 %v2427
    %2499 = vmatmul.mubr.f32.gmra.mrb[0].mxu0 %v2280
    %v2500 = vpop.f32.mrb[0].mxu0
    %v2501 = vadd.f32 %v2420, %v2500
    %v2502 = vpop.f32.mrb[0].mxu0
    %2503 = vdwg.mxu0
    %s2504 = scalar_lea.vmem %s65, 352
    %v2505 = vld [vmem:[%s2504] sm:$0xff]
    %v2506 = vld [vmem:[%s2504 + $0x8] sm:$0xff]
    %v2507 = vld [vmem:[%s2504 + $0x10] sm:$0xff]
    %v2508 = vld [vmem:[%s2504 + $0x18] sm:$0xff]
    %v2509 = vld [vmem:[%s2504 + $0x20] sm:$0xff]
    %v2510 = vld [vmem:[%s2504 + $0x28] sm:$0xff]
    %v2511 = vld [vmem:[%s2504 + $0x30] sm:$0xff]
    %v2512 = vld [vmem:[%s2504 + $0x38] sm:$0xff]
    %v2513 = vld [vmem:[%s2504 + $0x40] sm:$0xff]
    %v2514 = vld [vmem:[%s2504 + $0x48] sm:$0xff]
    %v2515 = vld [vmem:[%s2504 + $0x50] sm:$0xff]
    %v2516 = vld [vmem:[%s2504 + $0x58] sm:$0xff]
    %v2517 = vld [vmem:[%s2504 + $0x60] sm:$0xff]
    %v2518 = vld [vmem:[%s2504 + $0x68] sm:$0xff]
    %v2519 = vld [vmem:[%s2504 + $0x70] sm:$0xff]
    %v2520 = vld [vmem:[%s2504 + $0x78] sm:$0xff]
    %v2521 = vld [vmem:[%s2504 + $0x80] sm:$0xff]
    %v2522 = vld [vmem:[%s2504 + $0x88] sm:$0xff]
    %v2523 = vld [vmem:[%s2504 + $0x90] sm:$0xff]
    %v2524 = vld [vmem:[%s2504 + $0x98] sm:$0xff]
    %v2525 = vld [vmem:[%s2504 + $0xa0] sm:$0xff]
    %v2526 = vld [vmem:[%s2504 + $0xa8] sm:$0xff]
    %v2528 = vsel %vm2341, %v2288, 0
    %v2531 = vsel %vm2341, %v2294, 0
    %2533 = vmatprep.subr.mxu0 0.0
    %2534 = vmatpush1.msra.mxu0 %v2505
    %2535 = vmatprep.subr.mxu0 0.0
    %2536 = vmatpush1.msra.mxu0 %v2506
    %2537 = vmatprep.subr.mxu0 0.0
    %2538 = vmatpush1.msra.mxu0 %v2507
    %2539 = vmatprep.subr.mxu0 0.0
    %2540 = vmatpush1.msra.mxu0 %v2508
    %2541 = vmatprep.subr.mxu0 0.0
    %2542 = vmatpush1.msra.mxu0 %v2509
    %2543 = vmatprep.subr.mxu0 0.0
    %2544 = vmatpush1.msra.mxu0 %v2510
    %2545 = vmatprep.subr.mxu0 0.0
    %2546 = vmatpush1.msra.mxu0 %v2511
    %2547 = vmatprep.subr.mxu0 0.0
    %2548 = vmatpush1.msra.mxu0 %v2512
    %2549 = vmatprep.subr.mxu0 0.0
    %2550 = vmatpush1.msra.mxu0 %v2513
    %2551 = vmatprep.subr.mxu0 0.0
    %2552 = vmatpush1.msra.mxu0 %v2514
    %2553 = vmatprep.subr.mxu0 0.0
    %2554 = vmatpush1.msra.mxu0 %v2515
    %2555 = vmatprep.subr.mxu0 0.0
    %2556 = vmatpush1.msra.mxu0 %v2516
    %2557 = vmatprep.subr.mxu0 0.0
    %2558 = vmatpush1.msra.mxu0 %v2517
    %2559 = vmatprep.subr.mxu0 0.0
    %2560 = vmatpush1.msra.mxu0 %v2518
    %2561 = vmatprep.subr.mxu0 0.0
    %2562 = vmatpush1.msra.mxu0 %v2519
    %2563 = vmatprep.subr.mxu0 0.0
    %2564 = vmatpush1.msra.mxu0 %v2520
    %2565 = vmatprep.subr.mxu0 0.0
    %2566 = vmatpush1.msra.mxu0 %v2521
    %2567 = vmatprep.subr.mxu0 0.0
    %2568 = vmatpush1.msra.mxu0 %v2522
    %2569 = vmatprep.subr.mxu0 0.0
    %2570 = vmatpush1.msra.mxu0 %v2523
    %2571 = vmatprep.subr.mxu0 0.0
    %2572 = vmatpush1.msra.mxu0 %v2524
    %2573 = vmatprep.subr.mxu0 0.0
    %2574 = vmatpush1.msra.mxu0 %v2525
    %2575 = vmatprep.subr.mxu0 0.0
    %2576 = vmatpush1.msra.mxu0 %v2526
    %2577 = vmatprep.subr.mxu0 0.0
    %2578 = vmatpush1.msra.mxu0 0.0
    %2579 = vmatprep.subr.mxu0 0.0
    %2580 = vmatpush1.msra.mxu0 0.0
    %2581 = vmatprep.subr.mxu0 0.0
    %2582 = vmatpush1.msra.mxu0 0.0
    %2583 = vmatprep.subr.mxu0 0.0
    %2584 = vmatpush1.msra.mxu0 0.0
    %2585 = vmatprep.subr.mxu0 0.0
    %2586 = vmatpush1.msra.mxu0 0.0
    %2587 = vmatprep.subr.mxu0 0.0
    %2588 = vmatpush1.msra.mxu0 0.0
    %2589 = vmatprep.subr.mxu0 0.0
    %2590 = vmatpush1.msra.mxu0 0.0
    %2591 = vmatprep.subr.mxu0 0.0
    %2592 = vmatpush1.msra.mxu0 0.0
    %2593 = vmatprep.subr.mxu0 0.0
    %2594 = vmatpush1.msra.mxu0 0.0
    %2595 = vmatprep.subr.mxu0 0.0
    %2596 = vmatpush1.msra.mxu0 0.0
    %2597 = vmatprep.mubr.f32.mxu0 %v2528
    %2598 = vmatmul.mubr.f32.gmra.mrb[0].mxu0 %v2286
    %v2599 = vpop.f32.mrb[0].mxu0
    %v2600 = vadd.f32 0.0, %v2599
    %v2601 = vpop.f32.mrb[0].mxu0
    %2602 = vmatprep.mubr.f32.mxu0 %v2531
    %2603 = vmatmul.mubr.f32.gmra.mrb[0].mxu0 %v2292
    %v2604 = vpop.f32.mrb[0].mxu0
    %v2605 = vadd.f32 0.0, %v2604
    %v2606 = vpop.f32.mrb[0].mxu0
    %2607 = vdwg.mxu0
    %v2608 = vadd.f32 %v2496, %v2600
    %v2609 = vadd.f32 %v2501, %v2605
    %v2610 = vld [vmem:[%s63] sm:$0x1]
    %v2612 = vlaneseq
    %v2613 = vshrl.u32 %v2612, 7
    %v2614 = vsub.s32 0, %v2613
    %v2615 = vrot.slane %v2610, %v2614
    %v2617 = vadd.f32 %v2608, %v2615
    %v2618 = vadd.f32 %v2609, %v2615
    %v2619 = vmax.f32 %v2617, 0.0
    %v2620 = vmax.f32 %v2618, 0.0
    %v2621 = vld [vmem:[%s3] sm:$0xff]
    %v2622 = vld [vmem:[%s3 + $0x8] sm:$0xff]
    %v2623 = vld [vmem:[%s7] sm:$0x3f]
    %v2624 = vld [vmem:[%s5] sm:$0x1]
    %v2626 = vlaneseq
    %v2627 = vshrl.u32 %v2626, 7
    %v2628 = vsub.s32 0, %v2627
    %v2629 = vrot.slane %v2624, %v2628
    %vm2631 = vcmask 48128
    %v2633 = vsel %vm2631, %v2621, 0
    %v2636 = vsel %vm2631, %v2622, 0
    %vm2638 = vcmask 1045504
    %v2640 = vsel %vm2638, %v2623, 0
    %2642 = vmatprep.subr.mxu0 0.0
    %2643 = vmatpush1.msra.mxu0 %v2640
    %2644 = vmatprep.subr.mxu0 0.0
    %2645 = vmatpush1.msra.mxu0 0.0
    %2646 = vmatprep.subr.mxu0 0.0
    %2647 = vmatpush1.msra.mxu0 0.0
    %2648 = vmatprep.subr.mxu0 0.0
    %2649 = vmatpush1.msra.mxu0 0.0
    %2650 = vmatprep.subr.mxu0 0.0
    %2651 = vmatpush1.msra.mxu0 0.0
    %2652 = vmatprep.subr.mxu0 0.0
    %2653 = vmatpush1.msra.mxu0 0.0
    %2654 = vmatprep.subr.mxu0 0.0
    %2655 = vmatpush1.msra.mxu0 0.0
    %2656 = vmatprep.subr.mxu0 0.0
    %2657 = vmatpush1.msra.mxu0 0.0
    %2658 = vmatprep.subr.mxu0 0.0
    %2659 = vmatpush1.msra.mxu0 0.0
    %2660 = vmatprep.subr.mxu0 0.0
    %2661 = vmatpush1.msra.mxu0 0.0
    %2662 = vmatprep.subr.mxu0 0.0
    %2663 = vmatpush1.msra.mxu0 0.0
    %2664 = vmatprep.subr.mxu0 0.0
    %2665 = vmatpush1.msra.mxu0 0.0
    %2666 = vmatprep.subr.mxu0 0.0
    %2667 = vmatpush1.msra.mxu0 0.0
    %2668 = vmatprep.subr.mxu0 0.0
    %2669 = vmatpush1.msra.mxu0 0.0
    %2670 = vmatprep.subr.mxu0 0.0
    %2671 = vmatpush1.msra.mxu0 0.0
    %2672 = vmatprep.subr.mxu0 0.0
    %2673 = vmatpush1.msra.mxu0 0.0
    %2674 = vmatprep.subr.mxu0 0.0
    %2675 = vmatpush1.msra.mxu0 0.0
    %2676 = vmatprep.subr.mxu0 0.0
    %2677 = vmatpush1.msra.mxu0 0.0
    %2678 = vmatprep.subr.mxu0 0.0
    %2679 = vmatpush1.msra.mxu0 0.0
    %2680 = vmatprep.subr.mxu0 0.0
    %2681 = vmatpush1.msra.mxu0 0.0
    %2682 = vmatprep.subr.mxu0 0.0
    %2683 = vmatpush1.msra.mxu0 0.0
    %2684 = vmatprep.subr.mxu0 0.0
    %2685 = vmatpush1.msra.mxu0 0.0
    %2686 = vmatprep.subr.mxu0 0.0
    %2687 = vmatpush1.msra.mxu0 0.0
    %2688 = vmatprep.subr.mxu0 0.0
    %2689 = vmatpush1.msra.mxu0 0.0
    %2690 = vmatprep.subr.mxu0 0.0
    %2691 = vmatpush1.msra.mxu0 0.0
    %2692 = vmatprep.subr.mxu0 0.0
    %2693 = vmatpush1.msra.mxu0 0.0
    %2694 = vmatprep.subr.mxu0 0.0
    %2695 = vmatpush1.msra.mxu0 0.0
    %2696 = vmatprep.subr.mxu0 0.0
    %2697 = vmatpush1.msra.mxu0 0.0
    %2698 = vmatprep.subr.mxu0 0.0
    %2699 = vmatpush1.msra.mxu0 0.0
    %2700 = vmatprep.subr.mxu0 0.0
    %2701 = vmatpush1.msra.mxu0 0.0
    %2702 = vmatprep.subr.mxu0 0.0
    %2703 = vmatpush1.msra.mxu0 0.0
    %2704 = vmatprep.subr.mxu0 0.0
    %2705 = vmatpush1.msra.mxu0 0.0
    %2706 = vmatprep.mubr.f32.mxu0 0.0
    %2707 = vmatmul.mubr.f32.gmra.mrb[0].mxu0 %v2633
    %v2708 = vpop.f32.mrb[0].mxu0
    %v2709 = vadd.f32 %v2629, %v2708
    %v2710 = vpop.f32.mrb[0].mxu0
    %2711 = vmatprep.mubr.f32.mxu0 0.0
    %2712 = vmatmul.mubr.f32.gmra.mrb[0].mxu0 %v2636
    %v2713 = vpop.f32.mrb[0].mxu0
    %v2714 = vadd.f32 %v2629, %v2713
    %v2715 = vpop.f32.mrb[0].mxu0
    %2716 = vdwg.mxu0
    %v2717 = vmax.f32 %v2709, 0.0
    %v2718 = vmax.f32 %v2714, 0.0
    %v2719 = vld [vmem:[%s41] sm:$0xff]
    %v2720 = vld [vmem:[%s41 + $0x8] sm:$0xff]
    %v2721 = vld [vmem:[%s41 + $0x10] sm:$0x3]
    %v2722 = vld [vmem:[%s11] sm:$0xff]
    %v2723 = vld [vmem:[%s11 + $0x8] sm:$0xff]
    %v2724 = vld [vmem:[%s11 + $0x10] sm:$0x3]
    %v2726 = vsel %vm570, %v2719, 0
    %v2729 = vsel %vm570, %v2720, 0
    %v2732 = vsel %vm570, %v2721, 0
    %2734 = vmatprep.subr.mxu0 0.0
    %2735 = vmatpush1.msra.mxu0 %v2717
    %2736 = vmatprep.subr.mxu0 0.0
    %2737 = vmatpush1.msra.mxu0 %v2718
    %2738 = vmatprep.subr.mxu0 0.0
    %2739 = vmatpush1.msra.mxu0 0.0
    %2740 = vmatprep.subr.mxu0 0.0
    %2741 = vmatpush1.msra.mxu0 0.0
    %2742 = vmatprep.subr.mxu0 0.0
    %2743 = vmatpush1.msra.mxu0 0.0
    %2744 = vmatprep.subr.mxu0 0.0
    %2745 = vmatpush1.msra.mxu0 0.0
    %2746 = vmatprep.subr.mxu0 0.0
    %2747 = vmatpush1.msra.mxu0 0.0
    %2748 = vmatprep.subr.mxu0 0.0
    %2749 = vmatpush1.msra.mxu0 0.0
    %2750 = vmatprep.subr.mxu0 0.0
    %2751 = vmatpush1.msra.mxu0 0.0
    %2752 = vmatprep.subr.mxu0 0.0
    %2753 = vmatpush1.msra.mxu0 0.0
    %2754 = vmatprep.subr.mxu0 0.0
    %2755 = vmatpush1.msra.mxu0 0.0
    %2756 = vmatprep.subr.mxu0 0.0
    %2757 = vmatpush1.msra.mxu0 0.0
    %2758 = vmatprep.subr.mxu0 0.0
    %2759 = vmatpush1.msra.mxu0 0.0
    %2760 = vmatprep.subr.mxu0 0.0
    %2761 = vmatpush1.msra.mxu0 0.0
    %2762 = vmatprep.subr.mxu0 0.0
    %2763 = vmatpush1.msra.mxu0 0.0
    %2764 = vmatprep.subr.mxu0 0.0
    %2765 = vmatpush1.msra.mxu0 0.0
    %2766 = vmatprep.subr.mxu0 0.0
    %2767 = vmatpush1.msra.mxu0 0.0
    %2768 = vmatprep.subr.mxu0 0.0
    %2769 = vmatpush1.msra.mxu0 0.0
    %2770 = vmatprep.subr.mxu0 0.0
    %2771 = vmatpush1.msra.mxu0 0.0
    %2772 = vmatprep.subr.mxu0 0.0
    %2773 = vmatpush1.msra.mxu0 0.0
    %2774 = vmatprep.subr.mxu0 0.0
    %2775 = vmatpush1.msra.mxu0 0.0
    %2776 = vmatprep.subr.mxu0 0.0
    %2777 = vmatpush1.msra.mxu0 0.0
    %2778 = vmatprep.subr.mxu0 0.0
    %2779 = vmatpush1.msra.mxu0 0.0
    %2780 = vmatprep.subr.mxu0 0.0
    %2781 = vmatpush1.msra.mxu0 0.0
    %2782 = vmatprep.subr.mxu0 0.0
    %2783 = vmatpush1.msra.mxu0 0.0
    %2784 = vmatprep.subr.mxu0 0.0
    %2785 = vmatpush1.msra.mxu0 0.0
    %2786 = vmatprep.subr.mxu0 0.0
    %2787 = vmatpush1.msra.mxu0 0.0
    %2788 = vmatprep.subr.mxu0 0.0
    %2789 = vmatpush1.msra.mxu0 0.0
    %2790 = vmatprep.subr.mxu0 0.0
    %2791 = vmatpush1.msra.mxu0 0.0
    %2792 = vmatprep.subr.mxu0 0.0
    %2793 = vmatpush1.msra.mxu0 0.0
    %2794 = vmatprep.subr.mxu0 0.0
    %2795 = vmatpush1.msra.mxu0 0.0
    %2796 = vmatprep.subr.mxu0 0.0
    %2797 = vmatpush1.msra.mxu0 0.0
    %2798 = vmatprep.mubr.f32.mxu0 0.0
    %2799 = vmatmul.mubr.f32.gmra.mrb[0].mxu0 %v2726
    %v2800 = vpop.f32.mrb[0].mxu0
    %v2801 = vadd.f32 %v2722, %v2800
    %v2802 = vpop.f32.mrb[0].mxu0
    %2803 = vmatprep.mubr.f32.mxu0 0.0
    %2804 = vmatmul.mubr.f32.gmra.mrb[0].mxu0 %v2729
    %v2805 = vpop.f32.mrb[0].mxu0
    %v2806 = vadd.f32 %v2723, %v2805
    %v2807 = vpop.f32.mrb[0].mxu0
    %2808 = vmatprep.mubr.f32.mxu0 0.0
    %2809 = vmatmul.mubr.f32.gmra.mrb[0].mxu0 %v2732
    %v2810 = vpop.f32.mrb[0].mxu0
    %v2811 = vadd.f32 %v2724, %v2810
    %v2812 = vpop.f32.mrb[0].mxu0
    %2813 = vdwg.mxu0
    %v2814 = vld [vmem:[%s25] sm:$0xf]
    %vm2815 = vcmask 261120
    %v2816 = vsel %vm2815, %v2801, 0.0
    %2817 = vadd.xlane.f32.xlu0 %v2816
    %v2818 = vpop.xlane.xlu0 %2817
    %v2819 = vsel %vm2815, %v2806, 0.0
    %2820 = vadd.xlane.f32.xlu0 %v2819
    %v2821 = vpop.xlane.xlu0 %2820
    %vm2822 = vcmask 254976
    %v2823 = vsel %vm2822, %v2811, 0.0
    %2824 = vadd.xlane.f32.xlu0 %v2823
    %v2825 = vpop.xlane.xlu0 %2824
    %v2826 = vrcp.pop 32.0
    %v2827 = vmul.f32 %v2818, %v2826
    %v2828 = vmul.f32 %v2821, %v2826
    %v2829 = vmul.f32 %v2825, %v2826
    %v2830 = vsub.f32 %v2801, %v2827
    %v2831 = vsub.f32 %v2806, %v2828
    %v2832 = vsub.f32 %v2811, %v2829
    %v2833 = vmul.f32 %v2830, %v2830
    %v2834 = vmul.f32 %v2831, %v2831
    %v2835 = vmul.f32 %v2832, %v2832
    %v2836 = vsel %vm2815, %v2833, 0.0
    %2837 = vadd.xlane.f32.xlu0 %v2836
    %v2838 = vpop.xlane.xlu0 %2837
    %v2839 = vsel %vm2815, %v2834, 0.0
    %2840 = vadd.xlane.f32.xlu0 %v2839
    %v2841 = vpop.xlane.xlu0 %2840
    %v2842 = vsel %vm2822, %v2835, 0.0
    %2843 = vadd.xlane.f32.xlu0 %v2842
    %v2844 = vpop.xlane.xlu0 %2843
    %v2845 = vmul.f32 %v2838, %v2826
    %v2846 = vmul.f32 %v2841, %v2826
    %v2847 = vmul.f32 %v2844, %v2826
    %v2848 = vadd.f32 %v2845, 1e-06
    %v2849 = vadd.f32 %v2846, 1e-06
    %v2850 = vadd.f32 %v2847, 1e-06
    %v2851 = vrsqrt.pop %v2848
    %v2852 = vrsqrt.pop %v2849
    %v2853 = vrsqrt.pop %v2850
    %v2854 = vmul.f32 %v2830, %v2851
    %v2855 = vmul.f32 %v2831, %v2852
    %v2856 = vmul.f32 %v2832, %v2853
    %v2857 = vlaneseq
    %v2858 = vshrl.u32 %v2857, 7
    %v2859 = vsub.s32 0, %v2858
    %v2860 = vrot.slane %v2814, %v2859
    %v2861 = vmul.f32 %v2854, %v2860
    %v2862 = vmul.f32 %v2855, %v2860
    %v2863 = vmul.f32 %v2856, %v2860
    %v2864 = vlaneseq
    %v2865 = vshrl.u32 %v2864, 7
    %v2866 = vsub.s32 1, %v2865
    %v2867 = vrot.slane %v2814, %v2866
    %v2868 = vadd.f32 %v2861, %v2867
    %v2869 = vadd.f32 %v2862, %v2867
    %v2870 = vadd.f32 %v2863, %v2867
    %v2871 = vld [vmem:[%s33] sm:$0xff]
    %v2872 = vld [vmem:[%s33 + $0x8] sm:$0xff]
    %v2873 = vld [vmem:[%s33 + $0x10] sm:$0xff]
    %v2874 = vld [vmem:[%s33 + $0x18] sm:$0xff]
    %v2875 = vld [vmem:[%s31] sm:$0x1]
    %v2877 = vlaneseq
    %v2878 = vshrl.u32 %v2877, 7
    %v2879 = vsub.s32 0, %v2878
    %v2880 = vrot.slane %v2875, %v2879
    %v2883 = vsel %vm2815, %v2868, 0
    %v2886 = vsel %vm2815, %v2869, 0
    %v2889 = vsel %vm2815, %v2870, 0
    %2891 = vmatprep.subr.mxu0 0.0
    %2892 = vmatpush1.msra.mxu0 %v2871
    %2893 = vmatprep.subr.mxu0 0.0
    %2894 = vmatpush1.msra.mxu0 %v2872
    %2895 = vmatprep.subr.mxu0 0.0
    %2896 = vmatpush1.msra.mxu0 %v2873
    %2897 = vmatprep.subr.mxu0 0.0
    %2898 = vmatpush1.msra.mxu0 %v2874
    %2899 = vmatprep.subr.mxu0 0.0
    %2900 = vmatpush1.msra.mxu0 0.0
    %2901 = vmatprep.subr.mxu0 0.0
    %2902 = vmatpush1.msra.mxu0 0.0
    %2903 = vmatprep.subr.mxu0 0.0
    %2904 = vmatpush1.msra.mxu0 0.0
    %2905 = vmatprep.subr.mxu0 0.0
    %2906 = vmatpush1.msra.mxu0 0.0
    %2907 = vmatprep.subr.mxu0 0.0
    %2908 = vmatpush1.msra.mxu0 0.0
    %2909 = vmatprep.subr.mxu0 0.0
    %2910 = vmatpush1.msra.mxu0 0.0
    %2911 = vmatprep.subr.mxu0 0.0
    %2912 = vmatpush1.msra.mxu0 0.0
    %2913 = vmatprep.subr.mxu0 0.0
    %2914 = vmatpush1.msra.mxu0 0.0
    %2915 = vmatprep.subr.mxu0 0.0
    %2916 = vmatpush1.msra.mxu0 0.0
    %2917 = vmatprep.subr.mxu0 0.0
    %2918 = vmatpush1.msra.mxu0 0.0
    %2919 = vmatprep.subr.mxu0 0.0
    %2920 = vmatpush1.msra.mxu0 0.0
    %2921 = vmatprep.subr.mxu0 0.0
    %2922 = vmatpush1.msra.mxu0 0.0
    %2923 = vmatprep.subr.mxu0 0.0
    %2924 = vmatpush1.msra.mxu0 0.0
    %2925 = vmatprep.subr.mxu0 0.0
    %2926 = vmatpush1.msra.mxu0 0.0
    %2927 = vmatprep.subr.mxu0 0.0
    %2928 = vmatpush1.msra.mxu0 0.0
    %2929 = vmatprep.subr.mxu0 0.0
    %2930 = vmatpush1.msra.mxu0 0.0
    %2931 = vmatprep.subr.mxu0 0.0
    %2932 = vmatpush1.msra.mxu0 0.0
    %2933 = vmatprep.subr.mxu0 0.0
    %2934 = vmatpush1.msra.mxu0 0.0
    %2935 = vmatprep.subr.mxu0 0.0
    %2936 = vmatpush1.msra.mxu0 0.0
    %2937 = vmatprep.subr.mxu0 0.0
    %2938 = vmatpush1.msra.mxu0 0.0
    %2939 = vmatprep.subr.mxu0 0.0
    %2940 = vmatpush1.msra.mxu0 0.0
    %2941 = vmatprep.subr.mxu0 0.0
    %2942 = vmatpush1.msra.mxu0 0.0
    %2943 = vmatprep.subr.mxu0 0.0
    %2944 = vmatpush1.msra.mxu0 0.0
    %2945 = vmatprep.subr.mxu0 0.0
    %2946 = vmatpush1.msra.mxu0 0.0
    %2947 = vmatprep.subr.mxu0 0.0
    %2948 = vmatpush1.msra.mxu0 0.0
    %2949 = vmatprep.subr.mxu0 0.0
    %2950 = vmatpush1.msra.mxu0 0.0
    %2951 = vmatprep.subr.mxu0 0.0
    %2952 = vmatpush1.msra.mxu0 0.0
    %2953 = vmatprep.subr.mxu0 0.0
    %2954 = vmatpush1.msra.mxu0 0.0
    %2955 = vmatprep.mubr.f32.mxu0 0.0
    %2956 = vmatmul.mubr.f32.gmra.mrb[0].mxu0 %v2883
    %v2957 = vpop.f32.mrb[0].mxu0
    %v2958 = vadd.f32 %v2880, %v2957
    %v2959 = vpop.f32.mrb[0].mxu0
    %2960 = vmatprep.mubr.f32.mxu0 0.0
    %2961 = vmatmul.mubr.f32.gmra.mrb[0].mxu0 %v2886
    %v2962 = vpop.f32.mrb[0].mxu0
    %v2963 = vadd.f32 %v2880, %v2962
    %v2964 = vpop.f32.mrb[0].mxu0
    %2965 = vmatprep.mubr.f32.mxu0 0.0
    %2966 = vmatmul.mubr.f32.gmra.mrb[0].mxu0 %v2889
    %v2967 = vpop.f32.mrb[0].mxu0
    %v2968 = vadd.f32 %v2880, %v2967
    %v2969 = vpop.f32.mrb[0].mxu0
    %2970 = vdwg.mxu0
    %2974 = vrot.lane.b32.xlu0 %v2958, 96
    %v2975 = vpop.permute.xlu0 %2974
    %2976 = vrot.lane.b32.xlu0 %v2963, 96
    %v2977 = vpop.permute.xlu0 %2976
    %2978 = vrot.lane.b32.xlu0 %v2968, 96
    %v2979 = vpop.permute.xlu0 %2978
    %vm2980 = vcmask 64512
    %v2981 = vsel %vm2980, %v2958, 0
    %v2983 = vsel %vm2980, %v2963, 0
    %v2985 = vsel %vm2980, %v2968, 0
    %v2987 = vsel %vm2980, %v2975, 0
    %v2989 = vsel %vm2980, %v2977, 0
    %v2991 = vsel %vm2980, %v2979, 0
    %2993 = vmatprep.subr.mxu0 0.0
    %2994 = vmatpush1.xpose.msra.mxu0 %v2987
    %2995 = vmatprep.subr.mxu0 0.0
    %2996 = vmatpush1.xpose.msra.mxu0 %v2989
    %2997 = vmatprep.subr.mxu0 0.0
    %2998 = vmatpush1.xpose.msra.mxu0 %v2991
    %2999 = vmatprep.subr.mxu0 0.0
    %3000 = vmatpush1.xpose.msra.mxu0 0.0
    %3001 = vmatprep.subr.mxu0 0.0
    %3002 = vmatpush1.xpose.msra.mxu0 0.0
    %3003 = vmatprep.subr.mxu0 0.0
    %3004 = vmatpush1.xpose.msra.mxu0 0.0
    %3005 = vmatprep.subr.mxu0 0.0
    %3006 = vmatpush1.xpose.msra.mxu0 0.0
    %3007 = vmatprep.subr.mxu0 0.0
    %3008 = vmatpush1.xpose.msra.mxu0 0.0
    %3009 = vmatprep.subr.mxu0 0.0
    %3010 = vmatpush1.xpose.msra.mxu0 0.0
    %3011 = vmatprep.subr.mxu0 0.0
    %3012 = vmatpush1.xpose.msra.mxu0 0.0
    %3013 = vmatprep.subr.mxu0 0.0
    %3014 = vmatpush1.xpose.msra.mxu0 0.0
    %3015 = vmatprep.subr.mxu0 0.0
    %3016 = vmatpush1.xpose.msra.mxu0 0.0
    %3017 = vmatprep.subr.mxu0 0.0
    %3018 = vmatpush1.xpose.msra.mxu0 0.0
    %3019 = vmatprep.subr.mxu0 0.0
    %3020 = vmatpush1.xpose.msra.mxu0 0.0
    %3021 = vmatprep.subr.mxu0 0.0
    %3022 = vmatpush1.xpose.msra.mxu0 0.0
    %3023 = vmatprep.subr.mxu0 0.0
    %3024 = vmatpush1.xpose.msra.mxu0 0.0
    %3025 = vmatprep.subr.mxu0 0.0
    %3026 = vmatpush1.xpose.msra.mxu0 0.0
    %3027 = vmatprep.subr.mxu0 0.0
    %3028 = vmatpush1.xpose.msra.mxu0 0.0
    %3029 = vmatprep.subr.mxu0 0.0
    %3030 = vmatpush1.xpose.msra.mxu0 0.0
    %3031 = vmatprep.subr.mxu0 0.0
    %3032 = vmatpush1.xpose.msra.mxu0 0.0
    %3033 = vmatprep.subr.mxu0 0.0
    %3034 = vmatpush1.xpose.msra.mxu0 0.0
    %3035 = vmatprep.subr.mxu0 0.0
    %3036 = vmatpush1.xpose.msra.mxu0 0.0
    %3037 = vmatprep.subr.mxu0 0.0
    %3038 = vmatpush1.xpose.msra.mxu0 0.0
    %3039 = vmatprep.subr.mxu0 0.0
    %3040 = vmatpush1.xpose.msra.mxu0 0.0
    %3041 = vmatprep.subr.mxu0 0.0
    %3042 = vmatpush1.xpose.msra.mxu0 0.0
    %3043 = vmatprep.subr.mxu0 0.0
    %3044 = vmatpush1.xpose.msra.mxu0 0.0
    %3045 = vmatprep.subr.mxu0 0.0
    %3046 = vmatpush1.xpose.msra.mxu0 0.0
    %3047 = vmatprep.subr.mxu0 0.0
    %3048 = vmatpush1.xpose.msra.mxu0 0.0
    %3049 = vmatprep.subr.mxu0 0.0
    %3050 = vmatpush1.xpose.msra.mxu0 0.0
    %3051 = vmatprep.subr.mxu0 0.0
    %3052 = vmatpush1.xpose.msra.mxu0 0.0
    %3053 = vmatprep.subr.mxu0 0.0
    %3054 = vmatpush1.xpose.msra.mxu0 0.0
    %3055 = vmatprep.subr.mxu0 0.0
    %3056 = vmatpush1.xpose.msra.mxu0 0.0
    %3057 = vmatprep.mubr.f32.mxu0 0.0
    %3058 = vmatmul.mubr.f32.gmra.mrb[0].mxu0 %v2981
    %v3059 = vpop.f32.mrb[0].mxu0
    %v3060 = vadd.f32 %v157, %v3059
    %v3061 = vpop.f32.mrb[0].mxu0
    %3062 = vmatprep.mubr.f32.mxu0 0.0
    %3063 = vmatmul.mubr.f32.gmra.mrb[0].mxu0 %v2983
    %v3064 = vpop.f32.mrb[0].mxu0
    %v3065 = vadd.f32 %v158, %v3064
    %v3066 = vpop.f32.mrb[0].mxu0
    %3067 = vmatprep.mubr.f32.mxu0 0.0
    %3068 = vmatmul.mubr.f32.gmra.mrb[0].mxu0 %v2985
    %v3069 = vpop.f32.mrb[0].mxu0
    %v3070 = vadd.f32 %v159, %v3069
    %v3071 = vpop.f32.mrb[0].mxu0
    %3072 = vdwg.mxu0
    %vm3073 = vcmask 146432
    %v3074 = vsel %vm3073, %v3060, -inf
    %3075 = vmax.xlane.f32.xlu0 %v3074
    %v3076 = vpop.xlane.xlu0 %3075
    %v3077 = vsel %vm3073, %v3065, -inf
    %3078 = vmax.xlane.f32.xlu0 %v3077
    %v3079 = vpop.xlane.xlu0 %3078
    %vm3080 = vcmask 140288
    %v3081 = vsel %vm3080, %v3070, -inf
    %3082 = vmax.xlane.f32.xlu0 %v3081
    %v3083 = vpop.xlane.xlu0 %3082
    %v3084 = vsub.f32 %v3060, %v3076
    %v3085 = vsub.f32 %v3065, %v3079
    %v3086 = vsub.f32 %v3070, %v3083
    %v3087 = vmul.f32 %v3084, 1.442695
    %v3088 = vpow.pop %v3087
    %v3089 = vmul.f32 %v3085, 1.442695
    %v3090 = vpow.pop %v3089
    %v3091 = vmul.f32 %v3086, 1.442695
    %v3092 = vpow.pop %v3091
    %v3093 = vsel %vm3073, %v3088, 0.0
    %3094 = vadd.xlane.f32.xlu0 %v3093
    %v3095 = vpop.xlane.xlu0 %3094
    %v3096 = vsel %vm3073, %v3090, 0.0
    %3097 = vadd.xlane.f32.xlu0 %v3096
    %v3098 = vpop.xlane.xlu0 %3097
    %v3099 = vsel %vm3080, %v3092, 0.0
    %3100 = vadd.xlane.f32.xlu0 %v3099
    %v3101 = vpop.xlane.xlu0 %3100
    %v3102 = vrcp.pop %v3095
    %v3103 = vrcp.pop %v3098
    %v3104 = vrcp.pop %v3101
    %v3105 = vmul.f32 %v3088, %v3102
    %v3106 = vmul.f32 %v3090, %v3103
    %v3107 = vmul.f32 %v3092, %v3104
    %3108 = vrot.lane.b32.xlu0 %v2958, 64
    %v3109 = vpop.permute.xlu0 %3108
    %3110 = vrot.lane.b32.xlu0 %v2963, 64
    %v3111 = vpop.permute.xlu0 %3110
    %3112 = vrot.lane.b32.xlu0 %v2968, 64
    %v3113 = vpop.permute.xlu0 %3112
    %v3117 = vsel %vm3073, %v3105, 0
    %v3120 = vsel %vm3073, %v3106, 0
    %v3123 = vsel %vm3073, %v3107, 0
    %vm3125 = vcmask 1041408
    %v3126 = vsel %vm3125, %v3113, 0
    %3128 = vmatprep.subr.mxu0 0.0
    %3129 = vmatpush1.msra.mxu0 %v3109
    %3130 = vmatprep.subr.mxu0 0.0
    %3131 = vmatpush1.msra.mxu0 %v3111
    %3132 = vmatprep.subr.mxu0 0.0
    %3133 = vmatpush1.msra.mxu0 %v3126
    %3134 = vmatprep.subr.mxu0 0.0
    %3135 = vmatpush1.msra.mxu0 0.0
    %3136 = vmatprep.subr.mxu0 0.0
    %3137 = vmatpush1.msra.mxu0 0.0
    %3138 = vmatprep.subr.mxu0 0.0
    %3139 = vmatpush1.msra.mxu0 0.0
    %3140 = vmatprep.subr.mxu0 0.0
    %3141 = vmatpush1.msra.mxu0 0.0
    %3142 = vmatprep.subr.mxu0 0.0
    %3143 = vmatpush1.msra.mxu0 0.0
    %3144 = vmatprep.subr.mxu0 0.0
    %3145 = vmatpush1.msra.mxu0 0.0
    %3146 = vmatprep.subr.mxu0 0.0
    %3147 = vmatpush1.msra.mxu0 0.0
    %3148 = vmatprep.subr.mxu0 0.0
    %3149 = vmatpush1.msra.mxu0 0.0
    %3150 = vmatprep.subr.mxu0 0.0
    %3151 = vmatpush1.msra.mxu0 0.0
    %3152 = vmatprep.subr.mxu0 0.0
    %3153 = vmatpush1.msra.mxu0 0.0
    %3154 = vmatprep.subr.mxu0 0.0
    %3155 = vmatpush1.msra.mxu0 0.0
    %3156 = vmatprep.subr.mxu0 0.0
    %3157 = vmatpush1.msra.mxu0 0.0
    %3158 = vmatprep.subr.mxu0 0.0
    %3159 = vmatpush1.msra.mxu0 0.0
    %3160 = vmatprep.subr.mxu0 0.0
    %3161 = vmatpush1.msra.mxu0 0.0
    %3162 = vmatprep.subr.mxu0 0.0
    %3163 = vmatpush1.msra.mxu0 0.0
    %3164 = vmatprep.subr.mxu0 0.0
    %3165 = vmatpush1.msra.mxu0 0.0
    %3166 = vmatprep.subr.mxu0 0.0
    %3167 = vmatpush1.msra.mxu0 0.0
    %3168 = vmatprep.subr.mxu0 0.0
    %3169 = vmatpush1.msra.mxu0 0.0
    %3170 = vmatprep.subr.mxu0 0.0
    %3171 = vmatpush1.msra.mxu0 0.0
    %3172 = vmatprep.subr.mxu0 0.0
    %3173 = vmatpush1.msra.mxu0 0.0
    %3174 = vmatprep.subr.mxu0 0.0
    %3175 = vmatpush1.msra.mxu0 0.0
    %3176 = vmatprep.subr.mxu0 0.0
    %3177 = vmatpush1.msra.mxu0 0.0
    %3178 = vmatprep.subr.mxu0 0.0
    %3179 = vmatpush1.msra.mxu0 0.0
    %3180 = vmatprep.subr.mxu0 0.0
    %3181 = vmatpush1.msra.mxu0 0.0
    %3182 = vmatprep.subr.mxu0 0.0
    %3183 = vmatpush1.msra.mxu0 0.0
    %3184 = vmatprep.subr.mxu0 0.0
    %3185 = vmatpush1.msra.mxu0 0.0
    %3186 = vmatprep.subr.mxu0 0.0
    %3187 = vmatpush1.msra.mxu0 0.0
    %3188 = vmatprep.subr.mxu0 0.0
    %3189 = vmatpush1.msra.mxu0 0.0
    %3190 = vmatprep.subr.mxu0 0.0
    %3191 = vmatpush1.msra.mxu0 0.0
    %3192 = vmatprep.mubr.f32.mxu0 0.0
    %3193 = vmatmul.mubr.f32.gmra.mrb[0].mxu0 %v3117
    %v3194 = vpop.f32.mrb[0].mxu0
    %v3195 = vadd.f32 0.0, %v3194
    %v3196 = vpop.f32.mrb[0].mxu0
    %3197 = vmatprep.mubr.f32.mxu0 0.0
    %3198 = vmatmul.mubr.f32.gmra.mrb[0].mxu0 %v3120
    %v3199 = vpop.f32.mrb[0].mxu0
    %v3200 = vadd.f32 0.0, %v3199
    %v3201 = vpop.f32.mrb[0].mxu0
    %3202 = vmatprep.mubr.f32.mxu0 0.0
    %3203 = vmatmul.mubr.f32.gmra.mrb[0].mxu0 %v3123
    %v3204 = vpop.f32.mrb[0].mxu0
    %v3205 = vadd.f32 0.0, %v3204
    %v3206 = vpop.f32.mrb[0].mxu0
    %3207 = vdwg.mxu0
    %3208 = vrot.lane.b32.xlu0 %v2958, 120
    %v3209 = vpop.permute.xlu0 %3208
    %3210 = vrot.lane.b32.xlu0 %v2963, 120
    %v3211 = vpop.permute.xlu0 %3210
    %3212 = vrot.lane.b32.xlu0 %v2968, 120
    %v3213 = vpop.permute.xlu0 %3212
    %3214 = vrot.lane.b32.xlu0 %v2958, 88
    %v3215 = vpop.permute.xlu0 %3214
    %3216 = vrot.lane.b32.xlu0 %v2963, 88
    %v3217 = vpop.permute.xlu0 %3216
    %3218 = vrot.lane.b32.xlu0 %v2968, 88
    %v3219 = vpop.permute.xlu0 %3218
    %v3220 = vsel %vm2980, %v3209, 0
    %v3222 = vsel %vm2980, %v3211, 0
    %v3224 = vsel %vm2980, %v3213, 0
    %v3226 = vsel %vm2980, %v3215, 0
    %v3228 = vsel %vm2980, %v3217, 0
    %v3230 = vsel %vm2980, %v3219, 0
    %3232 = vmatprep.subr.mxu0 0.0
    %3233 = vmatpush1.xpose.msra.mxu0 %v3226
    %3234 = vmatprep.subr.mxu0 0.0
    %3235 = vmatpush1.xpose.msra.mxu0 %v3228
    %3236 = vmatprep.subr.mxu0 0.0
    %3237 = vmatpush1.xpose.msra.mxu0 %v3230
    %3238 = vmatprep.subr.mxu0 0.0
    %3239 = vmatpush1.xpose.msra.mxu0 0.0
    %3240 = vmatprep.subr.mxu0 0.0
    %3241 = vmatpush1.xpose.msra.mxu0 0.0
    %3242 = vmatprep.subr.mxu0 0.0
    %3243 = vmatpush1.xpose.msra.mxu0 0.0
    %3244 = vmatprep.subr.mxu0 0.0
    %3245 = vmatpush1.xpose.msra.mxu0 0.0
    %3246 = vmatprep.subr.mxu0 0.0
    %3247 = vmatpush1.xpose.msra.mxu0 0.0
    %3248 = vmatprep.subr.mxu0 0.0
    %3249 = vmatpush1.xpose.msra.mxu0 0.0
    %3250 = vmatprep.subr.mxu0 0.0
    %3251 = vmatpush1.xpose.msra.mxu0 0.0
    %3252 = vmatprep.subr.mxu0 0.0
    %3253 = vmatpush1.xpose.msra.mxu0 0.0
    %3254 = vmatprep.subr.mxu0 0.0
    %3255 = vmatpush1.xpose.msra.mxu0 0.0
    %3256 = vmatprep.subr.mxu0 0.0
    %3257 = vmatpush1.xpose.msra.mxu0 0.0
    %3258 = vmatprep.subr.mxu0 0.0
    %3259 = vmatpush1.xpose.msra.mxu0 0.0
    %3260 = vmatprep.subr.mxu0 0.0
    %3261 = vmatpush1.xpose.msra.mxu0 0.0
    %3262 = vmatprep.subr.mxu0 0.0
    %3263 = vmatpush1.xpose.msra.mxu0 0.0
    %3264 = vmatprep.subr.mxu0 0.0
    %3265 = vmatpush1.xpose.msra.mxu0 0.0
    %3266 = vmatprep.subr.mxu0 0.0
    %3267 = vmatpush1.xpose.msra.mxu0 0.0
    %3268 = vmatprep.subr.mxu0 0.0
    %3269 = vmatpush1.xpose.msra.mxu0 0.0
    %3270 = vmatprep.subr.mxu0 0.0
    %3271 = vmatpush1.xpose.msra.mxu0 0.0
    %3272 = vmatprep.subr.mxu0 0.0
    %3273 = vmatpush1.xpose.msra.mxu0 0.0
    %3274 = vmatprep.subr.mxu0 0.0
    %3275 = vmatpush1.xpose.msra.mxu0 0.0
    %3276 = vmatprep.subr.mxu0 0.0
    %3277 = vmatpush1.xpose.msra.mxu0 0.0
    %3278 = vmatprep.subr.mxu0 0.0
    %3279 = vmatpush1.xpose.msra.mxu0 0.0
    %3280 = vmatprep.subr.mxu0 0.0
    %3281 = vmatpush1.xpose.msra.mxu0 0.0
    %3282 = vmatprep.subr.mxu0 0.0
    %3283 = vmatpush1.xpose.msra.mxu0 0.0
    %3284 = vmatprep.subr.mxu0 0.0
    %3285 = vmatpush1.xpose.msra.mxu0 0.0
    %3286 = vmatprep.subr.mxu0 0.0
    %3287 = vmatpush1.xpose.msra.mxu0 0.0
    %3288 = vmatprep.subr.mxu0 0.0
    %3289 = vmatpush1.xpose.msra.mxu0 0.0
    %3290 = vmatprep.subr.mxu0 0.0
    %3291 = vmatpush1.xpose.msra.mxu0 0.0
    %3292 = vmatprep.subr.mxu0 0.0
    %3293 = vmatpush1.xpose.msra.mxu0 0.0
    %3294 = vmatprep.subr.mxu0 0.0
    %3295 = vmatpush1.xpose.msra.mxu0 0.0
    %3296 = vmatprep.mubr.f32.mxu0 0.0
    %3297 = vmatmul.mubr.f32.gmra.mrb[0].mxu0 %v3220
    %v3298 = vpop.f32.mrb[0].mxu0
    %v3299 = vadd.f32 %v157, %v3298
    %v3300 = vpop.f32.mrb[0].mxu0
    %3301 = vmatprep.mubr.f32.mxu0 0.0
    %3302 = vmatmul.mubr.f32.gmra.mrb[0].mxu0 %v3222
    %v3303 = vpop.f32.mrb[0].mxu0
    %v3304 = vadd.f32 %v158, %v3303
    %v3305 = vpop.f32.mrb[0].mxu0
    %3306 = vmatprep.mubr.f32.mxu0 0.0
    %3307 = vmatmul.mubr.f32.gmra.mrb[0].mxu0 %v3224
    %v3308 = vpop.f32.mrb[0].mxu0
    %v3309 = vadd.f32 %v159, %v3308
    %v3310 = vpop.f32.mrb[0].mxu0
    %3311 = vdwg.mxu0
    %v3312 = vsel %vm3073, %v3299, -inf
    %3313 = vmax.xlane.f32.xlu0 %v3312
    %v3314 = vpop.xlane.xlu0 %3313
    %v3315 = vsel %vm3073, %v3304, -inf
    %3316 = vmax.xlane.f32.xlu0 %v3315
    %v3317 = vpop.xlane.xlu0 %3316
    %v3318 = vsel %vm3080, %v3309, -inf
    %3319 = vmax.xlane.f32.xlu0 %v3318
    %v3320 = vpop.xlane.xlu0 %3319
    %v3321 = vsub.f32 %v3299, %v3314
    %v3322 = vsub.f32 %v3304, %v3317
    %v3323 = vsub.f32 %v3309, %v3320
    %v3324 = vmul.f32 %v3321, 1.442695
    %v3325 = vpow.pop %v3324
    %v3326 = vmul.f32 %v3322, 1.442695
    %v3327 = vpow.pop %v3326
    %v3328 = vmul.f32 %v3323, 1.442695
    %v3329 = vpow.pop %v3328
    %v3330 = vsel %vm3073, %v3325, 0.0
    %3331 = vadd.xlane.f32.xlu0 %v3330
    %v3332 = vpop.xlane.xlu0 %3331
    %v3333 = vsel %vm3073, %v3327, 0.0
    %3334 = vadd.xlane.f32.xlu0 %v3333
    %v3335 = vpop.xlane.xlu0 %3334
    %v3336 = vsel %vm3080, %v3329, 0.0
    %3337 = vadd.xlane.f32.xlu0 %v3336
    %v3338 = vpop.xlane.xlu0 %3337
    %v3339 = vrcp.pop %v3332
    %v3340 = vrcp.pop %v3335
    %v3341 = vrcp.pop %v3338
    %v3342 = vmul.f32 %v3325, %v3339
    %v3343 = vmul.f32 %v3327, %v3340
    %v3344 = vmul.f32 %v3329, %v3341
    %3345 = vrot.lane.b32.xlu0 %v2958, 56
    %v3346 = vpop.permute.xlu0 %3345
    %3347 = vrot.lane.b32.xlu0 %v2963, 56
    %v3348 = vpop.permute.xlu0 %3347
    %3349 = vrot.lane.b32.xlu0 %v2968, 56
    %v3350 = vpop.permute.xlu0 %3349
    %v3354 = vsel %vm3073, %v3342, 0
    %v3357 = vsel %vm3073, %v3343, 0
    %v3360 = vsel %vm3073, %v3344, 0
    %v3362 = vsel %vm3125, %v3350, 0
    %3364 = vmatprep.subr.mxu0 0.0
    %3365 = vmatpush1.msra.mxu0 %v3346
    %3366 = vmatprep.subr.mxu0 0.0
    %3367 = vmatpush1.msra.mxu0 %v3348
    %3368 = vmatprep.subr.mxu0 0.0
    %3369 = vmatpush1.msra.mxu0 %v3362
    %3370 = vmatprep.subr.mxu0 0.0
    %3371 = vmatpush1.msra.mxu0 0.0
    %3372 = vmatprep.subr.mxu0 0.0
    %3373 = vmatpush1.msra.mxu0 0.0
    %3374 = vmatprep.subr.mxu0 0.0
    %3375 = vmatpush1.msra.mxu0 0.0
    %3376 = vmatprep.subr.mxu0 0.0
    %3377 = vmatpush1.msra.mxu0 0.0
    %3378 = vmatprep.subr.mxu0 0.0
    %3379 = vmatpush1.msra.mxu0 0.0
    %3380 = vmatprep.subr.mxu0 0.0
    %3381 = vmatpush1.msra.mxu0 0.0
    %3382 = vmatprep.subr.mxu0 0.0
    %3383 = vmatpush1.msra.mxu0 0.0
    %3384 = vmatprep.subr.mxu0 0.0
    %3385 = vmatpush1.msra.mxu0 0.0
    %3386 = vmatprep.subr.mxu0 0.0
    %3387 = vmatpush1.msra.mxu0 0.0
    %3388 = vmatprep.subr.mxu0 0.0
    %3389 = vmatpush1.msra.mxu0 0.0
    %3390 = vmatprep.subr.mxu0 0.0
    %3391 = vmatpush1.msra.mxu0 0.0
    %3392 = vmatprep.subr.mxu0 0.0
    %3393 = vmatpush1.msra.mxu0 0.0
    %3394 = vmatprep.subr.mxu0 0.0
    %3395 = vmatpush1.msra.mxu0 0.0
    %3396 = vmatprep.subr.mxu0 0.0
    %3397 = vmatpush1.msra.mxu0 0.0
    %3398 = vmatprep.subr.mxu0 0.0
    %3399 = vmatpush1.msra.mxu0 0.0
    %3400 = vmatprep.subr.mxu0 0.0
    %3401 = vmatpush1.msra.mxu0 0.0
    %3402 = vmatprep.subr.mxu0 0.0
    %3403 = vmatpush1.msra.mxu0 0.0
    %3404 = vmatprep.subr.mxu0 0.0
    %3405 = vmatpush1.msra.mxu0 0.0
    %3406 = vmatprep.subr.mxu0 0.0
    %3407 = vmatpush1.msra.mxu0 0.0
    %3408 = vmatprep.subr.mxu0 0.0
    %3409 = vmatpush1.msra.mxu0 0.0
    %3410 = vmatprep.subr.mxu0 0.0
    %3411 = vmatpush1.msra.mxu0 0.0
    %3412 = vmatprep.subr.mxu0 0.0
    %3413 = vmatpush1.msra.mxu0 0.0
    %3414 = vmatprep.subr.mxu0 0.0
    %3415 = vmatpush1.msra.mxu0 0.0
    %3416 = vmatprep.subr.mxu0 0.0
    %3417 = vmatpush1.msra.mxu0 0.0
    %3418 = vmatprep.subr.mxu0 0.0
    %3419 = vmatpush1.msra.mxu0 0.0
    %3420 = vmatprep.subr.mxu0 0.0
    %3421 = vmatpush1.msra.mxu0 0.0
    %3422 = vmatprep.subr.mxu0 0.0
    %3423 = vmatpush1.msra.mxu0 0.0
    %3424 = vmatprep.subr.mxu0 0.0
    %3425 = vmatpush1.msra.mxu0 0.0
    %3426 = vmatprep.subr.mxu0 0.0
    %3427 = vmatpush1.msra.mxu0 0.0
    %3428 = vmatprep.mubr.f32.mxu0 0.0
    %3429 = vmatmul.mubr.f32.gmra.mrb[0].mxu0 %v3354
    %v3430 = vpop.f32.mrb[0].mxu0
    %v3431 = vadd.f32 0.0, %v3430
    %v3432 = vpop.f32.mrb[0].mxu0
    %3433 = vmatprep.mubr.f32.mxu0 0.0
    %3434 = vmatmul.mubr.f32.gmra.mrb[0].mxu0 %v3357
    %v3435 = vpop.f32.mrb[0].mxu0
    %v3436 = vadd.f32 0.0, %v3435
    %v3437 = vpop.f32.mrb[0].mxu0
    %3438 = vmatprep.mubr.f32.mxu0 0.0
    %3439 = vmatmul.mubr.f32.gmra.mrb[0].mxu0 %v3360
    %v3440 = vpop.f32.mrb[0].mxu0
    %v3441 = vadd.f32 0.0, %v3440
    %v3442 = vpop.f32.mrb[0].mxu0
    %3443 = vdwg.mxu0
    %3444 = vrot.lane.b32.xlu0 %v2958, 112
    %v3445 = vpop.permute.xlu0 %3444
    %3446 = vrot.lane.b32.xlu0 %v2963, 112
    %v3447 = vpop.permute.xlu0 %3446
    %3448 = vrot.lane.b32.xlu0 %v2968, 112
    %v3449 = vpop.permute.xlu0 %3448
    %3450 = vrot.lane.b32.xlu0 %v2958, 80
    %v3451 = vpop.permute.xlu0 %3450
    %3452 = vrot.lane.b32.xlu0 %v2963, 80
    %v3453 = vpop.permute.xlu0 %3452
    %3454 = vrot.lane.b32.xlu0 %v2968, 80
    %v3455 = vpop.permute.xlu0 %3454
    %v3456 = vsel %vm2980, %v3445, 0
    %v3458 = vsel %vm2980, %v3447, 0
    %v3460 = vsel %vm2980, %v3449, 0
    %v3462 = vsel %vm2980, %v3451, 0
    %v3464 = vsel %vm2980, %v3453, 0
    %v3466 = vsel %vm2980, %v3455, 0
    %3468 = vmatprep.subr.mxu0 0.0
    %3469 = vmatpush1.xpose.msra.mxu0 %v3462
    %3470 = vmatprep.subr.mxu0 0.0
    %3471 = vmatpush1.xpose.msra.mxu0 %v3464
    %3472 = vmatprep.subr.mxu0 0.0
    %3473 = vmatpush1.xpose.msra.mxu0 %v3466
    %3474 = vmatprep.subr.mxu0 0.0
    %3475 = vmatpush1.xpose.msra.mxu0 0.0
    %3476 = vmatprep.subr.mxu0 0.0
    %3477 = vmatpush1.xpose.msra.mxu0 0.0
    %3478 = vmatprep.subr.mxu0 0.0
    %3479 = vmatpush1.xpose.msra.mxu0 0.0
    %3480 = vmatprep.subr.mxu0 0.0
    %3481 = vmatpush1.xpose.msra.mxu0 0.0
    %3482 = vmatprep.subr.mxu0 0.0
    %3483 = vmatpush1.xpose.msra.mxu0 0.0
    %3484 = vmatprep.subr.mxu0 0.0
    %3485 = vmatpush1.xpose.msra.mxu0 0.0
    %3486 = vmatprep.subr.mxu0 0.0
    %3487 = vmatpush1.xpose.msra.mxu0 0.0
    %3488 = vmatprep.subr.mxu0 0.0
    %3489 = vmatpush1.xpose.msra.mxu0 0.0
    %3490 = vmatprep.subr.mxu0 0.0
    %3491 = vmatpush1.xpose.msra.mxu0 0.0
    %3492 = vmatprep.subr.mxu0 0.0
    %3493 = vmatpush1.xpose.msra.mxu0 0.0
    %3494 = vmatprep.subr.mxu0 0.0
    %3495 = vmatpush1.xpose.msra.mxu0 0.0
    %3496 = vmatprep.subr.mxu0 0.0
    %3497 = vmatpush1.xpose.msra.mxu0 0.0
    %3498 = vmatprep.subr.mxu0 0.0
    %3499 = vmatpush1.xpose.msra.mxu0 0.0
    %3500 = vmatprep.subr.mxu0 0.0
    %3501 = vmatpush1.xpose.msra.mxu0 0.0
    %3502 = vmatprep.subr.mxu0 0.0
    %3503 = vmatpush1.xpose.msra.mxu0 0.0
    %3504 = vmatprep.subr.mxu0 0.0
    %3505 = vmatpush1.xpose.msra.mxu0 0.0
    %3506 = vmatprep.subr.mxu0 0.0
    %3507 = vmatpush1.xpose.msra.mxu0 0.0
    %3508 = vmatprep.subr.mxu0 0.0
    %3509 = vmatpush1.xpose.msra.mxu0 0.0
    %3510 = vmatprep.subr.mxu0 0.0
    %3511 = vmatpush1.xpose.msra.mxu0 0.0
    %3512 = vmatprep.subr.mxu0 0.0
    %3513 = vmatpush1.xpose.msra.mxu0 0.0
    %3514 = vmatprep.subr.mxu0 0.0
    %3515 = vmatpush1.xpose.msra.mxu0 0.0
    %3516 = vmatprep.subr.mxu0 0.0
    %3517 = vmatpush1.xpose.msra.mxu0 0.0
    %3518 = vmatprep.subr.mxu0 0.0
    %3519 = vmatpush1.xpose.msra.mxu0 0.0
    %3520 = vmatprep.subr.mxu0 0.0
    %3521 = vmatpush1.xpose.msra.mxu0 0.0
    %3522 = vmatprep.subr.mxu0 0.0
    %3523 = vmatpush1.xpose.msra.mxu0 0.0
    %3524 = vmatprep.subr.mxu0 0.0
    %3525 = vmatpush1.xpose.msra.mxu0 0.0
    %3526 = vmatprep.subr.mxu0 0.0
    %3527 = vmatpush1.xpose.msra.mxu0 0.0
    %3528 = vmatprep.subr.mxu0 0.0
    %3529 = vmatpush1.xpose.msra.mxu0 0.0
    %3530 = vmatprep.subr.mxu0 0.0
    %3531 = vmatpush1.xpose.msra.mxu0 0.0
    %3532 = vmatprep.mubr.f32.mxu0 0.0
    %3533 = vmatmul.mubr.f32.gmra.mrb[0].mxu0 %v3456
    %v3534 = vpop.f32.mrb[0].mxu0
    %v3535 = vadd.f32 %v157, %v3534
    %v3536 = vpop.f32.mrb[0].mxu0
    %3537 = vmatprep.mubr.f32.mxu0 0.0
    %3538 = vmatmul.mubr.f32.gmra.mrb[0].mxu0 %v3458
    %v3539 = vpop.f32.mrb[0].mxu0
    %v3540 = vadd.f32 %v158, %v3539
    %v3541 = vpop.f32.mrb[0].mxu0
    %3542 = vmatprep.mubr.f32.mxu0 0.0
    %3543 = vmatmul.mubr.f32.gmra.mrb[0].mxu0 %v3460
    %v3544 = vpop.f32.mrb[0].mxu0
    %v3545 = vadd.f32 %v159, %v3544
    %v3546 = vpop.f32.mrb[0].mxu0
    %3547 = vdwg.mxu0
    %v3548 = vsel %vm3073, %v3535, -inf
    %3549 = vmax.xlane.f32.xlu0 %v3548
    %v3550 = vpop.xlane.xlu0 %3549
    %v3551 = vsel %vm3073, %v3540, -inf
    %3552 = vmax.xlane.f32.xlu0 %v3551
    %v3553 = vpop.xlane.xlu0 %3552
    %v3554 = vsel %vm3080, %v3545, -inf
    %3555 = vmax.xlane.f32.xlu0 %v3554
    %v3556 = vpop.xlane.xlu0 %3555
    %v3557 = vsub.f32 %v3535, %v3550
    %v3558 = vsub.f32 %v3540, %v3553
    %v3559 = vsub.f32 %v3545, %v3556
    %v3560 = vmul.f32 %v3557, 1.442695
    %v3561 = vpow.pop %v3560
    %v3562 = vmul.f32 %v3558, 1.442695
    %v3563 = vpow.pop %v3562
    %v3564 = vmul.f32 %v3559, 1.442695
    %v3565 = vpow.pop %v3564
    %v3566 = vsel %vm3073, %v3561, 0.0
    %3567 = vadd.xlane.f32.xlu0 %v3566
    %v3568 = vpop.xlane.xlu0 %3567
    %v3569 = vsel %vm3073, %v3563, 0.0
    %3570 = vadd.xlane.f32.xlu0 %v3569
    %v3571 = vpop.xlane.xlu0 %3570
    %v3572 = vsel %vm3080, %v3565, 0.0
    %3573 = vadd.xlane.f32.xlu0 %v3572
    %v3574 = vpop.xlane.xlu0 %3573
    %v3575 = vrcp.pop %v3568
    %v3576 = vrcp.pop %v3571
    %v3577 = vrcp.pop %v3574
    %v3578 = vmul.f32 %v3561, %v3575
    %v3579 = vmul.f32 %v3563, %v3576
    %v3580 = vmul.f32 %v3565, %v3577
    %3581 = vrot.lane.b32.xlu0 %v2958, 48
    %v3582 = vpop.permute.xlu0 %3581
    %3583 = vrot.lane.b32.xlu0 %v2963, 48
    %v3584 = vpop.permute.xlu0 %3583
    %3585 = vrot.lane.b32.xlu0 %v2968, 48
    %v3586 = vpop.permute.xlu0 %3585
    %v3590 = vsel %vm3073, %v3578, 0
    %v3593 = vsel %vm3073, %v3579, 0
    %v3596 = vsel %vm3073, %v3580, 0
    %v3598 = vsel %vm3125, %v3586, 0
    %3600 = vmatprep.subr.mxu0 0.0
    %3601 = vmatpush1.msra.mxu0 %v3582
    %3602 = vmatprep.subr.mxu0 0.0
    %3603 = vmatpush1.msra.mxu0 %v3584
    %3604 = vmatprep.subr.mxu0 0.0
    %3605 = vmatpush1.msra.mxu0 %v3598
    %3606 = vmatprep.subr.mxu0 0.0
    %3607 = vmatpush1.msra.mxu0 0.0
    %3608 = vmatprep.subr.mxu0 0.0
    %3609 = vmatpush1.msra.mxu0 0.0
    %3610 = vmatprep.subr.mxu0 0.0
    %3611 = vmatpush1.msra.mxu0 0.0
    %3612 = vmatprep.subr.mxu0 0.0
    %3613 = vmatpush1.msra.mxu0 0.0
    %3614 = vmatprep.subr.mxu0 0.0
    %3615 = vmatpush1.msra.mxu0 0.0
    %3616 = vmatprep.subr.mxu0 0.0
    %3617 = vmatpush1.msra.mxu0 0.0
    %3618 = vmatprep.subr.mxu0 0.0
    %3619 = vmatpush1.msra.mxu0 0.0
    %3620 = vmatprep.subr.mxu0 0.0
    %3621 = vmatpush1.msra.mxu0 0.0
    %3622 = vmatprep.subr.mxu0 0.0
    %3623 = vmatpush1.msra.mxu0 0.0
    %3624 = vmatprep.subr.mxu0 0.0
    %3625 = vmatpush1.msra.mxu0 0.0
    %3626 = vmatprep.subr.mxu0 0.0
    %3627 = vmatpush1.msra.mxu0 0.0
    %3628 = vmatprep.subr.mxu0 0.0
    %3629 = vmatpush1.msra.mxu0 0.0
    %3630 = vmatprep.subr.mxu0 0.0
    %3631 = vmatpush1.msra.mxu0 0.0
    %3632 = vmatprep.subr.mxu0 0.0
    %3633 = vmatpush1.msra.mxu0 0.0
    %3634 = vmatprep.subr.mxu0 0.0
    %3635 = vmatpush1.msra.mxu0 0.0
    %3636 = vmatprep.subr.mxu0 0.0
    %3637 = vmatpush1.msra.mxu0 0.0
    %3638 = vmatprep.subr.mxu0 0.0
    %3639 = vmatpush1.msra.mxu0 0.0
    %3640 = vmatprep.subr.mxu0 0.0
    %3641 = vmatpush1.msra.mxu0 0.0
    %3642 = vmatprep.subr.mxu0 0.0
    %3643 = vmatpush1.msra.mxu0 0.0
    %3644 = vmatprep.subr.mxu0 0.0
    %3645 = vmatpush1.msra.mxu0 0.0
    %3646 = vmatprep.subr.mxu0 0.0
    %3647 = vmatpush1.msra.mxu0 0.0
    %3648 = vmatprep.subr.mxu0 0.0
    %3649 = vmatpush1.msra.mxu0 0.0
    %3650 = vmatprep.subr.mxu0 0.0
    %3651 = vmatpush1.msra.mxu0 0.0
    %3652 = vmatprep.subr.mxu0 0.0
    %3653 = vmatpush1.msra.mxu0 0.0
    %3654 = vmatprep.subr.mxu0 0.0
    %3655 = vmatpush1.msra.mxu0 0.0
    %3656 = vmatprep.subr.mxu0 0.0
    %3657 = vmatpush1.msra.mxu0 0.0
    %3658 = vmatprep.subr.mxu0 0.0
    %3659 = vmatpush1.msra.mxu0 0.0
    %3660 = vmatprep.subr.mxu0 0.0
    %3661 = vmatpush1.msra.mxu0 0.0
    %3662 = vmatprep.subr.mxu0 0.0
    %3663 = vmatpush1.msra.mxu0 0.0
    %3664 = vmatprep.mubr.f32.mxu0 0.0
    %3665 = vmatmul.mubr.f32.gmra.mrb[0].mxu0 %v3590
    %v3666 = vpop.f32.mrb[0].mxu0
    %v3667 = vadd.f32 0.0, %v3666
    %v3668 = vpop.f32.mrb[0].mxu0
    %3669 = vmatprep.mubr.f32.mxu0 0.0
    %3670 = vmatmul.mubr.f32.gmra.mrb[0].mxu0 %v3593
    %v3671 = vpop.f32.mrb[0].mxu0
    %v3672 = vadd.f32 0.0, %v3671
    %v3673 = vpop.f32.mrb[0].mxu0
    %3674 = vmatprep.mubr.f32.mxu0 0.0
    %3675 = vmatmul.mubr.f32.gmra.mrb[0].mxu0 %v3596
    %v3676 = vpop.f32.mrb[0].mxu0
    %v3677 = vadd.f32 0.0, %v3676
    %v3678 = vpop.f32.mrb[0].mxu0
    %3679 = vdwg.mxu0
    %3680 = vrot.lane.b32.xlu0 %v2958, 104
    %v3681 = vpop.permute.xlu0 %3680
    %3682 = vrot.lane.b32.xlu0 %v2963, 104
    %v3683 = vpop.permute.xlu0 %3682
    %3684 = vrot.lane.b32.xlu0 %v2968, 104
    %v3685 = vpop.permute.xlu0 %3684
    %3686 = vrot.lane.b32.xlu0 %v2958, 72
    %v3687 = vpop.permute.xlu0 %3686
    %3688 = vrot.lane.b32.xlu0 %v2963, 72
    %v3689 = vpop.permute.xlu0 %3688
    %3690 = vrot.lane.b32.xlu0 %v2968, 72
    %v3691 = vpop.permute.xlu0 %3690
    %v3692 = vsel %vm2980, %v3681, 0
    %v3694 = vsel %vm2980, %v3683, 0
    %v3696 = vsel %vm2980, %v3685, 0
    %v3698 = vsel %vm2980, %v3687, 0
    %v3700 = vsel %vm2980, %v3689, 0
    %v3702 = vsel %vm2980, %v3691, 0
    %3704 = vmatprep.subr.mxu0 0.0
    %3705 = vmatpush1.xpose.msra.mxu0 %v3698
    %3706 = vmatprep.subr.mxu0 0.0
    %3707 = vmatpush1.xpose.msra.mxu0 %v3700
    %3708 = vmatprep.subr.mxu0 0.0
    %3709 = vmatpush1.xpose.msra.mxu0 %v3702
    %3710 = vmatprep.subr.mxu0 0.0
    %3711 = vmatpush1.xpose.msra.mxu0 0.0
    %3712 = vmatprep.subr.mxu0 0.0
    %3713 = vmatpush1.xpose.msra.mxu0 0.0
    %3714 = vmatprep.subr.mxu0 0.0
    %3715 = vmatpush1.xpose.msra.mxu0 0.0
    %3716 = vmatprep.subr.mxu0 0.0
    %3717 = vmatpush1.xpose.msra.mxu0 0.0
    %3718 = vmatprep.subr.mxu0 0.0
    %3719 = vmatpush1.xpose.msra.mxu0 0.0
    %3720 = vmatprep.subr.mxu0 0.0
    %3721 = vmatpush1.xpose.msra.mxu0 0.0
    %3722 = vmatprep.subr.mxu0 0.0
    %3723 = vmatpush1.xpose.msra.mxu0 0.0
    %3724 = vmatprep.subr.mxu0 0.0
    %3725 = vmatpush1.xpose.msra.mxu0 0.0
    %3726 = vmatprep.subr.mxu0 0.0
    %3727 = vmatpush1.xpose.msra.mxu0 0.0
    %3728 = vmatprep.subr.mxu0 0.0
    %3729 = vmatpush1.xpose.msra.mxu0 0.0
    %3730 = vmatprep.subr.mxu0 0.0
    %3731 = vmatpush1.xpose.msra.mxu0 0.0
    %3732 = vmatprep.subr.mxu0 0.0
    %3733 = vmatpush1.xpose.msra.mxu0 0.0
    %3734 = vmatprep.subr.mxu0 0.0
    %3735 = vmatpush1.xpose.msra.mxu0 0.0
    %3736 = vmatprep.subr.mxu0 0.0
    %3737 = vmatpush1.xpose.msra.mxu0 0.0
    %3738 = vmatprep.subr.mxu0 0.0
    %3739 = vmatpush1.xpose.msra.mxu0 0.0
    %3740 = vmatprep.subr.mxu0 0.0
    %3741 = vmatpush1.xpose.msra.mxu0 0.0
    %3742 = vmatprep.subr.mxu0 0.0
    %3743 = vmatpush1.xpose.msra.mxu0 0.0
    %3744 = vmatprep.subr.mxu0 0.0
    %3745 = vmatpush1.xpose.msra.mxu0 0.0
    %3746 = vmatprep.subr.mxu0 0.0
    %3747 = vmatpush1.xpose.msra.mxu0 0.0
    %3748 = vmatprep.subr.mxu0 0.0
    %3749 = vmatpush1.xpose.msra.mxu0 0.0
    %3750 = vmatprep.subr.mxu0 0.0
    %3751 = vmatpush1.xpose.msra.mxu0 0.0
    %3752 = vmatprep.subr.mxu0 0.0
    %3753 = vmatpush1.xpose.msra.mxu0 0.0
    %3754 = vmatprep.subr.mxu0 0.0
    %3755 = vmatpush1.xpose.msra.mxu0 0.0
    %3756 = vmatprep.subr.mxu0 0.0
    %3757 = vmatpush1.xpose.msra.mxu0 0.0
    %3758 = vmatprep.subr.mxu0 0.0
    %3759 = vmatpush1.xpose.msra.mxu0 0.0
    %3760 = vmatprep.subr.mxu0 0.0
    %3761 = vmatpush1.xpose.msra.mxu0 0.0
    %3762 = vmatprep.subr.mxu0 0.0
    %3763 = vmatpush1.xpose.msra.mxu0 0.0
    %3764 = vmatprep.subr.mxu0 0.0
    %3765 = vmatpush1.xpose.msra.mxu0 0.0
    %3766 = vmatprep.subr.mxu0 0.0
    %3767 = vmatpush1.xpose.msra.mxu0 0.0
    %3768 = vmatprep.mubr.f32.mxu0 0.0
    %3769 = vmatmul.mubr.f32.gmra.mrb[0].mxu0 %v3692
    %v3770 = vpop.f32.mrb[0].mxu0
    %v3771 = vadd.f32 %v157, %v3770
    %v3772 = vpop.f32.mrb[0].mxu0
    %3773 = vmatprep.mubr.f32.mxu0 0.0
    %3774 = vmatmul.mubr.f32.gmra.mrb[0].mxu0 %v3694
    %v3775 = vpop.f32.mrb[0].mxu0
    %v3776 = vadd.f32 %v158, %v3775
    %v3777 = vpop.f32.mrb[0].mxu0
    %3778 = vmatprep.mubr.f32.mxu0 0.0
    %3779 = vmatmul.mubr.f32.gmra.mrb[0].mxu0 %v3696
    %v3780 = vpop.f32.mrb[0].mxu0
    %v3781 = vadd.f32 %v159, %v3780
    %v3782 = vpop.f32.mrb[0].mxu0
    %3783 = vdwg.mxu0
    %v3784 = vsel %vm3073, %v3771, -inf
    %3785 = vmax.xlane.f32.xlu0 %v3784
    %v3786 = vpop.xlane.xlu0 %3785
    %v3787 = vsel %vm3073, %v3776, -inf
    %3788 = vmax.xlane.f32.xlu0 %v3787
    %v3789 = vpop.xlane.xlu0 %3788
    %v3790 = vsel %vm3080, %v3781, -inf
    %3791 = vmax.xlane.f32.xlu0 %v3790
    %v3792 = vpop.xlane.xlu0 %3791
    %v3793 = vsub.f32 %v3771, %v3786
    %v3794 = vsub.f32 %v3776, %v3789
    %v3795 = vsub.f32 %v3781, %v3792
    %v3796 = vmul.f32 %v3793, 1.442695
    %v3797 = vpow.pop %v3796
    %v3798 = vmul.f32 %v3794, 1.442695
    %v3799 = vpow.pop %v3798
    %v3800 = vmul.f32 %v3795, 1.442695
    %v3801 = vpow.pop %v3800
    %v3802 = vsel %vm3073, %v3797, 0.0
    %3803 = vadd.xlane.f32.xlu0 %v3802
    %v3804 = vpop.xlane.xlu0 %3803
    %v3805 = vsel %vm3073, %v3799, 0.0
    %3806 = vadd.xlane.f32.xlu0 %v3805
    %v3807 = vpop.xlane.xlu0 %3806
    %v3808 = vsel %vm3080, %v3801, 0.0
    %3809 = vadd.xlane.f32.xlu0 %v3808
    %v3810 = vpop.xlane.xlu0 %3809
    %v3811 = vrcp.pop %v3804
    %v3812 = vrcp.pop %v3807
    %v3813 = vrcp.pop %v3810
    %v3814 = vmul.f32 %v3797, %v3811
    %v3815 = vmul.f32 %v3799, %v3812
    %v3816 = vmul.f32 %v3801, %v3813
    %3817 = vrot.lane.b32.xlu0 %v2958, 40
    %v3818 = vpop.permute.xlu0 %3817
    %3819 = vrot.lane.b32.xlu0 %v2963, 40
    %v3820 = vpop.permute.xlu0 %3819
    %3821 = vrot.lane.b32.xlu0 %v2968, 40
    %v3822 = vpop.permute.xlu0 %3821
    %v3826 = vsel %vm3073, %v3814, 0
    %v3829 = vsel %vm3073, %v3815, 0
    %v3832 = vsel %vm3073, %v3816, 0
    %v3834 = vsel %vm3125, %v3822, 0
    %3836 = vmatprep.subr.mxu0 0.0
    %3837 = vmatpush1.msra.mxu0 %v3818
    %3838 = vmatprep.subr.mxu0 0.0
    %3839 = vmatpush1.msra.mxu0 %v3820
    %3840 = vmatprep.subr.mxu0 0.0
    %3841 = vmatpush1.msra.mxu0 %v3834
    %3842 = vmatprep.subr.mxu0 0.0
    %3843 = vmatpush1.msra.mxu0 0.0
    %3844 = vmatprep.subr.mxu0 0.0
    %3845 = vmatpush1.msra.mxu0 0.0
    %3846 = vmatprep.subr.mxu0 0.0
    %3847 = vmatpush1.msra.mxu0 0.0
    %3848 = vmatprep.subr.mxu0 0.0
    %3849 = vmatpush1.msra.mxu0 0.0
    %3850 = vmatprep.subr.mxu0 0.0
    %3851 = vmatpush1.msra.mxu0 0.0
    %3852 = vmatprep.subr.mxu0 0.0
    %3853 = vmatpush1.msra.mxu0 0.0
    %3854 = vmatprep.subr.mxu0 0.0
    %3855 = vmatpush1.msra.mxu0 0.0
    %3856 = vmatprep.subr.mxu0 0.0
    %3857 = vmatpush1.msra.mxu0 0.0
    %3858 = vmatprep.subr.mxu0 0.0
    %3859 = vmatpush1.msra.mxu0 0.0
    %3860 = vmatprep.subr.mxu0 0.0
    %3861 = vmatpush1.msra.mxu0 0.0
    %3862 = vmatprep.subr.mxu0 0.0
    %3863 = vmatpush1.msra.mxu0 0.0
    %3864 = vmatprep.subr.mxu0 0.0
    %3865 = vmatpush1.msra.mxu0 0.0
    %3866 = vmatprep.subr.mxu0 0.0
    %3867 = vmatpush1.msra.mxu0 0.0
    %3868 = vmatprep.subr.mxu0 0.0
    %3869 = vmatpush1.msra.mxu0 0.0
    %3870 = vmatprep.subr.mxu0 0.0
    %3871 = vmatpush1.msra.mxu0 0.0
    %3872 = vmatprep.subr.mxu0 0.0
    %3873 = vmatpush1.msra.mxu0 0.0
    %3874 = vmatprep.subr.mxu0 0.0
    %3875 = vmatpush1.msra.mxu0 0.0
    %3876 = vmatprep.subr.mxu0 0.0
    %3877 = vmatpush1.msra.mxu0 0.0
    %3878 = vmatprep.subr.mxu0 0.0
    %3879 = vmatpush1.msra.mxu0 0.0
    %3880 = vmatprep.subr.mxu0 0.0
    %3881 = vmatpush1.msra.mxu0 0.0
    %3882 = vmatprep.subr.mxu0 0.0
    %3883 = vmatpush1.msra.mxu0 0.0
    %3884 = vmatprep.subr.mxu0 0.0
    %3885 = vmatpush1.msra.mxu0 0.0
    %3886 = vmatprep.subr.mxu0 0.0
    %3887 = vmatpush1.msra.mxu0 0.0
    %3888 = vmatprep.subr.mxu0 0.0
    %3889 = vmatpush1.msra.mxu0 0.0
    %3890 = vmatprep.subr.mxu0 0.0
    %3891 = vmatpush1.msra.mxu0 0.0
    %3892 = vmatprep.subr.mxu0 0.0
    %3893 = vmatpush1.msra.mxu0 0.0
    %3894 = vmatprep.subr.mxu0 0.0
    %3895 = vmatpush1.msra.mxu0 0.0
    %3896 = vmatprep.subr.mxu0 0.0
    %3897 = vmatpush1.msra.mxu0 0.0
    %3898 = vmatprep.subr.mxu0 0.0
    %3899 = vmatpush1.msra.mxu0 0.0
    %3900 = vmatprep.mubr.f32.mxu0 0.0
    %3901 = vmatmul.mubr.f32.gmra.mrb[0].mxu0 %v3826
    %v3902 = vpop.f32.mrb[0].mxu0
    %v3903 = vadd.f32 0.0, %v3902
    %v3904 = vpop.f32.mrb[0].mxu0
    %3905 = vmatprep.mubr.f32.mxu0 0.0
    %3906 = vmatmul.mubr.f32.gmra.mrb[0].mxu0 %v3829
    %v3907 = vpop.f32.mrb[0].mxu0
    %v3908 = vadd.f32 0.0, %v3907
    %v3909 = vpop.f32.mrb[0].mxu0
    %3910 = vmatprep.mubr.f32.mxu0 0.0
    %3911 = vmatmul.mubr.f32.gmra.mrb[0].mxu0 %v3832
    %v3912 = vpop.f32.mrb[0].mxu0
    %v3913 = vadd.f32 0.0, %v3912
    %v3914 = vpop.f32.mrb[0].mxu0
    %3915 = vdwg.mxu0
    %3919 = vrot.lane.b32.xlu0 %v3431, 8
    %v3920 = vpop.permute.xlu0 %3919
    %3921 = vrot.lane.b32.xlu0 %v3436, 8
    %v3922 = vpop.permute.xlu0 %3921
    %3923 = vrot.lane.b32.xlu0 %v3441, 8
    %v3924 = vpop.permute.xlu0 %3923
    %3931 = vrot.lane.b32.xlu0 %v3667, 16
    %v3932 = vpop.permute.xlu0 %3931
    %3933 = vrot.lane.b32.xlu0 %v3672, 16
    %v3934 = vpop.permute.xlu0 %3933
    %3935 = vrot.lane.b32.xlu0 %v3677, 16
    %v3936 = vpop.permute.xlu0 %3935
    %3943 = vrot.lane.b32.xlu0 %v3903, 24
    %v3944 = vpop.permute.xlu0 %3943
    %3945 = vrot.lane.b32.xlu0 %v3908, 24
    %v3946 = vpop.permute.xlu0 %3945
    %3947 = vrot.lane.b32.xlu0 %v3913, 24
    %v3948 = vpop.permute.xlu0 %3947
    %v3952 = vsel %vm2980, %v3195, %v3920
    %v3953 = vsel %vm2980, %v3200, %v3922
    %v3954 = vsel %vm2980, %v3205, %v3924
    %v3955 = vsel %vm570, %v3952, %v3932
    %v3956 = vsel %vm570, %v3953, %v3934
    %v3957 = vsel %vm570, %v3954, %v3936
    %vm3958 = vcmask 195584
    %v3959 = vsel %vm3958, %v3955, %v3944
    %v3960 = vsel %vm3958, %v3956, %v3946
    %v3961 = vsel %vm3958, %v3957, %v3948
    %v3962 = vld [vmem:[%s29] sm:$0xff]
    %v3963 = vld [vmem:[%s29 + $0x8] sm:$0xff]
    %v3964 = vld [vmem:[%s29 + $0x10] sm:$0xff]
    %v3965 = vld [vmem:[%s29 + $0x18] sm:$0xff]
    %v3967 = vsel %vm2815, %v3959, 0
    %v3970 = vsel %vm2815, %v3960, 0
    %v3973 = vsel %vm2815, %v3961, 0
    %3975 = vmatprep.subr.mxu0 0.0
    %3976 = vmatpush1.msra.mxu0 %v3962
    %3977 = vmatprep.subr.mxu0 0.0
    %3978 = vmatpush1.msra.mxu0 %v3963
    %3979 = vmatprep.subr.mxu0 0.0
    %3980 = vmatpush1.msra.mxu0 %v3964
    %3981 = vmatprep.subr.mxu0 0.0
    %3982 = vmatpush1.msra.mxu0 %v3965
    %3983 = vmatprep.subr.mxu0 0.0
    %3984 = vmatpush1.msra.mxu0 0.0
    %3985 = vmatprep.subr.mxu0 0.0
    %3986 = vmatpush1.msra.mxu0 0.0
    %3987 = vmatprep.subr.mxu0 0.0
    %3988 = vmatpush1.msra.mxu0 0.0
    %3989 = vmatprep.subr.mxu0 0.0
    %3990 = vmatpush1.msra.mxu0 0.0
    %3991 = vmatprep.subr.mxu0 0.0
    %3992 = vmatpush1.msra.mxu0 0.0
    %3993 = vmatprep.subr.mxu0 0.0
    %3994 = vmatpush1.msra.mxu0 0.0
    %3995 = vmatprep.subr.mxu0 0.0
    %3996 = vmatpush1.msra.mxu0 0.0
    %3997 = vmatprep.subr.mxu0 0.0
    %3998 = vmatpush1.msra.mxu0 0.0
    %3999 = vmatprep.subr.mxu0 0.0
    %4000 = vmatpush1.msra.mxu0 0.0
    %4001 = vmatprep.subr.mxu0 0.0
    %4002 = vmatpush1.msra.mxu0 0.0
    %4003 = vmatprep.subr.mxu0 0.0
    %4004 = vmatpush1.msra.mxu0 0.0
    %4005 = vmatprep.subr.mxu0 0.0
    %4006 = vmatpush1.msra.mxu0 0.0
    %4007 = vmatprep.subr.mxu0 0.0
    %4008 = vmatpush1.msra.mxu0 0.0
    %4009 = vmatprep.subr.mxu0 0.0
    %4010 = vmatpush1.msra.mxu0 0.0
    %4011 = vmatprep.subr.mxu0 0.0
    %4012 = vmatpush1.msra.mxu0 0.0
    %4013 = vmatprep.subr.mxu0 0.0
    %4014 = vmatpush1.msra.mxu0 0.0
    %4015 = vmatprep.subr.mxu0 0.0
    %4016 = vmatpush1.msra.mxu0 0.0
    %4017 = vmatprep.subr.mxu0 0.0
    %4018 = vmatpush1.msra.mxu0 0.0
    %4019 = vmatprep.subr.mxu0 0.0
    %4020 = vmatpush1.msra.mxu0 0.0
    %4021 = vmatprep.subr.mxu0 0.0
    %4022 = vmatpush1.msra.mxu0 0.0
    %4023 = vmatprep.subr.mxu0 0.0
    %4024 = vmatpush1.msra.mxu0 0.0
    %4025 = vmatprep.subr.mxu0 0.0
    %4026 = vmatpush1.msra.mxu0 0.0
    %4027 = vmatprep.subr.mxu0 0.0
    %4028 = vmatpush1.msra.mxu0 0.0
    %4029 = vmatprep.subr.mxu0 0.0
    %4030 = vmatpush1.msra.mxu0 0.0
    %4031 = vmatprep.subr.mxu0 0.0
    %4032 = vmatpush1.msra.mxu0 0.0
    %4033 = vmatprep.subr.mxu0 0.0
    %4034 = vmatpush1.msra.mxu0 0.0
    %4035 = vmatprep.subr.mxu0 0.0
    %4036 = vmatpush1.msra.mxu0 0.0
    %4037 = vmatprep.subr.mxu0 0.0
    %4038 = vmatpush1.msra.mxu0 0.0
    %4039 = vmatprep.mubr.f32.mxu0 0.0
    %4040 = vmatmul.mubr.f32.gmra.mrb[0].mxu0 %v3967
    %v4041 = vpop.f32.mrb[0].mxu0
    %v4042 = vadd.f32 0.0, %v4041
    %v4043 = vpop.f32.mrb[0].mxu0
    %4044 = vmatprep.mubr.f32.mxu0 0.0
    %4045 = vmatmul.mubr.f32.gmra.mrb[0].mxu0 %v3970
    %v4046 = vpop.f32.mrb[0].mxu0
    %v4047 = vadd.f32 0.0, %v4046
    %v4048 = vpop.f32.mrb[0].mxu0
    %4049 = vmatprep.mubr.f32.mxu0 0.0
    %4050 = vmatmul.mubr.f32.gmra.mrb[0].mxu0 %v3973
    %v4051 = vpop.f32.mrb[0].mxu0
    %v4052 = vadd.f32 0.0, %v4051
    %v4053 = vpop.f32.mrb[0].mxu0
    %4054 = vdwg.mxu0
    %v4055 = vadd.f32 %v2801, %v4042
    %v4056 = vadd.f32 %v2806, %v4047
    %v4057 = vadd.f32 %v2811, %v4052
    %v4058 = vld [vmem:[%s27] sm:$0x1]
    %v4060 = vlaneseq
    %v4061 = vshrl.u32 %v4060, 7
    %v4062 = vsub.s32 0, %v4061
    %v4063 = vrot.slane %v4058, %v4062
    %v4065 = vadd.f32 %v4055, %v4063
    %v4066 = vadd.f32 %v4056, %v4063
    %v4067 = vadd.f32 %v4057, %v4063
    %v4068 = vsel %vm2815, %v4065, 0.0
    %4069 = vadd.xlane.f32.xlu0 %v4068
    %v4070 = vpop.xlane.xlu0 %4069
    %v4071 = vsel %vm2815, %v4066, 0.0
    %4072 = vadd.xlane.f32.xlu0 %v4071
    %v4073 = vpop.xlane.xlu0 %4072
    %v4074 = vsel %vm2822, %v4067, 0.0
    %4075 = vadd.xlane.f32.xlu0 %v4074
    %v4076 = vpop.xlane.xlu0 %4075
    %v4077 = vmul.f32 %v4070, %v2826
    %v4078 = vmul.f32 %v4073, %v2826
    %v4079 = vmul.f32 %v4076, %v2826
    %v4080 = vsub.f32 %v4065, %v4077
    %v4081 = vsub.f32 %v4066, %v4078
    %v4082 = vsub.f32 %v4067, %v4079
    %v4083 = vmul.f32 %v4080, %v4080
    %v4084 = vmul.f32 %v4081, %v4081
    %v4085 = vmul.f32 %v4082, %v4082
    %v4086 = vsel %vm2815, %v4083, 0.0
    %4087 = vadd.xlane.f32.xlu0 %v4086
    %v4088 = vpop.xlane.xlu0 %4087
    %v4089 = vsel %vm2815, %v4084, 0.0
    %4090 = vadd.xlane.f32.xlu0 %v4089
    %v4091 = vpop.xlane.xlu0 %4090
    %v4092 = vsel %vm2822, %v4085, 0.0
    %4093 = vadd.xlane.f32.xlu0 %v4092
    %v4094 = vpop.xlane.xlu0 %4093
    %v4095 = vmul.f32 %v4088, %v2826
    %v4096 = vmul.f32 %v4091, %v2826
    %v4097 = vmul.f32 %v4094, %v2826
    %v4098 = vadd.f32 %v4095, 1e-06
    %v4099 = vadd.f32 %v4096, 1e-06
    %v4100 = vadd.f32 %v4097, 1e-06
    %v4101 = vrsqrt.pop %v4098
    %v4102 = vrsqrt.pop %v4099
    %v4103 = vrsqrt.pop %v4100
    %v4104 = vmul.f32 %v4080, %v4101
    %v4105 = vmul.f32 %v4081, %v4102
    %v4106 = vmul.f32 %v4082, %v4103
    %v4107 = vlaneseq
    %v4108 = vshrl.u32 %v4107, 7
    %v4109 = vsub.s32 2, %v4108
    %v4110 = vrot.slane %v2814, %v4109
    %v4111 = vmul.f32 %v4104, %v4110
    %v4112 = vmul.f32 %v4105, %v4110
    %v4113 = vmul.f32 %v4106, %v4110
    %v4114 = vlaneseq
    %v4115 = vshrl.u32 %v4114, 7
    %v4116 = vsub.s32 3, %v4115
    %v4117 = vrot.slane %v2814, %v4116
    %v4118 = vadd.f32 %v4111, %v4117
    %v4119 = vadd.f32 %v4112, %v4117
    %v4120 = vadd.f32 %v4113, %v4117
    %v4121 = vld [vmem:[%s19] sm:$0xff]
    %v4122 = vld [vmem:[%s19 + $0x8] sm:$0xff]
    %v4123 = vld [vmem:[%s19 + $0x10] sm:$0xff]
    %v4124 = vld [vmem:[%s19 + $0x18] sm:$0xff]
    %v4125 = vld [vmem:[%s17] sm:$0x1]
    %v4127 = vlaneseq
    %v4128 = vshrl.u32 %v4127, 7
    %v4129 = vsub.s32 0, %v4128
    %v4130 = vrot.slane %v4125, %v4129
    %v4133 = vsel %vm2815, %v4118, 0
    %v4136 = vsel %vm2815, %v4119, 0
    %v4139 = vsel %vm2815, %v4120, 0
    %4141 = vmatprep.subr.mxu0 0.0
    %4142 = vmatpush1.msra.mxu0 %v4121
    %4143 = vmatprep.subr.mxu0 0.0
    %4144 = vmatpush1.msra.mxu0 %v4122
    %4145 = vmatprep.subr.mxu0 0.0
    %4146 = vmatpush1.msra.mxu0 %v4123
    %4147 = vmatprep.subr.mxu0 0.0
    %4148 = vmatpush1.msra.mxu0 %v4124
    %4149 = vmatprep.subr.mxu0 0.0
    %4150 = vmatpush1.msra.mxu0 0.0
    %4151 = vmatprep.subr.mxu0 0.0
    %4152 = vmatpush1.msra.mxu0 0.0
    %4153 = vmatprep.subr.mxu0 0.0
    %4154 = vmatpush1.msra.mxu0 0.0
    %4155 = vmatprep.subr.mxu0 0.0
    %4156 = vmatpush1.msra.mxu0 0.0
    %4157 = vmatprep.subr.mxu0 0.0
    %4158 = vmatpush1.msra.mxu0 0.0
    %4159 = vmatprep.subr.mxu0 0.0
    %4160 = vmatpush1.msra.mxu0 0.0
    %4161 = vmatprep.subr.mxu0 0.0
    %4162 = vmatpush1.msra.mxu0 0.0
    %4163 = vmatprep.subr.mxu0 0.0
    %4164 = vmatpush1.msra.mxu0 0.0
    %4165 = vmatprep.subr.mxu0 0.0
    %4166 = vmatpush1.msra.mxu0 0.0
    %4167 = vmatprep.subr.mxu0 0.0
    %4168 = vmatpush1.msra.mxu0 0.0
    %4169 = vmatprep.subr.mxu0 0.0
    %4170 = vmatpush1.msra.mxu0 0.0
    %4171 = vmatprep.subr.mxu0 0.0
    %4172 = vmatpush1.msra.mxu0 0.0
    %4173 = vmatprep.subr.mxu0 0.0
    %4174 = vmatpush1.msra.mxu0 0.0
    %4175 = vmatprep.subr.mxu0 0.0
    %4176 = vmatpush1.msra.mxu0 0.0
    %4177 = vmatprep.subr.mxu0 0.0
    %4178 = vmatpush1.msra.mxu0 0.0
    %4179 = vmatprep.subr.mxu0 0.0
    %4180 = vmatpush1.msra.mxu0 0.0
    %4181 = vmatprep.subr.mxu0 0.0
    %4182 = vmatpush1.msra.mxu0 0.0
    %4183 = vmatprep.subr.mxu0 0.0
    %4184 = vmatpush1.msra.mxu0 0.0
    %4185 = vmatprep.subr.mxu0 0.0
    %4186 = vmatpush1.msra.mxu0 0.0
    %4187 = vmatprep.subr.mxu0 0.0
    %4188 = vmatpush1.msra.mxu0 0.0
    %4189 = vmatprep.subr.mxu0 0.0
    %4190 = vmatpush1.msra.mxu0 0.0
    %4191 = vmatprep.subr.mxu0 0.0
    %4192 = vmatpush1.msra.mxu0 0.0
    %4193 = vmatprep.subr.mxu0 0.0
    %4194 = vmatpush1.msra.mxu0 0.0
    %4195 = vmatprep.subr.mxu0 0.0
    %4196 = vmatpush1.msra.mxu0 0.0
    %4197 = vmatprep.subr.mxu0 0.0
    %4198 = vmatpush1.msra.mxu0 0.0
    %4199 = vmatprep.subr.mxu0 0.0
    %4200 = vmatpush1.msra.mxu0 0.0
    %4201 = vmatprep.subr.mxu0 0.0
    %4202 = vmatpush1.msra.mxu0 0.0
    %4203 = vmatprep.subr.mxu0 0.0
    %4204 = vmatpush1.msra.mxu0 0.0
    %4205 = vmatprep.mubr.f32.mxu0 0.0
    %4206 = vmatmul.mubr.f32.gmra.mrb[0].mxu0 %v4133
    %v4207 = vpop.f32.mrb[0].mxu0
    %v4208 = vadd.f32 %v4130, %v4207
    %v4209 = vpop.f32.mrb[0].mxu0
    %4210 = vmatprep.mubr.f32.mxu0 0.0
    %4211 = vmatmul.mubr.f32.gmra.mrb[0].mxu0 %v4136
    %v4212 = vpop.f32.mrb[0].mxu0
    %v4213 = vadd.f32 %v4130, %v4212
    %v4214 = vpop.f32.mrb[0].mxu0
    %4215 = vmatprep.mubr.f32.mxu0 0.0
    %4216 = vmatmul.mubr.f32.gmra.mrb[0].mxu0 %v4139
    %v4217 = vpop.f32.mrb[0].mxu0
    %v4218 = vadd.f32 %v4130, %v4217
    %v4219 = vpop.f32.mrb[0].mxu0
    %4220 = vdwg.mxu0
    %v4221 = vmul.f32 %v4208, %v4208
    %v4222 = vmul.f32 %v4213, %v4213
    %v4223 = vmul.f32 %v4218, %v4218
    %v4224 = vmul.f32 %v4208, %v4221
    %v4225 = vmul.f32 %v4213, %v4222
    %v4226 = vmul.f32 %v4218, %v4223
    %v4227 = vmul.f32 %v4224, 0.044715
    %v4228 = vmul.f32 %v4225, 0.044715
    %v4229 = vmul.f32 %v4226, 0.044715
    %v4230 = vadd.f32 %v4208, %v4227
    %v4231 = vadd.f32 %v4213, %v4228
    %v4232 = vadd.f32 %v4218, %v4229
    %v4233 = vmul.f32 %v4230, 0.7978846
    %v4234 = vmul.f32 %v4231, 0.7978846
    %v4235 = vmul.f32 %v4232, 0.7978846
    %v4236 = vtanh.pop %v4233
    %v4237 = vtanh.pop %v4234
    %v4238 = vtanh.pop %v4235
    %v4239 = vadd.f32 %v4236, 1.0
    %v4240 = vadd.f32 %v4237, 1.0
    %v4241 = vadd.f32 %v4238, 1.0
    %v4242 = vmul.f32 %v4239, 0.5
    %v4243 = vmul.f32 %v4240, 0.5
    %v4244 = vmul.f32 %v4241, 0.5
    %v4245 = vmul.f32 %v4208, %v4242
    %v4246 = vmul.f32 %v4213, %v4243
    %v4247 = vmul.f32 %v4218, %v4244
    %v4248 = vld [vmem:[%s23] sm:$0xff]
    %v4249 = vld [vmem:[%s23 + $0x8] sm:$0xff]
    %v4250 = vld [vmem:[%s23 + $0x10] sm:$0xff]
    %v4251 = vld [vmem:[%s23 + $0x18] sm:$0xff]
    %v4252 = vld [vmem:[%s23 + $0x20] sm:$0xff]
    %v4253 = vld [vmem:[%s23 + $0x28] sm:$0xff]
    %v4254 = vld [vmem:[%s23 + $0x30] sm:$0xff]
    %v4255 = vld [vmem:[%s23 + $0x38] sm:$0xff]
    %vm4256 = vcmask 523264
    %v4258 = vsel %vm4256, %v4245, 0
    %v4261 = vsel %vm4256, %v4246, 0
    %v4264 = vsel %vm4256, %v4247, 0
    %4266 = vmatprep.subr.mxu0 0.0
    %4267 = vmatpush1.msra.mxu0 %v4248
    %4268 = vmatprep.subr.mxu0 0.0
    %4269 = vmatpush1.msra.mxu0 %v4249
    %4270 = vmatprep.subr.mxu0 0.0
    %4271 = vmatpush1.msra.mxu0 %v4250
    %4272 = vmatprep.subr.mxu0 0.0
    %4273 = vmatpush1.msra.mxu0 %v4251
    %4274 = vmatprep.subr.mxu0 0.0
    %4275 = vmatpush1.msra.mxu0 %v4252
    %4276 = vmatprep.subr.mxu0 0.0
    %4277 = vmatpush1.msra.mxu0 %v4253
    %4278 = vmatprep.subr.mxu0 0.0
    %4279 = vmatpush1.msra.mxu0 %v4254
    %4280 = vmatprep.subr.mxu0 0.0
    %4281 = vmatpush1.msra.mxu0 %v4255
    %4282 = vmatprep.subr.mxu0 0.0
    %4283 = vmatpush1.msra.mxu0 0.0
    %4284 = vmatprep.subr.mxu0 0.0
    %4285 = vmatpush1.msra.mxu0 0.0
    %4286 = vmatprep.subr.mxu0 0.0
    %4287 = vmatpush1.msra.mxu0 0.0
    %4288 = vmatprep.subr.mxu0 0.0
    %4289 = vmatpush1.msra.mxu0 0.0
    %4290 = vmatprep.subr.mxu0 0.0
    %4291 = vmatpush1.msra.mxu0 0.0
    %4292 = vmatprep.subr.mxu0 0.0
    %4293 = vmatpush1.msra.mxu0 0.0
    %4294 = vmatprep.subr.mxu0 0.0
    %4295 = vmatpush1.msra.mxu0 0.0
    %4296 = vmatprep.subr.mxu0 0.0
    %4297 = vmatpush1.msra.mxu0 0.0
    %4298 = vmatprep.subr.mxu0 0.0
    %4299 = vmatpush1.msra.mxu0 0.0
    %4300 = vmatprep.subr.mxu0 0.0
    %4301 = vmatpush1.msra.mxu0 0.0
    %4302 = vmatprep.subr.mxu0 0.0
    %4303 = vmatpush1.msra.mxu0 0.0
    %4304 = vmatprep.subr.mxu0 0.0
    %4305 = vmatpush1.msra.mxu0 0.0
    %4306 = vmatprep.subr.mxu0 0.0
    %4307 = vmatpush1.msra.mxu0 0.0
    %4308 = vmatprep.subr.mxu0 0.0
    %4309 = vmatpush1.msra.mxu0 0.0
    %4310 = vmatprep.subr.mxu0 0.0
    %4311 = vmatpush1.msra.mxu0 0.0
    %4312 = vmatprep.subr.mxu0 0.0
    %4313 = vmatpush1.msra.mxu0 0.0
    %4314 = vmatprep.subr.mxu0 0.0
    %4315 = vmatpush1.msra.mxu0 0.0
    %4316 = vmatprep.subr.mxu0 0.0
    %4317 = vmatpush1.msra.mxu0 0.0
    %4318 = vmatprep.subr.mxu0 0.0
    %4319 = vmatpush1.msra.mxu0 0.0
    %4320 = vmatprep.subr.mxu0 0.0
    %4321 = vmatpush1.msra.mxu0 0.0
    %4322 = vmatprep.subr.mxu0 0.0
    %4323 = vmatpush1.msra.mxu0 0.0
    %4324 = vmatprep.subr.mxu0 0.0
    %4325 = vmatpush1.msra.mxu0 0.0
    %4326 = vmatprep.subr.mxu0 0.0
    %4327 = vmatpush1.msra.mxu0 0.0
    %4328 = vmatprep.subr.mxu0 0.0
    %4329 = vmatpush1.msra.mxu0 0.0
    %4330 = vmatprep.mubr.f32.mxu0 0.0
    %4331 = vmatmul.mubr.f32.gmra.mrb[0].mxu0 %v4258
    %v4332 = vpop.f32.mrb[0].mxu0
    %v4333 = vadd.f32 0.0, %v4332
    %v4334 = vpop.f32.mrb[0].mxu0
    %4335 = vmatprep.mubr.f32.mxu0 0.0
    %4336 = vmatmul.mubr.f32.gmra.mrb[0].mxu0 %v4261
    %v4337 = vpop.f32.mrb[0].mxu0
    %v4338 = vadd.f32 0.0, %v4337
    %v4339 = vpop.f32.mrb[0].mxu0
    %4340 = vmatprep.mubr.f32.mxu0 0.0
    %4341 = vmatmul.mubr.f32.gmra.mrb[0].mxu0 %v4264
    %v4342 = vpop.f32.mrb[0].mxu0
    %v4343 = vadd.f32 0.0, %v4342
    %v4344 = vpop.f32.mrb[0].mxu0
    %4345 = vdwg.mxu0
    %v4346 = vadd.f32 %v4065, %v4333
    %v4347 = vadd.f32 %v4066, %v4338
    %v4348 = vadd.f32 %v4067, %v4343
    %v4349 = vld [vmem:[%s21] sm:$0x1]
    %v4351 = vlaneseq
    %v4352 = vshrl.u32 %v4351, 7
    %v4353 = vsub.s32 0, %v4352
    %v4354 = vrot.slane %v4349, %v4353
    %v4356 = vadd.f32 %v4346, %v4354
    %v4357 = vadd.f32 %v4347, %v4354
    %v4358 = vadd.f32 %v4348, %v4354
    %s4359 = scalar_lea.vmem %s25, 4
    %v4360 = vld [vmem:[%s4359] sm:$0xf]
    %v4361 = vsel %vm2815, %v4356, 0.0
    %4362 = vadd.xlane.f32.xlu0 %v4361
    %v4363 = vpop.xlane.xlu0 %4362
    %v4364 = vsel %vm2815, %v4357, 0.0
    %4365 = vadd.xlane.f32.xlu0 %v4364
    %v4366 = vpop.xlane.xlu0 %4365
    %v4367 = vsel %vm2822, %v4358, 0.0
    %4368 = vadd.xlane.f32.xlu0 %v4367
    %v4369 = vpop.xlane.xlu0 %4368
    %v4370 = vmul.f32 %v4363, %v2826
    %v4371 = vmul.f32 %v4366, %v2826
    %v4372 = vmul.f32 %v4369, %v2826
    %v4373 = vsub.f32 %v4356, %v4370
    %v4374 = vsub.f32 %v4357, %v4371
    %v4375 = vsub.f32 %v4358, %v4372
    %v4376 = vmul.f32 %v4373, %v4373
    %v4377 = vmul.f32 %v4374, %v4374
    %v4378 = vmul.f32 %v4375, %v4375
    %v4379 = vsel %vm2815, %v4376, 0.0
    %4380 = vadd.xlane.f32.xlu0 %v4379
    %v4381 = vpop.xlane.xlu0 %4380
    %v4382 = vsel %vm2815, %v4377, 0.0
    %4383 = vadd.xlane.f32.xlu0 %v4382
    %v4384 = vpop.xlane.xlu0 %4383
    %v4385 = vsel %vm2822, %v4378, 0.0
    %4386 = vadd.xlane.f32.xlu0 %v4385
    %v4387 = vpop.xlane.xlu0 %4386
    %v4388 = vmul.f32 %v4381, %v2826
    %v4389 = vmul.f32 %v4384, %v2826
    %v4390 = vmul.f32 %v4387, %v2826
    %v4391 = vadd.f32 %v4388, 1e-06
    %v4392 = vadd.f32 %v4389, 1e-06
    %v4393 = vadd.f32 %v4390, 1e-06
    %v4394 = vrsqrt.pop %v4391
    %v4395 = vrsqrt.pop %v4392
    %v4396 = vrsqrt.pop %v4393
    %v4397 = vmul.f32 %v4373, %v4394
    %v4398 = vmul.f32 %v4374, %v4395
    %v4399 = vmul.f32 %v4375, %v4396
    %v4400 = vlaneseq
    %v4401 = vshrl.u32 %v4400, 7
    %v4402 = vsub.s32 0, %v4401
    %v4403 = vrot.slane %v4360, %v4402
    %v4404 = vmul.f32 %v4397, %v4403
    %v4405 = vmul.f32 %v4398, %v4403
    %v4406 = vmul.f32 %v4399, %v4403
    %v4407 = vlaneseq
    %v4408 = vshrl.u32 %v4407, 7
    %v4409 = vsub.s32 1, %v4408
    %v4410 = vrot.slane %v4360, %v4409
    %v4411 = vadd.f32 %v4404, %v4410
    %v4412 = vadd.f32 %v4405, %v4410
    %v4413 = vadd.f32 %v4406, %v4410
    %s4414 = scalar_lea.vmem %s33, 32
    %v4415 = vld [vmem:[%s4414] sm:$0xff]
    %v4416 = vld [vmem:[%s4414 + $0x8] sm:$0xff]
    %v4417 = vld [vmem:[%s4414 + $0x10] sm:$0xff]
    %v4418 = vld [vmem:[%s4414 + $0x18] sm:$0xff]
    %s4419 = scalar_lea.vmem %s31, 1
    %v4420 = vld [vmem:[%s4419] sm:$0x1]
    %v4422 = vlaneseq
    %v4423 = vshrl.u32 %v4422, 7
    %v4424 = vsub.s32 0, %v4423
    %v4425 = vrot.slane %v4420, %v4424
    %v4428 = vsel %vm2815, %v4411, 0
    %v4431 = vsel %vm2815, %v4412, 0
    %v4434 = vsel %vm2815, %v4413, 0
    %4436 = vmatprep.subr.mxu0 0.0
    %4437 = vmatpush1.msra.mxu0 %v4415
    %4438 = vmatprep.subr.mxu0 0.0
    %4439 = vmatpush1.msra.mxu0 %v4416
    %4440 = vmatprep.subr.mxu0 0.0
    %4441 = vmatpush1.msra.mxu0 %v4417
    %4442 = vmatprep.subr.mxu0 0.0
    %4443 = vmatpush1.msra.mxu0 %v4418
    %4444 = vmatprep.subr.mxu0 0.0
    %4445 = vmatpush1.msra.mxu0 0.0
    %4446 = vmatprep.subr.mxu0 0.0
    %4447 = vmatpush1.msra.mxu0 0.0
    %4448 = vmatprep.subr.mxu0 0.0
    %4449 = vmatpush1.msra.mxu0 0.0
    %4450 = vmatprep.subr.mxu0 0.0
    %4451 = vmatpush1.msra.mxu0 0.0
    %4452 = vmatprep.subr.mxu0 0.0
    %4453 = vmatpush1.msra.mxu0 0.0
    %4454 = vmatprep.subr.mxu0 0.0
    %4455 = vmatpush1.msra.mxu0 0.0
    %4456 = vmatprep.subr.mxu0 0.0
    %4457 = vmatpush1.msra.mxu0 0.0
    %4458 = vmatprep.subr.mxu0 0.0
    %4459 = vmatpush1.msra.mxu0 0.0
    %4460 = vmatprep.subr.mxu0 0.0
    %4461 = vmatpush1.msra.mxu0 0.0
    %4462 = vmatprep.subr.mxu0 0.0
    %4463 = vmatpush1.msra.mxu0 0.0
    %4464 = vmatprep.subr.mxu0 0.0
    %4465 = vmatpush1.msra.mxu0 0.0
    %4466 = vmatprep.subr.mxu0 0.0
    %4467 = vmatpush1.msra.mxu0 0.0
    %4468 = vmatprep.subr.mxu0 0.0
    %4469 = vmatpush1.msra.mxu0 0.0
    %4470 = vmatprep.subr.mxu0 0.0
    %4471 = vmatpush1.msra.mxu0 0.0
    %4472 = vmatprep.subr.mxu0 0.0
    %4473 = vmatpush1.msra.mxu0 0.0
    %4474 = vmatprep.subr.mxu0 0.0
    %4475 = vmatpush1.msra.mxu0 0.0
    %4476 = vmatprep.subr.mxu0 0.0
    %4477 = vmatpush1.msra.mxu0 0.0
    %4478 = vmatprep.subr.mxu0 0.0
    %4479 = vmatpush1.msra.mxu0 0.0
    %4480 = vmatprep.subr.mxu0 0.0
    %4481 = vmatpush1.msra.mxu0 0.0
    %4482 = vmatprep.subr.mxu0 0.0
    %4483 = vmatpush1.msra.mxu0 0.0
    %4484 = vmatprep.subr.mxu0 0.0
    %4485 = vmatpush1.msra.mxu0 0.0
    %4486 = vmatprep.subr.mxu0 0.0
    %4487 = vmatpush1.msra.mxu0 0.0
    %4488 = vmatprep.subr.mxu0 0.0
    %4489 = vmatpush1.msra.mxu0 0.0
    %4490 = vmatprep.subr.mxu0 0.0
    %4491 = vmatpush1.msra.mxu0 0.0
    %4492 = vmatprep.subr.mxu0 0.0
    %4493 = vmatpush1.msra.mxu0 0.0
    %4494 = vmatprep.subr.mxu0 0.0
    %4495 = vmatpush1.msra.mxu0 0.0
    %4496 = vmatprep.subr.mxu0 0.0
    %4497 = vmatpush1.msra.mxu0 0.0
    %4498 = vmatprep.subr.mxu0 0.0
    %4499 = vmatpush1.msra.mxu0 0.0
    %4500 = vmatprep.mubr.f32.mxu0 0.0
    %4501 = vmatmul.mubr.f32.gmra.mrb[0].mxu0 %v4428
    %v4502 = vpop.f32.mrb[0].mxu0
    %v4503 = vadd.f32 %v4425, %v4502
    %v4504 = vpop.f32.mrb[0].mxu0
    %4505 = vmatprep.mubr.f32.mxu0 0.0
    %4506 = vmatmul.mubr.f32.gmra.mrb[0].mxu0 %v4431
    %v4507 = vpop.f32.mrb[0].mxu0
    %v4508 = vadd.f32 %v4425, %v4507
    %v4509 = vpop.f32.mrb[0].mxu0
    %4510 = vmatprep.mubr.f32.mxu0 0.0
    %4511 = vmatmul.mubr.f32.gmra.mrb[0].mxu0 %v4434
    %v4512 = vpop.f32.mrb[0].mxu0
    %v4513 = vadd.f32 %v4425, %v4512
    %v4514 = vpop.f32.mrb[0].mxu0
    %4515 = vdwg.mxu0
    %4519 = vrot.lane.b32.xlu0 %v4503, 96
    %v4520 = vpop.permute.xlu0 %4519
    %4521 = vrot.lane.b32.xlu0 %v4508, 96
    %v4522 = vpop.permute.xlu0 %4521
    %4523 = vrot.lane.b32.xlu0 %v4513, 96
    %v4524 = vpop.permute.xlu0 %4523
    %v4525 = vsel %vm2980, %v4503, 0
    %v4527 = vsel %vm2980, %v4508, 0
    %v4529 = vsel %vm2980, %v4513, 0
    %v4531 = vsel %vm2980, %v4520, 0
    %v4533 = vsel %vm2980, %v4522, 0
    %v4535 = vsel %vm2980, %v4524, 0
    %4537 = vmatprep.subr.mxu0 0.0
    %4538 = vmatpush1.xpose.msra.mxu0 %v4531
    %4539 = vmatprep.subr.mxu0 0.0
    %4540 = vmatpush1.xpose.msra.mxu0 %v4533
    %4541 = vmatprep.subr.mxu0 0.0
    %4542 = vmatpush1.xpose.msra.mxu0 %v4535
    %4543 = vmatprep.subr.mxu0 0.0
    %4544 = vmatpush1.xpose.msra.mxu0 0.0
    %4545 = vmatprep.subr.mxu0 0.0
    %4546 = vmatpush1.xpose.msra.mxu0 0.0
    %4547 = vmatprep.subr.mxu0 0.0
    %4548 = vmatpush1.xpose.msra.mxu0 0.0
    %4549 = vmatprep.subr.mxu0 0.0
    %4550 = vmatpush1.xpose.msra.mxu0 0.0
    %4551 = vmatprep.subr.mxu0 0.0
    %4552 = vmatpush1.xpose.msra.mxu0 0.0
    %4553 = vmatprep.subr.mxu0 0.0
    %4554 = vmatpush1.xpose.msra.mxu0 0.0
    %4555 = vmatprep.subr.mxu0 0.0
    %4556 = vmatpush1.xpose.msra.mxu0 0.0
    %4557 = vmatprep.subr.mxu0 0.0
    %4558 = vmatpush1.xpose.msra.mxu0 0.0
    %4559 = vmatprep.subr.mxu0 0.0
    %4560 = vmatpush1.xpose.msra.mxu0 0.0
    %4561 = vmatprep.subr.mxu0 0.0
    %4562 = vmatpush1.xpose.msra.mxu0 0.0
    %4563 = vmatprep.subr.mxu0 0.0
    %4564 = vmatpush1.xpose.msra.mxu0 0.0
    %4565 = vmatprep.subr.mxu0 0.0
    %4566 = vmatpush1.xpose.msra.mxu0 0.0
    %4567 = vmatprep.subr.mxu0 0.0
    %4568 = vmatpush1.xpose.msra.mxu0 0.0
    %4569 = vmatprep.subr.mxu0 0.0
    %4570 = vmatpush1.xpose.msra.mxu0 0.0
    %4571 = vmatprep.subr.mxu0 0.0
    %4572 = vmatpush1.xpose.msra.mxu0 0.0
    %4573 = vmatprep.subr.mxu0 0.0
    %4574 = vmatpush1.xpose.msra.mxu0 0.0
    %4575 = vmatprep.subr.mxu0 0.0
    %4576 = vmatpush1.xpose.msra.mxu0 0.0
    %4577 = vmatprep.subr.mxu0 0.0
    %4578 = vmatpush1.xpose.msra.mxu0 0.0
    %4579 = vmatprep.subr.mxu0 0.0
    %4580 = vmatpush1.xpose.msra.mxu0 0.0
    %4581 = vmatprep.subr.mxu0 0.0
    %4582 = vmatpush1.xpose.msra.mxu0 0.0
    %4583 = vmatprep.subr.mxu0 0.0
    %4584 = vmatpush1.xpose.msra.mxu0 0.0
    %4585 = vmatprep.subr.mxu0 0.0
    %4586 = vmatpush1.xpose.msra.mxu0 0.0
    %4587 = vmatprep.subr.mxu0 0.0
    %4588 = vmatpush1.xpose.msra.mxu0 0.0
    %4589 = vmatprep.subr.mxu0 0.0
    %4590 = vmatpush1.xpose.msra.mxu0 0.0
    %4591 = vmatprep.subr.mxu0 0.0
    %4592 = vmatpush1.xpose.msra.mxu0 0.0
    %4593 = vmatprep.subr.mxu0 0.0
    %4594 = vmatpush1.xpose.msra.mxu0 0.0
    %4595 = vmatprep.subr.mxu0 0.0
    %4596 = vmatpush1.xpose.msra.mxu0 0.0
    %4597 = vmatprep.subr.mxu0 0.0
    %4598 = vmatpush1.xpose.msra.mxu0 0.0
    %4599 = vmatprep.subr.mxu0 0.0
    %4600 = vmatpush1.xpose.msra.mxu0 0.0
    %4601 = vmatprep.mubr.f32.mxu0 0.0
    %4602 = vmatmul.mubr.f32.gmra.mrb[0].mxu0 %v4525
    %v4603 = vpop.f32.mrb[0].mxu0
    %v4604 = vadd.f32 %v157, %v4603
    %v4605 = vpop.f32.mrb[0].mxu0
    %4606 = vmatprep.mubr.f32.mxu0 0.0
    %4607 = vmatmul.mubr.f32.gmra.mrb[0].mxu0 %v4527
    %v4608 = vpop.f32.mrb[0].mxu0
    %v4609 = vadd.f32 %v158, %v4608
    %v4610 = vpop.f32.mrb[0].mxu0
    %4611 = vmatprep.mubr.f32.mxu0 0.0
    %4612 = vmatmul.mubr.f32.gmra.mrb[0].mxu0 %v4529
    %v4613 = vpop.f32.mrb[0].mxu0
    %v4614 = vadd.f32 %v159, %v4613
    %v4615 = vpop.f32.mrb[0].mxu0
    %4616 = vdwg.mxu0
    %v4617 = vsel %vm3073, %v4604, -inf
    %4618 = vmax.xlane.f32.xlu0 %v4617
    %v4619 = vpop.xlane.xlu0 %4618
    %v4620 = vsel %vm3073, %v4609, -inf
    %4621 = vmax.xlane.f32.xlu0 %v4620
    %v4622 = vpop.xlane.xlu0 %4621
    %v4623 = vsel %vm3080, %v4614, -inf
    %4624 = vmax.xlane.f32.xlu0 %v4623
    %v4625 = vpop.xlane.xlu0 %4624
    %v4626 = vsub.f32 %v4604, %v4619
    %v4627 = vsub.f32 %v4609, %v4622
    %v4628 = vsub.f32 %v4614, %v4625
    %v4629 = vmul.f32 %v4626, 1.442695
    %v4630 = vpow.pop %v4629
    %v4631 = vmul.f32 %v4627, 1.442695
    %v4632 = vpow.pop %v4631
    %v4633 = vmul.f32 %v4628, 1.442695
    %v4634 = vpow.pop %v4633
    %v4635 = vsel %vm3073, %v4630, 0.0
    %4636 = vadd.xlane.f32.xlu0 %v4635
    %v4637 = vpop.xlane.xlu0 %4636
    %v4638 = vsel %vm3073, %v4632, 0.0
    %4639 = vadd.xlane.f32.xlu0 %v4638
    %v4640 = vpop.xlane.xlu0 %4639
    %v4641 = vsel %vm3080, %v4634, 0.0
    %4642 = vadd.xlane.f32.xlu0 %v4641
    %v4643 = vpop.xlane.xlu0 %4642
    %v4644 = vrcp.pop %v4637
    %v4645 = vrcp.pop %v4640
    %v4646 = vrcp.pop %v4643
    %v4647 = vmul.f32 %v4630, %v4644
    %v4648 = vmul.f32 %v4632, %v4645
    %v4649 = vmul.f32 %v4634, %v4646
    %4650 = vrot.lane.b32.xlu0 %v4503, 64
    %v4651 = vpop.permute.xlu0 %4650
    %4652 = vrot.lane.b32.xlu0 %v4508, 64
    %v4653 = vpop.permute.xlu0 %4652
    %4654 = vrot.lane.b32.xlu0 %v4513, 64
    %v4655 = vpop.permute.xlu0 %4654
    %v4659 = vsel %vm3073, %v4647, 0
    %v4662 = vsel %vm3073, %v4648, 0
    %v4665 = vsel %vm3073, %v4649, 0
    %v4667 = vsel %vm3125, %v4655, 0
    %4669 = vmatprep.subr.mxu0 0.0
    %4670 = vmatpush1.msra.mxu0 %v4651
    %4671 = vmatprep.subr.mxu0 0.0
    %4672 = vmatpush1.msra.mxu0 %v4653
    %4673 = vmatprep.subr.mxu0 0.0
    %4674 = vmatpush1.msra.mxu0 %v4667
    %4675 = vmatprep.subr.mxu0 0.0
    %4676 = vmatpush1.msra.mxu0 0.0
    %4677 = vmatprep.subr.mxu0 0.0
    %4678 = vmatpush1.msra.mxu0 0.0
    %4679 = vmatprep.subr.mxu0 0.0
    %4680 = vmatpush1.msra.mxu0 0.0
    %4681 = vmatprep.subr.mxu0 0.0
    %4682 = vmatpush1.msra.mxu0 0.0
    %4683 = vmatprep.subr.mxu0 0.0
    %4684 = vmatpush1.msra.mxu0 0.0
    %4685 = vmatprep.subr.mxu0 0.0
    %4686 = vmatpush1.msra.mxu0 0.0
    %4687 = vmatprep.subr.mxu0 0.0
    %4688 = vmatpush1.msra.mxu0 0.0
    %4689 = vmatprep.subr.mxu0 0.0
    %4690 = vmatpush1.msra.mxu0 0.0
    %4691 = vmatprep.subr.mxu0 0.0
    %4692 = vmatpush1.msra.mxu0 0.0
    %4693 = vmatprep.subr.mxu0 0.0
    %4694 = vmatpush1.msra.mxu0 0.0
    %4695 = vmatprep.subr.mxu0 0.0
    %4696 = vmatpush1.msra.mxu0 0.0
    %4697 = vmatprep.subr.mxu0 0.0
    %4698 = vmatpush1.msra.mxu0 0.0
    %4699 = vmatprep.subr.mxu0 0.0
    %4700 = vmatpush1.msra.mxu0 0.0
    %4701 = vmatprep.subr.mxu0 0.0
    %4702 = vmatpush1.msra.mxu0 0.0
    %4703 = vmatprep.subr.mxu0 0.0
    %4704 = vmatpush1.msra.mxu0 0.0
    %4705 = vmatprep.subr.mxu0 0.0
    %4706 = vmatpush1.msra.mxu0 0.0
    %4707 = vmatprep.subr.mxu0 0.0
    %4708 = vmatpush1.msra.mxu0 0.0
    %4709 = vmatprep.subr.mxu0 0.0
    %4710 = vmatpush1.msra.mxu0 0.0
    %4711 = vmatprep.subr.mxu0 0.0
    %4712 = vmatpush1.msra.mxu0 0.0
    %4713 = vmatprep.subr.mxu0 0.0
    %4714 = vmatpush1.msra.mxu0 0.0
    %4715 = vmatprep.subr.mxu0 0.0
    %4716 = vmatpush1.msra.mxu0 0.0
    %4717 = vmatprep.subr.mxu0 0.0
    %4718 = vmatpush1.msra.mxu0 0.0
    %4719 = vmatprep.subr.mxu0 0.0
    %4720 = vmatpush1.msra.mxu0 0.0
    %4721 = vmatprep.subr.mxu0 0.0
    %4722 = vmatpush1.msra.mxu0 0.0
    %4723 = vmatprep.subr.mxu0 0.0
    %4724 = vmatpush1.msra.mxu0 0.0
    %4725 = vmatprep.subr.mxu0 0.0
    %4726 = vmatpush1.msra.mxu0 0.0
    %4727 = vmatprep.subr.mxu0 0.0
    %4728 = vmatpush1.msra.mxu0 0.0
    %4729 = vmatprep.subr.mxu0 0.0
    %4730 = vmatpush1.msra.mxu0 0.0
    %4731 = vmatprep.subr.mxu0 0.0
    %4732 = vmatpush1.msra.mxu0 0.0
    %4733 = vmatprep.mubr.f32.mxu0 0.0
    %4734 = vmatmul.mubr.f32.gmra.mrb[0].mxu0 %v4659
    %v4735 = vpop.f32.mrb[0].mxu0
    %v4736 = vadd.f32 0.0, %v4735
    %v4737 = vpop.f32.mrb[0].mxu0
    %4738 = vmatprep.mubr.f32.mxu0 0.0
    %4739 = vmatmul.mubr.f32.gmra.mrb[0].mxu0 %v4662
    %v4740 = vpop.f32.mrb[0].mxu0
    %v4741 = vadd.f32 0.0, %v4740
    %v4742 = vpop.f32.mrb[0].mxu0
    %4743 = vmatprep.mubr.f32.mxu0 0.0
    %4744 = vmatmul.mubr.f32.gmra.mrb[0].mxu0 %v4665
    %v4745 = vpop.f32.mrb[0].mxu0
    %v4746 = vadd.f32 0.0, %v4745
    %v4747 = vpop.f32.mrb[0].mxu0
    %4748 = vdwg.mxu0
    %4749 = vrot.lane.b32.xlu0 %v4503, 120
    %v4750 = vpop.permute.xlu0 %4749
    %4751 = vrot.lane.b32.xlu0 %v4508, 120
    %v4752 = vpop.permute.xlu0 %4751
    %4753 = vrot.lane.b32.xlu0 %v4513, 120
    %v4754 = vpop.permute.xlu0 %4753
    %4755 = vrot.lane.b32.xlu0 %v4503, 88
    %v4756 = vpop.permute.xlu0 %4755
    %4757 = vrot.lane.b32.xlu0 %v4508, 88
    %v4758 = vpop.permute.xlu0 %4757
    %4759 = vrot.lane.b32.xlu0 %v4513, 88
    %v4760 = vpop.permute.xlu0 %4759
    %v4761 = vsel %vm2980, %v4750, 0
    %v4763 = vsel %vm2980, %v4752, 0
    %v4765 = vsel %vm2980, %v4754, 0
    %v4767 = vsel %vm2980, %v4756, 0
    %v4769 = vsel %vm2980, %v4758, 0
    %v4771 = vsel %vm2980, %v4760, 0
    %4773 = vmatprep.subr.mxu0 0.0
    %4774 = vmatpush1.xpose.msra.mxu0 %v4767
    %4775 = vmatprep.subr.mxu0 0.0
    %4776 = vmatpush1.xpose.msra.mxu0 %v4769
    %4777 = vmatprep.subr.mxu0 0.0
    %4778 = vmatpush1.xpose.msra.mxu0 %v4771
    %4779 = vmatprep.subr.mxu0 0.0
    %4780 = vmatpush1.xpose.msra.mxu0 0.0
    %4781 = vmatprep.subr.mxu0 0.0
    %4782 = vmatpush1.xpose.msra.mxu0 0.0
    %4783 = vmatprep.subr.mxu0 0.0
    %4784 = vmatpush1.xpose.msra.mxu0 0.0
    %4785 = vmatprep.subr.mxu0 0.0
    %4786 = vmatpush1.xpose.msra.mxu0 0.0
    %4787 = vmatprep.subr.mxu0 0.0
    %4788 = vmatpush1.xpose.msra.mxu0 0.0
    %4789 = vmatprep.subr.mxu0 0.0
    %4790 = vmatpush1.xpose.msra.mxu0 0.0
    %4791 = vmatprep.subr.mxu0 0.0
    %4792 = vmatpush1.xpose.msra.mxu0 0.0
    %4793 = vmatprep.subr.mxu0 0.0
    %4794 = vmatpush1.xpose.msra.mxu0 0.0
    %4795 = vmatprep.subr.mxu0 0.0
    %4796 = vmatpush1.xpose.msra.mxu0 0.0
    %4797 = vmatprep.subr.mxu0 0.0
    %4798 = vmatpush1.xpose.msra.mxu0 0.0
    %4799 = vmatprep.subr.mxu0 0.0
    %4800 = vmatpush1.xpose.msra.mxu0 0.0
    %4801 = vmatprep.subr.mxu0 0.0
    %4802 = vmatpush1.xpose.msra.mxu0 0.0
    %4803 = vmatprep.subr.mxu0 0.0
    %4804 = vmatpush1.xpose.msra.mxu0 0.0
    %4805 = vmatprep.subr.mxu0 0.0
    %4806 = vmatpush1.xpose.msra.mxu0 0.0
    %4807 = vmatprep.subr.mxu0 0.0
    %4808 = vmatpush1.xpose.msra.mxu0 0.0
    %4809 = vmatprep.subr.mxu0 0.0
    %4810 = vmatpush1.xpose.msra.mxu0 0.0
    %4811 = vmatprep.subr.mxu0 0.0
    %4812 = vmatpush1.xpose.msra.mxu0 0.0
    %4813 = vmatprep.subr.mxu0 0.0
    %4814 = vmatpush1.xpose.msra.mxu0 0.0
    %4815 = vmatprep.subr.mxu0 0.0
    %4816 = vmatpush1.xpose.msra.mxu0 0.0
    %4817 = vmatprep.subr.mxu0 0.0
    %4818 = vmatpush1.xpose.msra.mxu0 0.0
    %4819 = vmatprep.subr.mxu0 0.0
    %4820 = vmatpush1.xpose.msra.mxu0 0.0
    %4821 = vmatprep.subr.mxu0 0.0
    %4822 = vmatpush1.xpose.msra.mxu0 0.0
    %4823 = vmatprep.subr.mxu0 0.0
    %4824 = vmatpush1.xpose.msra.mxu0 0.0
    %4825 = vmatprep.subr.mxu0 0.0
    %4826 = vmatpush1.xpose.msra.mxu0 0.0
    %4827 = vmatprep.subr.mxu0 0.0
    %4828 = vmatpush1.xpose.msra.mxu0 0.0
    %4829 = vmatprep.subr.mxu0 0.0
    %4830 = vmatpush1.xpose.msra.mxu0 0.0
    %4831 = vmatprep.subr.mxu0 0.0
    %4832 = vmatpush1.xpose.msra.mxu0 0.0
    %4833 = vmatprep.subr.mxu0 0.0
    %4834 = vmatpush1.xpose.msra.mxu0 0.0
    %4835 = vmatprep.subr.mxu0 0.0
    %4836 = vmatpush1.xpose.msra.mxu0 0.0
    %4837 = vmatprep.mubr.f32.mxu0 0.0
    %4838 = vmatmul.mubr.f32.gmra.mrb[0].mxu0 %v4761
    %v4839 = vpop.f32.mrb[0].mxu0
    %v4840 = vadd.f32 %v157, %v4839
    %v4841 = vpop.f32.mrb[0].mxu0
    %4842 = vmatprep.mubr.f32.mxu0 0.0
    %4843 = vmatmul.mubr.f32.gmra.mrb[0].mxu0 %v4763
    %v4844 = vpop.f32.mrb[0].mxu0
    %v4845 = vadd.f32 %v158, %v4844
    %v4846 = vpop.f32.mrb[0].mxu0
    %4847 = vmatprep.mubr.f32.mxu0 0.0
    %4848 = vmatmul.mubr.f32.gmra.mrb[0].mxu0 %v4765
    %v4849 = vpop.f32.mrb[0].mxu0
    %v4850 = vadd.f32 %v159, %v4849
    %v4851 = vpop.f32.mrb[0].mxu0
    %4852 = vdwg.mxu0
    %v4853 = vsel %vm3073, %v4840, -inf
    %4854 = vmax.xlane.f32.xlu0 %v4853
    %v4855 = vpop.xlane.xlu0 %4854
    %v4856 = vsel %vm3073, %v4845, -inf
    %4857 = vmax.xlane.f32.xlu0 %v4856
    %v4858 = vpop.xlane.xlu0 %4857
    %v4859 = vsel %vm3080, %v4850, -inf
    %4860 = vmax.xlane.f32.xlu0 %v4859
    %v4861 = vpop.xlane.xlu0 %4860
    %v4862 = vsub.f32 %v4840, %v4855
    %v4863 = vsub.f32 %v4845, %v4858
    %v4864 = vsub.f32 %v4850, %v4861
    %v4865 = vmul.f32 %v4862, 1.442695
    %v4866 = vpow.pop %v4865
    %v4867 = vmul.f32 %v4863, 1.442695
    %v4868 = vpow.pop %v4867
    %v4869 = vmul.f32 %v4864, 1.442695
    %v4870 = vpow.pop %v4869
    %v4871 = vsel %vm3073, %v4866, 0.0
    %4872 = vadd.xlane.f32.xlu0 %v4871
    %v4873 = vpop.xlane.xlu0 %4872
    %v4874 = vsel %vm3073, %v4868, 0.0
    %4875 = vadd.xlane.f32.xlu0 %v4874
    %v4876 = vpop.xlane.xlu0 %4875
    %v4877 = vsel %vm3080, %v4870, 0.0
    %4878 = vadd.xlane.f32.xlu0 %v4877
    %v4879 = vpop.xlane.xlu0 %4878
    %v4880 = vrcp.pop %v4873
    %v4881 = vrcp.pop %v4876
    %v4882 = vrcp.pop %v4879
    %v4883 = vmul.f32 %v4866, %v4880
    %v4884 = vmul.f32 %v4868, %v4881
    %v4885 = vmul.f32 %v4870, %v4882
    %4886 = vrot.lane.b32.xlu0 %v4503, 56
    %v4887 = vpop.permute.xlu0 %4886
    %4888 = vrot.lane.b32.xlu0 %v4508, 56
    %v4889 = vpop.permute.xlu0 %4888
    %4890 = vrot.lane.b32.xlu0 %v4513, 56
    %v4891 = vpop.permute.xlu0 %4890
    %v4895 = vsel %vm3073, %v4883, 0
    %v4898 = vsel %vm3073, %v4884, 0
    %v4901 = vsel %vm3073, %v4885, 0
    %v4903 = vsel %vm3125, %v4891, 0
    %4905 = vmatprep.subr.mxu0 0.0
    %4906 = vmatpush1.msra.mxu0 %v4887
    %4907 = vmatprep.subr.mxu0 0.0
    %4908 = vmatpush1.msra.mxu0 %v4889
    %4909 = vmatprep.subr.mxu0 0.0
    %4910 = vmatpush1.msra.mxu0 %v4903
    %4911 = vmatprep.subr.mxu0 0.0
    %4912 = vmatpush1.msra.mxu0 0.0
    %4913 = vmatprep.subr.mxu0 0.0
    %4914 = vmatpush1.msra.mxu0 0.0
    %4915 = vmatprep.subr.mxu0 0.0
    %4916 = vmatpush1.msra.mxu0 0.0
    %4917 = vmatprep.subr.mxu0 0.0
    %4918 = vmatpush1.msra.mxu0 0.0
    %4919 = vmatprep.subr.mxu0 0.0
    %4920 = vmatpush1.msra.mxu0 0.0
    %4921 = vmatprep.subr.mxu0 0.0
    %4922 = vmatpush1.msra.mxu0 0.0
    %4923 = vmatprep.subr.mxu0 0.0
    %4924 = vmatpush1.msra.mxu0 0.0
    %4925 = vmatprep.subr.mxu0 0.0
    %4926 = vmatpush1.msra.mxu0 0.0
    %4927 = vmatprep.subr.mxu0 0.0
    %4928 = vmatpush1.msra.mxu0 0.0
    %4929 = vmatprep.subr.mxu0 0.0
    %4930 = vmatpush1.msra.mxu0 0.0
    %4931 = vmatprep.subr.mxu0 0.0
    %4932 = vmatpush1.msra.mxu0 0.0
    %4933 = vmatprep.subr.mxu0 0.0
    %4934 = vmatpush1.msra.mxu0 0.0
    %4935 = vmatprep.subr.mxu0 0.0
    %4936 = vmatpush1.msra.mxu0 0.0
    %4937 = vmatprep.subr.mxu0 0.0
    %4938 = vmatpush1.msra.mxu0 0.0
    %4939 = vmatprep.subr.mxu0 0.0
    %4940 = vmatpush1.msra.mxu0 0.0
    %4941 = vmatprep.subr.mxu0 0.0
    %4942 = vmatpush1.msra.mxu0 0.0
    %4943 = vmatprep.subr.mxu0 0.0
    %4944 = vmatpush1.msra.mxu0 0.0
    %4945 = vmatprep.subr.mxu0 0.0
    %4946 = vmatpush1.msra.mxu0 0.0
    %4947 = vmatprep.subr.mxu0 0.0
    %4948 = vmatpush1.msra.mxu0 0.0
    %4949 = vmatprep.subr.mxu0 0.0
    %4950 = vmatpush1.msra.mxu0 0.0
    %4951 = vmatprep.subr.mxu0 0.0
    %4952 = vmatpush1.msra.mxu0 0.0
    %4953 = vmatprep.subr.mxu0 0.0
    %4954 = vmatpush1.msra.mxu0 0.0
    %4955 = vmatprep.subr.mxu0 0.0
    %4956 = vmatpush1.msra.mxu0 0.0
    %4957 = vmatprep.subr.mxu0 0.0
    %4958 = vmatpush1.msra.mxu0 0.0
    %4959 = vmatprep.subr.mxu0 0.0
    %4960 = vmatpush1.msra.mxu0 0.0
    %4961 = vmatprep.subr.mxu0 0.0
    %4962 = vmatpush1.msra.mxu0 0.0
    %4963 = vmatprep.subr.mxu0 0.0
    %4964 = vmatpush1.msra.mxu0 0.0
    %4965 = vmatprep.subr.mxu0 0.0
    %4966 = vmatpush1.msra.mxu0 0.0
    %4967 = vmatprep.subr.mxu0 0.0
    %4968 = vmatpush1.msra.mxu0 0.0
    %4969 = vmatprep.mubr.f32.mxu0 0.0
    %4970 = vmatmul.mubr.f32.gmra.mrb[0].mxu0 %v4895
    %v4971 = vpop.f32.mrb[0].mxu0
    %v4972 = vadd.f32 0.0, %v4971
    %v4973 = vpop.f32.mrb[0].mxu0
    %4974 = vmatprep.mubr.f32.mxu0 0.0
    %4975 = vmatmul.mubr.f32.gmra.mrb[0].mxu0 %v4898
    %v4976 = vpop.f32.mrb[0].mxu0
    %v4977 = vadd.f32 0.0, %v4976
    %v4978 = vpop.f32.mrb[0].mxu0
    %4979 = vmatprep.mubr.f32.mxu0 0.0
    %4980 = vmatmul.mubr.f32.gmra.mrb[0].mxu0 %v4901
    %v4981 = vpop.f32.mrb[0].mxu0
    %v4982 = vadd.f32 0.0, %v4981
    %v4983 = vpop.f32.mrb[0].mxu0
    %4984 = vdwg.mxu0
    %4985 = vrot.lane.b32.xlu0 %v4503, 112
    %v4986 = vpop.permute.xlu0 %4985
    %4987 = vrot.lane.b32.xlu0 %v4508, 112
    %v4988 = vpop.permute.xlu0 %4987
    %4989 = vrot.lane.b32.xlu0 %v4513, 112
    %v4990 = vpop.permute.xlu0 %4989
    %4991 = vrot.lane.b32.xlu0 %v4503, 80
    %v4992 = vpop.permute.xlu0 %4991
    %4993 = vrot.lane.b32.xlu0 %v4508, 80
    %v4994 = vpop.permute.xlu0 %4993
    %4995 = vrot.lane.b32.xlu0 %v4513, 80
    %v4996 = vpop.permute.xlu0 %4995
    %v4997 = vsel %vm2980, %v4986, 0
    %v4999 = vsel %vm2980, %v4988, 0
    %v5001 = vsel %vm2980, %v4990, 0
    %v5003 = vsel %vm2980, %v4992, 0
    %v5005 = vsel %vm2980, %v4994, 0
    %v5007 = vsel %vm2980, %v4996, 0
    %5009 = vmatprep.subr.mxu0 0.0
    %5010 = vmatpush1.xpose.msra.mxu0 %v5003
    %5011 = vmatprep.subr.mxu0 0.0
    %5012 = vmatpush1.xpose.msra.mxu0 %v5005
    %5013 = vmatprep.subr.mxu0 0.0
    %5014 = vmatpush1.xpose.msra.mxu0 %v5007
    %5015 = vmatprep.subr.mxu0 0.0
    %5016 = vmatpush1.xpose.msra.mxu0 0.0
    %5017 = vmatprep.subr.mxu0 0.0
    %5018 = vmatpush1.xpose.msra.mxu0 0.0
    %5019 = vmatprep.subr.mxu0 0.0
    %5020 = vmatpush1.xpose.msra.mxu0 0.0
    %5021 = vmatprep.subr.mxu0 0.0
    %5022 = vmatpush1.xpose.msra.mxu0 0.0
    %5023 = vmatprep.subr.mxu0 0.0
    %5024 = vmatpush1.xpose.msra.mxu0 0.0
    %5025 = vmatprep.subr.mxu0 0.0
    %5026 = vmatpush1.xpose.msra.mxu0 0.0
    %5027 = vmatprep.subr.mxu0 0.0
    %5028 = vmatpush1.xpose.msra.mxu0 0.0
    %5029 = vmatprep.subr.mxu0 0.0
    %5030 = vmatpush1.xpose.msra.mxu0 0.0
    %5031 = vmatprep.subr.mxu0 0.0
    %5032 = vmatpush1.xpose.msra.mxu0 0.0
    %5033 = vmatprep.subr.mxu0 0.0
    %5034 = vmatpush1.xpose.msra.mxu0 0.0
    %5035 = vmatprep.subr.mxu0 0.0
    %5036 = vmatpush1.xpose.msra.mxu0 0.0
    %5037 = vmatprep.subr.mxu0 0.0
    %5038 = vmatpush1.xpose.msra.mxu0 0.0
    %5039 = vmatprep.subr.mxu0 0.0
    %5040 = vmatpush1.xpose.msra.mxu0 0.0
    %5041 = vmatprep.subr.mxu0 0.0
    %5042 = vmatpush1.xpose.msra.mxu0 0.0
    %5043 = vmatprep.subr.mxu0 0.0
    %5044 = vmatpush1.xpose.msra.mxu0 0.0
    %5045 = vmatprep.subr.mxu0 0.0
    %5046 = vmatpush1.xpose.msra.mxu0 0.0
    %5047 = vmatprep.subr.mxu0 0.0
    %5048 = vmatpush1.xpose.msra.mxu0 0.0
    %5049 = vmatprep.subr.mxu0 0.0
    %5050 = vmatpush1.xpose.msra.mxu0 0.0
    %5051 = vmatprep.subr.mxu0 0.0
    %5052 = vmatpush1.xpose.msra.mxu0 0.0
    %5053 = vmatprep.subr.mxu0 0.0
    %5054 = vmatpush1.xpose.msra.mxu0 0.0
    %5055 = vmatprep.subr.mxu0 0.0
    %5056 = vmatpush1.xpose.msra.mxu0 0.0
    %5057 = vmatprep.subr.mxu0 0.0
    %5058 = vmatpush1.xpose.msra.mxu0 0.0
    %5059 = vmatprep.subr.mxu0 0.0
    %5060 = vmatpush1.xpose.msra.mxu0 0.0
    %5061 = vmatprep.subr.mxu0 0.0
    %5062 = vmatpush1.xpose.msra.mxu0 0.0
    %5063 = vmatprep.subr.mxu0 0.0
    %5064 = vmatpush1.xpose.msra.mxu0 0.0
    %5065 = vmatprep.subr.mxu0 0.0
    %5066 = vmatpush1.xpose.msra.mxu0 0.0
    %5067 = vmatprep.subr.mxu0 0.0
    %5068 = vmatpush1.xpose.msra.mxu0 0.0
    %5069 = vmatprep.subr.mxu0 0.0
    %5070 = vmatpush1.xpose.msra.mxu0 0.0
    %5071 = vmatprep.subr.mxu0 0.0
    %5072 = vmatpush1.xpose.msra.mxu0 0.0
    %5073 = vmatprep.mubr.f32.mxu0 0.0
    %5074 = vmatmul.mubr.f32.gmra.mrb[0].mxu0 %v4997
    %v5075 = vpop.f32.mrb[0].mxu0
    %v5076 = vadd.f32 %v157, %v5075
    %v5077 = vpop.f32.mrb[0].mxu0
    %5078 = vmatprep.mubr.f32.mxu0 0.0
    %5079 = vmatmul.mubr.f32.gmra.mrb[0].mxu0 %v4999
    %v5080 = vpop.f32.mrb[0].mxu0
    %v5081 = vadd.f32 %v158, %v5080
    %v5082 = vpop.f32.mrb[0].mxu0
    %5083 = vmatprep.mubr.f32.mxu0 0.0
    %5084 = vmatmul.mubr.f32.gmra.mrb[0].mxu0 %v5001
    %v5085 = vpop.f32.mrb[0].mxu0
    %v5086 = vadd.f32 %v159, %v5085
    %v5087 = vpop.f32.mrb[0].mxu0
    %5088 = vdwg.mxu0
    %v5089 = vsel %vm3073, %v5076, -inf
    %5090 = vmax.xlane.f32.xlu0 %v5089
    %v5091 = vpop.xlane.xlu0 %5090
    %v5092 = vsel %vm3073, %v5081, -inf
    %5093 = vmax.xlane.f32.xlu0 %v5092
    %v5094 = vpop.xlane.xlu0 %5093
    %v5095 = vsel %vm3080, %v5086, -inf
    %5096 = vmax.xlane.f32.xlu0 %v5095
    %v5097 = vpop.xlane.xlu0 %5096
    %v5098 = vsub.f32 %v5076, %v5091
    %v5099 = vsub.f32 %v5081, %v5094
    %v5100 = vsub.f32 %v5086, %v5097
    %v5101 = vmul.f32 %v5098, 1.442695
    %v5102 = vpow.pop %v5101
    %v5103 = vmul.f32 %v5099, 1.442695
    %v5104 = vpow.pop %v5103
    %v5105 = vmul.f32 %v5100, 1.442695
    %v5106 = vpow.pop %v5105
    %v5107 = vsel %vm3073, %v5102, 0.0
    %5108 = vadd.xlane.f32.xlu0 %v5107
    %v5109 = vpop.xlane.xlu0 %5108
    %v5110 = vsel %vm3073, %v5104, 0.0
    %5111 = vadd.xlane.f32.xlu0 %v5110
    %v5112 = vpop.xlane.xlu0 %5111
    %v5113 = vsel %vm3080, %v5106, 0.0
    %5114 = vadd.xlane.f32.xlu0 %v5113
    %v5115 = vpop.xlane.xlu0 %5114
    %v5116 = vrcp.pop %v5109
    %v5117 = vrcp.pop %v5112
    %v5118 = vrcp.pop %v5115
    %v5119 = vmul.f32 %v5102, %v5116
    %v5120 = vmul.f32 %v5104, %v5117
    %v5121 = vmul.f32 %v5106, %v5118
    %5122 = vrot.lane.b32.xlu0 %v4503, 48
    %v5123 = vpop.permute.xlu0 %5122
    %5124 = vrot.lane.b32.xlu0 %v4508, 48
    %v5125 = vpop.permute.xlu0 %5124
    %5126 = vrot.lane.b32.xlu0 %v4513, 48
    %v5127 = vpop.permute.xlu0 %5126
    %v5131 = vsel %vm3073, %v5119, 0
    %v5134 = vsel %vm3073, %v5120, 0
    %v5137 = vsel %vm3073, %v5121, 0
    %v5139 = vsel %vm3125, %v5127, 0
    %5141 = vmatprep.subr.mxu0 0.0
    %5142 = vmatpush1.msra.mxu0 %v5123
    %5143 = vmatprep.subr.mxu0 0.0
    %5144 = vmatpush1.msra.mxu0 %v5125
    %5145 = vmatprep.subr.mxu0 0.0
    %5146 = vmatpush1.msra.mxu0 %v5139
    %5147 = vmatprep.subr.mxu0 0.0
    %5148 = vmatpush1.msra.mxu0 0.0
    %5149 = vmatprep.subr.mxu0 0.0
    %5150 = vmatpush1.msra.mxu0 0.0
    %5151 = vmatprep.subr.mxu0 0.0
    %5152 = vmatpush1.msra.mxu0 0.0
    %5153 = vmatprep.subr.mxu0 0.0
    %5154 = vmatpush1.msra.mxu0 0.0
    %5155 = vmatprep.subr.mxu0 0.0
    %5156 = vmatpush1.msra.mxu0 0.0
    %5157 = vmatprep.subr.mxu0 0.0
    %5158 = vmatpush1.msra.mxu0 0.0
    %5159 = vmatprep.subr.mxu0 0.0
    %5160 = vmatpush1.msra.mxu0 0.0
    %5161 = vmatprep.subr.mxu0 0.0
    %5162 = vmatpush1.msra.mxu0 0.0
    %5163 = vmatprep.subr.mxu0 0.0
    %5164 = vmatpush1.msra.mxu0 0.0
    %5165 = vmatprep.subr.mxu0 0.0
    %5166 = vmatpush1.msra.mxu0 0.0
    %5167 = vmatprep.subr.mxu0 0.0
    %5168 = vmatpush1.msra.mxu0 0.0
    %5169 = vmatprep.subr.mxu0 0.0
    %5170 = vmatpush1.msra.mxu0 0.0
    %5171 = vmatprep.subr.mxu0 0.0
    %5172 = vmatpush1.msra.mxu0 0.0
    %5173 = vmatprep.subr.mxu0 0.0
    %5174 = vmatpush1.msra.mxu0 0.0
    %5175 = vmatprep.subr.mxu0 0.0
    %5176 = vmatpush1.msra.mxu0 0.0
    %5177 = vmatprep.subr.mxu0 0.0
    %5178 = vmatpush1.msra.mxu0 0.0
    %5179 = vmatprep.subr.mxu0 0.0
    %5180 = vmatpush1.msra.mxu0 0.0
    %5181 = vmatprep.subr.mxu0 0.0
    %5182 = vmatpush1.msra.mxu0 0.0
    %5183 = vmatprep.subr.mxu0 0.0
    %5184 = vmatpush1.msra.mxu0 0.0
    %5185 = vmatprep.subr.mxu0 0.0
    %5186 = vmatpush1.msra.mxu0 0.0
    %5187 = vmatprep.subr.mxu0 0.0
    %5188 = vmatpush1.msra.mxu0 0.0
    %5189 = vmatprep.subr.mxu0 0.0
    %5190 = vmatpush1.msra.mxu0 0.0
    %5191 = vmatprep.subr.mxu0 0.0
    %5192 = vmatpush1.msra.mxu0 0.0
    %5193 = vmatprep.subr.mxu0 0.0
    %5194 = vmatpush1.msra.mxu0 0.0
    %5195 = vmatprep.subr.mxu0 0.0
    %5196 = vmatpush1.msra.mxu0 0.0
    %5197 = vmatprep.subr.mxu0 0.0
    %5198 = vmatpush1.msra.mxu0 0.0
    %5199 = vmatprep.subr.mxu0 0.0
    %5200 = vmatpush1.msra.mxu0 0.0
    %5201 = vmatprep.subr.mxu0 0.0
    %5202 = vmatpush1.msra.mxu0 0.0
    %5203 = vmatprep.subr.mxu0 0.0
    %5204 = vmatpush1.msra.mxu0 0.0
    %5205 = vmatprep.mubr.f32.mxu0 0.0
    %5206 = vmatmul.mubr.f32.gmra.mrb[0].mxu0 %v5131
    %v5207 = vpop.f32.mrb[0].mxu0
    %v5208 = vadd.f32 0.0, %v5207
    %v5209 = vpop.f32.mrb[0].mxu0
    %5210 = vmatprep.mubr.f32.mxu0 0.0
    %5211 = vmatmul.mubr.f32.gmra.mrb[0].mxu0 %v5134
    %v5212 = vpop.f32.mrb[0].mxu0
    %v5213 = vadd.f32 0.0, %v5212
    %v5214 = vpop.f32.mrb[0].mxu0
    %5215 = vmatprep.mubr.f32.mxu0 0.0
    %5216 = vmatmul.mubr.f32.gmra.mrb[0].mxu0 %v5137
    %v5217 = vpop.f32.mrb[0].mxu0
    %v5218 = vadd.f32 0.0, %v5217
    %v5219 = vpop.f32.mrb[0].mxu0
    %5220 = vdwg.mxu0
    %5221 = vrot.lane.b32.xlu0 %v4503, 104
    %v5222 = vpop.permute.xlu0 %5221
    %5223 = vrot.lane.b32.xlu0 %v4508, 104
    %v5224 = vpop.permute.xlu0 %5223
    %5225 = vrot.lane.b32.xlu0 %v4513, 104
    %v5226 = vpop.permute.xlu0 %5225
    %5227 = vrot.lane.b32.xlu0 %v4503, 72
    %v5228 = vpop.permute.xlu0 %5227
    %5229 = vrot.lane.b32.xlu0 %v4508, 72
    %v5230 = vpop.permute.xlu0 %5229
    %5231 = vrot.lane.b32.xlu0 %v4513, 72
    %v5232 = vpop.permute.xlu0 %5231
    %v5233 = vsel %vm2980, %v5222, 0
    %v5235 = vsel %vm2980, %v5224, 0
    %v5237 = vsel %vm2980, %v5226, 0
    %v5239 = vsel %vm2980, %v5228, 0
    %v5241 = vsel %vm2980, %v5230, 0
    %v5243 = vsel %vm2980, %v5232, 0
    %5245 = vmatprep.subr.mxu0 0.0
    %5246 = vmatpush1.xpose.msra.mxu0 %v5239
    %5247 = vmatprep.subr.mxu0 0.0
    %5248 = vmatpush1.xpose.msra.mxu0 %v5241
    %5249 = vmatprep.subr.mxu0 0.0
    %5250 = vmatpush1.xpose.msra.mxu0 %v5243
    %5251 = vmatprep.subr.mxu0 0.0
    %5252 = vmatpush1.xpose.msra.mxu0 0.0
    %5253 = vmatprep.subr.mxu0 0.0
    %5254 = vmatpush1.xpose.msra.mxu0 0.0
    %5255 = vmatprep.subr.mxu0 0.0
    %5256 = vmatpush1.xpose.msra.mxu0 0.0
    %5257 = vmatprep.subr.mxu0 0.0
    %5258 = vmatpush1.xpose.msra.mxu0 0.0
    %5259 = vmatprep.subr.mxu0 0.0
    %5260 = vmatpush1.xpose.msra.mxu0 0.0
    %5261 = vmatprep.subr.mxu0 0.0
    %5262 = vmatpush1.xpose.msra.mxu0 0.0
    %5263 = vmatprep.subr.mxu0 0.0
    %5264 = vmatpush1.xpose.msra.mxu0 0.0
    %5265 = vmatprep.subr.mxu0 0.0
    %5266 = vmatpush1.xpose.msra.mxu0 0.0
    %5267 = vmatprep.subr.mxu0 0.0
    %5268 = vmatpush1.xpose.msra.mxu0 0.0
    %5269 = vmatprep.subr.mxu0 0.0
    %5270 = vmatpush1.xpose.msra.mxu0 0.0
    %5271 = vmatprep.subr.mxu0 0.0
    %5272 = vmatpush1.xpose.msra.mxu0 0.0
    %5273 = vmatprep.subr.mxu0 0.0
    %5274 = vmatpush1.xpose.msra.mxu0 0.0
    %5275 = vmatprep.subr.mxu0 0.0
    %5276 = vmatpush1.xpose.msra.mxu0 0.0
    %5277 = vmatprep.subr.mxu0 0.0
    %5278 = vmatpush1.xpose.msra.mxu0 0.0
    %5279 = vmatprep.subr.mxu0 0.0
    %5280 = vmatpush1.xpose.msra.mxu0 0.0
    %5281 = vmatprep.subr.mxu0 0.0
    %5282 = vmatpush1.xpose.msra.mxu0 0.0
    %5283 = vmatprep.subr.mxu0 0.0
    %5284 = vmatpush1.xpose.msra.mxu0 0.0
    %5285 = vmatprep.subr.mxu0 0.0
    %5286 = vmatpush1.xpose.msra.mxu0 0.0
    %5287 = vmatprep.subr.mxu0 0.0
    %5288 = vmatpush1.xpose.msra.mxu0 0.0
    %5289 = vmatprep.subr.mxu0 0.0
    %5290 = vmatpush1.xpose.msra.mxu0 0.0
    %5291 = vmatprep.subr.mxu0 0.0
    %5292 = vmatpush1.xpose.msra.mxu0 0.0
    %5293 = vmatprep.subr.mxu0 0.0
    %5294 = vmatpush1.xpose.msra.mxu0 0.0
    %5295 = vmatprep.subr.mxu0 0.0
    %5296 = vmatpush1.xpose.msra.mxu0 0.0
    %5297 = vmatprep.subr.mxu0 0.0
    %5298 = vmatpush1.xpose.msra.mxu0 0.0
    %5299 = vmatprep.subr.mxu0 0.0
    %5300 = vmatpush1.xpose.msra.mxu0 0.0
    %5301 = vmatprep.subr.mxu0 0.0
    %5302 = vmatpush1.xpose.msra.mxu0 0.0
    %5303 = vmatprep.subr.mxu0 0.0
    %5304 = vmatpush1.xpose.msra.mxu0 0.0
    %5305 = vmatprep.subr.mxu0 0.0
    %5306 = vmatpush1.xpose.msra.mxu0 0.0
    %5307 = vmatprep.subr.mxu0 0.0
    %5308 = vmatpush1.xpose.msra.mxu0 0.0
    %5309 = vmatprep.mubr.f32.mxu0 0.0
    %5310 = vmatmul.mubr.f32.gmra.mrb[0].mxu0 %v5233
    %v5311 = vpop.f32.mrb[0].mxu0
    %v5312 = vadd.f32 %v157, %v5311
    %v5313 = vpop.f32.mrb[0].mxu0
    %5314 = vmatprep.mubr.f32.mxu0 0.0
    %5315 = vmatmul.mubr.f32.gmra.mrb[0].mxu0 %v5235
    %v5316 = vpop.f32.mrb[0].mxu0
    %v5317 = vadd.f32 %v158, %v5316
    %v5318 = vpop.f32.mrb[0].mxu0
    %5319 = vmatprep.mubr.f32.mxu0 0.0
    %5320 = vmatmul.mubr.f32.gmra.mrb[0].mxu0 %v5237
    %v5321 = vpop.f32.mrb[0].mxu0
    %v5322 = vadd.f32 %v159, %v5321
    %v5323 = vpop.f32.mrb[0].mxu0
    %5324 = vdwg.mxu0
    %v5325 = vsel %vm3073, %v5312, -inf
    %5326 = vmax.xlane.f32.xlu0 %v5325
    %v5327 = vpop.xlane.xlu0 %5326
    %v5328 = vsel %vm3073, %v5317, -inf
    %5329 = vmax.xlane.f32.xlu0 %v5328
    %v5330 = vpop.xlane.xlu0 %5329
    %v5331 = vsel %vm3080, %v5322, -inf
    %5332 = vmax.xlane.f32.xlu0 %v5331
    %v5333 = vpop.xlane.xlu0 %5332
    %v5334 = vsub.f32 %v5312, %v5327
    %v5335 = vsub.f32 %v5317, %v5330
    %v5336 = vsub.f32 %v5322, %v5333
    %v5337 = vmul.f32 %v5334, 1.442695
    %v5338 = vpow.pop %v5337
    %v5339 = vmul.f32 %v5335, 1.442695
    %v5340 = vpow.pop %v5339
    %v5341 = vmul.f32 %v5336, 1.442695
    %v5342 = vpow.pop %v5341
    %v5343 = vsel %vm3073, %v5338, 0.0
    %5344 = vadd.xlane.f32.xlu0 %v5343
    %v5345 = vpop.xlane.xlu0 %5344
    %v5346 = vsel %vm3073, %v5340, 0.0
    %5347 = vadd.xlane.f32.xlu0 %v5346
    %v5348 = vpop.xlane.xlu0 %5347
    %v5349 = vsel %vm3080, %v5342, 0.0
    %5350 = vadd.xlane.f32.xlu0 %v5349
    %v5351 = vpop.xlane.xlu0 %5350
    %v5352 = vrcp.pop %v5345
    %v5353 = vrcp.pop %v5348
    %v5354 = vrcp.pop %v5351
    %v5355 = vmul.f32 %v5338, %v5352
    %v5356 = vmul.f32 %v5340, %v5353
    %v5357 = vmul.f32 %v5342, %v5354
    %5358 = vrot.lane.b32.xlu0 %v4503, 40
    %v5359 = vpop.permute.xlu0 %5358
    %5360 = vrot.lane.b32.xlu0 %v4508, 40
    %v5361 = vpop.permute.xlu0 %5360
    %5362 = vrot.lane.b32.xlu0 %v4513, 40
    %v5363 = vpop.permute.xlu0 %5362
    %v5367 = vsel %vm3073, %v5355, 0
    %v5370 = vsel %vm3073, %v5356, 0
    %v5373 = vsel %vm3073, %v5357, 0
    %v5375 = vsel %vm3125, %v5363, 0
    %5377 = vmatprep.subr.mxu0 0.0
    %5378 = vmatpush1.msra.mxu0 %v5359
    %5379 = vmatprep.subr.mxu0 0.0
    %5380 = vmatpush1.msra.mxu0 %v5361
    %5381 = vmatprep.subr.mxu0 0.0
    %5382 = vmatpush1.msra.mxu0 %v5375
    %5383 = vmatprep.subr.mxu0 0.0
    %5384 = vmatpush1.msra.mxu0 0.0
    %5385 = vmatprep.subr.mxu0 0.0
    %5386 = vmatpush1.msra.mxu0 0.0
    %5387 = vmatprep.subr.mxu0 0.0
    %5388 = vmatpush1.msra.mxu0 0.0
    %5389 = vmatprep.subr.mxu0 0.0
    %5390 = vmatpush1.msra.mxu0 0.0
    %5391 = vmatprep.subr.mxu0 0.0
    %5392 = vmatpush1.msra.mxu0 0.0
    %5393 = vmatprep.subr.mxu0 0.0
    %5394 = vmatpush1.msra.mxu0 0.0
    %5395 = vmatprep.subr.mxu0 0.0
    %5396 = vmatpush1.msra.mxu0 0.0
    %5397 = vmatprep.subr.mxu0 0.0
    %5398 = vmatpush1.msra.mxu0 0.0
    %5399 = vmatprep.subr.mxu0 0.0
    %5400 = vmatpush1.msra.mxu0 0.0
    %5401 = vmatprep.subr.mxu0 0.0
    %5402 = vmatpush1.msra.mxu0 0.0
    %5403 = vmatprep.subr.mxu0 0.0
    %5404 = vmatpush1.msra.mxu0 0.0
    %5405 = vmatprep.subr.mxu0 0.0
    %5406 = vmatpush1.msra.mxu0 0.0
    %5407 = vmatprep.subr.mxu0 0.0
    %5408 = vmatpush1.msra.mxu0 0.0
    %5409 = vmatprep.subr.mxu0 0.0
    %5410 = vmatpush1.msra.mxu0 0.0
    %5411 = vmatprep.subr.mxu0 0.0
    %5412 = vmatpush1.msra.mxu0 0.0
    %5413 = vmatprep.subr.mxu0 0.0
    %5414 = vmatpush1.msra.mxu0 0.0
    %5415 = vmatprep.subr.mxu0 0.0
    %5416 = vmatpush1.msra.mxu0 0.0
    %5417 = vmatprep.subr.mxu0 0.0
    %5418 = vmatpush1.msra.mxu0 0.0
    %5419 = vmatprep.subr.mxu0 0.0
    %5420 = vmatpush1.msra.mxu0 0.0
    %5421 = vmatprep.subr.mxu0 0.0
    %5422 = vmatpush1.msra.mxu0 0.0
    %5423 = vmatprep.subr.mxu0 0.0
    %5424 = vmatpush1.msra.mxu0 0.0
    %5425 = vmatprep.subr.mxu0 0.0
    %5426 = vmatpush1.msra.mxu0 0.0
    %5427 = vmatprep.subr.mxu0 0.0
    %5428 = vmatpush1.msra.mxu0 0.0
    %5429 = vmatprep.subr.mxu0 0.0
    %5430 = vmatpush1.msra.mxu0 0.0
    %5431 = vmatprep.subr.mxu0 0.0
    %5432 = vmatpush1.msra.mxu0 0.0
    %5433 = vmatprep.subr.mxu0 0.0
    %5434 = vmatpush1.msra.mxu0 0.0
    %5435 = vmatprep.subr.mxu0 0.0
    %5436 = vmatpush1.msra.mxu0 0.0
    %5437 = vmatprep.subr.mxu0 0.0
    %5438 = vmatpush1.msra.mxu0 0.0
    %5439 = vmatprep.subr.mxu0 0.0
    %5440 = vmatpush1.msra.mxu0 0.0
    %5441 = vmatprep.mubr.f32.mxu0 0.0
    %5442 = vmatmul.mubr.f32.gmra.mrb[0].mxu0 %v5367
    %v5443 = vpop.f32.mrb[0].mxu0
    %v5444 = vadd.f32 0.0, %v5443
    %v5445 = vpop.f32.mrb[0].mxu0
    %5446 = vmatprep.mubr.f32.mxu0 0.0
    %5447 = vmatmul.mubr.f32.gmra.mrb[0].mxu0 %v5370
    %v5448 = vpop.f32.mrb[0].mxu0
    %v5449 = vadd.f32 0.0, %v5448
    %v5450 = vpop.f32.mrb[0].mxu0
    %5451 = vmatprep.mubr.f32.mxu0 0.0
    %5452 = vmatmul.mubr.f32.gmra.mrb[0].mxu0 %v5373
    %v5453 = vpop.f32.mrb[0].mxu0
    %v5454 = vadd.f32 0.0, %v5453
    %v5455 = vpop.f32.mrb[0].mxu0
    %5456 = vdwg.mxu0
    %5460 = vrot.lane.b32.xlu0 %v4972, 8
    %v5461 = vpop.permute.xlu0 %5460
    %5462 = vrot.lane.b32.xlu0 %v4977, 8
    %v5463 = vpop.permute.xlu0 %5462
    %5464 = vrot.lane.b32.xlu0 %v4982, 8
    %v5465 = vpop.permute.xlu0 %5464
    %5472 = vrot.lane.b32.xlu0 %v5208, 16
    %v5473 = vpop.permute.xlu0 %5472
    %5474 = vrot.lane.b32.xlu0 %v5213, 16
    %v5475 = vpop.permute.xlu0 %5474
    %5476 = vrot.lane.b32.xlu0 %v5218, 16
    %v5477 = vpop.permute.xlu0 %5476
    %5484 = vrot.lane.b32.xlu0 %v5444, 24
    %v5485 = vpop.permute.xlu0 %5484
    %5486 = vrot.lane.b32.xlu0 %v5449, 24
    %v5487 = vpop.permute.xlu0 %5486
    %5488 = vrot.lane.b32.xlu0 %v5454, 24
    %v5489 = vpop.permute.xlu0 %5488
    %v5493 = vsel %vm2980, %v4736, %v5461
    %v5494 = vsel %vm2980, %v4741, %v5463
    %v5495 = vsel %vm2980, %v4746, %v5465
    %v5496 = vsel %vm570, %v5493, %v5473
    %v5497 = vsel %vm570, %v5494, %v5475
    %v5498 = vsel %vm570, %v5495, %v5477
    %v5499 = vsel %vm3958, %v5496, %v5485
    %v5500 = vsel %vm3958, %v5497, %v5487
    %v5501 = vsel %vm3958, %v5498, %v5489
    %s5502 = scalar_lea.vmem %s29, 32
    %v5503 = vld [vmem:[%s5502] sm:$0xff]
    %v5504 = vld [vmem:[%s5502 + $0x8] sm:$0xff]
    %v5505 = vld [vmem:[%s5502 + $0x10] sm:$0xff]
    %v5506 = vld [vmem:[%s5502 + $0x18] sm:$0xff]
    %v5508 = vsel %vm2815, %v5499, 0
    %v5511 = vsel %vm2815, %v5500, 0
    %v5514 = vsel %vm2815, %v5501, 0
    %5516 = vmatprep.subr.mxu0 0.0
    %5517 = vmatpush1.msra.mxu0 %v5503
    %5518 = vmatprep.subr.mxu0 0.0
    %5519 = vmatpush1.msra.mxu0 %v5504
    %5520 = vmatprep.subr.mxu0 0.0
    %5521 = vmatpush1.msra.mxu0 %v5505
    %5522 = vmatprep.subr.mxu0 0.0
    %5523 = vmatpush1.msra.mxu0 %v5506
    %5524 = vmatprep.subr.mxu0 0.0
    %5525 = vmatpush1.msra.mxu0 0.0
    %5526 = vmatprep.subr.mxu0 0.0
    %5527 = vmatpush1.msra.mxu0 0.0
    %5528 = vmatprep.subr.mxu0 0.0
    %5529 = vmatpush1.msra.mxu0 0.0
    %5530 = vmatprep.subr.mxu0 0.0
    %5531 = vmatpush1.msra.mxu0 0.0
    %5532 = vmatprep.subr.mxu0 0.0
    %5533 = vmatpush1.msra.mxu0 0.0
    %5534 = vmatprep.subr.mxu0 0.0
    %5535 = vmatpush1.msra.mxu0 0.0
    %5536 = vmatprep.subr.mxu0 0.0
    %5537 = vmatpush1.msra.mxu0 0.0
    %5538 = vmatprep.subr.mxu0 0.0
    %5539 = vmatpush1.msra.mxu0 0.0
    %5540 = vmatprep.subr.mxu0 0.0
    %5541 = vmatpush1.msra.mxu0 0.0
    %5542 = vmatprep.subr.mxu0 0.0
    %5543 = vmatpush1.msra.mxu0 0.0
    %5544 = vmatprep.subr.mxu0 0.0
    %5545 = vmatpush1.msra.mxu0 0.0
    %5546 = vmatprep.subr.mxu0 0.0
    %5547 = vmatpush1.msra.mxu0 0.0
    %5548 = vmatprep.subr.mxu0 0.0
    %5549 = vmatpush1.msra.mxu0 0.0
    %5550 = vmatprep.subr.mxu0 0.0
    %5551 = vmatpush1.msra.mxu0 0.0
    %5552 = vmatprep.subr.mxu0 0.0
    %5553 = vmatpush1.msra.mxu0 0.0
    %5554 = vmatprep.subr.mxu0 0.0
    %5555 = vmatpush1.msra.mxu0 0.0
    %5556 = vmatprep.subr.mxu0 0.0
    %5557 = vmatpush1.msra.mxu0 0.0
    %5558 = vmatprep.subr.mxu0 0.0
    %5559 = vmatpush1.msra.mxu0 0.0
    %5560 = vmatprep.subr.mxu0 0.0
    %5561 = vmatpush1.msra.mxu0 0.0
    %5562 = vmatprep.subr.mxu0 0.0
    %5563 = vmatpush1.msra.mxu0 0.0
    %5564 = vmatprep.subr.mxu0 0.0
    %5565 = vmatpush1.msra.mxu0 0.0
    %5566 = vmatprep.subr.mxu0 0.0
    %5567 = vmatpush1.msra.mxu0 0.0
    %5568 = vmatprep.subr.mxu0 0.0
    %5569 = vmatpush1.msra.mxu0 0.0
    %5570 = vmatprep.subr.mxu0 0.0
    %5571 = vmatpush1.msra.mxu0 0.0
    %5572 = vmatprep.subr.mxu0 0.0
    %5573 = vmatpush1.msra.mxu0 0.0
    %5574 = vmatprep.subr.mxu0 0.0
    %5575 = vmatpush1.msra.mxu0 0.0
    %5576 = vmatprep.subr.mxu0 0.0
    %5577 = vmatpush1.msra.mxu0 0.0
    %5578 = vmatprep.subr.mxu0 0.0
    %5579 = vmatpush1.msra.mxu0 0.0
    %5580 = vmatprep.mubr.f32.mxu0 0.0
    %5581 = vmatmul.mubr.f32.gmra.mrb[0].mxu0 %v5508
    %v5582 = vpop.f32.mrb[0].mxu0
    %v5583 = vadd.f32 0.0, %v5582
    %v5584 = vpop.f32.mrb[0].mxu0
    %5585 = vmatprep.mubr.f32.mxu0 0.0
    %5586 = vmatmul.mubr.f32.gmra.mrb[0].mxu0 %v5511
    %v5587 = vpop.f32.mrb[0].mxu0
    %v5588 = vadd.f32 0.0, %v5587
    %v5589 = vpop.f32.mrb[0].mxu0
    %5590 = vmatprep.mubr.f32.mxu0 0.0
    %5591 = vmatmul.mubr.f32.gmra.mrb[0].mxu0 %v5514
    %v5592 = vpop.f32.mrb[0].mxu0
    %v5593 = vadd.f32 0.0, %v5592
    %v5594 = vpop.f32.mrb[0].mxu0
    %5595 = vdwg.mxu0
    %v5596 = vadd.f32 %v4356, %v5583
    %v5597 = vadd.f32 %v4357, %v5588
    %v5598 = vadd.f32 %v4358, %v5593
    %s5599 = scalar_lea.vmem %s27, 1
    %v5600 = vld [vmem:[%s5599] sm:$0x1]
    %v5602 = vlaneseq
    %v5603 = vshrl.u32 %v5602, 7
    %v5604 = vsub.s32 0, %v5603
    %v5605 = vrot.slane %v5600, %v5604
    %v5607 = vadd.f32 %v5596, %v5605
    %v5608 = vadd.f32 %v5597, %v5605
    %v5609 = vadd.f32 %v5598, %v5605
    %v5610 = vsel %vm2815, %v5607, 0.0
    %5611 = vadd.xlane.f32.xlu0 %v5610
    %v5612 = vpop.xlane.xlu0 %5611
    %v5613 = vsel %vm2815, %v5608, 0.0
    %5614 = vadd.xlane.f32.xlu0 %v5613
    %v5615 = vpop.xlane.xlu0 %5614
    %v5616 = vsel %vm2822, %v5609, 0.0
    %5617 = vadd.xlane.f32.xlu0 %v5616
    %v5618 = vpop.xlane.xlu0 %5617
    %v5619 = vmul.f32 %v5612, %v2826
    %v5620 = vmul.f32 %v5615, %v2826
    %v5621 = vmul.f32 %v5618, %v2826
    %v5622 = vsub.f32 %v5607, %v5619
    %v5623 = vsub.f32 %v5608, %v5620
    %v5624 = vsub.f32 %v5609, %v5621
    %v5625 = vmul.f32 %v5622, %v5622
    %v5626 = vmul.f32 %v5623, %v5623
    %v5627 = vmul.f32 %v5624, %v5624
    %v5628 = vsel %vm2815, %v5625, 0.0
    %5629 = vadd.xlane.f32.xlu0 %v5628
    %v5630 = vpop.xlane.xlu0 %5629
    %v5631 = vsel %vm2815, %v5626, 0.0
    %5632 = vadd.xlane.f32.xlu0 %v5631
    %v5633 = vpop.xlane.xlu0 %5632
    %v5634 = vsel %vm2822, %v5627, 0.0
    %5635 = vadd.xlane.f32.xlu0 %v5634
    %v5636 = vpop.xlane.xlu0 %5635
    %v5637 = vmul.f32 %v5630, %v2826
    %v5638 = vmul.f32 %v5633, %v2826
    %v5639 = vmul.f32 %v5636, %v2826
    %v5640 = vadd.f32 %v5637, 1e-06
    %v5641 = vadd.f32 %v5638, 1e-06
    %v5642 = vadd.f32 %v5639, 1e-06
    %v5643 = vrsqrt.pop %v5640
    %v5644 = vrsqrt.pop %v5641
    %v5645 = vrsqrt.pop %v5642
    %v5646 = vmul.f32 %v5622, %v5643
    %v5647 = vmul.f32 %v5623, %v5644
    %v5648 = vmul.f32 %v5624, %v5645
    %v5649 = vlaneseq
    %v5650 = vshrl.u32 %v5649, 7
    %v5651 = vsub.s32 2, %v5650
    %v5652 = vrot.slane %v4360, %v5651
    %v5653 = vmul.f32 %v5646, %v5652
    %v5654 = vmul.f32 %v5647, %v5652
    %v5655 = vmul.f32 %v5648, %v5652
    %v5656 = vlaneseq
    %v5657 = vshrl.u32 %v5656, 7
    %v5658 = vsub.s32 3, %v5657
    %v5659 = vrot.slane %v4360, %v5658
    %v5660 = vadd.f32 %v5653, %v5659
    %v5661 = vadd.f32 %v5654, %v5659
    %v5662 = vadd.f32 %v5655, %v5659
    %s5663 = scalar_lea.vmem %s19, 32
    %v5664 = vld [vmem:[%s5663] sm:$0xff]
    %v5665 = vld [vmem:[%s5663 + $0x8] sm:$0xff]
    %v5666 = vld [vmem:[%s5663 + $0x10] sm:$0xff]
    %v5667 = vld [vmem:[%s5663 + $0x18] sm:$0xff]
    %s5668 = scalar_lea.vmem %s17, 1
    %v5669 = vld [vmem:[%s5668] sm:$0x1]
    %v5671 = vlaneseq
    %v5672 = vshrl.u32 %v5671, 7
    %v5673 = vsub.s32 0, %v5672
    %v5674 = vrot.slane %v5669, %v5673
    %v5677 = vsel %vm2815, %v5660, 0
    %v5680 = vsel %vm2815, %v5661, 0
    %v5683 = vsel %vm2815, %v5662, 0
    %5685 = vmatprep.subr.mxu0 0.0
    %5686 = vmatpush1.msra.mxu0 %v5664
    %5687 = vmatprep.subr.mxu0 0.0
    %5688 = vmatpush1.msra.mxu0 %v5665
    %5689 = vmatprep.subr.mxu0 0.0
    %5690 = vmatpush1.msra.mxu0 %v5666
    %5691 = vmatprep.subr.mxu0 0.0
    %5692 = vmatpush1.msra.mxu0 %v5667
    %5693 = vmatprep.subr.mxu0 0.0
    %5694 = vmatpush1.msra.mxu0 0.0
    %5695 = vmatprep.subr.mxu0 0.0
    %5696 = vmatpush1.msra.mxu0 0.0
    %5697 = vmatprep.subr.mxu0 0.0
    %5698 = vmatpush1.msra.mxu0 0.0
    %5699 = vmatprep.subr.mxu0 0.0
    %5700 = vmatpush1.msra.mxu0 0.0
    %5701 = vmatprep.subr.mxu0 0.0
    %5702 = vmatpush1.msra.mxu0 0.0
    %5703 = vmatprep.subr.mxu0 0.0
    %5704 = vmatpush1.msra.mxu0 0.0
    %5705 = vmatprep.subr.mxu0 0.0
    %5706 = vmatpush1.msra.mxu0 0.0
    %5707 = vmatprep.subr.mxu0 0.0
    %5708 = vmatpush1.msra.mxu0 0.0
    %5709 = vmatprep.subr.mxu0 0.0
    %5710 = vmatpush1.msra.mxu0 0.0
    %5711 = vmatprep.subr.mxu0 0.0
    %5712 = vmatpush1.msra.mxu0 0.0
    %5713 = vmatprep.subr.mxu0 0.0
    %5714 = vmatpush1.msra.mxu0 0.0
    %5715 = vmatprep.subr.mxu0 0.0
    %5716 = vmatpush1.msra.mxu0 0.0
    %5717 = vmatprep.subr.mxu0 0.0
    %5718 = vmatpush1.msra.mxu0 0.0
    %5719 = vmatprep.subr.mxu0 0.0
    %5720 = vmatpush1.msra.mxu0 0.0
    %5721 = vmatprep.subr.mxu0 0.0
    %5722 = vmatpush1.msra.mxu0 0.0
    %5723 = vmatprep.subr.mxu0 0.0
    %5724 = vmatpush1.msra.mxu0 0.0
    %5725 = vmatprep.subr.mxu0 0.0
    %5726 = vmatpush1.msra.mxu0 0.0
    %5727 = vmatprep.subr.mxu0 0.0
    %5728 = vmatpush1.msra.mxu0 0.0
    %5729 = vmatprep.subr.mxu0 0.0
    %5730 = vmatpush1.msra.mxu0 0.0
    %5731 = vmatprep.subr.mxu0 0.0
    %5732 = vmatpush1.msra.mxu0 0.0
    %5733 = vmatprep.subr.mxu0 0.0
    %5734 = vmatpush1.msra.mxu0 0.0
    %5735 = vmatprep.subr.mxu0 0.0
    %5736 = vmatpush1.msra.mxu0 0.0
    %5737 = vmatprep.subr.mxu0 0.0
    %5738 = vmatpush1.msra.mxu0 0.0
    %5739 = vmatprep.subr.mxu0 0.0
    %5740 = vmatpush1.msra.mxu0 0.0
    %5741 = vmatprep.subr.mxu0 0.0
    %5742 = vmatpush1.msra.mxu0 0.0
    %5743 = vmatprep.subr.mxu0 0.0
    %5744 = vmatpush1.msra.mxu0 0.0
    %5745 = vmatprep.subr.mxu0 0.0
    %5746 = vmatpush1.msra.mxu0 0.0
    %5747 = vmatprep.subr.mxu0 0.0
    %5748 = vmatpush1.msra.mxu0 0.0
    %5749 = vmatprep.mubr.f32.mxu0 0.0
    %5750 = vmatmul.mubr.f32.gmra.mrb[0].mxu0 %v5677
    %v5751 = vpop.f32.mrb[0].mxu0
    %v5752 = vadd.f32 %v5674, %v5751
    %v5753 = vpop.f32.mrb[0].mxu0
    %5754 = vmatprep.mubr.f32.mxu0 0.0
    %5755 = vmatmul.mubr.f32.gmra.mrb[0].mxu0 %v5680
    %v5756 = vpop.f32.mrb[0].mxu0
    %v5757 = vadd.f32 %v5674, %v5756
    %v5758 = vpop.f32.mrb[0].mxu0
    %5759 = vmatprep.mubr.f32.mxu0 0.0
    %5760 = vmatmul.mubr.f32.gmra.mrb[0].mxu0 %v5683
    %v5761 = vpop.f32.mrb[0].mxu0
    %v5762 = vadd.f32 %v5674, %v5761
    %v5763 = vpop.f32.mrb[0].mxu0
    %5764 = vdwg.mxu0
    %v5765 = vmul.f32 %v5752, %v5752
    %v5766 = vmul.f32 %v5757, %v5757
    %v5767 = vmul.f32 %v5762, %v5762
    %v5768 = vmul.f32 %v5752, %v5765
    %v5769 = vmul.f32 %v5757, %v5766
    %v5770 = vmul.f32 %v5762, %v5767
    %v5771 = vmul.f32 %v5768, 0.044715
    %v5772 = vmul.f32 %v5769, 0.044715
    %v5773 = vmul.f32 %v5770, 0.044715
    %v5774 = vadd.f32 %v5752, %v5771
    %v5775 = vadd.f32 %v5757, %v5772
    %v5776 = vadd.f32 %v5762, %v5773
    %v5777 = vmul.f32 %v5774, 0.7978846
    %v5778 = vmul.f32 %v5775, 0.7978846
    %v5779 = vmul.f32 %v5776, 0.7978846
    %v5780 = vtanh.pop %v5777
    %v5781 = vtanh.pop %v5778
    %v5782 = vtanh.pop %v5779
    %v5783 = vadd.f32 %v5780, 1.0
    %v5784 = vadd.f32 %v5781, 1.0
    %v5785 = vadd.f32 %v5782, 1.0
    %v5786 = vmul.f32 %v5783, 0.5
    %v5787 = vmul.f32 %v5784, 0.5
    %v5788 = vmul.f32 %v5785, 0.5
    %v5789 = vmul.f32 %v5752, %v5786
    %v5790 = vmul.f32 %v5757, %v5787
    %v5791 = vmul.f32 %v5762, %v5788
    %s5792 = scalar_lea.vmem %s23, 64
    %v5793 = vld [vmem:[%s5792] sm:$0xff]
    %v5794 = vld [vmem:[%s5792 + $0x8] sm:$0xff]
    %v5795 = vld [vmem:[%s5792 + $0x10] sm:$0xff]
    %v5796 = vld [vmem:[%s5792 + $0x18] sm:$0xff]
    %v5797 = vld [vmem:[%s5792 + $0x20] sm:$0xff]
    %v5798 = vld [vmem:[%s5792 + $0x28] sm:$0xff]
    %v5799 = vld [vmem:[%s5792 + $0x30] sm:$0xff]
    %v5800 = vld [vmem:[%s5792 + $0x38] sm:$0xff]
    %v5802 = vsel %vm4256, %v5789, 0
    %v5805 = vsel %vm4256, %v5790, 0
    %v5808 = vsel %vm4256, %v5791, 0
    %5810 = vmatprep.subr.mxu0 0.0
    %5811 = vmatpush1.msra.mxu0 %v5793
    %5812 = vmatprep.subr.mxu0 0.0
    %5813 = vmatpush1.msra.mxu0 %v5794
    %5814 = vmatprep.subr.mxu0 0.0
    %5815 = vmatpush1.msra.mxu0 %v5795
    %5816 = vmatprep.subr.mxu0 0.0
    %5817 = vmatpush1.msra.mxu0 %v5796
    %5818 = vmatprep.subr.mxu0 0.0
    %5819 = vmatpush1.msra.mxu0 %v5797
    %5820 = vmatprep.subr.mxu0 0.0
    %5821 = vmatpush1.msra.mxu0 %v5798
    %5822 = vmatprep.subr.mxu0 0.0
    %5823 = vmatpush1.msra.mxu0 %v5799
    %5824 = vmatprep.subr.mxu0 0.0
    %5825 = vmatpush1.msra.mxu0 %v5800
    %5826 = vmatprep.subr.mxu0 0.0
    %5827 = vmatpush1.msra.mxu0 0.0
    %5828 = vmatprep.subr.mxu0 0.0
    %5829 = vmatpush1.msra.mxu0 0.0
    %5830 = vmatprep.subr.mxu0 0.0
    %5831 = vmatpush1.msra.mxu0 0.0
    %5832 = vmatprep.subr.mxu0 0.0
    %5833 = vmatpush1.msra.mxu0 0.0
    %5834 = vmatprep.subr.mxu0 0.0
    %5835 = vmatpush1.msra.mxu0 0.0
    %5836 = vmatprep.subr.mxu0 0.0
    %5837 = vmatpush1.msra.mxu0 0.0
    %5838 = vmatprep.subr.mxu0 0.0
    %5839 = vmatpush1.msra.mxu0 0.0
    %5840 = vmatprep.subr.mxu0 0.0
    %5841 = vmatpush1.msra.mxu0 0.0
    %5842 = vmatprep.subr.mxu0 0.0
    %5843 = vmatpush1.msra.mxu0 0.0
    %5844 = vmatprep.subr.mxu0 0.0
    %5845 = vmatpush1.msra.mxu0 0.0
    %5846 = vmatprep.subr.mxu0 0.0
    %5847 = vmatpush1.msra.mxu0 0.0
    %5848 = vmatprep.subr.mxu0 0.0
    %5849 = vmatpush1.msra.mxu0 0.0
    %5850 = vmatprep.subr.mxu0 0.0
    %5851 = vmatpush1.msra.mxu0 0.0
    %5852 = vmatprep.subr.mxu0 0.0
    %5853 = vmatpush1.msra.mxu0 0.0
    %5854 = vmatprep.subr.mxu0 0.0
    %5855 = vmatpush1.msra.mxu0 0.0
    %5856 = vmatprep.subr.mxu0 0.0
    %5857 = vmatpush1.msra.mxu0 0.0
    %5858 = vmatprep.subr.mxu0 0.0
    %5859 = vmatpush1.msra.mxu0 0.0
    %5860 = vmatprep.subr.mxu0 0.0
    %5861 = vmatpush1.msra.mxu0 0.0
    %5862 = vmatprep.subr.mxu0 0.0
    %5863 = vmatpush1.msra.mxu0 0.0
    %5864 = vmatprep.subr.mxu0 0.0
    %5865 = vmatpush1.msra.mxu0 0.0
    %5866 = vmatprep.subr.mxu0 0.0
    %5867 = vmatpush1.msra.mxu0 0.0
    %5868 = vmatprep.subr.mxu0 0.0
    %5869 = vmatpush1.msra.mxu0 0.0
    %5870 = vmatprep.subr.mxu0 0.0
    %5871 = vmatpush1.msra.mxu0 0.0
    %5872 = vmatprep.subr.mxu0 0.0
    %5873 = vmatpush1.msra.mxu0 0.0
    %5874 = vmatprep.mubr.f32.mxu0 0.0
    %5875 = vmatmul.mubr.f32.gmra.mrb[0].mxu0 %v5802
    %v5876 = vpop.f32.mrb[0].mxu0
    %v5877 = vadd.f32 0.0, %v5876
    %v5878 = vpop.f32.mrb[0].mxu0
    %5879 = vmatprep.mubr.f32.mxu0 0.0
    %5880 = vmatmul.mubr.f32.gmra.mrb[0].mxu0 %v5805
    %v5881 = vpop.f32.mrb[0].mxu0
    %v5882 = vadd.f32 0.0, %v5881
    %v5883 = vpop.f32.mrb[0].mxu0
    %5884 = vmatprep.mubr.f32.mxu0 0.0
    %5885 = vmatmul.mubr.f32.gmra.mrb[0].mxu0 %v5808
    %v5886 = vpop.f32.mrb[0].mxu0
    %v5887 = vadd.f32 0.0, %v5886
    %v5888 = vpop.f32.mrb[0].mxu0
    %5889 = vdwg.mxu0
    %v5890 = vadd.f32 %v5607, %v5877
    %v5891 = vadd.f32 %v5608, %v5882
    %v5892 = vadd.f32 %v5609, %v5887
    %s5893 = scalar_lea.vmem %s21, 1
    %v5894 = vld [vmem:[%s5893] sm:$0x1]
    %v5896 = vlaneseq
    %v5897 = vshrl.u32 %v5896, 7
    %v5898 = vsub.s32 0, %v5897
    %v5899 = vrot.slane %v5894, %v5898
    %v5901 = vadd.f32 %v5890, %v5899
    %v5902 = vadd.f32 %v5891, %v5899
    %v5903 = vadd.f32 %v5892, %v5899
    %v5904 = vld [vmem:[%s9] sm:$0x3]
    %v5905 = vsel %vm2815, %v5901, 0.0
    %5906 = vadd.xlane.f32.xlu0 %v5905
    %v5907 = vpop.xlane.xlu0 %5906
    %v5908 = vsel %vm2815, %v5902, 0.0
    %5909 = vadd.xlane.f32.xlu0 %v5908
    %v5910 = vpop.xlane.xlu0 %5909
    %v5911 = vsel %vm2822, %v5903, 0.0
    %5912 = vadd.xlane.f32.xlu0 %v5911
    %v5913 = vpop.xlane.xlu0 %5912
    %v5914 = vmul.f32 %v5907, %v2826
    %v5915 = vmul.f32 %v5910, %v2826
    %v5916 = vmul.f32 %v5913, %v2826
    %v5917 = vsub.f32 %v5901, %v5914
    %v5918 = vsub.f32 %v5902, %v5915
    %v5919 = vsub.f32 %v5903, %v5916
    %v5920 = vmul.f32 %v5917, %v5917
    %v5921 = vmul.f32 %v5918, %v5918
    %v5922 = vmul.f32 %v5919, %v5919
    %v5923 = vsel %vm2815, %v5920, 0.0
    %5924 = vadd.xlane.f32.xlu0 %v5923
    %v5925 = vpop.xlane.xlu0 %5924
    %v5926 = vsel %vm2815, %v5921, 0.0
    %5927 = vadd.xlane.f32.xlu0 %v5926
    %v5928 = vpop.xlane.xlu0 %5927
    %v5929 = vsel %vm2822, %v5922, 0.0
    %5930 = vadd.xlane.f32.xlu0 %v5929
    %v5931 = vpop.xlane.xlu0 %5930
    %v5932 = vmul.f32 %v5925, %v2826
    %v5933 = vmul.f32 %v5928, %v2826
    %v5934 = vmul.f32 %v5931, %v2826
    %v5935 = vadd.f32 %v5932, 1e-06
    %v5936 = vadd.f32 %v5933, 1e-06
    %v5937 = vadd.f32 %v5934, 1e-06
    %v5938 = vrsqrt.pop %v5935
    %v5939 = vrsqrt.pop %v5936
    %v5940 = vrsqrt.pop %v5937
    %v5941 = vmul.f32 %v5917, %v5938
    %v5942 = vmul.f32 %v5918, %v5939
    %v5943 = vmul.f32 %v5919, %v5940
    %v5944 = vlaneseq
    %v5945 = vshrl.u32 %v5944, 7
    %v5946 = vsub.s32 0, %v5945
    %v5947 = vrot.slane %v5904, %v5946
    %v5948 = vmul.f32 %v5941, %v5947
    %v5949 = vmul.f32 %v5942, %v5947
    %v5950 = vmul.f32 %v5943, %v5947
    %v5951 = vlaneseq
    %v5952 = vshrl.u32 %v5951, 7
    %v5953 = vsub.s32 1, %v5952
    %v5954 = vrot.slane %v5904, %v5953
    %v5955 = vadd.f32 %v5948, %v5954
    %v5956 = vadd.f32 %v5949, %v5954
    %v5957 = vadd.f32 %v5950, %v5954
    %v5958 = vld [vmem:[%s43] sm:$0xff]
    %v5959 = vld [vmem:[%s43 + $0x8] sm:$0xff]
    %v5960 = vld [vmem:[%s43 + $0x10] sm:$0x3]
    %v5961 = vld [vmem:[%s13] sm:$0xff]
    %v5962 = vld [vmem:[%s13 + $0x8] sm:$0xff]
    %v5963 = vld [vmem:[%s13 + $0x10] sm:$0x3]
    %v5965 = vsel %vm570, %v5958, 0
    %v5968 = vsel %vm570, %v5959, 0
    %v5971 = vsel %vm570, %v5960, 0
    %5973 = vmatprep.subr.mxu0 0.0
    %5974 = vmatpush1.msra.mxu0 %v2619
    %5975 = vmatprep.subr.mxu0 0.0
    %5976 = vmatpush1.msra.mxu0 %v2620
    %5977 = vmatprep.subr.mxu0 0.0
    %5978 = vmatpush1.msra.mxu0 0.0
    %5979 = vmatprep.subr.mxu0 0.0
    %5980 = vmatpush1.msra.mxu0 0.0
    %5981 = vmatprep.subr.mxu0 0.0
    %5982 = vmatpush1.msra.mxu0 0.0
    %5983 = vmatprep.subr.mxu0 0.0
    %5984 = vmatpush1.msra.mxu0 0.0
    %5985 = vmatprep.subr.mxu0 0.0
    %5986 = vmatpush1.msra.mxu0 0.0
    %5987 = vmatprep.subr.mxu0 0.0
    %5988 = vmatpush1.msra.mxu0 0.0
    %5989 = vmatprep.subr.mxu0 0.0
    %5990 = vmatpush1.msra.mxu0 0.0
    %5991 = vmatprep.subr.mxu0 0.0
    %5992 = vmatpush1.msra.mxu0 0.0
    %5993 = vmatprep.subr.mxu0 0.0
    %5994 = vmatpush1.msra.mxu0 0.0
    %5995 = vmatprep.subr.mxu0 0.0
    %5996 = vmatpush1.msra.mxu0 0.0
    %5997 = vmatprep.subr.mxu0 0.0
    %5998 = vmatpush1.msra.mxu0 0.0
    %5999 = vmatprep.subr.mxu0 0.0
    %6000 = vmatpush1.msra.mxu0 0.0
    %6001 = vmatprep.subr.mxu0 0.0
    %6002 = vmatpush1.msra.mxu0 0.0
    %6003 = vmatprep.subr.mxu0 0.0
    %6004 = vmatpush1.msra.mxu0 0.0
    %6005 = vmatprep.subr.mxu0 0.0
    %6006 = vmatpush1.msra.mxu0 0.0
    %6007 = vmatprep.subr.mxu0 0.0
    %6008 = vmatpush1.msra.mxu0 0.0
    %6009 = vmatprep.subr.mxu0 0.0
    %6010 = vmatpush1.msra.mxu0 0.0
    %6011 = vmatprep.subr.mxu0 0.0
    %6012 = vmatpush1.msra.mxu0 0.0
    %6013 = vmatprep.subr.mxu0 0.0
    %6014 = vmatpush1.msra.mxu0 0.0
    %6015 = vmatprep.subr.mxu0 0.0
    %6016 = vmatpush1.msra.mxu0 0.0
    %6017 = vmatprep.subr.mxu0 0.0
    %6018 = vmatpush1.msra.mxu0 0.0
    %6019 = vmatprep.subr.mxu0 0.0
    %6020 = vmatpush1.msra.mxu0 0.0
    %6021 = vmatprep.subr.mxu0 0.0
    %6022 = vmatpush1.msra.mxu0 0.0
    %6023 = vmatprep.subr.mxu0 0.0
    %6024 = vmatpush1.msra.mxu0 0.0
    %6025 = vmatprep.subr.mxu0 0.0
    %6026 = vmatpush1.msra.mxu0 0.0
    %6027 = vmatprep.subr.mxu0 0.0
    %6028 = vmatpush1.msra.mxu0 0.0
    %6029 = vmatprep.subr.mxu0 0.0
    %6030 = vmatpush1.msra.mxu0 0.0
    %6031 = vmatprep.subr.mxu0 0.0
    %6032 = vmatpush1.msra.mxu0 0.0
    %6033 = vmatprep.subr.mxu0 0.0
    %6034 = vmatpush1.msra.mxu0 0.0
    %6035 = vmatprep.subr.mxu0 0.0
    %6036 = vmatpush1.msra.mxu0 0.0
    %6037 = vmatprep.mubr.f32.mxu0 0.0
    %6038 = vmatmul.mubr.f32.gmra.mrb[0].mxu0 %v5965
    %v6039 = vpop.f32.mrb[0].mxu0
    %v6040 = vadd.f32 %v5961, %v6039
    %v6041 = vpop.f32.mrb[0].mxu0
    %6042 = vmatprep.mubr.f32.mxu0 0.0
    %6043 = vmatmul.mubr.f32.gmra.mrb[0].mxu0 %v5968
    %v6044 = vpop.f32.mrb[0].mxu0
    %v6045 = vadd.f32 %v5962, %v6044
    %v6046 = vpop.f32.mrb[0].mxu0
    %6047 = vmatprep.mubr.f32.mxu0 0.0
    %6048 = vmatmul.mubr.f32.gmra.mrb[0].mxu0 %v5971
    %v6049 = vpop.f32.mrb[0].mxu0
    %v6050 = vadd.f32 %v5963, %v6049
    %v6051 = vpop.f32.mrb[0].mxu0
    %6052 = vdwg.mxu0
    %s6053 = scalar_lea.vmem %s25, 8
    %v6054 = vld [vmem:[%s6053] sm:$0xf]
    %v6055 = vsel %vm2815, %v6040, 0.0
    %6056 = vadd.xlane.f32.xlu0 %v6055
    %v6057 = vpop.xlane.xlu0 %6056
    %v6058 = vsel %vm2815, %v6045, 0.0
    %6059 = vadd.xlane.f32.xlu0 %v6058
    %v6060 = vpop.xlane.xlu0 %6059
    %v6061 = vsel %vm2822, %v6050, 0.0
    %6062 = vadd.xlane.f32.xlu0 %v6061
    %v6063 = vpop.xlane.xlu0 %6062
    %v6064 = vmul.f32 %v6057, %v2826
    %v6065 = vmul.f32 %v6060, %v2826
    %v6066 = vmul.f32 %v6063, %v2826
    %v6067 = vsub.f32 %v6040, %v6064
    %v6068 = vsub.f32 %v6045, %v6065
    %v6069 = vsub.f32 %v6050, %v6066
    %v6070 = vmul.f32 %v6067, %v6067
    %v6071 = vmul.f32 %v6068, %v6068
    %v6072 = vmul.f32 %v6069, %v6069
    %v6073 = vsel %vm2815, %v6070, 0.0
    %6074 = vadd.xlane.f32.xlu0 %v6073
    %v6075 = vpop.xlane.xlu0 %6074
    %v6076 = vsel %vm2815, %v6071, 0.0
    %6077 = vadd.xlane.f32.xlu0 %v6076
    %v6078 = vpop.xlane.xlu0 %6077
    %v6079 = vsel %vm2822, %v6072, 0.0
    %6080 = vadd.xlane.f32.xlu0 %v6079
    %v6081 = vpop.xlane.xlu0 %6080
    %v6082 = vmul.f32 %v6075, %v2826
    %v6083 = vmul.f32 %v6078, %v2826
    %v6084 = vmul.f32 %v6081, %v2826
    %v6085 = vadd.f32 %v6082, 1e-06
    %v6086 = vadd.f32 %v6083, 1e-06
    %v6087 = vadd.f32 %v6084, 1e-06
    %v6088 = vrsqrt.pop %v6085
    %v6089 = vrsqrt.pop %v6086
    %v6090 = vrsqrt.pop %v6087
    %v6091 = vmul.f32 %v6067, %v6088
    %v6092 = vmul.f32 %v6068, %v6089
    %v6093 = vmul.f32 %v6069, %v6090
    %v6094 = vlaneseq
    %v6095 = vshrl.u32 %v6094, 7
    %v6096 = vsub.s32 0, %v6095
    %v6097 = vrot.slane %v6054, %v6096
    %v6098 = vmul.f32 %v6091, %v6097
    %v6099 = vmul.f32 %v6092, %v6097
    %v6100 = vmul.f32 %v6093, %v6097
    %v6101 = vlaneseq
    %v6102 = vshrl.u32 %v6101, 7
    %v6103 = vsub.s32 1, %v6102
    %v6104 = vrot.slane %v6054, %v6103
    %v6105 = vadd.f32 %v6098, %v6104
    %v6106 = vadd.f32 %v6099, %v6104
    %v6107 = vadd.f32 %v6100, %v6104
    %s6108 = scalar_lea.vmem %s33, 64
    %v6109 = vld [vmem:[%s6108] sm:$0xff]
    %v6110 = vld [vmem:[%s6108 + $0x8] sm:$0xff]
    %v6111 = vld [vmem:[%s6108 + $0x10] sm:$0xff]
    %v6112 = vld [vmem:[%s6108 + $0x18] sm:$0xff]
    %s6113 = scalar_lea.vmem %s31, 2
    %v6114 = vld [vmem:[%s6113] sm:$0x1]
    %v6116 = vlaneseq
    %v6117 = vshrl.u32 %v6116, 7
    %v6118 = vsub.s32 0, %v6117
    %v6119 = vrot.slane %v6114, %v6118
    %v6122 = vsel %vm2815, %v6105, 0
    %v6125 = vsel %vm2815, %v6106, 0
    %v6128 = vsel %vm2815, %v6107, 0
    %6130 = vmatprep.subr.mxu0 0.0
    %6131 = vmatpush1.msra.mxu0 %v6109
    %6132 = vmatprep.subr.mxu0 0.0
    %6133 = vmatpush1.msra.mxu0 %v6110
    %6134 = vmatprep.subr.mxu0 0.0
    %6135 = vmatpush1.msra.mxu0 %v6111
    %6136 = vmatprep.subr.mxu0 0.0
    %6137 = vmatpush1.msra.mxu0 %v6112
    %6138 = vmatprep.subr.mxu0 0.0
    %6139 = vmatpush1.msra.mxu0 0.0
    %6140 = vmatprep.subr.mxu0 0.0
    %6141 = vmatpush1.msra.mxu0 0.0
    %6142 = vmatprep.subr.mxu0 0.0
    %6143 = vmatpush1.msra.mxu0 0.0
    %6144 = vmatprep.subr.mxu0 0.0
    %6145 = vmatpush1.msra.mxu0 0.0
    %6146 = vmatprep.subr.mxu0 0.0
    %6147 = vmatpush1.msra.mxu0 0.0
    %6148 = vmatprep.subr.mxu0 0.0
    %6149 = vmatpush1.msra.mxu0 0.0
    %6150 = vmatprep.subr.mxu0 0.0
    %6151 = vmatpush1.msra.mxu0 0.0
    %6152 = vmatprep.subr.mxu0 0.0
    %6153 = vmatpush1.msra.mxu0 0.0
    %6154 = vmatprep.subr.mxu0 0.0
    %6155 = vmatpush1.msra.mxu0 0.0
    %6156 = vmatprep.subr.mxu0 0.0
    %6157 = vmatpush1.msra.mxu0 0.0
    %6158 = vmatprep.subr.mxu0 0.0
    %6159 = vmatpush1.msra.mxu0 0.0
    %6160 = vmatprep.subr.mxu0 0.0
    %6161 = vmatpush1.msra.mxu0 0.0
    %6162 = vmatprep.subr.mxu0 0.0
    %6163 = vmatpush1.msra.mxu0 0.0
    %6164 = vmatprep.subr.mxu0 0.0
    %6165 = vmatpush1.msra.mxu0 0.0
    %6166 = vmatprep.subr.mxu0 0.0
    %6167 = vmatpush1.msra.mxu0 0.0
    %6168 = vmatprep.subr.mxu0 0.0
    %6169 = vmatpush1.msra.mxu0 0.0
    %6170 = vmatprep.subr.mxu0 0.0
    %6171 = vmatpush1.msra.mxu0 0.0
    %6172 = vmatprep.subr.mxu0 0.0
    %6173 = vmatpush1.msra.mxu0 0.0
    %6174 = vmatprep.subr.mxu0 0.0
    %6175 = vmatpush1.msra.mxu0 0.0
    %6176 = vmatprep.subr.mxu0 0.0
    %6177 = vmatpush1.msra.mxu0 0.0
    %6178 = vmatprep.subr.mxu0 0.0
    %6179 = vmatpush1.msra.mxu0 0.0
    %6180 = vmatprep.subr.mxu0 0.0
    %6181 = vmatpush1.msra.mxu0 0.0
    %6182 = vmatprep.subr.mxu0 0.0
    %6183 = vmatpush1.msra.mxu0 0.0
    %6184 = vmatprep.subr.mxu0 0.0
    %6185 = vmatpush1.msra.mxu0 0.0
    %6186 = vmatprep.subr.mxu0 0.0
    %6187 = vmatpush1.msra.mxu0 0.0
    %6188 = vmatprep.subr.mxu0 0.0
    %6189 = vmatpush1.msra.mxu0 0.0
    %6190 = vmatprep.subr.mxu0 0.0
    %6191 = vmatpush1.msra.mxu0 0.0
    %6192 = vmatprep.subr.mxu0 0.0
    %6193 = vmatpush1.msra.mxu0 0.0
    %6194 = vmatprep.mubr.f32.mxu0 0.0
    %6195 = vmatmul.mubr.f32.gmra.mrb[0].mxu0 %v6122
    %v6196 = vpop.f32.mrb[0].mxu0
    %v6197 = vadd.f32 %v6119, %v6196
    %v6198 = vpop.f32.mrb[0].mxu0
    %6199 = vmatprep.mubr.f32.mxu0 0.0
    %6200 = vmatmul.mubr.f32.gmra.mrb[0].mxu0 %v6125
    %v6201 = vpop.f32.mrb[0].mxu0
    %v6202 = vadd.f32 %v6119, %v6201
    %v6203 = vpop.f32.mrb[0].mxu0
    %6204 = vmatprep.mubr.f32.mxu0 0.0
    %6205 = vmatmul.mubr.f32.gmra.mrb[0].mxu0 %v6128
    %v6206 = vpop.f32.mrb[0].mxu0
    %v6207 = vadd.f32 %v6119, %v6206
    %v6208 = vpop.f32.mrb[0].mxu0
    %6209 = vdwg.mxu0
    %6213 = vrot.lane.b32.xlu0 %v6197, 96
    %v6214 = vpop.permute.xlu0 %6213
    %6215 = vrot.lane.b32.xlu0 %v6202, 96
    %v6216 = vpop.permute.xlu0 %6215
    %6217 = vrot.lane.b32.xlu0 %v6207, 96
    %v6218 = vpop.permute.xlu0 %6217
    %v6219 = vsel %vm2980, %v6197, 0
    %v6221 = vsel %vm2980, %v6202, 0
    %v6223 = vsel %vm2980, %v6207, 0
    %v6225 = vsel %vm2980, %v6214, 0
    %v6227 = vsel %vm2980, %v6216, 0
    %v6229 = vsel %vm2980, %v6218, 0
    %6231 = vmatprep.subr.mxu0 0.0
    %6232 = vmatpush1.xpose.msra.mxu0 %v6225
    %6233 = vmatprep.subr.mxu0 0.0
    %6234 = vmatpush1.xpose.msra.mxu0 %v6227
    %6235 = vmatprep.subr.mxu0 0.0
    %6236 = vmatpush1.xpose.msra.mxu0 %v6229
    %6237 = vmatprep.subr.mxu0 0.0
    %6238 = vmatpush1.xpose.msra.mxu0 0.0
    %6239 = vmatprep.subr.mxu0 0.0
    %6240 = vmatpush1.xpose.msra.mxu0 0.0
    %6241 = vmatprep.subr.mxu0 0.0
    %6242 = vmatpush1.xpose.msra.mxu0 0.0
    %6243 = vmatprep.subr.mxu0 0.0
    %6244 = vmatpush1.xpose.msra.mxu0 0.0
    %6245 = vmatprep.subr.mxu0 0.0
    %6246 = vmatpush1.xpose.msra.mxu0 0.0
    %6247 = vmatprep.subr.mxu0 0.0
    %6248 = vmatpush1.xpose.msra.mxu0 0.0
    %6249 = vmatprep.subr.mxu0 0.0
    %6250 = vmatpush1.xpose.msra.mxu0 0.0
    %6251 = vmatprep.subr.mxu0 0.0
    %6252 = vmatpush1.xpose.msra.mxu0 0.0
    %6253 = vmatprep.subr.mxu0 0.0
    %6254 = vmatpush1.xpose.msra.mxu0 0.0
    %6255 = vmatprep.subr.mxu0 0.0
    %6256 = vmatpush1.xpose.msra.mxu0 0.0
    %6257 = vmatprep.subr.mxu0 0.0
    %6258 = vmatpush1.xpose.msra.mxu0 0.0
    %6259 = vmatprep.subr.mxu0 0.0
    %6260 = vmatpush1.xpose.msra.mxu0 0.0
    %6261 = vmatprep.subr.mxu0 0.0
    %6262 = vmatpush1.xpose.msra.mxu0 0.0
    %6263 = vmatprep.subr.mxu0 0.0
    %6264 = vmatpush1.xpose.msra.mxu0 0.0
    %6265 = vmatprep.subr.mxu0 0.0
    %6266 = vmatpush1.xpose.msra.mxu0 0.0
    %6267 = vmatprep.subr.mxu0 0.0
    %6268 = vmatpush1.xpose.msra.mxu0 0.0
    %6269 = vmatprep.subr.mxu0 0.0
    %6270 = vmatpush1.xpose.msra.mxu0 0.0
    %6271 = vmatprep.subr.mxu0 0.0
    %6272 = vmatpush1.xpose.msra.mxu0 0.0
    %6273 = vmatprep.subr.mxu0 0.0
    %6274 = vmatpush1.xpose.msra.mxu0 0.0
    %6275 = vmatprep.subr.mxu0 0.0
    %6276 = vmatpush1.xpose.msra.mxu0 0.0
    %6277 = vmatprep.subr.mxu0 0.0
    %6278 = vmatpush1.xpose.msra.mxu0 0.0
    %6279 = vmatprep.subr.mxu0 0.0
    %6280 = vmatpush1.xpose.msra.mxu0 0.0
    %6281 = vmatprep.subr.mxu0 0.0
    %6282 = vmatpush1.xpose.msra.mxu0 0.0
    %6283 = vmatprep.subr.mxu0 0.0
    %6284 = vmatpush1.xpose.msra.mxu0 0.0
    %6285 = vmatprep.subr.mxu0 0.0
    %6286 = vmatpush1.xpose.msra.mxu0 0.0
    %6287 = vmatprep.subr.mxu0 0.0
    %6288 = vmatpush1.xpose.msra.mxu0 0.0
    %6289 = vmatprep.subr.mxu0 0.0
    %6290 = vmatpush1.xpose.msra.mxu0 0.0
    %6291 = vmatprep.subr.mxu0 0.0
    %6292 = vmatpush1.xpose.msra.mxu0 0.0
    %6293 = vmatprep.subr.mxu0 0.0
    %6294 = vmatpush1.xpose.msra.mxu0 0.0
    %6295 = vmatprep.mubr.f32.mxu0 0.0
    %6296 = vmatmul.mubr.f32.gmra.mrb[0].mxu0 %v6219
    %v6297 = vpop.f32.mrb[0].mxu0
    %v6298 = vadd.f32 %v157, %v6297
    %v6299 = vpop.f32.mrb[0].mxu0
    %6300 = vmatprep.mubr.f32.mxu0 0.0
    %6301 = vmatmul.mubr.f32.gmra.mrb[0].mxu0 %v6221
    %v6302 = vpop.f32.mrb[0].mxu0
    %v6303 = vadd.f32 %v158, %v6302
    %v6304 = vpop.f32.mrb[0].mxu0
    %6305 = vmatprep.mubr.f32.mxu0 0.0
    %6306 = vmatmul.mubr.f32.gmra.mrb[0].mxu0 %v6223
    %v6307 = vpop.f32.mrb[0].mxu0
    %v6308 = vadd.f32 %v159, %v6307
    %v6309 = vpop.f32.mrb[0].mxu0
    %6310 = vdwg.mxu0
    %v6311 = vsel %vm3073, %v6298, -inf
    %6312 = vmax.xlane.f32.xlu0 %v6311
    %v6313 = vpop.xlane.xlu0 %6312
    %v6314 = vsel %vm3073, %v6303, -inf
    %6315 = vmax.xlane.f32.xlu0 %v6314
    %v6316 = vpop.xlane.xlu0 %6315
    %v6317 = vsel %vm3080, %v6308, -inf
    %6318 = vmax.xlane.f32.xlu0 %v6317
    %v6319 = vpop.xlane.xlu0 %6318
    %v6320 = vsub.f32 %v6298, %v6313
    %v6321 = vsub.f32 %v6303, %v6316
    %v6322 = vsub.f32 %v6308, %v6319
    %v6323 = vmul.f32 %v6320, 1.442695
    %v6324 = vpow.pop %v6323
    %v6325 = vmul.f32 %v6321, 1.442695
    %v6326 = vpow.pop %v6325
    %v6327 = vmul.f32 %v6322, 1.442695
    %v6328 = vpow.pop %v6327
    %v6329 = vsel %vm3073, %v6324, 0.0
    %6330 = vadd.xlane.f32.xlu0 %v6329
    %v6331 = vpop.xlane.xlu0 %6330
    %v6332 = vsel %vm3073, %v6326, 0.0
    %6333 = vadd.xlane.f32.xlu0 %v6332
    %v6334 = vpop.xlane.xlu0 %6333
    %v6335 = vsel %vm3080, %v6328, 0.0
    %6336 = vadd.xlane.f32.xlu0 %v6335
    %v6337 = vpop.xlane.xlu0 %6336
    %v6338 = vrcp.pop %v6331
    %v6339 = vrcp.pop %v6334
    %v6340 = vrcp.pop %v6337
    %v6341 = vmul.f32 %v6324, %v6338
    %v6342 = vmul.f32 %v6326, %v6339
    %v6343 = vmul.f32 %v6328, %v6340
    %6344 = vrot.lane.b32.xlu0 %v6197, 64
    %v6345 = vpop.permute.xlu0 %6344
    %6346 = vrot.lane.b32.xlu0 %v6202, 64
    %v6347 = vpop.permute.xlu0 %6346
    %6348 = vrot.lane.b32.xlu0 %v6207, 64
    %v6349 = vpop.permute.xlu0 %6348
    %v6353 = vsel %vm3073, %v6341, 0
    %v6356 = vsel %vm3073, %v6342, 0
    %v6359 = vsel %vm3073, %v6343, 0
    %v6361 = vsel %vm3125, %v6349, 0
    %6363 = vmatprep.subr.mxu0 0.0
    %6364 = vmatpush1.msra.mxu0 %v6345
    %6365 = vmatprep.subr.mxu0 0.0
    %6366 = vmatpush1.msra.mxu0 %v6347
    %6367 = vmatprep.subr.mxu0 0.0
    %6368 = vmatpush1.msra.mxu0 %v6361
    %6369 = vmatprep.subr.mxu0 0.0
    %6370 = vmatpush1.msra.mxu0 0.0
    %6371 = vmatprep.subr.mxu0 0.0
    %6372 = vmatpush1.msra.mxu0 0.0
    %6373 = vmatprep.subr.mxu0 0.0
    %6374 = vmatpush1.msra.mxu0 0.0
    %6375 = vmatprep.subr.mxu0 0.0
    %6376 = vmatpush1.msra.mxu0 0.0
    %6377 = vmatprep.subr.mxu0 0.0
    %6378 = vmatpush1.msra.mxu0 0.0
    %6379 = vmatprep.subr.mxu0 0.0
    %6380 = vmatpush1.msra.mxu0 0.0
    %6381 = vmatprep.subr.mxu0 0.0
    %6382 = vmatpush1.msra.mxu0 0.0
    %6383 = vmatprep.subr.mxu0 0.0
    %6384 = vmatpush1.msra.mxu0 0.0
    %6385 = vmatprep.subr.mxu0 0.0
    %6386 = vmatpush1.msra.mxu0 0.0
    %6387 = vmatprep.subr.mxu0 0.0
    %6388 = vmatpush1.msra.mxu0 0.0
    %6389 = vmatprep.subr.mxu0 0.0
    %6390 = vmatpush1.msra.mxu0 0.0
    %6391 = vmatprep.subr.mxu0 0.0
    %6392 = vmatpush1.msra.mxu0 0.0
    %6393 = vmatprep.subr.mxu0 0.0
    %6394 = vmatpush1.msra.mxu0 0.0
    %6395 = vmatprep.subr.mxu0 0.0
    %6396 = vmatpush1.msra.mxu0 0.0
    %6397 = vmatprep.subr.mxu0 0.0
    %6398 = vmatpush1.msra.mxu0 0.0
    %6399 = vmatprep.subr.mxu0 0.0
    %6400 = vmatpush1.msra.mxu0 0.0
    %6401 = vmatprep.subr.mxu0 0.0
    %6402 = vmatpush1.msra.mxu0 0.0
    %6403 = vmatprep.subr.mxu0 0.0
    %6404 = vmatpush1.msra.mxu0 0.0
    %6405 = vmatprep.subr.mxu0 0.0
    %6406 = vmatpush1.msra.mxu0 0.0
    %6407 = vmatprep.subr.mxu0 0.0
    %6408 = vmatpush1.msra.mxu0 0.0
    %6409 = vmatprep.subr.mxu0 0.0
    %6410 = vmatpush1.msra.mxu0 0.0
    %6411 = vmatprep.subr.mxu0 0.0
    %6412 = vmatpush1.msra.mxu0 0.0
    %6413 = vmatprep.subr.mxu0 0.0
    %6414 = vmatpush1.msra.mxu0 0.0
    %6415 = vmatprep.subr.mxu0 0.0
    %6416 = vmatpush1.msra.mxu0 0.0
    %6417 = vmatprep.subr.mxu0 0.0
    %6418 = vmatpush1.msra.mxu0 0.0
    %6419 = vmatprep.subr.mxu0 0.0
    %6420 = vmatpush1.msra.mxu0 0.0
    %6421 = vmatprep.subr.mxu0 0.0
    %6422 = vmatpush1.msra.mxu0 0.0
    %6423 = vmatprep.subr.mxu0 0.0
    %6424 = vmatpush1.msra.mxu0 0.0
    %6425 = vmatprep.subr.mxu0 0.0
    %6426 = vmatpush1.msra.mxu0 0.0
    %6427 = vmatprep.mubr.f32.mxu0 0.0
    %6428 = vmatmul.mubr.f32.gmra.mrb[0].mxu0 %v6353
    %v6429 = vpop.f32.mrb[0].mxu0
    %v6430 = vadd.f32 0.0, %v6429
    %v6431 = vpop.f32.mrb[0].mxu0
    %6432 = vmatprep.mubr.f32.mxu0 0.0
    %6433 = vmatmul.mubr.f32.gmra.mrb[0].mxu0 %v6356
    %v6434 = vpop.f32.mrb[0].mxu0
    %v6435 = vadd.f32 0.0, %v6434
    %v6436 = vpop.f32.mrb[0].mxu0
    %6437 = vmatprep.mubr.f32.mxu0 0.0
    %6438 = vmatmul.mubr.f32.gmra.mrb[0].mxu0 %v6359
    %v6439 = vpop.f32.mrb[0].mxu0
    %v6440 = vadd.f32 0.0, %v6439
    %v6441 = vpop.f32.mrb[0].mxu0
    %6442 = vdwg.mxu0
    %6443 = vrot.lane.b32.xlu0 %v6197, 120
    %v6444 = vpop.permute.xlu0 %6443
    %6445 = vrot.lane.b32.xlu0 %v6202, 120
    %v6446 = vpop.permute.xlu0 %6445
    %6447 = vrot.lane.b32.xlu0 %v6207, 120
    %v6448 = vpop.permute.xlu0 %6447
    %6449 = vrot.lane.b32.xlu0 %v6197, 88
    %v6450 = vpop.permute.xlu0 %6449
    %6451 = vrot.lane.b32.xlu0 %v6202, 88
    %v6452 = vpop.permute.xlu0 %6451
    %6453 = vrot.lane.b32.xlu0 %v6207, 88
    %v6454 = vpop.permute.xlu0 %6453
    %v6455 = vsel %vm2980, %v6444, 0
    %v6457 = vsel %vm2980, %v6446, 0
    %v6459 = vsel %vm2980, %v6448, 0
    %v6461 = vsel %vm2980, %v6450, 0
    %v6463 = vsel %vm2980, %v6452, 0
    %v6465 = vsel %vm2980, %v6454, 0
    %6467 = vmatprep.subr.mxu0 0.0
    %6468 = vmatpush1.xpose.msra.mxu0 %v6461
    %6469 = vmatprep.subr.mxu0 0.0
    %6470 = vmatpush1.xpose.msra.mxu0 %v6463
    %6471 = vmatprep.subr.mxu0 0.0
    %6472 = vmatpush1.xpose.msra.mxu0 %v6465
    %6473 = vmatprep.subr.mxu0 0.0
    %6474 = vmatpush1.xpose.msra.mxu0 0.0
    %6475 = vmatprep.subr.mxu0 0.0
    %6476 = vmatpush1.xpose.msra.mxu0 0.0
    %6477 = vmatprep.subr.mxu0 0.0
    %6478 = vmatpush1.xpose.msra.mxu0 0.0
    %6479 = vmatprep.subr.mxu0 0.0
    %6480 = vmatpush1.xpose.msra.mxu0 0.0
    %6481 = vmatprep.subr.mxu0 0.0
    %6482 = vmatpush1.xpose.msra.mxu0 0.0
    %6483 = vmatprep.subr.mxu0 0.0
    %6484 = vmatpush1.xpose.msra.mxu0 0.0
    %6485 = vmatprep.subr.mxu0 0.0
    %6486 = vmatpush1.xpose.msra.mxu0 0.0
    %6487 = vmatprep.subr.mxu0 0.0
    %6488 = vmatpush1.xpose.msra.mxu0 0.0
    %6489 = vmatprep.subr.mxu0 0.0
    %6490 = vmatpush1.xpose.msra.mxu0 0.0
    %6491 = vmatprep.subr.mxu0 0.0
    %6492 = vmatpush1.xpose.msra.mxu0 0.0
    %6493 = vmatprep.subr.mxu0 0.0
    %6494 = vmatpush1.xpose.msra.mxu0 0.0
    %6495 = vmatprep.subr.mxu0 0.0
    %6496 = vmatpush1.xpose.msra.mxu0 0.0
    %6497 = vmatprep.subr.mxu0 0.0
    %6498 = vmatpush1.xpose.msra.mxu0 0.0
    %6499 = vmatprep.subr.mxu0 0.0
    %6500 = vmatpush1.xpose.msra.mxu0 0.0
    %6501 = vmatprep.subr.mxu0 0.0
    %6502 = vmatpush1.xpose.msra.mxu0 0.0
    %6503 = vmatprep.subr.mxu0 0.0
    %6504 = vmatpush1.xpose.msra.mxu0 0.0
    %6505 = vmatprep.subr.mxu0 0.0
    %6506 = vmatpush1.xpose.msra.mxu0 0.0
    %6507 = vmatprep.subr.mxu0 0.0
    %6508 = vmatpush1.xpose.msra.mxu0 0.0
    %6509 = vmatprep.subr.mxu0 0.0
    %6510 = vmatpush1.xpose.msra.mxu0 0.0
    %6511 = vmatprep.subr.mxu0 0.0
    %6512 = vmatpush1.xpose.msra.mxu0 0.0
    %6513 = vmatprep.subr.mxu0 0.0
    %6514 = vmatpush1.xpose.msra.mxu0 0.0
    %6515 = vmatprep.subr.mxu0 0.0
    %6516 = vmatpush1.xpose.msra.mxu0 0.0
    %6517 = vmatprep.subr.mxu0 0.0
    %6518 = vmatpush1.xpose.msra.mxu0 0.0
    %6519 = vmatprep.subr.mxu0 0.0
    %6520 = vmatpush1.xpose.msra.mxu0 0.0
    %6521 = vmatprep.subr.mxu0 0.0
    %6522 = vmatpush1.xpose.msra.mxu0 0.0
    %6523 = vmatprep.subr.mxu0 0.0
    %6524 = vmatpush1.xpose.msra.mxu0 0.0
    %6525 = vmatprep.subr.mxu0 0.0
    %6526 = vmatpush1.xpose.msra.mxu0 0.0
    %6527 = vmatprep.subr.mxu0 0.0
    %6528 = vmatpush1.xpose.msra.mxu0 0.0
    %6529 = vmatprep.subr.mxu0 0.0
    %6530 = vmatpush1.xpose.msra.mxu0 0.0
    %6531 = vmatprep.mubr.f32.mxu0 0.0
    %6532 = vmatmul.mubr.f32.gmra.mrb[0].mxu0 %v6455
    %v6533 = vpop.f32.mrb[0].mxu0
    %v6534 = vadd.f32 %v157, %v6533
    %v6535 = vpop.f32.mrb[0].mxu0
    %6536 = vmatprep.mubr.f32.mxu0 0.0
    %6537 = vmatmul.mubr.f32.gmra.mrb[0].mxu0 %v6457
    %v6538 = vpop.f32.mrb[0].mxu0
    %v6539 = vadd.f32 %v158, %v6538
    %v6540 = vpop.f32.mrb[0].mxu0
    %6541 = vmatprep.mubr.f32.mxu0 0.0
    %6542 = vmatmul.mubr.f32.gmra.mrb[0].mxu0 %v6459
    %v6543 = vpop.f32.mrb[0].mxu0
    %v6544 = vadd.f32 %v159, %v6543
    %v6545 = vpop.f32.mrb[0].mxu0
    %6546 = vdwg.mxu0
    %v6547 = vsel %vm3073, %v6534, -inf
    %6548 = vmax.xlane.f32.xlu0 %v6547
    %v6549 = vpop.xlane.xlu0 %6548
    %v6550 = vsel %vm3073, %v6539, -inf
    %6551 = vmax.xlane.f32.xlu0 %v6550
    %v6552 = vpop.xlane.xlu0 %6551
    %v6553 = vsel %vm3080, %v6544, -inf
    %6554 = vmax.xlane.f32.xlu0 %v6553
    %v6555 = vpop.xlane.xlu0 %6554
    %v6556 = vsub.f32 %v6534, %v6549
    %v6557 = vsub.f32 %v6539, %v6552
    %v6558 = vsub.f32 %v6544, %v6555
    %v6559 = vmul.f32 %v6556, 1.442695
    %v6560 = vpow.pop %v6559
    %v6561 = vmul.f32 %v6557, 1.442695
    %v6562 = vpow.pop %v6561
    %v6563 = vmul.f32 %v6558, 1.442695
    %v6564 = vpow.pop %v6563
    %v6565 = vsel %vm3073, %v6560, 0.0
    %6566 = vadd.xlane.f32.xlu0 %v6565
    %v6567 = vpop.xlane.xlu0 %6566
    %v6568 = vsel %vm3073, %v6562, 0.0
    %6569 = vadd.xlane.f32.xlu0 %v6568
    %v6570 = vpop.xlane.xlu0 %6569
    %v6571 = vsel %vm3080, %v6564, 0.0
    %6572 = vadd.xlane.f32.xlu0 %v6571
    %v6573 = vpop.xlane.xlu0 %6572
    %v6574 = vrcp.pop %v6567
    %v6575 = vrcp.pop %v6570
    %v6576 = vrcp.pop %v6573
    %v6577 = vmul.f32 %v6560, %v6574
    %v6578 = vmul.f32 %v6562, %v6575
    %v6579 = vmul.f32 %v6564, %v6576
    %6580 = vrot.lane.b32.xlu0 %v6197, 56
    %v6581 = vpop.permute.xlu0 %6580
    %6582 = vrot.lane.b32.xlu0 %v6202, 56
    %v6583 = vpop.permute.xlu0 %6582
    %6584 = vrot.lane.b32.xlu0 %v6207, 56
    %v6585 = vpop.permute.xlu0 %6584
    %v6589 = vsel %vm3073, %v6577, 0
    %v6592 = vsel %vm3073, %v6578, 0
    %v6595 = vsel %vm3073, %v6579, 0
    %v6597 = vsel %vm3125, %v6585, 0
    %6599 = vmatprep.subr.mxu0 0.0
    %6600 = vmatpush1.msra.mxu0 %v6581
    %6601 = vmatprep.subr.mxu0 0.0
    %6602 = vmatpush1.msra.mxu0 %v6583
    %6603 = vmatprep.subr.mxu0 0.0
    %6604 = vmatpush1.msra.mxu0 %v6597
    %6605 = vmatprep.subr.mxu0 0.0
    %6606 = vmatpush1.msra.mxu0 0.0
    %6607 = vmatprep.subr.mxu0 0.0
    %6608 = vmatpush1.msra.mxu0 0.0
    %6609 = vmatprep.subr.mxu0 0.0
    %6610 = vmatpush1.msra.mxu0 0.0
    %6611 = vmatprep.subr.mxu0 0.0
    %6612 = vmatpush1.msra.mxu0 0.0
    %6613 = vmatprep.subr.mxu0 0.0
    %6614 = vmatpush1.msra.mxu0 0.0
    %6615 = vmatprep.subr.mxu0 0.0
    %6616 = vmatpush1.msra.mxu0 0.0
    %6617 = vmatprep.subr.mxu0 0.0
    %6618 = vmatpush1.msra.mxu0 0.0
    %6619 = vmatprep.subr.mxu0 0.0
    %6620 = vmatpush1.msra.mxu0 0.0
    %6621 = vmatprep.subr.mxu0 0.0
    %6622 = vmatpush1.msra.mxu0 0.0
    %6623 = vmatprep.subr.mxu0 0.0
    %6624 = vmatpush1.msra.mxu0 0.0
    %6625 = vmatprep.subr.mxu0 0.0
    %6626 = vmatpush1.msra.mxu0 0.0
    %6627 = vmatprep.subr.mxu0 0.0
    %6628 = vmatpush1.msra.mxu0 0.0
    %6629 = vmatprep.subr.mxu0 0.0
    %6630 = vmatpush1.msra.mxu0 0.0
    %6631 = vmatprep.subr.mxu0 0.0
    %6632 = vmatpush1.msra.mxu0 0.0
    %6633 = vmatprep.subr.mxu0 0.0
    %6634 = vmatpush1.msra.mxu0 0.0
    %6635 = vmatprep.subr.mxu0 0.0
    %6636 = vmatpush1.msra.mxu0 0.0
    %6637 = vmatprep.subr.mxu0 0.0
    %6638 = vmatpush1.msra.mxu0 0.0
    %6639 = vmatprep.subr.mxu0 0.0
    %6640 = vmatpush1.msra.mxu0 0.0
    %6641 = vmatprep.subr.mxu0 0.0
    %6642 = vmatpush1.msra.mxu0 0.0
    %6643 = vmatprep.subr.mxu0 0.0
    %6644 = vmatpush1.msra.mxu0 0.0
    %6645 = vmatprep.subr.mxu0 0.0
    %6646 = vmatpush1.msra.mxu0 0.0
    %6647 = vmatprep.subr.mxu0 0.0
    %6648 = vmatpush1.msra.mxu0 0.0
    %6649 = vmatprep.subr.mxu0 0.0
    %6650 = vmatpush1.msra.mxu0 0.0
    %6651 = vmatprep.subr.mxu0 0.0
    %6652 = vmatpush1.msra.mxu0 0.0
    %6653 = vmatprep.subr.mxu0 0.0
    %6654 = vmatpush1.msra.mxu0 0.0
    %6655 = vmatprep.subr.mxu0 0.0
    %6656 = vmatpush1.msra.mxu0 0.0
    %6657 = vmatprep.subr.mxu0 0.0
    %6658 = vmatpush1.msra.mxu0 0.0
    %6659 = vmatprep.subr.mxu0 0.0
    %6660 = vmatpush1.msra.mxu0 0.0
    %6661 = vmatprep.subr.mxu0 0.0
    %6662 = vmatpush1.msra.mxu0 0.0
    %6663 = vmatprep.mubr.f32.mxu0 0.0
    %6664 = vmatmul.mubr.f32.gmra.mrb[0].mxu0 %v6589
    %v6665 = vpop.f32.mrb[0].mxu0
    %v6666 = vadd.f32 0.0, %v6665
    %v6667 = vpop.f32.mrb[0].mxu0
    %6668 = vmatprep.mubr.f32.mxu0 0.0
    %6669 = vmatmul.mubr.f32.gmra.mrb[0].mxu0 %v6592
    %v6670 = vpop.f32.mrb[0].mxu0
    %v6671 = vadd.f32 0.0, %v6670
    %v6672 = vpop.f32.mrb[0].mxu0
    %6673 = vmatprep.mubr.f32.mxu0 0.0
    %6674 = vmatmul.mubr.f32.gmra.mrb[0].mxu0 %v6595
    %v6675 = vpop.f32.mrb[0].mxu0
    %v6676 = vadd.f32 0.0, %v6675
    %v6677 = vpop.f32.mrb[0].mxu0
    %6678 = vdwg.mxu0
    %6679 = vrot.lane.b32.xlu0 %v6197, 112
    %v6680 = vpop.permute.xlu0 %6679
    %6681 = vrot.lane.b32.xlu0 %v6202, 112
    %v6682 = vpop.permute.xlu0 %6681
    %6683 = vrot.lane.b32.xlu0 %v6207, 112
    %v6684 = vpop.permute.xlu0 %6683
    %6685 = vrot.lane.b32.xlu0 %v6197, 80
    %v6686 = vpop.permute.xlu0 %6685
    %6687 = vrot.lane.b32.xlu0 %v6202, 80
    %v6688 = vpop.permute.xlu0 %6687
    %6689 = vrot.lane.b32.xlu0 %v6207, 80
    %v6690 = vpop.permute.xlu0 %6689
    %v6691 = vsel %vm2980, %v6680, 0
    %v6693 = vsel %vm2980, %v6682, 0
    %v6695 = vsel %vm2980, %v6684, 0
    %v6697 = vsel %vm2980, %v6686, 0
    %v6699 = vsel %vm2980, %v6688, 0
    %v6701 = vsel %vm2980, %v6690, 0
    %6703 = vmatprep.subr.mxu0 0.0
    %6704 = vmatpush1.xpose.msra.mxu0 %v6697
    %6705 = vmatprep.subr.mxu0 0.0
    %6706 = vmatpush1.xpose.msra.mxu0 %v6699
    %6707 = vmatprep.subr.mxu0 0.0
    %6708 = vmatpush1.xpose.msra.mxu0 %v6701
    %6709 = vmatprep.subr.mxu0 0.0
    %6710 = vmatpush1.xpose.msra.mxu0 0.0
    %6711 = vmatprep.subr.mxu0 0.0
    %6712 = vmatpush1.xpose.msra.mxu0 0.0
    %6713 = vmatprep.subr.mxu0 0.0
    %6714 = vmatpush1.xpose.msra.mxu0 0.0
    %6715 = vmatprep.subr.mxu0 0.0
    %6716 = vmatpush1.xpose.msra.mxu0 0.0
    %6717 = vmatprep.subr.mxu0 0.0
    %6718 = vmatpush1.xpose.msra.mxu0 0.0
    %6719 = vmatprep.subr.mxu0 0.0
    %6720 = vmatpush1.xpose.msra.mxu0 0.0
    %6721 = vmatprep.subr.mxu0 0.0
    %6722 = vmatpush1.xpose.msra.mxu0 0.0
    %6723 = vmatprep.subr.mxu0 0.0
    %6724 = vmatpush1.xpose.msra.mxu0 0.0
    %6725 = vmatprep.subr.mxu0 0.0
    %6726 = vmatpush1.xpose.msra.mxu0 0.0
    %6727 = vmatprep.subr.mxu0 0.0
    %6728 = vmatpush1.xpose.msra.mxu0 0.0
    %6729 = vmatprep.subr.mxu0 0.0
    %6730 = vmatpush1.xpose.msra.mxu0 0.0
    %6731 = vmatprep.subr.mxu0 0.0
    %6732 = vmatpush1.xpose.msra.mxu0 0.0
    %6733 = vmatprep.subr.mxu0 0.0
    %6734 = vmatpush1.xpose.msra.mxu0 0.0
    %6735 = vmatprep.subr.mxu0 0.0
    %6736 = vmatpush1.xpose.msra.mxu0 0.0
    %6737 = vmatprep.subr.mxu0 0.0
    %6738 = vmatpush1.xpose.msra.mxu0 0.0
    %6739 = vmatprep.subr.mxu0 0.0
    %6740 = vmatpush1.xpose.msra.mxu0 0.0
    %6741 = vmatprep.subr.mxu0 0.0
    %6742 = vmatpush1.xpose.msra.mxu0 0.0
    %6743 = vmatprep.subr.mxu0 0.0
    %6744 = vmatpush1.xpose.msra.mxu0 0.0
    %6745 = vmatprep.subr.mxu0 0.0
    %6746 = vmatpush1.xpose.msra.mxu0 0.0
    %6747 = vmatprep.subr.mxu0 0.0
    %6748 = vmatpush1.xpose.msra.mxu0 0.0
    %6749 = vmatprep.subr.mxu0 0.0
    %6750 = vmatpush1.xpose.msra.mxu0 0.0
    %6751 = vmatprep.subr.mxu0 0.0
    %6752 = vmatpush1.xpose.msra.mxu0 0.0
    %6753 = vmatprep.subr.mxu0 0.0
    %6754 = vmatpush1.xpose.msra.mxu0 0.0
    %6755 = vmatprep.subr.mxu0 0.0
    %6756 = vmatpush1.xpose.msra.mxu0 0.0
    %6757 = vmatprep.subr.mxu0 0.0
    %6758 = vmatpush1.xpose.msra.mxu0 0.0
    %6759 = vmatprep.subr.mxu0 0.0
    %6760 = vmatpush1.xpose.msra.mxu0 0.0
    %6761 = vmatprep.subr.mxu0 0.0
    %6762 = vmatpush1.xpose.msra.mxu0 0.0
    %6763 = vmatprep.subr.mxu0 0.0
    %6764 = vmatpush1.xpose.msra.mxu0 0.0
    %6765 = vmatprep.subr.mxu0 0.0
    %6766 = vmatpush1.xpose.msra.mxu0 0.0
    %6767 = vmatprep.mubr.f32.mxu0 0.0
    %6768 = vmatmul.mubr.f32.gmra.mrb[0].mxu0 %v6691
    %v6769 = vpop.f32.mrb[0].mxu0
    %v6770 = vadd.f32 %v157, %v6769
    %v6771 = vpop.f32.mrb[0].mxu0
    %6772 = vmatprep.mubr.f32.mxu0 0.0
    %6773 = vmatmul.mubr.f32.gmra.mrb[0].mxu0 %v6693
    %v6774 = vpop.f32.mrb[0].mxu0
    %v6775 = vadd.f32 %v158, %v6774
    %v6776 = vpop.f32.mrb[0].mxu0
    %6777 = vmatprep.mubr.f32.mxu0 0.0
    %6778 = vmatmul.mubr.f32.gmra.mrb[0].mxu0 %v6695
    %v6779 = vpop.f32.mrb[0].mxu0
    %v6780 = vadd.f32 %v159, %v6779
    %v6781 = vpop.f32.mrb[0].mxu0
    %6782 = vdwg.mxu0
    %v6783 = vsel %vm3073, %v6770, -inf
    %6784 = vmax.xlane.f32.xlu0 %v6783
    %v6785 = vpop.xlane.xlu0 %6784
    %v6786 = vsel %vm3073, %v6775, -inf
    %6787 = vmax.xlane.f32.xlu0 %v6786
    %v6788 = vpop.xlane.xlu0 %6787
    %v6789 = vsel %vm3080, %v6780, -inf
    %6790 = vmax.xlane.f32.xlu0 %v6789
    %v6791 = vpop.xlane.xlu0 %6790
    %v6792 = vsub.f32 %v6770, %v6785
    %v6793 = vsub.f32 %v6775, %v6788
    %v6794 = vsub.f32 %v6780, %v6791
    %v6795 = vmul.f32 %v6792, 1.442695
    %v6796 = vpow.pop %v6795
    %v6797 = vmul.f32 %v6793, 1.442695
    %v6798 = vpow.pop %v6797
    %v6799 = vmul.f32 %v6794, 1.442695
    %v6800 = vpow.pop %v6799
    %v6801 = vsel %vm3073, %v6796, 0.0
    %6802 = vadd.xlane.f32.xlu0 %v6801
    %v6803 = vpop.xlane.xlu0 %6802
    %v6804 = vsel %vm3073, %v6798, 0.0
    %6805 = vadd.xlane.f32.xlu0 %v6804
    %v6806 = vpop.xlane.xlu0 %6805
    %v6807 = vsel %vm3080, %v6800, 0.0
    %6808 = vadd.xlane.f32.xlu0 %v6807
    %v6809 = vpop.xlane.xlu0 %6808
    %v6810 = vrcp.pop %v6803
    %v6811 = vrcp.pop %v6806
    %v6812 = vrcp.pop %v6809
    %v6813 = vmul.f32 %v6796, %v6810
    %v6814 = vmul.f32 %v6798, %v6811
    %v6815 = vmul.f32 %v6800, %v6812
    %6816 = vrot.lane.b32.xlu0 %v6197, 48
    %v6817 = vpop.permute.xlu0 %6816
    %6818 = vrot.lane.b32.xlu0 %v6202, 48
    %v6819 = vpop.permute.xlu0 %6818
    %6820 = vrot.lane.b32.xlu0 %v6207, 48
    %v6821 = vpop.permute.xlu0 %6820
    %v6825 = vsel %vm3073, %v6813, 0
    %v6828 = vsel %vm3073, %v6814, 0
    %v6831 = vsel %vm3073, %v6815, 0
    %v6833 = vsel %vm3125, %v6821, 0
    %6835 = vmatprep.subr.mxu0 0.0
    %6836 = vmatpush1.msra.mxu0 %v6817
    %6837 = vmatprep.subr.mxu0 0.0
    %6838 = vmatpush1.msra.mxu0 %v6819
    %6839 = vmatprep.subr.mxu0 0.0
    %6840 = vmatpush1.msra.mxu0 %v6833
    %6841 = vmatprep.subr.mxu0 0.0
    %6842 = vmatpush1.msra.mxu0 0.0
    %6843 = vmatprep.subr.mxu0 0.0
    %6844 = vmatpush1.msra.mxu0 0.0
    %6845 = vmatprep.subr.mxu0 0.0
    %6846 = vmatpush1.msra.mxu0 0.0
    %6847 = vmatprep.subr.mxu0 0.0
    %6848 = vmatpush1.msra.mxu0 0.0
    %6849 = vmatprep.subr.mxu0 0.0
    %6850 = vmatpush1.msra.mxu0 0.0
    %6851 = vmatprep.subr.mxu0 0.0
    %6852 = vmatpush1.msra.mxu0 0.0
    %6853 = vmatprep.subr.mxu0 0.0
    %6854 = vmatpush1.msra.mxu0 0.0
    %6855 = vmatprep.subr.mxu0 0.0
    %6856 = vmatpush1.msra.mxu0 0.0
    %6857 = vmatprep.subr.mxu0 0.0
    %6858 = vmatpush1.msra.mxu0 0.0
    %6859 = vmatprep.subr.mxu0 0.0
    %6860 = vmatpush1.msra.mxu0 0.0
    %6861 = vmatprep.subr.mxu0 0.0
    %6862 = vmatpush1.msra.mxu0 0.0
    %6863 = vmatprep.subr.mxu0 0.0
    %6864 = vmatpush1.msra.mxu0 0.0
    %6865 = vmatprep.subr.mxu0 0.0
    %6866 = vmatpush1.msra.mxu0 0.0
    %6867 = vmatprep.subr.mxu0 0.0
    %6868 = vmatpush1.msra.mxu0 0.0
    %6869 = vmatprep.subr.mxu0 0.0
    %6870 = vmatpush1.msra.mxu0 0.0
    %6871 = vmatprep.subr.mxu0 0.0
    %6872 = vmatpush1.msra.mxu0 0.0
    %6873 = vmatprep.subr.mxu0 0.0
    %6874 = vmatpush1.msra.mxu0 0.0
    %6875 = vmatprep.subr.mxu0 0.0
    %6876 = vmatpush1.msra.mxu0 0.0
    %6877 = vmatprep.subr.mxu0 0.0
    %6878 = vmatpush1.msra.mxu0 0.0
    %6879 = vmatprep.subr.mxu0 0.0
    %6880 = vmatpush1.msra.mxu0 0.0
    %6881 = vmatprep.subr.mxu0 0.0
    %6882 = vmatpush1.msra.mxu0 0.0
    %6883 = vmatprep.subr.mxu0 0.0
    %6884 = vmatpush1.msra.mxu0 0.0
    %6885 = vmatprep.subr.mxu0 0.0
    %6886 = vmatpush1.msra.mxu0 0.0
    %6887 = vmatprep.subr.mxu0 0.0
    %6888 = vmatpush1.msra.mxu0 0.0
    %6889 = vmatprep.subr.mxu0 0.0
    %6890 = vmatpush1.msra.mxu0 0.0
    %6891 = vmatprep.subr.mxu0 0.0
    %6892 = vmatpush1.msra.mxu0 0.0
    %6893 = vmatprep.subr.mxu0 0.0
    %6894 = vmatpush1.msra.mxu0 0.0
    %6895 = vmatprep.subr.mxu0 0.0
    %6896 = vmatpush1.msra.mxu0 0.0
    %6897 = vmatprep.subr.mxu0 0.0
    %6898 = vmatpush1.msra.mxu0 0.0
    %6899 = vmatprep.mubr.f32.mxu0 0.0
    %6900 = vmatmul.mubr.f32.gmra.mrb[0].mxu0 %v6825
    %v6901 = vpop.f32.mrb[0].mxu0
    %v6902 = vadd.f32 0.0, %v6901
    %v6903 = vpop.f32.mrb[0].mxu0
    %6904 = vmatprep.mubr.f32.mxu0 0.0
    %6905 = vmatmul.mubr.f32.gmra.mrb[0].mxu0 %v6828
    %v6906 = vpop.f32.mrb[0].mxu0
    %v6907 = vadd.f32 0.0, %v6906
    %v6908 = vpop.f32.mrb[0].mxu0
    %6909 = vmatprep.mubr.f32.mxu0 0.0
    %6910 = vmatmul.mubr.f32.gmra.mrb[0].mxu0 %v6831
    %v6911 = vpop.f32.mrb[0].mxu0
    %v6912 = vadd.f32 0.0, %v6911
    %v6913 = vpop.f32.mrb[0].mxu0
    %6914 = vdwg.mxu0
    %6915 = vrot.lane.b32.xlu0 %v6197, 104
    %v6916 = vpop.permute.xlu0 %6915
    %6917 = vrot.lane.b32.xlu0 %v6202, 104
    %v6918 = vpop.permute.xlu0 %6917
    %6919 = vrot.lane.b32.xlu0 %v6207, 104
    %v6920 = vpop.permute.xlu0 %6919
    %6921 = vrot.lane.b32.xlu0 %v6197, 72
    %v6922 = vpop.permute.xlu0 %6921
    %6923 = vrot.lane.b32.xlu0 %v6202, 72
    %v6924 = vpop.permute.xlu0 %6923
    %6925 = vrot.lane.b32.xlu0 %v6207, 72
    %v6926 = vpop.permute.xlu0 %6925
    %v6927 = vsel %vm2980, %v6916, 0
    %v6929 = vsel %vm2980, %v6918, 0
    %v6931 = vsel %vm2980, %v6920, 0
    %v6933 = vsel %vm2980, %v6922, 0
    %v6935 = vsel %vm2980, %v6924, 0
    %v6937 = vsel %vm2980, %v6926, 0
    %6939 = vmatprep.subr.mxu0 0.0
    %6940 = vmatpush1.xpose.msra.mxu0 %v6933
    %6941 = vmatprep.subr.mxu0 0.0
    %6942 = vmatpush1.xpose.msra.mxu0 %v6935
    %6943 = vmatprep.subr.mxu0 0.0
    %6944 = vmatpush1.xpose.msra.mxu0 %v6937
    %6945 = vmatprep.subr.mxu0 0.0
    %6946 = vmatpush1.xpose.msra.mxu0 0.0
    %6947 = vmatprep.subr.mxu0 0.0
    %6948 = vmatpush1.xpose.msra.mxu0 0.0
    %6949 = vmatprep.subr.mxu0 0.0
    %6950 = vmatpush1.xpose.msra.mxu0 0.0
    %6951 = vmatprep.subr.mxu0 0.0
    %6952 = vmatpush1.xpose.msra.mxu0 0.0
    %6953 = vmatprep.subr.mxu0 0.0
    %6954 = vmatpush1.xpose.msra.mxu0 0.0
    %6955 = vmatprep.subr.mxu0 0.0
    %6956 = vmatpush1.xpose.msra.mxu0 0.0
    %6957 = vmatprep.subr.mxu0 0.0
    %6958 = vmatpush1.xpose.msra.mxu0 0.0
    %6959 = vmatprep.subr.mxu0 0.0
    %6960 = vmatpush1.xpose.msra.mxu0 0.0
    %6961 = vmatprep.subr.mxu0 0.0
    %6962 = vmatpush1.xpose.msra.mxu0 0.0
    %6963 = vmatprep.subr.mxu0 0.0
    %6964 = vmatpush1.xpose.msra.mxu0 0.0
    %6965 = vmatprep.subr.mxu0 0.0
    %6966 = vmatpush1.xpose.msra.mxu0 0.0
    %6967 = vmatprep.subr.mxu0 0.0
    %6968 = vmatpush1.xpose.msra.mxu0 0.0
    %6969 = vmatprep.subr.mxu0 0.0
    %6970 = vmatpush1.xpose.msra.mxu0 0.0
    %6971 = vmatprep.subr.mxu0 0.0
    %6972 = vmatpush1.xpose.msra.mxu0 0.0
    %6973 = vmatprep.subr.mxu0 0.0
    %6974 = vmatpush1.xpose.msra.mxu0 0.0
    %6975 = vmatprep.subr.mxu0 0.0
    %6976 = vmatpush1.xpose.msra.mxu0 0.0
    %6977 = vmatprep.subr.mxu0 0.0
    %6978 = vmatpush1.xpose.msra.mxu0 0.0
    %6979 = vmatprep.subr.mxu0 0.0
    %6980 = vmatpush1.xpose.msra.mxu0 0.0
    %6981 = vmatprep.subr.mxu0 0.0
    %6982 = vmatpush1.xpose.msra.mxu0 0.0
    %6983 = vmatprep.subr.mxu0 0.0
    %6984 = vmatpush1.xpose.msra.mxu0 0.0
    %6985 = vmatprep.subr.mxu0 0.0
    %6986 = vmatpush1.xpose.msra.mxu0 0.0
    %6987 = vmatprep.subr.mxu0 0.0
    %6988 = vmatpush1.xpose.msra.mxu0 0.0
    %6989 = vmatprep.subr.mxu0 0.0
    %6990 = vmatpush1.xpose.msra.mxu0 0.0
    %6991 = vmatprep.subr.mxu0 0.0
    %6992 = vmatpush1.xpose.msra.mxu0 0.0
    %6993 = vmatprep.subr.mxu0 0.0
    %6994 = vmatpush1.xpose.msra.mxu0 0.0
    %6995 = vmatprep.subr.mxu0 0.0
    %6996 = vmatpush1.xpose.msra.mxu0 0.0
    %6997 = vmatprep.subr.mxu0 0.0
    %6998 = vmatpush1.xpose.msra.mxu0 0.0
    %6999 = vmatprep.subr.mxu0 0.0
    %7000 = vmatpush1.xpose.msra.mxu0 0.0
    %7001 = vmatprep.subr.mxu0 0.0
    %7002 = vmatpush1.xpose.msra.mxu0 0.0
    %7003 = vmatprep.mubr.f32.mxu0 0.0
    %7004 = vmatmul.mubr.f32.gmra.mrb[0].mxu0 %v6927
    %v7005 = vpop.f32.mrb[0].mxu0
    %v7006 = vadd.f32 %v157, %v7005
    %v7007 = vpop.f32.mrb[0].mxu0
    %7008 = vmatprep.mubr.f32.mxu0 0.0
    %7009 = vmatmul.mubr.f32.gmra.mrb[0].mxu0 %v6929
    %v7010 = vpop.f32.mrb[0].mxu0
    %v7011 = vadd.f32 %v158, %v7010
    %v7012 = vpop.f32.mrb[0].mxu0
    %7013 = vmatprep.mubr.f32.mxu0 0.0
    %7014 = vmatmul.mubr.f32.gmra.mrb[0].mxu0 %v6931
    %v7015 = vpop.f32.mrb[0].mxu0
    %v7016 = vadd.f32 %v159, %v7015
    %v7017 = vpop.f32.mrb[0].mxu0
    %7018 = vdwg.mxu0
    %v7019 = vsel %vm3073, %v7006, -inf
    %7020 = vmax.xlane.f32.xlu0 %v7019
    %v7021 = vpop.xlane.xlu0 %7020
    %v7022 = vsel %vm3073, %v7011, -inf
    %7023 = vmax.xlane.f32.xlu0 %v7022
    %v7024 = vpop.xlane.xlu0 %7023
    %v7025 = vsel %vm3080, %v7016, -inf
    %7026 = vmax.xlane.f32.xlu0 %v7025
    %v7027 = vpop.xlane.xlu0 %7026
    %v7028 = vsub.f32 %v7006, %v7021
    %v7029 = vsub.f32 %v7011, %v7024
    %v7030 = vsub.f32 %v7016, %v7027
    %v7031 = vmul.f32 %v7028, 1.442695
    %v7032 = vpow.pop %v7031
    %v7033 = vmul.f32 %v7029, 1.442695
    %v7034 = vpow.pop %v7033
    %v7035 = vmul.f32 %v7030, 1.442695
    %v7036 = vpow.pop %v7035
    %v7037 = vsel %vm3073, %v7032, 0.0
    %7038 = vadd.xlane.f32.xlu0 %v7037
    %v7039 = vpop.xlane.xlu0 %7038
    %v7040 = vsel %vm3073, %v7034, 0.0
    %7041 = vadd.xlane.f32.xlu0 %v7040
    %v7042 = vpop.xlane.xlu0 %7041
    %v7043 = vsel %vm3080, %v7036, 0.0
    %7044 = vadd.xlane.f32.xlu0 %v7043
    %v7045 = vpop.xlane.xlu0 %7044
    %v7046 = vrcp.pop %v7039
    %v7047 = vrcp.pop %v7042
    %v7048 = vrcp.pop %v7045
    %v7049 = vmul.f32 %v7032, %v7046
    %v7050 = vmul.f32 %v7034, %v7047
    %v7051 = vmul.f32 %v7036, %v7048
    %7052 = vrot.lane.b32.xlu0 %v6197, 40
    %v7053 = vpop.permute.xlu0 %7052
    %7054 = vrot.lane.b32.xlu0 %v6202, 40
    %v7055 = vpop.permute.xlu0 %7054
    %7056 = vrot.lane.b32.xlu0 %v6207, 40
    %v7057 = vpop.permute.xlu0 %7056
    %v7061 = vsel %vm3073, %v7049, 0
    %v7064 = vsel %vm3073, %v7050, 0
    %v7067 = vsel %vm3073, %v7051, 0
    %v7069 = vsel %vm3125, %v7057, 0
    %7071 = vmatprep.subr.mxu0 0.0
    %7072 = vmatpush1.msra.mxu0 %v7053
    %7073 = vmatprep.subr.mxu0 0.0
    %7074 = vmatpush1.msra.mxu0 %v7055
    %7075 = vmatprep.subr.mxu0 0.0
    %7076 = vmatpush1.msra.mxu0 %v7069
    %7077 = vmatprep.subr.mxu0 0.0
    %7078 = vmatpush1.msra.mxu0 0.0
    %7079 = vmatprep.subr.mxu0 0.0
    %7080 = vmatpush1.msra.mxu0 0.0
    %7081 = vmatprep.subr.mxu0 0.0
    %7082 = vmatpush1.msra.mxu0 0.0
    %7083 = vmatprep.subr.mxu0 0.0
    %7084 = vmatpush1.msra.mxu0 0.0
    %7085 = vmatprep.subr.mxu0 0.0
    %7086 = vmatpush1.msra.mxu0 0.0
    %7087 = vmatprep.subr.mxu0 0.0
    %7088 = vmatpush1.msra.mxu0 0.0
    %7089 = vmatprep.subr.mxu0 0.0
    %7090 = vmatpush1.msra.mxu0 0.0
    %7091 = vmatprep.subr.mxu0 0.0
    %7092 = vmatpush1.msra.mxu0 0.0
    %7093 = vmatprep.subr.mxu0 0.0
    %7094 = vmatpush1.msra.mxu0 0.0
    %7095 = vmatprep.subr.mxu0 0.0
    %7096 = vmatpush1.msra.mxu0 0.0
    %7097 = vmatprep.subr.mxu0 0.0
    %7098 = vmatpush1.msra.mxu0 0.0
    %7099 = vmatprep.subr.mxu0 0.0
    %7100 = vmatpush1.msra.mxu0 0.0
    %7101 = vmatprep.subr.mxu0 0.0
    %7102 = vmatpush1.msra.mxu0 0.0
    %7103 = vmatprep.subr.mxu0 0.0
    %7104 = vmatpush1.msra.mxu0 0.0
    %7105 = vmatprep.subr.mxu0 0.0
    %7106 = vmatpush1.msra.mxu0 0.0
    %7107 = vmatprep.subr.mxu0 0.0
    %7108 = vmatpush1.msra.mxu0 0.0
    %7109 = vmatprep.subr.mxu0 0.0
    %7110 = vmatpush1.msra.mxu0 0.0
    %7111 = vmatprep.subr.mxu0 0.0
    %7112 = vmatpush1.msra.mxu0 0.0
    %7113 = vmatprep.subr.mxu0 0.0
    %7114 = vmatpush1.msra.mxu0 0.0
    %7115 = vmatprep.subr.mxu0 0.0
    %7116 = vmatpush1.msra.mxu0 0.0
    %7117 = vmatprep.subr.mxu0 0.0
    %7118 = vmatpush1.msra.mxu0 0.0
    %7119 = vmatprep.subr.mxu0 0.0
    %7120 = vmatpush1.msra.mxu0 0.0
    %7121 = vmatprep.subr.mxu0 0.0
    %7122 = vmatpush1.msra.mxu0 0.0
    %7123 = vmatprep.subr.mxu0 0.0
    %7124 = vmatpush1.msra.mxu0 0.0
    %7125 = vmatprep.subr.mxu0 0.0
    %7126 = vmatpush1.msra.mxu0 0.0
    %7127 = vmatprep.subr.mxu0 0.0
    %7128 = vmatpush1.msra.mxu0 0.0
    %7129 = vmatprep.subr.mxu0 0.0
    %7130 = vmatpush1.msra.mxu0 0.0
    %7131 = vmatprep.subr.mxu0 0.0
    %7132 = vmatpush1.msra.mxu0 0.0
    %7133 = vmatprep.subr.mxu0 0.0
    %7134 = vmatpush1.msra.mxu0 0.0
    %7135 = vmatprep.mubr.f32.mxu0 0.0
    %7136 = vmatmul.mubr.f32.gmra.mrb[0].mxu0 %v7061
    %v7137 = vpop.f32.mrb[0].mxu0
    %v7138 = vadd.f32 0.0, %v7137
    %v7139 = vpop.f32.mrb[0].mxu0
    %7140 = vmatprep.mubr.f32.mxu0 0.0
    %7141 = vmatmul.mubr.f32.gmra.mrb[0].mxu0 %v7064
    %v7142 = vpop.f32.mrb[0].mxu0
    %v7143 = vadd.f32 0.0, %v7142
    %v7144 = vpop.f32.mrb[0].mxu0
    %7145 = vmatprep.mubr.f32.mxu0 0.0
    %7146 = vmatmul.mubr.f32.gmra.mrb[0].mxu0 %v7067
    %v7147 = vpop.f32.mrb[0].mxu0
    %v7148 = vadd.f32 0.0, %v7147
    %v7149 = vpop.f32.mrb[0].mxu0
    %7150 = vdwg.mxu0
    %7154 = vrot.lane.b32.xlu0 %v6666, 8
    %v7155 = vpop.permute.xlu0 %7154
    %7156 = vrot.lane.b32.xlu0 %v6671, 8
    %v7157 = vpop.permute.xlu0 %7156
    %7158 = vrot.lane.b32.xlu0 %v6676, 8
    %v7159 = vpop.permute.xlu0 %7158
    %7166 = vrot.lane.b32.xlu0 %v6902, 16
    %v7167 = vpop.permute.xlu0 %7166
    %7168 = vrot.lane.b32.xlu0 %v6907, 16
    %v7169 = vpop.permute.xlu0 %7168
    %7170 = vrot.lane.b32.xlu0 %v6912, 16
    %v7171 = vpop.permute.xlu0 %7170
    %7178 = vrot.lane.b32.xlu0 %v7138, 24
    %v7179 = vpop.permute.xlu0 %7178
    %7180 = vrot.lane.b32.xlu0 %v7143, 24
    %v7181 = vpop.permute.xlu0 %7180
    %7182 = vrot.lane.b32.xlu0 %v7148, 24
    %v7183 = vpop.permute.xlu0 %7182
    %v7187 = vsel %vm2980, %v6430, %v7155
    %v7188 = vsel %vm2980, %v6435, %v7157
    %v7189 = vsel %vm2980, %v6440, %v7159
    %v7190 = vsel %vm570, %v7187, %v7167
    %v7191 = vsel %vm570, %v7188, %v7169
    %v7192 = vsel %vm570, %v7189, %v7171
    %v7193 = vsel %vm3958, %v7190, %v7179
    %v7194 = vsel %vm3958, %v7191, %v7181
    %v7195 = vsel %vm3958, %v7192, %v7183
    %s7196 = scalar_lea.vmem %s29, 64
    %v7197 = vld [vmem:[%s7196] sm:$0xff]
    %v7198 = vld [vmem:[%s7196 + $0x8] sm:$0xff]
    %v7199 = vld [vmem:[%s7196 + $0x10] sm:$0xff]
    %v7200 = vld [vmem:[%s7196 + $0x18] sm:$0xff]
    %v7202 = vsel %vm2815, %v7193, 0
    %v7205 = vsel %vm2815, %v7194, 0
    %v7208 = vsel %vm2815, %v7195, 0
    %7210 = vmatprep.subr.mxu0 0.0
    %7211 = vmatpush1.msra.mxu0 %v7197
    %7212 = vmatprep.subr.mxu0 0.0
    %7213 = vmatpush1.msra.mxu0 %v7198
    %7214 = vmatprep.subr.mxu0 0.0
    %7215 = vmatpush1.msra.mxu0 %v7199
    %7216 = vmatprep.subr.mxu0 0.0
    %7217 = vmatpush1.msra.mxu0 %v7200
    %7218 = vmatprep.subr.mxu0 0.0
    %7219 = vmatpush1.msra.mxu0 0.0
    %7220 = vmatprep.subr.mxu0 0.0
    %7221 = vmatpush1.msra.mxu0 0.0
    %7222 = vmatprep.subr.mxu0 0.0
    %7223 = vmatpush1.msra.mxu0 0.0
    %7224 = vmatprep.subr.mxu0 0.0
    %7225 = vmatpush1.msra.mxu0 0.0
    %7226 = vmatprep.subr.mxu0 0.0
    %7227 = vmatpush1.msra.mxu0 0.0
    %7228 = vmatprep.subr.mxu0 0.0
    %7229 = vmatpush1.msra.mxu0 0.0
    %7230 = vmatprep.subr.mxu0 0.0
    %7231 = vmatpush1.msra.mxu0 0.0
    %7232 = vmatprep.subr.mxu0 0.0
    %7233 = vmatpush1.msra.mxu0 0.0
    %7234 = vmatprep.subr.mxu0 0.0
    %7235 = vmatpush1.msra.mxu0 0.0
    %7236 = vmatprep.subr.mxu0 0.0
    %7237 = vmatpush1.msra.mxu0 0.0
    %7238 = vmatprep.subr.mxu0 0.0
    %7239 = vmatpush1.msra.mxu0 0.0
    %7240 = vmatprep.subr.mxu0 0.0
    %7241 = vmatpush1.msra.mxu0 0.0
    %7242 = vmatprep.subr.mxu0 0.0
    %7243 = vmatpush1.msra.mxu0 0.0
    %7244 = vmatprep.subr.mxu0 0.0
    %7245 = vmatpush1.msra.mxu0 0.0
    %7246 = vmatprep.subr.mxu0 0.0
    %7247 = vmatpush1.msra.mxu0 0.0
    %7248 = vmatprep.subr.mxu0 0.0
    %7249 = vmatpush1.msra.mxu0 0.0
    %7250 = vmatprep.subr.mxu0 0.0
    %7251 = vmatpush1.msra.mxu0 0.0
    %7252 = vmatprep.subr.mxu0 0.0
    %7253 = vmatpush1.msra.mxu0 0.0
    %7254 = vmatprep.subr.mxu0 0.0
    %7255 = vmatpush1.msra.mxu0 0.0
    %7256 = vmatprep.subr.mxu0 0.0
    %7257 = vmatpush1.msra.mxu0 0.0
    %7258 = vmatprep.subr.mxu0 0.0
    %7259 = vmatpush1.msra.mxu0 0.0
    %7260 = vmatprep.subr.mxu0 0.0
    %7261 = vmatpush1.msra.mxu0 0.0
    %7262 = vmatprep.subr.mxu0 0.0
    %7263 = vmatpush1.msra.mxu0 0.0
    %7264 = vmatprep.subr.mxu0 0.0
    %7265 = vmatpush1.msra.mxu0 0.0
    %7266 = vmatprep.subr.mxu0 0.0
    %7267 = vmatpush1.msra.mxu0 0.0
    %7268 = vmatprep.subr.mxu0 0.0
    %7269 = vmatpush1.msra.mxu0 0.0
    %7270 = vmatprep.subr.mxu0 0.0
    %7271 = vmatpush1.msra.mxu0 0.0
    %7272 = vmatprep.subr.mxu0 0.0
    %7273 = vmatpush1.msra.mxu0 0.0
    %7274 = vmatprep.mubr.f32.mxu0 0.0
    %7275 = vmatmul.mubr.f32.gmra.mrb[0].mxu0 %v7202
    %v7276 = vpop.f32.mrb[0].mxu0
    %v7277 = vadd.f32 0.0, %v7276
    %v7278 = vpop.f32.mrb[0].mxu0
    %7279 = vmatprep.mubr.f32.mxu0 0.0
    %7280 = vmatmul.mubr.f32.gmra.mrb[0].mxu0 %v7205
    %v7281 = vpop.f32.mrb[0].mxu0
    %v7282 = vadd.f32 0.0, %v7281
    %v7283 = vpop.f32.mrb[0].mxu0
    %7284 = vmatprep.mubr.f32.mxu0 0.0
    %7285 = vmatmul.mubr.f32.gmra.mrb[0].mxu0 %v7208
    %v7286 = vpop.f32.mrb[0].mxu0
    %v7287 = vadd.f32 0.0, %v7286
    %v7288 = vpop.f32.mrb[0].mxu0
    %7289 = vdwg.mxu0
    %v7290 = vadd.f32 %v6040, %v7277
    %v7291 = vadd.f32 %v6045, %v7282
    %v7292 = vadd.f32 %v6050, %v7287
    %s7293 = scalar_lea.vmem %s27, 2
    %v7294 = vld [vmem:[%s7293] sm:$0x1]
    %v7296 = vlaneseq
    %v7297 = vshrl.u32 %v7296, 7
    %v7298 = vsub.s32 0, %v7297
    %v7299 = vrot.slane %v7294, %v7298
    %v7301 = vadd.f32 %v7290, %v7299
    %v7302 = vadd.f32 %v7291, %v7299
    %v7303 = vadd.f32 %v7292, %v7299
    %v7304 = vsel %vm2815, %v7301, 0.0
    %7305 = vadd.xlane.f32.xlu0 %v7304
    %v7306 = vpop.xlane.xlu0 %7305
    %v7307 = vsel %vm2815, %v7302, 0.0
    %7308 = vadd.xlane.f32.xlu0 %v7307
    %v7309 = vpop.xlane.xlu0 %7308
    %v7310 = vsel %vm2822, %v7303, 0.0
    %7311 = vadd.xlane.f32.xlu0 %v7310
    %v7312 = vpop.xlane.xlu0 %7311
    %v7313 = vmul.f32 %v7306, %v2826
    %v7314 = vmul.f32 %v7309, %v2826
    %v7315 = vmul.f32 %v7312, %v2826
    %v7316 = vsub.f32 %v7301, %v7313
    %v7317 = vsub.f32 %v7302, %v7314
    %v7318 = vsub.f32 %v7303, %v7315
    %v7319 = vmul.f32 %v7316, %v7316
    %v7320 = vmul.f32 %v7317, %v7317
    %v7321 = vmul.f32 %v7318, %v7318
    %v7322 = vsel %vm2815, %v7319, 0.0
    %7323 = vadd.xlane.f32.xlu0 %v7322
    %v7324 = vpop.xlane.xlu0 %7323
    %v7325 = vsel %vm2815, %v7320, 0.0
    %7326 = vadd.xlane.f32.xlu0 %v7325
    %v7327 = vpop.xlane.xlu0 %7326
    %v7328 = vsel %vm2822, %v7321, 0.0
    %7329 = vadd.xlane.f32.xlu0 %v7328
    %v7330 = vpop.xlane.xlu0 %7329
    %v7331 = vmul.f32 %v7324, %v2826
    %v7332 = vmul.f32 %v7327, %v2826
    %v7333 = vmul.f32 %v7330, %v2826
    %v7334 = vadd.f32 %v7331, 1e-06
    %v7335 = vadd.f32 %v7332, 1e-06
    %v7336 = vadd.f32 %v7333, 1e-06
    %v7337 = vrsqrt.pop %v7334
    %v7338 = vrsqrt.pop %v7335
    %v7339 = vrsqrt.pop %v7336
    %v7340 = vmul.f32 %v7316, %v7337
    %v7341 = vmul.f32 %v7317, %v7338
    %v7342 = vmul.f32 %v7318, %v7339
    %v7343 = vlaneseq
    %v7344 = vshrl.u32 %v7343, 7
    %v7345 = vsub.s32 2, %v7344
    %v7346 = vrot.slane %v6054, %v7345
    %v7347 = vmul.f32 %v7340, %v7346
    %v7348 = vmul.f32 %v7341, %v7346
    %v7349 = vmul.f32 %v7342, %v7346
    %v7350 = vlaneseq
    %v7351 = vshrl.u32 %v7350, 7
    %v7352 = vsub.s32 3, %v7351
    %v7353 = vrot.slane %v6054, %v7352
    %v7354 = vadd.f32 %v7347, %v7353
    %v7355 = vadd.f32 %v7348, %v7353
    %v7356 = vadd.f32 %v7349, %v7353
    %s7357 = scalar_lea.vmem %s19, 64
    %v7358 = vld [vmem:[%s7357] sm:$0xff]
    %v7359 = vld [vmem:[%s7357 + $0x8] sm:$0xff]
    %v7360 = vld [vmem:[%s7357 + $0x10] sm:$0xff]
    %v7361 = vld [vmem:[%s7357 + $0x18] sm:$0xff]
    %s7362 = scalar_lea.vmem %s17, 2
    %v7363 = vld [vmem:[%s7362] sm:$0x1]
    %v7365 = vlaneseq
    %v7366 = vshrl.u32 %v7365, 7
    %v7367 = vsub.s32 0, %v7366
    %v7368 = vrot.slane %v7363, %v7367
    %v7371 = vsel %vm2815, %v7354, 0
    %v7374 = vsel %vm2815, %v7355, 0
    %v7377 = vsel %vm2815, %v7356, 0
    %7379 = vmatprep.subr.mxu0 0.0
    %7380 = vmatpush1.msra.mxu0 %v7358
    %7381 = vmatprep.subr.mxu0 0.0
    %7382 = vmatpush1.msra.mxu0 %v7359
    %7383 = vmatprep.subr.mxu0 0.0
    %7384 = vmatpush1.msra.mxu0 %v7360
    %7385 = vmatprep.subr.mxu0 0.0
    %7386 = vmatpush1.msra.mxu0 %v7361
    %7387 = vmatprep.subr.mxu0 0.0
    %7388 = vmatpush1.msra.mxu0 0.0
    %7389 = vmatprep.subr.mxu0 0.0
    %7390 = vmatpush1.msra.mxu0 0.0
    %7391 = vmatprep.subr.mxu0 0.0
    %7392 = vmatpush1.msra.mxu0 0.0
    %7393 = vmatprep.subr.mxu0 0.0
    %7394 = vmatpush1.msra.mxu0 0.0
    %7395 = vmatprep.subr.mxu0 0.0
    %7396 = vmatpush1.msra.mxu0 0.0
    %7397 = vmatprep.subr.mxu0 0.0
    %7398 = vmatpush1.msra.mxu0 0.0
    %7399 = vmatprep.subr.mxu0 0.0
    %7400 = vmatpush1.msra.mxu0 0.0
    %7401 = vmatprep.subr.mxu0 0.0
    %7402 = vmatpush1.msra.mxu0 0.0
    %7403 = vmatprep.subr.mxu0 0.0
    %7404 = vmatpush1.msra.mxu0 0.0
    %7405 = vmatprep.subr.mxu0 0.0
    %7406 = vmatpush1.msra.mxu0 0.0
    %7407 = vmatprep.subr.mxu0 0.0
    %7408 = vmatpush1.msra.mxu0 0.0
    %7409 = vmatprep.subr.mxu0 0.0
    %7410 = vmatpush1.msra.mxu0 0.0
    %7411 = vmatprep.subr.mxu0 0.0
    %7412 = vmatpush1.msra.mxu0 0.0
    %7413 = vmatprep.subr.mxu0 0.0
    %7414 = vmatpush1.msra.mxu0 0.0
    %7415 = vmatprep.subr.mxu0 0.0
    %7416 = vmatpush1.msra.mxu0 0.0
    %7417 = vmatprep.subr.mxu0 0.0
    %7418 = vmatpush1.msra.mxu0 0.0
    %7419 = vmatprep.subr.mxu0 0.0
    %7420 = vmatpush1.msra.mxu0 0.0
    %7421 = vmatprep.subr.mxu0 0.0
    %7422 = vmatpush1.msra.mxu0 0.0
    %7423 = vmatprep.subr.mxu0 0.0
    %7424 = vmatpush1.msra.mxu0 0.0
    %7425 = vmatprep.subr.mxu0 0.0
    %7426 = vmatpush1.msra.mxu0 0.0
    %7427 = vmatprep.subr.mxu0 0.0
    %7428 = vmatpush1.msra.mxu0 0.0
    %7429 = vmatprep.subr.mxu0 0.0
    %7430 = vmatpush1.msra.mxu0 0.0
    %7431 = vmatprep.subr.mxu0 0.0
    %7432 = vmatpush1.msra.mxu0 0.0
    %7433 = vmatprep.subr.mxu0 0.0
    %7434 = vmatpush1.msra.mxu0 0.0
    %7435 = vmatprep.subr.mxu0 0.0
    %7436 = vmatpush1.msra.mxu0 0.0
    %7437 = vmatprep.subr.mxu0 0.0
    %7438 = vmatpush1.msra.mxu0 0.0
    %7439 = vmatprep.subr.mxu0 0.0
    %7440 = vmatpush1.msra.mxu0 0.0
    %7441 = vmatprep.subr.mxu0 0.0
    %7442 = vmatpush1.msra.mxu0 0.0
    %7443 = vmatprep.mubr.f32.mxu0 0.0
    %7444 = vmatmul.mubr.f32.gmra.mrb[0].mxu0 %v7371
    %v7445 = vpop.f32.mrb[0].mxu0
    %v7446 = vadd.f32 %v7368, %v7445
    %v7447 = vpop.f32.mrb[0].mxu0
    %7448 = vmatprep.mubr.f32.mxu0 0.0
    %7449 = vmatmul.mubr.f32.gmra.mrb[0].mxu0 %v7374
    %v7450 = vpop.f32.mrb[0].mxu0
    %v7451 = vadd.f32 %v7368, %v7450
    %v7452 = vpop.f32.mrb[0].mxu0
    %7453 = vmatprep.mubr.f32.mxu0 0.0
    %7454 = vmatmul.mubr.f32.gmra.mrb[0].mxu0 %v7377
    %v7455 = vpop.f32.mrb[0].mxu0
    %v7456 = vadd.f32 %v7368, %v7455
    %v7457 = vpop.f32.mrb[0].mxu0
    %7458 = vdwg.mxu0
    %v7459 = vmul.f32 %v7446, %v7446
    %v7460 = vmul.f32 %v7451, %v7451
    %v7461 = vmul.f32 %v7456, %v7456
    %v7462 = vmul.f32 %v7446, %v7459
    %v7463 = vmul.f32 %v7451, %v7460
    %v7464 = vmul.f32 %v7456, %v7461
    %v7465 = vmul.f32 %v7462, 0.044715
    %v7466 = vmul.f32 %v7463, 0.044715
    %v7467 = vmul.f32 %v7464, 0.044715
    %v7468 = vadd.f32 %v7446, %v7465
    %v7469 = vadd.f32 %v7451, %v7466
    %v7470 = vadd.f32 %v7456, %v7467
    %v7471 = vmul.f32 %v7468, 0.7978846
    %v7472 = vmul.f32 %v7469, 0.7978846
    %v7473 = vmul.f32 %v7470, 0.7978846
    %v7474 = vtanh.pop %v7471
    %v7475 = vtanh.pop %v7472
    %v7476 = vtanh.pop %v7473
    %v7477 = vadd.f32 %v7474, 1.0
    %v7478 = vadd.f32 %v7475, 1.0
    %v7479 = vadd.f32 %v7476, 1.0
    %v7480 = vmul.f32 %v7477, 0.5
    %v7481 = vmul.f32 %v7478, 0.5
    %v7482 = vmul.f32 %v7479, 0.5
    %v7483 = vmul.f32 %v7446, %v7480
    %v7484 = vmul.f32 %v7451, %v7481
    %v7485 = vmul.f32 %v7456, %v7482
    %s7486 = scalar_lea.vmem %s23, 128
    %v7487 = vld [vmem:[%s7486] sm:$0xff]
    %v7488 = vld [vmem:[%s7486 + $0x8] sm:$0xff]
    %v7489 = vld [vmem:[%s7486 + $0x10] sm:$0xff]
    %v7490 = vld [vmem:[%s7486 + $0x18] sm:$0xff]
    %v7491 = vld [vmem:[%s7486 + $0x20] sm:$0xff]
    %v7492 = vld [vmem:[%s7486 + $0x28] sm:$0xff]
    %v7493 = vld [vmem:[%s7486 + $0x30] sm:$0xff]
    %v7494 = vld [vmem:[%s7486 + $0x38] sm:$0xff]
    %v7496 = vsel %vm4256, %v7483, 0
    %v7499 = vsel %vm4256, %v7484, 0
    %v7502 = vsel %vm4256, %v7485, 0
    %7504 = vmatprep.subr.mxu0 0.0
    %7505 = vmatpush1.msra.mxu0 %v7487
    %7506 = vmatprep.subr.mxu0 0.0
    %7507 = vmatpush1.msra.mxu0 %v7488
    %7508 = vmatprep.subr.mxu0 0.0
    %7509 = vmatpush1.msra.mxu0 %v7489
    %7510 = vmatprep.subr.mxu0 0.0
    %7511 = vmatpush1.msra.mxu0 %v7490
    %7512 = vmatprep.subr.mxu0 0.0
    %7513 = vmatpush1.msra.mxu0 %v7491
    %7514 = vmatprep.subr.mxu0 0.0
    %7515 = vmatpush1.msra.mxu0 %v7492
    %7516 = vmatprep.subr.mxu0 0.0
    %7517 = vmatpush1.msra.mxu0 %v7493
    %7518 = vmatprep.subr.mxu0 0.0
    %7519 = vmatpush1.msra.mxu0 %v7494
    %7520 = vmatprep.subr.mxu0 0.0
    %7521 = vmatpush1.msra.mxu0 0.0
    %7522 = vmatprep.subr.mxu0 0.0
    %7523 = vmatpush1.msra.mxu0 0.0
    %7524 = vmatprep.subr.mxu0 0.0
    %7525 = vmatpush1.msra.mxu0 0.0
    %7526 = vmatprep.subr.mxu0 0.0
    %7527 = vmatpush1.msra.mxu0 0.0
    %7528 = vmatprep.subr.mxu0 0.0
    %7529 = vmatpush1.msra.mxu0 0.0
    %7530 = vmatprep.subr.mxu0 0.0
    %7531 = vmatpush1.msra.mxu0 0.0
    %7532 = vmatprep.subr.mxu0 0.0
    %7533 = vmatpush1.msra.mxu0 0.0
    %7534 = vmatprep.subr.mxu0 0.0
    %7535 = vmatpush1.msra.mxu0 0.0
    %7536 = vmatprep.subr.mxu0 0.0
    %7537 = vmatpush1.msra.mxu0 0.0
    %7538 = vmatprep.subr.mxu0 0.0
    %7539 = vmatpush1.msra.mxu0 0.0
    %7540 = vmatprep.subr.mxu0 0.0
    %7541 = vmatpush1.msra.mxu0 0.0
    %7542 = vmatprep.subr.mxu0 0.0
    %7543 = vmatpush1.msra.mxu0 0.0
    %7544 = vmatprep.subr.mxu0 0.0
    %7545 = vmatpush1.msra.mxu0 0.0
    %7546 = vmatprep.subr.mxu0 0.0
    %7547 = vmatpush1.msra.mxu0 0.0
    %7548 = vmatprep.subr.mxu0 0.0
    %7549 = vmatpush1.msra.mxu0 0.0
    %7550 = vmatprep.subr.mxu0 0.0
    %7551 = vmatpush1.msra.mxu0 0.0
    %7552 = vmatprep.subr.mxu0 0.0
    %7553 = vmatpush1.msra.mxu0 0.0
    %7554 = vmatprep.subr.mxu0 0.0
    %7555 = vmatpush1.msra.mxu0 0.0
    %7556 = vmatprep.subr.mxu0 0.0
    %7557 = vmatpush1.msra.mxu0 0.0
    %7558 = vmatprep.subr.mxu0 0.0
    %7559 = vmatpush1.msra.mxu0 0.0
    %7560 = vmatprep.subr.mxu0 0.0
    %7561 = vmatpush1.msra.mxu0 0.0
    %7562 = vmatprep.subr.mxu0 0.0
    %7563 = vmatpush1.msra.mxu0 0.0
    %7564 = vmatprep.subr.mxu0 0.0
    %7565 = vmatpush1.msra.mxu0 0.0
    %7566 = vmatprep.subr.mxu0 0.0
    %7567 = vmatpush1.msra.mxu0 0.0
    %7568 = vmatprep.mubr.f32.mxu0 0.0
    %7569 = vmatmul.mubr.f32.gmra.mrb[0].mxu0 %v7496
    %v7570 = vpop.f32.mrb[0].mxu0
    %v7571 = vadd.f32 0.0, %v7570
    %v7572 = vpop.f32.mrb[0].mxu0
    %7573 = vmatprep.mubr.f32.mxu0 0.0
    %7574 = vmatmul.mubr.f32.gmra.mrb[0].mxu0 %v7499
    %v7575 = vpop.f32.mrb[0].mxu0
    %v7576 = vadd.f32 0.0, %v7575
    %v7577 = vpop.f32.mrb[0].mxu0
    %7578 = vmatprep.mubr.f32.mxu0 0.0
    %7579 = vmatmul.mubr.f32.gmra.mrb[0].mxu0 %v7502
    %v7580 = vpop.f32.mrb[0].mxu0
    %v7581 = vadd.f32 0.0, %v7580
    %v7582 = vpop.f32.mrb[0].mxu0
    %7583 = vdwg.mxu0
    %v7584 = vadd.f32 %v7301, %v7571
    %v7585 = vadd.f32 %v7302, %v7576
    %v7586 = vadd.f32 %v7303, %v7581
    %s7587 = scalar_lea.vmem %s21, 2
    %v7588 = vld [vmem:[%s7587] sm:$0x1]
    %v7590 = vlaneseq
    %v7591 = vshrl.u32 %v7590, 7
    %v7592 = vsub.s32 0, %v7591
    %v7593 = vrot.slane %v7588, %v7592
    %v7595 = vadd.f32 %v7584, %v7593
    %v7596 = vadd.f32 %v7585, %v7593
    %v7597 = vadd.f32 %v7586, %v7593
    %v7598 = vadd.f32 %v7595, %v4356
    %v7599 = vadd.f32 %v7596, %v4357
    %v7600 = vadd.f32 %v7597, %v4358
    %s7601 = scalar_lea.vmem %s25, 12
    %v7602 = vld [vmem:[%s7601] sm:$0xf]
    %v7603 = vsel %vm2815, %v7598, 0.0
    %7604 = vadd.xlane.f32.xlu0 %v7603
    %v7605 = vpop.xlane.xlu0 %7604
    %v7606 = vsel %vm2815, %v7599, 0.0
    %7607 = vadd.xlane.f32.xlu0 %v7606
    %v7608 = vpop.xlane.xlu0 %7607
    %v7609 = vsel %vm2822, %v7600, 0.0
    %7610 = vadd.xlane.f32.xlu0 %v7609
    %v7611 = vpop.xlane.xlu0 %7610
    %v7612 = vmul.f32 %v7605, %v2826
    %v7613 = vmul.f32 %v7608, %v2826
    %v7614 = vmul.f32 %v7611, %v2826
    %v7615 = vsub.f32 %v7598, %v7612
    %v7616 = vsub.f32 %v7599, %v7613
    %v7617 = vsub.f32 %v7600, %v7614
    %v7618 = vmul.f32 %v7615, %v7615
    %v7619 = vmul.f32 %v7616, %v7616
    %v7620 = vmul.f32 %v7617, %v7617
    %v7621 = vsel %vm2815, %v7618, 0.0
    %7622 = vadd.xlane.f32.xlu0 %v7621
    %v7623 = vpop.xlane.xlu0 %7622
    %v7624 = vsel %vm2815, %v7619, 0.0
    %7625 = vadd.xlane.f32.xlu0 %v7624
    %v7626 = vpop.xlane.xlu0 %7625
    %v7627 = vsel %vm2822, %v7620, 0.0
    %7628 = vadd.xlane.f32.xlu0 %v7627
    %v7629 = vpop.xlane.xlu0 %7628
    %v7630 = vmul.f32 %v7623, %v2826
    %v7631 = vmul.f32 %v7626, %v2826
    %v7632 = vmul.f32 %v7629, %v2826
    %v7633 = vadd.f32 %v7630, 1e-06
    %v7634 = vadd.f32 %v7631, 1e-06
    %v7635 = vadd.f32 %v7632, 1e-06
    %v7636 = vrsqrt.pop %v7633
    %v7637 = vrsqrt.pop %v7634
    %v7638 = vrsqrt.pop %v7635
    %v7639 = vmul.f32 %v7615, %v7636
    %v7640 = vmul.f32 %v7616, %v7637
    %v7641 = vmul.f32 %v7617, %v7638
    %v7642 = vlaneseq
    %v7643 = vshrl.u32 %v7642, 7
    %v7644 = vsub.s32 0, %v7643
    %v7645 = vrot.slane %v7602, %v7644
    %v7646 = vmul.f32 %v7639, %v7645
    %v7647 = vmul.f32 %v7640, %v7645
    %v7648 = vmul.f32 %v7641, %v7645
    %v7649 = vlaneseq
    %v7650 = vshrl.u32 %v7649, 7
    %v7651 = vsub.s32 1, %v7650
    %v7652 = vrot.slane %v7602, %v7651
    %v7653 = vadd.f32 %v7646, %v7652
    %v7654 = vadd.f32 %v7647, %v7652
    %v7655 = vadd.f32 %v7648, %v7652
    %s7656 = scalar_lea.vmem %s33, 96
    %v7657 = vld [vmem:[%s7656] sm:$0xff]
    %v7658 = vld [vmem:[%s7656 + $0x8] sm:$0xff]
    %v7659 = vld [vmem:[%s7656 + $0x10] sm:$0xff]
    %v7660 = vld [vmem:[%s7656 + $0x18] sm:$0xff]
    %s7661 = scalar_lea.vmem %s31, 3
    %v7662 = vld [vmem:[%s7661] sm:$0x1]
    %v7664 = vlaneseq
    %v7665 = vshrl.u32 %v7664, 7
    %v7666 = vsub.s32 0, %v7665
    %v7667 = vrot.slane %v7662, %v7666
    %v7670 = vsel %vm2815, %v7653, 0
    %v7673 = vsel %vm2815, %v7654, 0
    %v7676 = vsel %vm2815, %v7655, 0
    %7678 = vmatprep.subr.mxu0 0.0
    %7679 = vmatpush1.msra.mxu0 %v7657
    %7680 = vmatprep.subr.mxu0 0.0
    %7681 = vmatpush1.msra.mxu0 %v7658
    %7682 = vmatprep.subr.mxu0 0.0
    %7683 = vmatpush1.msra.mxu0 %v7659
    %7684 = vmatprep.subr.mxu0 0.0
    %7685 = vmatpush1.msra.mxu0 %v7660
    %7686 = vmatprep.subr.mxu0 0.0
    %7687 = vmatpush1.msra.mxu0 0.0
    %7688 = vmatprep.subr.mxu0 0.0
    %7689 = vmatpush1.msra.mxu0 0.0
    %7690 = vmatprep.subr.mxu0 0.0
    %7691 = vmatpush1.msra.mxu0 0.0
    %7692 = vmatprep.subr.mxu0 0.0
    %7693 = vmatpush1.msra.mxu0 0.0
    %7694 = vmatprep.subr.mxu0 0.0
    %7695 = vmatpush1.msra.mxu0 0.0
    %7696 = vmatprep.subr.mxu0 0.0
    %7697 = vmatpush1.msra.mxu0 0.0
    %7698 = vmatprep.subr.mxu0 0.0
    %7699 = vmatpush1.msra.mxu0 0.0
    %7700 = vmatprep.subr.mxu0 0.0
    %7701 = vmatpush1.msra.mxu0 0.0
    %7702 = vmatprep.subr.mxu0 0.0
    %7703 = vmatpush1.msra.mxu0 0.0
    %7704 = vmatprep.subr.mxu0 0.0
    %7705 = vmatpush1.msra.mxu0 0.0
    %7706 = vmatprep.subr.mxu0 0.0
    %7707 = vmatpush1.msra.mxu0 0.0
    %7708 = vmatprep.subr.mxu0 0.0
    %7709 = vmatpush1.msra.mxu0 0.0
    %7710 = vmatprep.subr.mxu0 0.0
    %7711 = vmatpush1.msra.mxu0 0.0
    %7712 = vmatprep.subr.mxu0 0.0
    %7713 = vmatpush1.msra.mxu0 0.0
    %7714 = vmatprep.subr.mxu0 0.0
    %7715 = vmatpush1.msra.mxu0 0.0
    %7716 = vmatprep.subr.mxu0 0.0
    %7717 = vmatpush1.msra.mxu0 0.0
    %7718 = vmatprep.subr.mxu0 0.0
    %7719 = vmatpush1.msra.mxu0 0.0
    %7720 = vmatprep.subr.mxu0 0.0
    %7721 = vmatpush1.msra.mxu0 0.0
    %7722 = vmatprep.subr.mxu0 0.0
    %7723 = vmatpush1.msra.mxu0 0.0
    %7724 = vmatprep.subr.mxu0 0.0
    %7725 = vmatpush1.msra.mxu0 0.0
    %7726 = vmatprep.subr.mxu0 0.0
    %7727 = vmatpush1.msra.mxu0 0.0
    %7728 = vmatprep.subr.mxu0 0.0
    %7729 = vmatpush1.msra.mxu0 0.0
    %7730 = vmatprep.subr.mxu0 0.0
    %7731 = vmatpush1.msra.mxu0 0.0
    %7732 = vmatprep.subr.mxu0 0.0
    %7733 = vmatpush1.msra.mxu0 0.0
    %7734 = vmatprep.subr.mxu0 0.0
    %7735 = vmatpush1.msra.mxu0 0.0
    %7736 = vmatprep.subr.mxu0 0.0
    %7737 = vmatpush1.msra.mxu0 0.0
    %7738 = vmatprep.subr.mxu0 0.0
    %7739 = vmatpush1.msra.mxu0 0.0
    %7740 = vmatprep.subr.mxu0 0.0
    %7741 = vmatpush1.msra.mxu0 0.0
    %7742 = vmatprep.mubr.f32.mxu0 0.0
    %7743 = vmatmul.mubr.f32.gmra.mrb[0].mxu0 %v7670
    %v7744 = vpop.f32.mrb[0].mxu0
    %v7745 = vadd.f32 %v7667, %v7744
    %v7746 = vpop.f32.mrb[0].mxu0
    %7747 = vmatprep.mubr.f32.mxu0 0.0
    %7748 = vmatmul.mubr.f32.gmra.mrb[0].mxu0 %v7673
    %v7749 = vpop.f32.mrb[0].mxu0
    %v7750 = vadd.f32 %v7667, %v7749
    %v7751 = vpop.f32.mrb[0].mxu0
    %7752 = vmatprep.mubr.f32.mxu0 0.0
    %7753 = vmatmul.mubr.f32.gmra.mrb[0].mxu0 %v7676
    %v7754 = vpop.f32.mrb[0].mxu0
    %v7755 = vadd.f32 %v7667, %v7754
    %v7756 = vpop.f32.mrb[0].mxu0
    %7757 = vdwg.mxu0
    %7761 = vrot.lane.b32.xlu0 %v7745, 96
    %v7762 = vpop.permute.xlu0 %7761
    %7763 = vrot.lane.b32.xlu0 %v7750, 96
    %v7764 = vpop.permute.xlu0 %7763
    %7765 = vrot.lane.b32.xlu0 %v7755, 96
    %v7766 = vpop.permute.xlu0 %7765
    %v7767 = vsel %vm2980, %v7745, 0
    %v7769 = vsel %vm2980, %v7750, 0
    %v7771 = vsel %vm2980, %v7755, 0
    %v7773 = vsel %vm2980, %v7762, 0
    %v7775 = vsel %vm2980, %v7764, 0
    %v7777 = vsel %vm2980, %v7766, 0
    %7779 = vmatprep.subr.mxu0 0.0
    %7780 = vmatpush1.xpose.msra.mxu0 %v7773
    %7781 = vmatprep.subr.mxu0 0.0
    %7782 = vmatpush1.xpose.msra.mxu0 %v7775
    %7783 = vmatprep.subr.mxu0 0.0
    %7784 = vmatpush1.xpose.msra.mxu0 %v7777
    %7785 = vmatprep.subr.mxu0 0.0
    %7786 = vmatpush1.xpose.msra.mxu0 0.0
    %7787 = vmatprep.subr.mxu0 0.0
    %7788 = vmatpush1.xpose.msra.mxu0 0.0
    %7789 = vmatprep.subr.mxu0 0.0
    %7790 = vmatpush1.xpose.msra.mxu0 0.0
    %7791 = vmatprep.subr.mxu0 0.0
    %7792 = vmatpush1.xpose.msra.mxu0 0.0
    %7793 = vmatprep.subr.mxu0 0.0
    %7794 = vmatpush1.xpose.msra.mxu0 0.0
    %7795 = vmatprep.subr.mxu0 0.0
    %7796 = vmatpush1.xpose.msra.mxu0 0.0
    %7797 = vmatprep.subr.mxu0 0.0
    %7798 = vmatpush1.xpose.msra.mxu0 0.0
    %7799 = vmatprep.subr.mxu0 0.0
    %7800 = vmatpush1.xpose.msra.mxu0 0.0
    %7801 = vmatprep.subr.mxu0 0.0
    %7802 = vmatpush1.xpose.msra.mxu0 0.0
    %7803 = vmatprep.subr.mxu0 0.0
    %7804 = vmatpush1.xpose.msra.mxu0 0.0
    %7805 = vmatprep.subr.mxu0 0.0
    %7806 = vmatpush1.xpose.msra.mxu0 0.0
    %7807 = vmatprep.subr.mxu0 0.0
    %7808 = vmatpush1.xpose.msra.mxu0 0.0
    %7809 = vmatprep.subr.mxu0 0.0
    %7810 = vmatpush1.xpose.msra.mxu0 0.0
    %7811 = vmatprep.subr.mxu0 0.0
    %7812 = vmatpush1.xpose.msra.mxu0 0.0
    %7813 = vmatprep.subr.mxu0 0.0
    %7814 = vmatpush1.xpose.msra.mxu0 0.0
    %7815 = vmatprep.subr.mxu0 0.0
    %7816 = vmatpush1.xpose.msra.mxu0 0.0
    %7817 = vmatprep.subr.mxu0 0.0
    %7818 = vmatpush1.xpose.msra.mxu0 0.0
    %7819 = vmatprep.subr.mxu0 0.0
    %7820 = vmatpush1.xpose.msra.mxu0 0.0
    %7821 = vmatprep.subr.mxu0 0.0
    %7822 = vmatpush1.xpose.msra.mxu0 0.0
    %7823 = vmatprep.subr.mxu0 0.0
    %7824 = vmatpush1.xpose.msra.mxu0 0.0
    %7825 = vmatprep.subr.mxu0 0.0
    %7826 = vmatpush1.xpose.msra.mxu0 0.0
    %7827 = vmatprep.subr.mxu0 0.0
    %7828 = vmatpush1.xpose.msra.mxu0 0.0
    %7829 = vmatprep.subr.mxu0 0.0
    %7830 = vmatpush1.xpose.msra.mxu0 0.0
    %7831 = vmatprep.subr.mxu0 0.0
    %7832 = vmatpush1.xpose.msra.mxu0 0.0
    %7833 = vmatprep.subr.mxu0 0.0
    %7834 = vmatpush1.xpose.msra.mxu0 0.0
    %7835 = vmatprep.subr.mxu0 0.0
    %7836 = vmatpush1.xpose.msra.mxu0 0.0
    %7837 = vmatprep.subr.mxu0 0.0
    %7838 = vmatpush1.xpose.msra.mxu0 0.0
    %7839 = vmatprep.subr.mxu0 0.0
    %7840 = vmatpush1.xpose.msra.mxu0 0.0
    %7841 = vmatprep.subr.mxu0 0.0
    %7842 = vmatpush1.xpose.msra.mxu0 0.0
    %7843 = vmatprep.mubr.f32.mxu0 0.0
    %7844 = vmatmul.mubr.f32.gmra.mrb[0].mxu0 %v7767
    %v7845 = vpop.f32.mrb[0].mxu0
    %v7846 = vadd.f32 %v157, %v7845
    %v7847 = vpop.f32.mrb[0].mxu0
    %7848 = vmatprep.mubr.f32.mxu0 0.0
    %7849 = vmatmul.mubr.f32.gmra.mrb[0].mxu0 %v7769
    %v7850 = vpop.f32.mrb[0].mxu0
    %v7851 = vadd.f32 %v158, %v7850
    %v7852 = vpop.f32.mrb[0].mxu0
    %7853 = vmatprep.mubr.f32.mxu0 0.0
    %7854 = vmatmul.mubr.f32.gmra.mrb[0].mxu0 %v7771
    %v7855 = vpop.f32.mrb[0].mxu0
    %v7856 = vadd.f32 %v159, %v7855
    %v7857 = vpop.f32.mrb[0].mxu0
    %7858 = vdwg.mxu0
    %v7859 = vsel %vm3073, %v7846, -inf
    %7860 = vmax.xlane.f32.xlu0 %v7859
    %v7861 = vpop.xlane.xlu0 %7860
    %v7862 = vsel %vm3073, %v7851, -inf
    %7863 = vmax.xlane.f32.xlu0 %v7862
    %v7864 = vpop.xlane.xlu0 %7863
    %v7865 = vsel %vm3080, %v7856, -inf
    %7866 = vmax.xlane.f32.xlu0 %v7865
    %v7867 = vpop.xlane.xlu0 %7866
    %v7868 = vsub.f32 %v7846, %v7861
    %v7869 = vsub.f32 %v7851, %v7864
    %v7870 = vsub.f32 %v7856, %v7867
    %v7871 = vmul.f32 %v7868, 1.442695
    %v7872 = vpow.pop %v7871
    %v7873 = vmul.f32 %v7869, 1.442695
    %v7874 = vpow.pop %v7873
    %v7875 = vmul.f32 %v7870, 1.442695
    %v7876 = vpow.pop %v7875
    %v7877 = vsel %vm3073, %v7872, 0.0
    %7878 = vadd.xlane.f32.xlu0 %v7877
    %v7879 = vpop.xlane.xlu0 %7878
    %v7880 = vsel %vm3073, %v7874, 0.0
    %7881 = vadd.xlane.f32.xlu0 %v7880
    %v7882 = vpop.xlane.xlu0 %7881
    %v7883 = vsel %vm3080, %v7876, 0.0
    %7884 = vadd.xlane.f32.xlu0 %v7883
    %v7885 = vpop.xlane.xlu0 %7884
    %v7886 = vrcp.pop %v7879
    %v7887 = vrcp.pop %v7882
    %v7888 = vrcp.pop %v7885
    %v7889 = vmul.f32 %v7872, %v7886
    %v7890 = vmul.f32 %v7874, %v7887
    %v7891 = vmul.f32 %v7876, %v7888
    %7892 = vrot.lane.b32.xlu0 %v7745, 64
    %v7893 = vpop.permute.xlu0 %7892
    %7894 = vrot.lane.b32.xlu0 %v7750, 64
    %v7895 = vpop.permute.xlu0 %7894
    %7896 = vrot.lane.b32.xlu0 %v7755, 64
    %v7897 = vpop.permute.xlu0 %7896
    %v7901 = vsel %vm3073, %v7889, 0
    %v7904 = vsel %vm3073, %v7890, 0
    %v7907 = vsel %vm3073, %v7891, 0
    %v7909 = vsel %vm3125, %v7897, 0
    %7911 = vmatprep.subr.mxu0 0.0
    %7912 = vmatpush1.msra.mxu0 %v7893
    %7913 = vmatprep.subr.mxu0 0.0
    %7914 = vmatpush1.msra.mxu0 %v7895
    %7915 = vmatprep.subr.mxu0 0.0
    %7916 = vmatpush1.msra.mxu0 %v7909
    %7917 = vmatprep.subr.mxu0 0.0
    %7918 = vmatpush1.msra.mxu0 0.0
    %7919 = vmatprep.subr.mxu0 0.0
    %7920 = vmatpush1.msra.mxu0 0.0
    %7921 = vmatprep.subr.mxu0 0.0
    %7922 = vmatpush1.msra.mxu0 0.0
    %7923 = vmatprep.subr.mxu0 0.0
    %7924 = vmatpush1.msra.mxu0 0.0
    %7925 = vmatprep.subr.mxu0 0.0
    %7926 = vmatpush1.msra.mxu0 0.0
    %7927 = vmatprep.subr.mxu0 0.0
    %7928 = vmatpush1.msra.mxu0 0.0
    %7929 = vmatprep.subr.mxu0 0.0
    %7930 = vmatpush1.msra.mxu0 0.0
    %7931 = vmatprep.subr.mxu0 0.0
    %7932 = vmatpush1.msra.mxu0 0.0
    %7933 = vmatprep.subr.mxu0 0.0
    %7934 = vmatpush1.msra.mxu0 0.0
    %7935 = vmatprep.subr.mxu0 0.0
    %7936 = vmatpush1.msra.mxu0 0.0
    %7937 = vmatprep.subr.mxu0 0.0
    %7938 = vmatpush1.msra.mxu0 0.0
    %7939 = vmatprep.subr.mxu0 0.0
    %7940 = vmatpush1.msra.mxu0 0.0
    %7941 = vmatprep.subr.mxu0 0.0
    %7942 = vmatpush1.msra.mxu0 0.0
    %7943 = vmatprep.subr.mxu0 0.0
    %7944 = vmatpush1.msra.mxu0 0.0
    %7945 = vmatprep.subr.mxu0 0.0
    %7946 = vmatpush1.msra.mxu0 0.0
    %7947 = vmatprep.subr.mxu0 0.0
    %7948 = vmatpush1.msra.mxu0 0.0
    %7949 = vmatprep.subr.mxu0 0.0
    %7950 = vmatpush1.msra.mxu0 0.0
    %7951 = vmatprep.subr.mxu0 0.0
    %7952 = vmatpush1.msra.mxu0 0.0
    %7953 = vmatprep.subr.mxu0 0.0
    %7954 = vmatpush1.msra.mxu0 0.0
    %7955 = vmatprep.subr.mxu0 0.0
    %7956 = vmatpush1.msra.mxu0 0.0
    %7957 = vmatprep.subr.mxu0 0.0
    %7958 = vmatpush1.msra.mxu0 0.0
    %7959 = vmatprep.subr.mxu0 0.0
    %7960 = vmatpush1.msra.mxu0 0.0
    %7961 = vmatprep.subr.mxu0 0.0
    %7962 = vmatpush1.msra.mxu0 0.0
    %7963 = vmatprep.subr.mxu0 0.0
    %7964 = vmatpush1.msra.mxu0 0.0
    %7965 = vmatprep.subr.mxu0 0.0
    %7966 = vmatpush1.msra.mxu0 0.0
    %7967 = vmatprep.subr.mxu0 0.0
    %7968 = vmatpush1.msra.mxu0 0.0
    %7969 = vmatprep.subr.mxu0 0.0
    %7970 = vmatpush1.msra.mxu0 0.0
    %7971 = vmatprep.subr.mxu0 0.0
    %7972 = vmatpush1.msra.mxu0 0.0
    %7973 = vmatprep.subr.mxu0 0.0
    %7974 = vmatpush1.msra.mxu0 0.0
    %7975 = vmatprep.mubr.f32.mxu0 0.0
    %7976 = vmatmul.mubr.f32.gmra.mrb[0].mxu0 %v7901
    %v7977 = vpop.f32.mrb[0].mxu0
    %v7978 = vadd.f32 0.0, %v7977
    %v7979 = vpop.f32.mrb[0].mxu0
    %7980 = vmatprep.mubr.f32.mxu0 0.0
    %7981 = vmatmul.mubr.f32.gmra.mrb[0].mxu0 %v7904
    %v7982 = vpop.f32.mrb[0].mxu0
    %v7983 = vadd.f32 0.0, %v7982
    %v7984 = vpop.f32.mrb[0].mxu0
    %7985 = vmatprep.mubr.f32.mxu0 0.0
    %7986 = vmatmul.mubr.f32.gmra.mrb[0].mxu0 %v7907
    %v7987 = vpop.f32.mrb[0].mxu0
    %v7988 = vadd.f32 0.0, %v7987
    %v7989 = vpop.f32.mrb[0].mxu0
    %7990 = vdwg.mxu0
    %7991 = vrot.lane.b32.xlu0 %v7745, 120
    %v7992 = vpop.permute.xlu0 %7991
    %7993 = vrot.lane.b32.xlu0 %v7750, 120
    %v7994 = vpop.permute.xlu0 %7993
    %7995 = vrot.lane.b32.xlu0 %v7755, 120
    %v7996 = vpop.permute.xlu0 %7995
    %7997 = vrot.lane.b32.xlu0 %v7745, 88
    %v7998 = vpop.permute.xlu0 %7997
    %7999 = vrot.lane.b32.xlu0 %v7750, 88
    %v8000 = vpop.permute.xlu0 %7999
    %8001 = vrot.lane.b32.xlu0 %v7755, 88
    %v8002 = vpop.permute.xlu0 %8001
    %v8003 = vsel %vm2980, %v7992, 0
    %v8005 = vsel %vm2980, %v7994, 0
    %v8007 = vsel %vm2980, %v7996, 0
    %v8009 = vsel %vm2980, %v7998, 0
    %v8011 = vsel %vm2980, %v8000, 0
    %v8013 = vsel %vm2980, %v8002, 0
    %8015 = vmatprep.subr.mxu0 0.0
    %8016 = vmatpush1.xpose.msra.mxu0 %v8009
    %8017 = vmatprep.subr.mxu0 0.0
    %8018 = vmatpush1.xpose.msra.mxu0 %v8011
    %8019 = vmatprep.subr.mxu0 0.0
    %8020 = vmatpush1.xpose.msra.mxu0 %v8013
    %8021 = vmatprep.subr.mxu0 0.0
    %8022 = vmatpush1.xpose.msra.mxu0 0.0
    %8023 = vmatprep.subr.mxu0 0.0
    %8024 = vmatpush1.xpose.msra.mxu0 0.0
    %8025 = vmatprep.subr.mxu0 0.0
    %8026 = vmatpush1.xpose.msra.mxu0 0.0
    %8027 = vmatprep.subr.mxu0 0.0
    %8028 = vmatpush1.xpose.msra.mxu0 0.0
    %8029 = vmatprep.subr.mxu0 0.0
    %8030 = vmatpush1.xpose.msra.mxu0 0.0
    %8031 = vmatprep.subr.mxu0 0.0
    %8032 = vmatpush1.xpose.msra.mxu0 0.0
    %8033 = vmatprep.subr.mxu0 0.0
    %8034 = vmatpush1.xpose.msra.mxu0 0.0
    %8035 = vmatprep.subr.mxu0 0.0
    %8036 = vmatpush1.xpose.msra.mxu0 0.0
    %8037 = vmatprep.subr.mxu0 0.0
    %8038 = vmatpush1.xpose.msra.mxu0 0.0
    %8039 = vmatprep.subr.mxu0 0.0
    %8040 = vmatpush1.xpose.msra.mxu0 0.0
    %8041 = vmatprep.subr.mxu0 0.0
    %8042 = vmatpush1.xpose.msra.mxu0 0.0
    %8043 = vmatprep.subr.mxu0 0.0
    %8044 = vmatpush1.xpose.msra.mxu0 0.0
    %8045 = vmatprep.subr.mxu0 0.0
    %8046 = vmatpush1.xpose.msra.mxu0 0.0
    %8047 = vmatprep.subr.mxu0 0.0
    %8048 = vmatpush1.xpose.msra.mxu0 0.0
    %8049 = vmatprep.subr.mxu0 0.0
    %8050 = vmatpush1.xpose.msra.mxu0 0.0
    %8051 = vmatprep.subr.mxu0 0.0
    %8052 = vmatpush1.xpose.msra.mxu0 0.0
    %8053 = vmatprep.subr.mxu0 0.0
    %8054 = vmatpush1.xpose.msra.mxu0 0.0
    %8055 = vmatprep.subr.mxu0 0.0
    %8056 = vmatpush1.xpose.msra.mxu0 0.0
    %8057 = vmatprep.subr.mxu0 0.0
    %8058 = vmatpush1.xpose.msra.mxu0 0.0
    %8059 = vmatprep.subr.mxu0 0.0
    %8060 = vmatpush1.xpose.msra.mxu0 0.0
    %8061 = vmatprep.subr.mxu0 0.0
    %8062 = vmatpush1.xpose.msra.mxu0 0.0
    %8063 = vmatprep.subr.mxu0 0.0
    %8064 = vmatpush1.xpose.msra.mxu0 0.0
    %8065 = vmatprep.subr.mxu0 0.0
    %8066 = vmatpush1.xpose.msra.mxu0 0.0
    %8067 = vmatprep.subr.mxu0 0.0
    %8068 = vmatpush1.xpose.msra.mxu0 0.0
    %8069 = vmatprep.subr.mxu0 0.0
    %8070 = vmatpush1.xpose.msra.mxu0 0.0
    %8071 = vmatprep.subr.mxu0 0.0
    %8072 = vmatpush1.xpose.msra.mxu0 0.0
    %8073 = vmatprep.subr.mxu0 0.0
    %8074 = vmatpush1.xpose.msra.mxu0 0.0
    %8075 = vmatprep.subr.mxu0 0.0
    %8076 = vmatpush1.xpose.msra.mxu0 0.0
    %8077 = vmatprep.subr.mxu0 0.0
    %8078 = vmatpush1.xpose.msra.mxu0 0.0
    %8079 = vmatprep.mubr.f32.mxu0 0.0
    %8080 = vmatmul.mubr.f32.gmra.mrb[0].mxu0 %v8003
    %v8081 = vpop.f32.mrb[0].mxu0
    %v8082 = vadd.f32 %v157, %v8081
    %v8083 = vpop.f32.mrb[0].mxu0
    %8084 = vmatprep.mubr.f32.mxu0 0.0
    %8085 = vmatmul.mubr.f32.gmra.mrb[0].mxu0 %v8005
    %v8086 = vpop.f32.mrb[0].mxu0
    %v8087 = vadd.f32 %v158, %v8086
    %v8088 = vpop.f32.mrb[0].mxu0
    %8089 = vmatprep.mubr.f32.mxu0 0.0
    %8090 = vmatmul.mubr.f32.gmra.mrb[0].mxu0 %v8007
    %v8091 = vpop.f32.mrb[0].mxu0
    %v8092 = vadd.f32 %v159, %v8091
    %v8093 = vpop.f32.mrb[0].mxu0
    %8094 = vdwg.mxu0
    %v8095 = vsel %vm3073, %v8082, -inf
    %8096 = vmax.xlane.f32.xlu0 %v8095
    %v8097 = vpop.xlane.xlu0 %8096
    %v8098 = vsel %vm3073, %v8087, -inf
    %8099 = vmax.xlane.f32.xlu0 %v8098
    %v8100 = vpop.xlane.xlu0 %8099
    %v8101 = vsel %vm3080, %v8092, -inf
    %8102 = vmax.xlane.f32.xlu0 %v8101
    %v8103 = vpop.xlane.xlu0 %8102
    %v8104 = vsub.f32 %v8082, %v8097
    %v8105 = vsub.f32 %v8087, %v8100
    %v8106 = vsub.f32 %v8092, %v8103
    %v8107 = vmul.f32 %v8104, 1.442695
    %v8108 = vpow.pop %v8107
    %v8109 = vmul.f32 %v8105, 1.442695
    %v8110 = vpow.pop %v8109
    %v8111 = vmul.f32 %v8106, 1.442695
    %v8112 = vpow.pop %v8111
    %v8113 = vsel %vm3073, %v8108, 0.0
    %8114 = vadd.xlane.f32.xlu0 %v8113
    %v8115 = vpop.xlane.xlu0 %8114
    %v8116 = vsel %vm3073, %v8110, 0.0
    %8117 = vadd.xlane.f32.xlu0 %v8116
    %v8118 = vpop.xlane.xlu0 %8117
    %v8119 = vsel %vm3080, %v8112, 0.0
    %8120 = vadd.xlane.f32.xlu0 %v8119
    %v8121 = vpop.xlane.xlu0 %8120
    %v8122 = vrcp.pop %v8115
    %v8123 = vrcp.pop %v8118
    %v8124 = vrcp.pop %v8121
    %v8125 = vmul.f32 %v8108, %v8122
    %v8126 = vmul.f32 %v8110, %v8123
    %v8127 = vmul.f32 %v8112, %v8124
    %8128 = vrot.lane.b32.xlu0 %v7745, 56
    %v8129 = vpop.permute.xlu0 %8128
    %8130 = vrot.lane.b32.xlu0 %v7750, 56
    %v8131 = vpop.permute.xlu0 %8130
    %8132 = vrot.lane.b32.xlu0 %v7755, 56
    %v8133 = vpop.permute.xlu0 %8132
    %v8137 = vsel %vm3073, %v8125, 0
    %v8140 = vsel %vm3073, %v8126, 0
    %v8143 = vsel %vm3073, %v8127, 0
    %v8145 = vsel %vm3125, %v8133, 0
    %8147 = vmatprep.subr.mxu0 0.0
    %8148 = vmatpush1.msra.mxu0 %v8129
    %8149 = vmatprep.subr.mxu0 0.0
    %8150 = vmatpush1.msra.mxu0 %v8131
    %8151 = vmatprep.subr.mxu0 0.0
    %8152 = vmatpush1.msra.mxu0 %v8145
    %8153 = vmatprep.subr.mxu0 0.0
    %8154 = vmatpush1.msra.mxu0 0.0
    %8155 = vmatprep.subr.mxu0 0.0
    %8156 = vmatpush1.msra.mxu0 0.0
    %8157 = vmatprep.subr.mxu0 0.0
    %8158 = vmatpush1.msra.mxu0 0.0
    %8159 = vmatprep.subr.mxu0 0.0
    %8160 = vmatpush1.msra.mxu0 0.0
    %8161 = vmatprep.subr.mxu0 0.0
    %8162 = vmatpush1.msra.mxu0 0.0
    %8163 = vmatprep.subr.mxu0 0.0
    %8164 = vmatpush1.msra.mxu0 0.0
    %8165 = vmatprep.subr.mxu0 0.0
    %8166 = vmatpush1.msra.mxu0 0.0
    %8167 = vmatprep.subr.mxu0 0.0
    %8168 = vmatpush1.msra.mxu0 0.0
    %8169 = vmatprep.subr.mxu0 0.0
    %8170 = vmatpush1.msra.mxu0 0.0
    %8171 = vmatprep.subr.mxu0 0.0
    %8172 = vmatpush1.msra.mxu0 0.0
    %8173 = vmatprep.subr.mxu0 0.0
    %8174 = vmatpush1.msra.mxu0 0.0
    %8175 = vmatprep.subr.mxu0 0.0
    %8176 = vmatpush1.msra.mxu0 0.0
    %8177 = vmatprep.subr.mxu0 0.0
    %8178 = vmatpush1.msra.mxu0 0.0
    %8179 = vmatprep.subr.mxu0 0.0
    %8180 = vmatpush1.msra.mxu0 0.0
    %8181 = vmatprep.subr.mxu0 0.0
    %8182 = vmatpush1.msra.mxu0 0.0
    %8183 = vmatprep.subr.mxu0 0.0
    %8184 = vmatpush1.msra.mxu0 0.0
    %8185 = vmatprep.subr.mxu0 0.0
    %8186 = vmatpush1.msra.mxu0 0.0
    %8187 = vmatprep.subr.mxu0 0.0
    %8188 = vmatpush1.msra.mxu0 0.0
    %8189 = vmatprep.subr.mxu0 0.0
    %8190 = vmatpush1.msra.mxu0 0.0
    %8191 = vmatprep.subr.mxu0 0.0
    %8192 = vmatpush1.msra.mxu0 0.0
    %8193 = vmatprep.subr.mxu0 0.0
    %8194 = vmatpush1.msra.mxu0 0.0
    %8195 = vmatprep.subr.mxu0 0.0
    %8196 = vmatpush1.msra.mxu0 0.0
    %8197 = vmatprep.subr.mxu0 0.0
    %8198 = vmatpush1.msra.mxu0 0.0
    %8199 = vmatprep.subr.mxu0 0.0
    %8200 = vmatpush1.msra.mxu0 0.0
    %8201 = vmatprep.subr.mxu0 0.0
    %8202 = vmatpush1.msra.mxu0 0.0
    %8203 = vmatprep.subr.mxu0 0.0
    %8204 = vmatpush1.msra.mxu0 0.0
    %8205 = vmatprep.subr.mxu0 0.0
    %8206 = vmatpush1.msra.mxu0 0.0
    %8207 = vmatprep.subr.mxu0 0.0
    %8208 = vmatpush1.msra.mxu0 0.0
    %8209 = vmatprep.subr.mxu0 0.0
    %8210 = vmatpush1.msra.mxu0 0.0
    %8211 = vmatprep.mubr.f32.mxu0 0.0
    %8212 = vmatmul.mubr.f32.gmra.mrb[0].mxu0 %v8137
    %v8213 = vpop.f32.mrb[0].mxu0
    %v8214 = vadd.f32 0.0, %v8213
    %v8215 = vpop.f32.mrb[0].mxu0
    %8216 = vmatprep.mubr.f32.mxu0 0.0
    %8217 = vmatmul.mubr.f32.gmra.mrb[0].mxu0 %v8140
    %v8218 = vpop.f32.mrb[0].mxu0
    %v8219 = vadd.f32 0.0, %v8218
    %v8220 = vpop.f32.mrb[0].mxu0
    %8221 = vmatprep.mubr.f32.mxu0 0.0
    %8222 = vmatmul.mubr.f32.gmra.mrb[0].mxu0 %v8143
    %v8223 = vpop.f32.mrb[0].mxu0
    %v8224 = vadd.f32 0.0, %v8223
    %v8225 = vpop.f32.mrb[0].mxu0
    %8226 = vdwg.mxu0
    %8227 = vrot.lane.b32.xlu0 %v7745, 112
    %v8228 = vpop.permute.xlu0 %8227
    %8229 = vrot.lane.b32.xlu0 %v7750, 112
    %v8230 = vpop.permute.xlu0 %8229
    %8231 = vrot.lane.b32.xlu0 %v7755, 112
    %v8232 = vpop.permute.xlu0 %8231
    %8233 = vrot.lane.b32.xlu0 %v7745, 80
    %v8234 = vpop.permute.xlu0 %8233
    %8235 = vrot.lane.b32.xlu0 %v7750, 80
    %v8236 = vpop.permute.xlu0 %8235
    %8237 = vrot.lane.b32.xlu0 %v7755, 80
    %v8238 = vpop.permute.xlu0 %8237
    %v8239 = vsel %vm2980, %v8228, 0
    %v8241 = vsel %vm2980, %v8230, 0
    %v8243 = vsel %vm2980, %v8232, 0
    %v8245 = vsel %vm2980, %v8234, 0
    %v8247 = vsel %vm2980, %v8236, 0
    %v8249 = vsel %vm2980, %v8238, 0
    %8251 = vmatprep.subr.mxu0 0.0
    %8252 = vmatpush1.xpose.msra.mxu0 %v8245
    %8253 = vmatprep.subr.mxu0 0.0
    %8254 = vmatpush1.xpose.msra.mxu0 %v8247
    %8255 = vmatprep.subr.mxu0 0.0
    %8256 = vmatpush1.xpose.msra.mxu0 %v8249
    %8257 = vmatprep.subr.mxu0 0.0
    %8258 = vmatpush1.xpose.msra.mxu0 0.0
    %8259 = vmatprep.subr.mxu0 0.0
    %8260 = vmatpush1.xpose.msra.mxu0 0.0
    %8261 = vmatprep.subr.mxu0 0.0
    %8262 = vmatpush1.xpose.msra.mxu0 0.0
    %8263 = vmatprep.subr.mxu0 0.0
    %8264 = vmatpush1.xpose.msra.mxu0 0.0
    %8265 = vmatprep.subr.mxu0 0.0
    %8266 = vmatpush1.xpose.msra.mxu0 0.0
    %8267 = vmatprep.subr.mxu0 0.0
    %8268 = vmatpush1.xpose.msra.mxu0 0.0
    %8269 = vmatprep.subr.mxu0 0.0
    %8270 = vmatpush1.xpose.msra.mxu0 0.0
    %8271 = vmatprep.subr.mxu0 0.0
    %8272 = vmatpush1.xpose.msra.mxu0 0.0
    %8273 = vmatprep.subr.mxu0 0.0
    %8274 = vmatpush1.xpose.msra.mxu0 0.0
    %8275 = vmatprep.subr.mxu0 0.0
    %8276 = vmatpush1.xpose.msra.mxu0 0.0
    %8277 = vmatprep.subr.mxu0 0.0
    %8278 = vmatpush1.xpose.msra.mxu0 0.0
    %8279 = vmatprep.subr.mxu0 0.0
    %8280 = vmatpush1.xpose.msra.mxu0 0.0
    %8281 = vmatprep.subr.mxu0 0.0
    %8282 = vmatpush1.xpose.msra.mxu0 0.0
    %8283 = vmatprep.subr.mxu0 0.0
    %8284 = vmatpush1.xpose.msra.mxu0 0.0
    %8285 = vmatprep.subr.mxu0 0.0
    %8286 = vmatpush1.xpose.msra.mxu0 0.0
    %8287 = vmatprep.subr.mxu0 0.0
    %8288 = vmatpush1.xpose.msra.mxu0 0.0
    %8289 = vmatprep.subr.mxu0 0.0
    %8290 = vmatpush1.xpose.msra.mxu0 0.0
    %8291 = vmatprep.subr.mxu0 0.0
    %8292 = vmatpush1.xpose.msra.mxu0 0.0
    %8293 = vmatprep.subr.mxu0 0.0
    %8294 = vmatpush1.xpose.msra.mxu0 0.0
    %8295 = vmatprep.subr.mxu0 0.0
    %8296 = vmatpush1.xpose.msra.mxu0 0.0
    %8297 = vmatprep.subr.mxu0 0.0
    %8298 = vmatpush1.xpose.msra.mxu0 0.0
    %8299 = vmatprep.subr.mxu0 0.0
    %8300 = vmatpush1.xpose.msra.mxu0 0.0
    %8301 = vmatprep.subr.mxu0 0.0
    %8302 = vmatpush1.xpose.msra.mxu0 0.0
    %8303 = vmatprep.subr.mxu0 0.0
    %8304 = vmatpush1.xpose.msra.mxu0 0.0
    %8305 = vmatprep.subr.mxu0 0.0
    %8306 = vmatpush1.xpose.msra.mxu0 0.0
    %8307 = vmatprep.subr.mxu0 0.0
    %8308 = vmatpush1.xpose.msra.mxu0 0.0
    %8309 = vmatprep.subr.mxu0 0.0
    %8310 = vmatpush1.xpose.msra.mxu0 0.0
    %8311 = vmatprep.subr.mxu0 0.0
    %8312 = vmatpush1.xpose.msra.mxu0 0.0
    %8313 = vmatprep.subr.mxu0 0.0
    %8314 = vmatpush1.xpose.msra.mxu0 0.0
    %8315 = vmatprep.mubr.f32.mxu0 0.0
    %8316 = vmatmul.mubr.f32.gmra.mrb[0].mxu0 %v8239
    %v8317 = vpop.f32.mrb[0].mxu0
    %v8318 = vadd.f32 %v157, %v8317
    %v8319 = vpop.f32.mrb[0].mxu0
    %8320 = vmatprep.mubr.f32.mxu0 0.0
    %8321 = vmatmul.mubr.f32.gmra.mrb[0].mxu0 %v8241
    %v8322 = vpop.f32.mrb[0].mxu0
    %v8323 = vadd.f32 %v158, %v8322
    %v8324 = vpop.f32.mrb[0].mxu0
    %8325 = vmatprep.mubr.f32.mxu0 0.0
    %8326 = vmatmul.mubr.f32.gmra.mrb[0].mxu0 %v8243
    %v8327 = vpop.f32.mrb[0].mxu0
    %v8328 = vadd.f32 %v159, %v8327
    %v8329 = vpop.f32.mrb[0].mxu0
    %8330 = vdwg.mxu0
    %v8331 = vsel %vm3073, %v8318, -inf
    %8332 = vmax.xlane.f32.xlu0 %v8331
    %v8333 = vpop.xlane.xlu0 %8332
    %v8334 = vsel %vm3073, %v8323, -inf
    %8335 = vmax.xlane.f32.xlu0 %v8334
    %v8336 = vpop.xlane.xlu0 %8335
    %v8337 = vsel %vm3080, %v8328, -inf
    %8338 = vmax.xlane.f32.xlu0 %v8337
    %v8339 = vpop.xlane.xlu0 %8338
    %v8340 = vsub.f32 %v8318, %v8333
    %v8341 = vsub.f32 %v8323, %v8336
    %v8342 = vsub.f32 %v8328, %v8339
    %v8343 = vmul.f32 %v8340, 1.442695
    %v8344 = vpow.pop %v8343
    %v8345 = vmul.f32 %v8341, 1.442695
    %v8346 = vpow.pop %v8345
    %v8347 = vmul.f32 %v8342, 1.442695
    %v8348 = vpow.pop %v8347
    %v8349 = vsel %vm3073, %v8344, 0.0
    %8350 = vadd.xlane.f32.xlu0 %v8349
    %v8351 = vpop.xlane.xlu0 %8350
    %v8352 = vsel %vm3073, %v8346, 0.0
    %8353 = vadd.xlane.f32.xlu0 %v8352
    %v8354 = vpop.xlane.xlu0 %8353
    %v8355 = vsel %vm3080, %v8348, 0.0
    %8356 = vadd.xlane.f32.xlu0 %v8355
    %v8357 = vpop.xlane.xlu0 %8356
    %v8358 = vrcp.pop %v8351
    %v8359 = vrcp.pop %v8354
    %v8360 = vrcp.pop %v8357
    %v8361 = vmul.f32 %v8344, %v8358
    %v8362 = vmul.f32 %v8346, %v8359
    %v8363 = vmul.f32 %v8348, %v8360
    %8364 = vrot.lane.b32.xlu0 %v7745, 48
    %v8365 = vpop.permute.xlu0 %8364
    %8366 = vrot.lane.b32.xlu0 %v7750, 48
    %v8367 = vpop.permute.xlu0 %8366
    %8368 = vrot.lane.b32.xlu0 %v7755, 48
    %v8369 = vpop.permute.xlu0 %8368
    %v8373 = vsel %vm3073, %v8361, 0
    %v8376 = vsel %vm3073, %v8362, 0
    %v8379 = vsel %vm3073, %v8363, 0
    %v8381 = vsel %vm3125, %v8369, 0
    %8383 = vmatprep.subr.mxu0 0.0
    %8384 = vmatpush1.msra.mxu0 %v8365
    %8385 = vmatprep.subr.mxu0 0.0
    %8386 = vmatpush1.msra.mxu0 %v8367
    %8387 = vmatprep.subr.mxu0 0.0
    %8388 = vmatpush1.msra.mxu0 %v8381
    %8389 = vmatprep.subr.mxu0 0.0
    %8390 = vmatpush1.msra.mxu0 0.0
    %8391 = vmatprep.subr.mxu0 0.0
    %8392 = vmatpush1.msra.mxu0 0.0
    %8393 = vmatprep.subr.mxu0 0.0
    %8394 = vmatpush1.msra.mxu0 0.0
    %8395 = vmatprep.subr.mxu0 0.0
    %8396 = vmatpush1.msra.mxu0 0.0
    %8397 = vmatprep.subr.mxu0 0.0
    %8398 = vmatpush1.msra.mxu0 0.0
    %8399 = vmatprep.subr.mxu0 0.0
    %8400 = vmatpush1.msra.mxu0 0.0
    %8401 = vmatprep.subr.mxu0 0.0
    %8402 = vmatpush1.msra.mxu0 0.0
    %8403 = vmatprep.subr.mxu0 0.0
    %8404 = vmatpush1.msra.mxu0 0.0
    %8405 = vmatprep.subr.mxu0 0.0
    %8406 = vmatpush1.msra.mxu0 0.0
    %8407 = vmatprep.subr.mxu0 0.0
    %8408 = vmatpush1.msra.mxu0 0.0
    %8409 = vmatprep.subr.mxu0 0.0
    %8410 = vmatpush1.msra.mxu0 0.0
    %8411 = vmatprep.subr.mxu0 0.0
    %8412 = vmatpush1.msra.mxu0 0.0
    %8413 = vmatprep.subr.mxu0 0.0
    %8414 = vmatpush1.msra.mxu0 0.0
    %8415 = vmatprep.subr.mxu0 0.0
    %8416 = vmatpush1.msra.mxu0 0.0
    %8417 = vmatprep.subr.mxu0 0.0
    %8418 = vmatpush1.msra.mxu0 0.0
    %8419 = vmatprep.subr.mxu0 0.0
    %8420 = vmatpush1.msra.mxu0 0.0
    %8421 = vmatprep.subr.mxu0 0.0
    %8422 = vmatpush1.msra.mxu0 0.0
    %8423 = vmatprep.subr.mxu0 0.0
    %8424 = vmatpush1.msra.mxu0 0.0
    %8425 = vmatprep.subr.mxu0 0.0
    %8426 = vmatpush1.msra.mxu0 0.0
    %8427 = vmatprep.subr.mxu0 0.0
    %8428 = vmatpush1.msra.mxu0 0.0
    %8429 = vmatprep.subr.mxu0 0.0
    %8430 = vmatpush1.msra.mxu0 0.0
    %8431 = vmatprep.subr.mxu0 0.0
    %8432 = vmatpush1.msra.mxu0 0.0
    %8433 = vmatprep.subr.mxu0 0.0
    %8434 = vmatpush1.msra.mxu0 0.0
    %8435 = vmatprep.subr.mxu0 0.0
    %8436 = vmatpush1.msra.mxu0 0.0
    %8437 = vmatprep.subr.mxu0 0.0
    %8438 = vmatpush1.msra.mxu0 0.0
    %8439 = vmatprep.subr.mxu0 0.0
    %8440 = vmatpush1.msra.mxu0 0.0
    %8441 = vmatprep.subr.mxu0 0.0
    %8442 = vmatpush1.msra.mxu0 0.0
    %8443 = vmatprep.subr.mxu0 0.0
    %8444 = vmatpush1.msra.mxu0 0.0
    %8445 = vmatprep.subr.mxu0 0.0
    %8446 = vmatpush1.msra.mxu0 0.0
    %8447 = vmatprep.mubr.f32.mxu0 0.0
    %8448 = vmatmul.mubr.f32.gmra.mrb[0].mxu0 %v8373
    %v8449 = vpop.f32.mrb[0].mxu0
    %v8450 = vadd.f32 0.0, %v8449
    %v8451 = vpop.f32.mrb[0].mxu0
    %8452 = vmatprep.mubr.f32.mxu0 0.0
    %8453 = vmatmul.mubr.f32.gmra.mrb[0].mxu0 %v8376
    %v8454 = vpop.f32.mrb[0].mxu0
    %v8455 = vadd.f32 0.0, %v8454
    %v8456 = vpop.f32.mrb[0].mxu0
    %8457 = vmatprep.mubr.f32.mxu0 0.0
    %8458 = vmatmul.mubr.f32.gmra.mrb[0].mxu0 %v8379
    %v8459 = vpop.f32.mrb[0].mxu0
    %v8460 = vadd.f32 0.0, %v8459
    %v8461 = vpop.f32.mrb[0].mxu0
    %8462 = vdwg.mxu0
    %8463 = vrot.lane.b32.xlu0 %v7745, 104
    %v8464 = vpop.permute.xlu0 %8463
    %8465 = vrot.lane.b32.xlu0 %v7750, 104
    %v8466 = vpop.permute.xlu0 %8465
    %8467 = vrot.lane.b32.xlu0 %v7755, 104
    %v8468 = vpop.permute.xlu0 %8467
    %8469 = vrot.lane.b32.xlu0 %v7745, 72
    %v8470 = vpop.permute.xlu0 %8469
    %8471 = vrot.lane.b32.xlu0 %v7750, 72
    %v8472 = vpop.permute.xlu0 %8471
    %8473 = vrot.lane.b32.xlu0 %v7755, 72
    %v8474 = vpop.permute.xlu0 %8473
    %v8475 = vsel %vm2980, %v8464, 0
    %v8477 = vsel %vm2980, %v8466, 0
    %v8479 = vsel %vm2980, %v8468, 0
    %v8481 = vsel %vm2980, %v8470, 0
    %v8483 = vsel %vm2980, %v8472, 0
    %v8485 = vsel %vm2980, %v8474, 0
    %8487 = vmatprep.subr.mxu0 0.0
    %8488 = vmatpush1.xpose.msra.mxu0 %v8481
    %8489 = vmatprep.subr.mxu0 0.0
    %8490 = vmatpush1.xpose.msra.mxu0 %v8483
    %8491 = vmatprep.subr.mxu0 0.0
    %8492 = vmatpush1.xpose.msra.mxu0 %v8485
    %8493 = vmatprep.subr.mxu0 0.0
    %8494 = vmatpush1.xpose.msra.mxu0 0.0
    %8495 = vmatprep.subr.mxu0 0.0
    %8496 = vmatpush1.xpose.msra.mxu0 0.0
    %8497 = vmatprep.subr.mxu0 0.0
    %8498 = vmatpush1.xpose.msra.mxu0 0.0
    %8499 = vmatprep.subr.mxu0 0.0
    %8500 = vmatpush1.xpose.msra.mxu0 0.0
    %8501 = vmatprep.subr.mxu0 0.0
    %8502 = vmatpush1.xpose.msra.mxu0 0.0
    %8503 = vmatprep.subr.mxu0 0.0
    %8504 = vmatpush1.xpose.msra.mxu0 0.0
    %8505 = vmatprep.subr.mxu0 0.0
    %8506 = vmatpush1.xpose.msra.mxu0 0.0
    %8507 = vmatprep.subr.mxu0 0.0
    %8508 = vmatpush1.xpose.msra.mxu0 0.0
    %8509 = vmatprep.subr.mxu0 0.0
    %8510 = vmatpush1.xpose.msra.mxu0 0.0
    %8511 = vmatprep.subr.mxu0 0.0
    %8512 = vmatpush1.xpose.msra.mxu0 0.0
    %8513 = vmatprep.subr.mxu0 0.0
    %8514 = vmatpush1.xpose.msra.mxu0 0.0
    %8515 = vmatprep.subr.mxu0 0.0
    %8516 = vmatpush1.xpose.msra.mxu0 0.0
    %8517 = vmatprep.subr.mxu0 0.0
    %8518 = vmatpush1.xpose.msra.mxu0 0.0
    %8519 = vmatprep.subr.mxu0 0.0
    %8520 = vmatpush1.xpose.msra.mxu0 0.0
    %8521 = vmatprep.subr.mxu0 0.0
    %8522 = vmatpush1.xpose.msra.mxu0 0.0
    %8523 = vmatprep.subr.mxu0 0.0
    %8524 = vmatpush1.xpose.msra.mxu0 0.0
    %8525 = vmatprep.subr.mxu0 0.0
    %8526 = vmatpush1.xpose.msra.mxu0 0.0
    %8527 = vmatprep.subr.mxu0 0.0
    %8528 = vmatpush1.xpose.msra.mxu0 0.0
    %8529 = vmatprep.subr.mxu0 0.0
    %8530 = vmatpush1.xpose.msra.mxu0 0.0
    %8531 = vmatprep.subr.mxu0 0.0
    %8532 = vmatpush1.xpose.msra.mxu0 0.0
    %8533 = vmatprep.subr.mxu0 0.0
    %8534 = vmatpush1.xpose.msra.mxu0 0.0
    %8535 = vmatprep.subr.mxu0 0.0
    %8536 = vmatpush1.xpose.msra.mxu0 0.0
    %8537 = vmatprep.subr.mxu0 0.0
    %8538 = vmatpush1.xpose.msra.mxu0 0.0
    %8539 = vmatprep.subr.mxu0 0.0
    %8540 = vmatpush1.xpose.msra.mxu0 0.0
    %8541 = vmatprep.subr.mxu0 0.0
    %8542 = vmatpush1.xpose.msra.mxu0 0.0
    %8543 = vmatprep.subr.mxu0 0.0
    %8544 = vmatpush1.xpose.msra.mxu0 0.0
    %8545 = vmatprep.subr.mxu0 0.0
    %8546 = vmatpush1.xpose.msra.mxu0 0.0
    %8547 = vmatprep.subr.mxu0 0.0
    %8548 = vmatpush1.xpose.msra.mxu0 0.0
    %8549 = vmatprep.subr.mxu0 0.0
    %8550 = vmatpush1.xpose.msra.mxu0 0.0
    %8551 = vmatprep.mubr.f32.mxu0 0.0
    %8552 = vmatmul.mubr.f32.gmra.mrb[0].mxu0 %v8475
    %v8553 = vpop.f32.mrb[0].mxu0
    %v8554 = vadd.f32 %v157, %v8553
    %v8555 = vpop.f32.mrb[0].mxu0
    %8556 = vmatprep.mubr.f32.mxu0 0.0
    %8557 = vmatmul.mubr.f32.gmra.mrb[0].mxu0 %v8477
    %v8558 = vpop.f32.mrb[0].mxu0
    %v8559 = vadd.f32 %v158, %v8558
    %v8560 = vpop.f32.mrb[0].mxu0
    %8561 = vmatprep.mubr.f32.mxu0 0.0
    %8562 = vmatmul.mubr.f32.gmra.mrb[0].mxu0 %v8479
    %v8563 = vpop.f32.mrb[0].mxu0
    %v8564 = vadd.f32 %v159, %v8563
    %v8565 = vpop.f32.mrb[0].mxu0
    %8566 = vdwg.mxu0
    %v8567 = vsel %vm3073, %v8554, -inf
    %8568 = vmax.xlane.f32.xlu0 %v8567
    %v8569 = vpop.xlane.xlu0 %8568
    %v8570 = vsel %vm3073, %v8559, -inf
    %8571 = vmax.xlane.f32.xlu0 %v8570
    %v8572 = vpop.xlane.xlu0 %8571
    %v8573 = vsel %vm3080, %v8564, -inf
    %8574 = vmax.xlane.f32.xlu0 %v8573
    %v8575 = vpop.xlane.xlu0 %8574
    %v8576 = vsub.f32 %v8554, %v8569
    %v8577 = vsub.f32 %v8559, %v8572
    %v8578 = vsub.f32 %v8564, %v8575
    %v8579 = vmul.f32 %v8576, 1.442695
    %v8580 = vpow.pop %v8579
    %v8581 = vmul.f32 %v8577, 1.442695
    %v8582 = vpow.pop %v8581
    %v8583 = vmul.f32 %v8578, 1.442695
    %v8584 = vpow.pop %v8583
    %v8585 = vsel %vm3073, %v8580, 0.0
    %8586 = vadd.xlane.f32.xlu0 %v8585
    %v8587 = vpop.xlane.xlu0 %8586
    %v8588 = vsel %vm3073, %v8582, 0.0
    %8589 = vadd.xlane.f32.xlu0 %v8588
    %v8590 = vpop.xlane.xlu0 %8589
    %v8591 = vsel %vm3080, %v8584, 0.0
    %8592 = vadd.xlane.f32.xlu0 %v8591
    %v8593 = vpop.xlane.xlu0 %8592
    %v8594 = vrcp.pop %v8587
    %v8595 = vrcp.pop %v8590
    %v8596 = vrcp.pop %v8593
    %v8597 = vmul.f32 %v8580, %v8594
    %v8598 = vmul.f32 %v8582, %v8595
    %v8599 = vmul.f32 %v8584, %v8596
    %8600 = vrot.lane.b32.xlu0 %v7745, 40
    %v8601 = vpop.permute.xlu0 %8600
    %8602 = vrot.lane.b32.xlu0 %v7750, 40
    %v8603 = vpop.permute.xlu0 %8602
    %8604 = vrot.lane.b32.xlu0 %v7755, 40
    %v8605 = vpop.permute.xlu0 %8604
    %v8609 = vsel %vm3073, %v8597, 0
    %v8612 = vsel %vm3073, %v8598, 0
    %v8615 = vsel %vm3073, %v8599, 0
    %v8617 = vsel %vm3125, %v8605, 0
    %8619 = vmatprep.subr.mxu0 0.0
    %8620 = vmatpush1.msra.mxu0 %v8601
    %8621 = vmatprep.subr.mxu0 0.0
    %8622 = vmatpush1.msra.mxu0 %v8603
    %8623 = vmatprep.subr.mxu0 0.0
    %8624 = vmatpush1.msra.mxu0 %v8617
    %8625 = vmatprep.subr.mxu0 0.0
    %8626 = vmatpush1.msra.mxu0 0.0
    %8627 = vmatprep.subr.mxu0 0.0
    %8628 = vmatpush1.msra.mxu0 0.0
    %8629 = vmatprep.subr.mxu0 0.0
    %8630 = vmatpush1.msra.mxu0 0.0
    %8631 = vmatprep.subr.mxu0 0.0
    %8632 = vmatpush1.msra.mxu0 0.0
    %8633 = vmatprep.subr.mxu0 0.0
    %8634 = vmatpush1.msra.mxu0 0.0
    %8635 = vmatprep.subr.mxu0 0.0
    %8636 = vmatpush1.msra.mxu0 0.0
    %8637 = vmatprep.subr.mxu0 0.0
    %8638 = vmatpush1.msra.mxu0 0.0
    %8639 = vmatprep.subr.mxu0 0.0
    %8640 = vmatpush1.msra.mxu0 0.0
    %8641 = vmatprep.subr.mxu0 0.0
    %8642 = vmatpush1.msra.mxu0 0.0
    %8643 = vmatprep.subr.mxu0 0.0
    %8644 = vmatpush1.msra.mxu0 0.0
    %8645 = vmatprep.subr.mxu0 0.0
    %8646 = vmatpush1.msra.mxu0 0.0
    %8647 = vmatprep.subr.mxu0 0.0
    %8648 = vmatpush1.msra.mxu0 0.0
    %8649 = vmatprep.subr.mxu0 0.0
    %8650 = vmatpush1.msra.mxu0 0.0
    %8651 = vmatprep.subr.mxu0 0.0
    %8652 = vmatpush1.msra.mxu0 0.0
    %8653 = vmatprep.subr.mxu0 0.0
    %8654 = vmatpush1.msra.mxu0 0.0
    %8655 = vmatprep.subr.mxu0 0.0
    %8656 = vmatpush1.msra.mxu0 0.0
    %8657 = vmatprep.subr.mxu0 0.0
    %8658 = vmatpush1.msra.mxu0 0.0
    %8659 = vmatprep.subr.mxu0 0.0
    %8660 = vmatpush1.msra.mxu0 0.0
    %8661 = vmatprep.subr.mxu0 0.0
    %8662 = vmatpush1.msra.mxu0 0.0
    %8663 = vmatprep.subr.mxu0 0.0
    %8664 = vmatpush1.msra.mxu0 0.0
    %8665 = vmatprep.subr.mxu0 0.0
    %8666 = vmatpush1.msra.mxu0 0.0
    %8667 = vmatprep.subr.mxu0 0.0
    %8668 = vmatpush1.msra.mxu0 0.0
    %8669 = vmatprep.subr.mxu0 0.0
    %8670 = vmatpush1.msra.mxu0 0.0
    %8671 = vmatprep.subr.mxu0 0.0
    %8672 = vmatpush1.msra.mxu0 0.0
    %8673 = vmatprep.subr.mxu0 0.0
    %8674 = vmatpush1.msra.mxu0 0.0
    %8675 = vmatprep.subr.mxu0 0.0
    %8676 = vmatpush1.msra.mxu0 0.0
    %8677 = vmatprep.subr.mxu0 0.0
    %8678 = vmatpush1.msra.mxu0 0.0
    %8679 = vmatprep.subr.mxu0 0.0
    %8680 = vmatpush1.msra.mxu0 0.0
    %8681 = vmatprep.subr.mxu0 0.0
    %8682 = vmatpush1.msra.mxu0 0.0
    %8683 = vmatprep.mubr.f32.mxu0 0.0
    %8684 = vmatmul.mubr.f32.gmra.mrb[0].mxu0 %v8609
    %v8685 = vpop.f32.mrb[0].mxu0
    %v8686 = vadd.f32 0.0, %v8685
    %v8687 = vpop.f32.mrb[0].mxu0
    %8688 = vmatprep.mubr.f32.mxu0 0.0
    %8689 = vmatmul.mubr.f32.gmra.mrb[0].mxu0 %v8612
    %v8690 = vpop.f32.mrb[0].mxu0
    %v8691 = vadd.f32 0.0, %v8690
    %v8692 = vpop.f32.mrb[0].mxu0
    %8693 = vmatprep.mubr.f32.mxu0 0.0
    %8694 = vmatmul.mubr.f32.gmra.mrb[0].mxu0 %v8615
    %v8695 = vpop.f32.mrb[0].mxu0
    %v8696 = vadd.f32 0.0, %v8695
    %v8697 = vpop.f32.mrb[0].mxu0
    %8698 = vdwg.mxu0
    %8702 = vrot.lane.b32.xlu0 %v8214, 8
    %v8703 = vpop.permute.xlu0 %8702
    %8704 = vrot.lane.b32.xlu0 %v8219, 8
    %v8705 = vpop.permute.xlu0 %8704
    %8706 = vrot.lane.b32.xlu0 %v8224, 8
    %v8707 = vpop.permute.xlu0 %8706
    %8714 = vrot.lane.b32.xlu0 %v8450, 16
    %v8715 = vpop.permute.xlu0 %8714
    %8716 = vrot.lane.b32.xlu0 %v8455, 16
    %v8717 = vpop.permute.xlu0 %8716
    %8718 = vrot.lane.b32.xlu0 %v8460, 16
    %v8719 = vpop.permute.xlu0 %8718
    %8726 = vrot.lane.b32.xlu0 %v8686, 24
    %v8727 = vpop.permute.xlu0 %8726
    %8728 = vrot.lane.b32.xlu0 %v8691, 24
    %v8729 = vpop.permute.xlu0 %8728
    %8730 = vrot.lane.b32.xlu0 %v8696, 24
    %v8731 = vpop.permute.xlu0 %8730
    %v8735 = vsel %vm2980, %v7978, %v8703
    %v8736 = vsel %vm2980, %v7983, %v8705
    %v8737 = vsel %vm2980, %v7988, %v8707
    %v8738 = vsel %vm570, %v8735, %v8715
    %v8739 = vsel %vm570, %v8736, %v8717
    %v8740 = vsel %vm570, %v8737, %v8719
    %v8741 = vsel %vm3958, %v8738, %v8727
    %v8742 = vsel %vm3958, %v8739, %v8729
    %v8743 = vsel %vm3958, %v8740, %v8731
    %s8744 = scalar_lea.vmem %s29, 96
    %v8745 = vld [vmem:[%s8744] sm:$0xff]
    %v8746 = vld [vmem:[%s8744 + $0x8] sm:$0xff]
    %v8747 = vld [vmem:[%s8744 + $0x10] sm:$0xff]
    %v8748 = vld [vmem:[%s8744 + $0x18] sm:$0xff]
    %v8750 = vsel %vm2815, %v8741, 0
    %v8753 = vsel %vm2815, %v8742, 0
    %v8756 = vsel %vm2815, %v8743, 0
    %8758 = vmatprep.subr.mxu0 0.0
    %8759 = vmatpush1.msra.mxu0 %v8745
    %8760 = vmatprep.subr.mxu0 0.0
    %8761 = vmatpush1.msra.mxu0 %v8746
    %8762 = vmatprep.subr.mxu0 0.0
    %8763 = vmatpush1.msra.mxu0 %v8747
    %8764 = vmatprep.subr.mxu0 0.0
    %8765 = vmatpush1.msra.mxu0 %v8748
    %8766 = vmatprep.subr.mxu0 0.0
    %8767 = vmatpush1.msra.mxu0 0.0
    %8768 = vmatprep.subr.mxu0 0.0
    %8769 = vmatpush1.msra.mxu0 0.0
    %8770 = vmatprep.subr.mxu0 0.0
    %8771 = vmatpush1.msra.mxu0 0.0
    %8772 = vmatprep.subr.mxu0 0.0
    %8773 = vmatpush1.msra.mxu0 0.0
    %8774 = vmatprep.subr.mxu0 0.0
    %8775 = vmatpush1.msra.mxu0 0.0
    %8776 = vmatprep.subr.mxu0 0.0
    %8777 = vmatpush1.msra.mxu0 0.0
    %8778 = vmatprep.subr.mxu0 0.0
    %8779 = vmatpush1.msra.mxu0 0.0
    %8780 = vmatprep.subr.mxu0 0.0
    %8781 = vmatpush1.msra.mxu0 0.0
    %8782 = vmatprep.subr.mxu0 0.0
    %8783 = vmatpush1.msra.mxu0 0.0
    %8784 = vmatprep.subr.mxu0 0.0
    %8785 = vmatpush1.msra.mxu0 0.0
    %8786 = vmatprep.subr.mxu0 0.0
    %8787 = vmatpush1.msra.mxu0 0.0
    %8788 = vmatprep.subr.mxu0 0.0
    %8789 = vmatpush1.msra.mxu0 0.0
    %8790 = vmatprep.subr.mxu0 0.0
    %8791 = vmatpush1.msra.mxu0 0.0
    %8792 = vmatprep.subr.mxu0 0.0
    %8793 = vmatpush1.msra.mxu0 0.0
    %8794 = vmatprep.subr.mxu0 0.0
    %8795 = vmatpush1.msra.mxu0 0.0
    %8796 = vmatprep.subr.mxu0 0.0
    %8797 = vmatpush1.msra.mxu0 0.0
    %8798 = vmatprep.subr.mxu0 0.0
    %8799 = vmatpush1.msra.mxu0 0.0
    %8800 = vmatprep.subr.mxu0 0.0
    %8801 = vmatpush1.msra.mxu0 0.0
    %8802 = vmatprep.subr.mxu0 0.0
    %8803 = vmatpush1.msra.mxu0 0.0
    %8804 = vmatprep.subr.mxu0 0.0
    %8805 = vmatpush1.msra.mxu0 0.0
    %8806 = vmatprep.subr.mxu0 0.0
    %8807 = vmatpush1.msra.mxu0 0.0
    %8808 = vmatprep.subr.mxu0 0.0
    %8809 = vmatpush1.msra.mxu0 0.0
    %8810 = vmatprep.subr.mxu0 0.0
    %8811 = vmatpush1.msra.mxu0 0.0
    %8812 = vmatprep.subr.mxu0 0.0
    %8813 = vmatpush1.msra.mxu0 0.0
    %8814 = vmatprep.subr.mxu0 0.0
    %8815 = vmatpush1.msra.mxu0 0.0
    %8816 = vmatprep.subr.mxu0 0.0
    %8817 = vmatpush1.msra.mxu0 0.0
    %8818 = vmatprep.subr.mxu0 0.0
    %8819 = vmatpush1.msra.mxu0 0.0
    %8820 = vmatprep.subr.mxu0 0.0
    %8821 = vmatpush1.msra.mxu0 0.0
    %8822 = vmatprep.mubr.f32.mxu0 0.0
    %8823 = vmatmul.mubr.f32.gmra.mrb[0].mxu0 %v8750
    %v8824 = vpop.f32.mrb[0].mxu0
    %v8825 = vadd.f32 0.0, %v8824
    %v8826 = vpop.f32.mrb[0].mxu0
    %8827 = vmatprep.mubr.f32.mxu0 0.0
    %8828 = vmatmul.mubr.f32.gmra.mrb[0].mxu0 %v8753
    %v8829 = vpop.f32.mrb[0].mxu0
    %v8830 = vadd.f32 0.0, %v8829
    %v8831 = vpop.f32.mrb[0].mxu0
    %8832 = vmatprep.mubr.f32.mxu0 0.0
    %8833 = vmatmul.mubr.f32.gmra.mrb[0].mxu0 %v8756
    %v8834 = vpop.f32.mrb[0].mxu0
    %v8835 = vadd.f32 0.0, %v8834
    %v8836 = vpop.f32.mrb[0].mxu0
    %8837 = vdwg.mxu0
    %v8838 = vadd.f32 %v7598, %v8825
    %v8839 = vadd.f32 %v7599, %v8830
    %v8840 = vadd.f32 %v7600, %v8835
    %s8841 = scalar_lea.vmem %s27, 3
    %v8842 = vld [vmem:[%s8841] sm:$0x1]
    %v8844 = vlaneseq
    %v8845 = vshrl.u32 %v8844, 7
    %v8846 = vsub.s32 0, %v8845
    %v8847 = vrot.slane %v8842, %v8846
    %v8849 = vadd.f32 %v8838, %v8847
    %v8850 = vadd.f32 %v8839, %v8847
    %v8851 = vadd.f32 %v8840, %v8847
    %v8852 = vsel %vm2815, %v8849, 0.0
    %8853 = vadd.xlane.f32.xlu0 %v8852
    %v8854 = vpop.xlane.xlu0 %8853
    %v8855 = vsel %vm2815, %v8850, 0.0
    %8856 = vadd.xlane.f32.xlu0 %v8855
    %v8857 = vpop.xlane.xlu0 %8856
    %v8858 = vsel %vm2822, %v8851, 0.0
    %8859 = vadd.xlane.f32.xlu0 %v8858
    %v8860 = vpop.xlane.xlu0 %8859
    %v8861 = vmul.f32 %v8854, %v2826
    %v8862 = vmul.f32 %v8857, %v2826
    %v8863 = vmul.f32 %v8860, %v2826
    %v8864 = vsub.f32 %v8849, %v8861
    %v8865 = vsub.f32 %v8850, %v8862
    %v8866 = vsub.f32 %v8851, %v8863
    %v8867 = vmul.f32 %v8864, %v8864
    %v8868 = vmul.f32 %v8865, %v8865
    %v8869 = vmul.f32 %v8866, %v8866
    %v8870 = vsel %vm2815, %v8867, 0.0
    %8871 = vadd.xlane.f32.xlu0 %v8870
    %v8872 = vpop.xlane.xlu0 %8871
    %v8873 = vsel %vm2815, %v8868, 0.0
    %8874 = vadd.xlane.f32.xlu0 %v8873
    %v8875 = vpop.xlane.xlu0 %8874
    %v8876 = vsel %vm2822, %v8869, 0.0
    %8877 = vadd.xlane.f32.xlu0 %v8876
    %v8878 = vpop.xlane.xlu0 %8877
    %v8879 = vmul.f32 %v8872, %v2826
    %v8880 = vmul.f32 %v8875, %v2826
    %v8881 = vmul.f32 %v8878, %v2826
    %v8882 = vadd.f32 %v8879, 1e-06
    %v8883 = vadd.f32 %v8880, 1e-06
    %v8884 = vadd.f32 %v8881, 1e-06
    %v8885 = vrsqrt.pop %v8882
    %v8886 = vrsqrt.pop %v8883
    %v8887 = vrsqrt.pop %v8884
    %v8888 = vmul.f32 %v8864, %v8885
    %v8889 = vmul.f32 %v8865, %v8886
    %v8890 = vmul.f32 %v8866, %v8887
    %v8891 = vlaneseq
    %v8892 = vshrl.u32 %v8891, 7
    %v8893 = vsub.s32 2, %v8892
    %v8894 = vrot.slane %v7602, %v8893
    %v8895 = vmul.f32 %v8888, %v8894
    %v8896 = vmul.f32 %v8889, %v8894
    %v8897 = vmul.f32 %v8890, %v8894
    %v8898 = vlaneseq
    %v8899 = vshrl.u32 %v8898, 7
    %v8900 = vsub.s32 3, %v8899
    %v8901 = vrot.slane %v7602, %v8900
    %v8902 = vadd.f32 %v8895, %v8901
    %v8903 = vadd.f32 %v8896, %v8901
    %v8904 = vadd.f32 %v8897, %v8901
    %s8905 = scalar_lea.vmem %s19, 96
    %v8906 = vld [vmem:[%s8905] sm:$0xff]
    %v8907 = vld [vmem:[%s8905 + $0x8] sm:$0xff]
    %v8908 = vld [vmem:[%s8905 + $0x10] sm:$0xff]
    %v8909 = vld [vmem:[%s8905 + $0x18] sm:$0xff]
    %s8910 = scalar_lea.vmem %s17, 3
    %v8911 = vld [vmem:[%s8910] sm:$0x1]
    %v8913 = vlaneseq
    %v8914 = vshrl.u32 %v8913, 7
    %v8915 = vsub.s32 0, %v8914
    %v8916 = vrot.slane %v8911, %v8915
    %v8919 = vsel %vm2815, %v8902, 0
    %v8922 = vsel %vm2815, %v8903, 0
    %v8925 = vsel %vm2815, %v8904, 0
    %8927 = vmatprep.subr.mxu0 0.0
    %8928 = vmatpush1.msra.mxu0 %v8906
    %8929 = vmatprep.subr.mxu0 0.0
    %8930 = vmatpush1.msra.mxu0 %v8907
    %8931 = vmatprep.subr.mxu0 0.0
    %8932 = vmatpush1.msra.mxu0 %v8908
    %8933 = vmatprep.subr.mxu0 0.0
    %8934 = vmatpush1.msra.mxu0 %v8909
    %8935 = vmatprep.subr.mxu0 0.0
    %8936 = vmatpush1.msra.mxu0 0.0
    %8937 = vmatprep.subr.mxu0 0.0
    %8938 = vmatpush1.msra.mxu0 0.0
    %8939 = vmatprep.subr.mxu0 0.0
    %8940 = vmatpush1.msra.mxu0 0.0
    %8941 = vmatprep.subr.mxu0 0.0
    %8942 = vmatpush1.msra.mxu0 0.0
    %8943 = vmatprep.subr.mxu0 0.0
    %8944 = vmatpush1.msra.mxu0 0.0
    %8945 = vmatprep.subr.mxu0 0.0
    %8946 = vmatpush1.msra.mxu0 0.0
    %8947 = vmatprep.subr.mxu0 0.0
    %8948 = vmatpush1.msra.mxu0 0.0
    %8949 = vmatprep.subr.mxu0 0.0
    %8950 = vmatpush1.msra.mxu0 0.0
    %8951 = vmatprep.subr.mxu0 0.0
    %8952 = vmatpush1.msra.mxu0 0.0
    %8953 = vmatprep.subr.mxu0 0.0
    %8954 = vmatpush1.msra.mxu0 0.0
    %8955 = vmatprep.subr.mxu0 0.0
    %8956 = vmatpush1.msra.mxu0 0.0
    %8957 = vmatprep.subr.mxu0 0.0
    %8958 = vmatpush1.msra.mxu0 0.0
    %8959 = vmatprep.subr.mxu0 0.0
    %8960 = vmatpush1.msra.mxu0 0.0
    %8961 = vmatprep.subr.mxu0 0.0
    %8962 = vmatpush1.msra.mxu0 0.0
    %8963 = vmatprep.subr.mxu0 0.0
    %8964 = vmatpush1.msra.mxu0 0.0
    %8965 = vmatprep.subr.mxu0 0.0
    %8966 = vmatpush1.msra.mxu0 0.0
    %8967 = vmatprep.subr.mxu0 0.0
    %8968 = vmatpush1.msra.mxu0 0.0
    %8969 = vmatprep.subr.mxu0 0.0
    %8970 = vmatpush1.msra.mxu0 0.0
    %8971 = vmatprep.subr.mxu0 0.0
    %8972 = vmatpush1.msra.mxu0 0.0
    %8973 = vmatprep.subr.mxu0 0.0
    %8974 = vmatpush1.msra.mxu0 0.0
    %8975 = vmatprep.subr.mxu0 0.0
    %8976 = vmatpush1.msra.mxu0 0.0
    %8977 = vmatprep.subr.mxu0 0.0
    %8978 = vmatpush1.msra.mxu0 0.0
    %8979 = vmatprep.subr.mxu0 0.0
    %8980 = vmatpush1.msra.mxu0 0.0
    %8981 = vmatprep.subr.mxu0 0.0
    %8982 = vmatpush1.msra.mxu0 0.0
    %8983 = vmatprep.subr.mxu0 0.0
    %8984 = vmatpush1.msra.mxu0 0.0
    %8985 = vmatprep.subr.mxu0 0.0
    %8986 = vmatpush1.msra.mxu0 0.0
    %8987 = vmatprep.subr.mxu0 0.0
    %8988 = vmatpush1.msra.mxu0 0.0
    %8989 = vmatprep.subr.mxu0 0.0
    %8990 = vmatpush1.msra.mxu0 0.0
    %8991 = vmatprep.mubr.f32.mxu0 0.0
    %8992 = vmatmul.mubr.f32.gmra.mrb[0].mxu0 %v8919
    %v8993 = vpop.f32.mrb[0].mxu0
    %v8994 = vadd.f32 %v8916, %v8993
    %v8995 = vpop.f32.mrb[0].mxu0
    %8996 = vmatprep.mubr.f32.mxu0 0.0
    %8997 = vmatmul.mubr.f32.gmra.mrb[0].mxu0 %v8922
    %v8998 = vpop.f32.mrb[0].mxu0
    %v8999 = vadd.f32 %v8916, %v8998
    %v9000 = vpop.f32.mrb[0].mxu0
    %9001 = vmatprep.mubr.f32.mxu0 0.0
    %9002 = vmatmul.mubr.f32.gmra.mrb[0].mxu0 %v8925
    %v9003 = vpop.f32.mrb[0].mxu0
    %v9004 = vadd.f32 %v8916, %v9003
    %v9005 = vpop.f32.mrb[0].mxu0
    %9006 = vdwg.mxu0
    %v9007 = vmul.f32 %v8994, %v8994
    %v9008 = vmul.f32 %v8999, %v8999
    %v9009 = vmul.f32 %v9004, %v9004
    %v9010 = vmul.f32 %v8994, %v9007
    %v9011 = vmul.f32 %v8999, %v9008
    %v9012 = vmul.f32 %v9004, %v9009
    %v9013 = vmul.f32 %v9010, 0.044715
    %v9014 = vmul.f32 %v9011, 0.044715
    %v9015 = vmul.f32 %v9012, 0.044715
    %v9016 = vadd.f32 %v8994, %v9013
    %v9017 = vadd.f32 %v8999, %v9014
    %v9018 = vadd.f32 %v9004, %v9015
    %v9019 = vmul.f32 %v9016, 0.7978846
    %v9020 = vmul.f32 %v9017, 0.7978846
    %v9021 = vmul.f32 %v9018, 0.7978846
    %v9022 = vtanh.pop %v9019
    %v9023 = vtanh.pop %v9020
    %v9024 = vtanh.pop %v9021
    %v9025 = vadd.f32 %v9022, 1.0
    %v9026 = vadd.f32 %v9023, 1.0
    %v9027 = vadd.f32 %v9024, 1.0
    %v9028 = vmul.f32 %v9025, 0.5
    %v9029 = vmul.f32 %v9026, 0.5
    %v9030 = vmul.f32 %v9027, 0.5
    %v9031 = vmul.f32 %v8994, %v9028
    %v9032 = vmul.f32 %v8999, %v9029
    %v9033 = vmul.f32 %v9004, %v9030
    %s9034 = scalar_lea.vmem %s23, 192
    %v9035 = vld [vmem:[%s9034] sm:$0xff]
    %v9036 = vld [vmem:[%s9034 + $0x8] sm:$0xff]
    %v9037 = vld [vmem:[%s9034 + $0x10] sm:$0xff]
    %v9038 = vld [vmem:[%s9034 + $0x18] sm:$0xff]
    %v9039 = vld [vmem:[%s9034 + $0x20] sm:$0xff]
    %v9040 = vld [vmem:[%s9034 + $0x28] sm:$0xff]
    %v9041 = vld [vmem:[%s9034 + $0x30] sm:$0xff]
    %v9042 = vld [vmem:[%s9034 + $0x38] sm:$0xff]
    %v9044 = vsel %vm4256, %v9031, 0
    %v9047 = vsel %vm4256, %v9032, 0
    %v9050 = vsel %vm4256, %v9033, 0
    %9052 = vmatprep.subr.mxu0 0.0
    %9053 = vmatpush1.msra.mxu0 %v9035
    %9054 = vmatprep.subr.mxu0 0.0
    %9055 = vmatpush1.msra.mxu0 %v9036
    %9056 = vmatprep.subr.mxu0 0.0
    %9057 = vmatpush1.msra.mxu0 %v9037
    %9058 = vmatprep.subr.mxu0 0.0
    %9059 = vmatpush1.msra.mxu0 %v9038
    %9060 = vmatprep.subr.mxu0 0.0
    %9061 = vmatpush1.msra.mxu0 %v9039
    %9062 = vmatprep.subr.mxu0 0.0
    %9063 = vmatpush1.msra.mxu0 %v9040
    %9064 = vmatprep.subr.mxu0 0.0
    %9065 = vmatpush1.msra.mxu0 %v9041
    %9066 = vmatprep.subr.mxu0 0.0
    %9067 = vmatpush1.msra.mxu0 %v9042
    %9068 = vmatprep.subr.mxu0 0.0
    %9069 = vmatpush1.msra.mxu0 0.0
    %9070 = vmatprep.subr.mxu0 0.0
    %9071 = vmatpush1.msra.mxu0 0.0
    %9072 = vmatprep.subr.mxu0 0.0
    %9073 = vmatpush1.msra.mxu0 0.0
    %9074 = vmatprep.subr.mxu0 0.0
    %9075 = vmatpush1.msra.mxu0 0.0
    %9076 = vmatprep.subr.mxu0 0.0
    %9077 = vmatpush1.msra.mxu0 0.0
    %9078 = vmatprep.subr.mxu0 0.0
    %9079 = vmatpush1.msra.mxu0 0.0
    %9080 = vmatprep.subr.mxu0 0.0
    %9081 = vmatpush1.msra.mxu0 0.0
    %9082 = vmatprep.subr.mxu0 0.0
    %9083 = vmatpush1.msra.mxu0 0.0
    %9084 = vmatprep.subr.mxu0 0.0
    %9085 = vmatpush1.msra.mxu0 0.0
    %9086 = vmatprep.subr.mxu0 0.0
    %9087 = vmatpush1.msra.mxu0 0.0
    %9088 = vmatprep.subr.mxu0 0.0
    %9089 = vmatpush1.msra.mxu0 0.0
    %9090 = vmatprep.subr.mxu0 0.0
    %9091 = vmatpush1.msra.mxu0 0.0
    %9092 = vmatprep.subr.mxu0 0.0
    %9093 = vmatpush1.msra.mxu0 0.0
    %9094 = vmatprep.subr.mxu0 0.0
    %9095 = vmatpush1.msra.mxu0 0.0
    %9096 = vmatprep.subr.mxu0 0.0
    %9097 = vmatpush1.msra.mxu0 0.0
    %9098 = vmatprep.subr.mxu0 0.0
    %9099 = vmatpush1.msra.mxu0 0.0
    %9100 = vmatprep.subr.mxu0 0.0
    %9101 = vmatpush1.msra.mxu0 0.0
    %9102 = vmatprep.subr.mxu0 0.0
    %9103 = vmatpush1.msra.mxu0 0.0
    %9104 = vmatprep.subr.mxu0 0.0
    %9105 = vmatpush1.msra.mxu0 0.0
    %9106 = vmatprep.subr.mxu0 0.0
    %9107 = vmatpush1.msra.mxu0 0.0
    %9108 = vmatprep.subr.mxu0 0.0
    %9109 = vmatpush1.msra.mxu0 0.0
    %9110 = vmatprep.subr.mxu0 0.0
    %9111 = vmatpush1.msra.mxu0 0.0
    %9112 = vmatprep.subr.mxu0 0.0
    %9113 = vmatpush1.msra.mxu0 0.0
    %9114 = vmatprep.subr.mxu0 0.0
    %9115 = vmatpush1.msra.mxu0 0.0
    %9116 = vmatprep.mubr.f32.mxu0 0.0
    %9117 = vmatmul.mubr.f32.gmra.mrb[0].mxu0 %v9044
    %v9118 = vpop.f32.mrb[0].mxu0
    %v9119 = vadd.f32 0.0, %v9118
    %v9120 = vpop.f32.mrb[0].mxu0
    %9121 = vmatprep.mubr.f32.mxu0 0.0
    %9122 = vmatmul.mubr.f32.gmra.mrb[0].mxu0 %v9047
    %v9123 = vpop.f32.mrb[0].mxu0
    %v9124 = vadd.f32 0.0, %v9123
    %v9125 = vpop.f32.mrb[0].mxu0
    %9126 = vmatprep.mubr.f32.mxu0 0.0
    %9127 = vmatmul.mubr.f32.gmra.mrb[0].mxu0 %v9050
    %v9128 = vpop.f32.mrb[0].mxu0
    %v9129 = vadd.f32 0.0, %v9128
    %v9130 = vpop.f32.mrb[0].mxu0
    %9131 = vdwg.mxu0
    %v9132 = vadd.f32 %v8849, %v9119
    %v9133 = vadd.f32 %v8850, %v9124
    %v9134 = vadd.f32 %v8851, %v9129
    %s9135 = scalar_lea.vmem %s21, 3
    %v9136 = vld [vmem:[%s9135] sm:$0x1]
    %v9138 = vlaneseq
    %v9139 = vshrl.u32 %v9138, 7
    %v9140 = vsub.s32 0, %v9139
    %v9141 = vrot.slane %v9136, %v9140
    %v9143 = vadd.f32 %v9132, %v9141
    %v9144 = vadd.f32 %v9133, %v9141
    %v9145 = vadd.f32 %v9134, %v9141
    %v9146 = vadd.f32 %v9143, %v5901
    %v9147 = vadd.f32 %v9144, %v5902
    %v9148 = vadd.f32 %v9145, %v5903
    %v9149 = vld [vmem:[%s69] sm:$0x3]
    %v9150 = vsel %vm2815, %v9146, 0.0
    %9151 = vadd.xlane.f32.xlu0 %v9150
    %v9152 = vpop.xlane.xlu0 %9151
    %v9153 = vsel %vm2815, %v9147, 0.0
    %9154 = vadd.xlane.f32.xlu0 %v9153
    %v9155 = vpop.xlane.xlu0 %9154
    %v9156 = vsel %vm2822, %v9148, 0.0
    %9157 = vadd.xlane.f32.xlu0 %v9156
    %v9158 = vpop.xlane.xlu0 %9157
    %v9159 = vmul.f32 %v9152, %v2826
    %v9160 = vmul.f32 %v9155, %v2826
    %v9161 = vmul.f32 %v9158, %v2826
    %v9162 = vsub.f32 %v9146, %v9159
    %v9163 = vsub.f32 %v9147, %v9160
    %v9164 = vsub.f32 %v9148, %v9161
    %v9165 = vmul.f32 %v9162, %v9162
    %v9166 = vmul.f32 %v9163, %v9163
    %v9167 = vmul.f32 %v9164, %v9164
    %v9168 = vsel %vm2815, %v9165, 0.0
    %9169 = vadd.xlane.f32.xlu0 %v9168
    %v9170 = vpop.xlane.xlu0 %9169
    %v9171 = vsel %vm2815, %v9166, 0.0
    %9172 = vadd.xlane.f32.xlu0 %v9171
    %v9173 = vpop.xlane.xlu0 %9172
    %v9174 = vsel %vm2822, %v9167, 0.0
    %9175 = vadd.xlane.f32.xlu0 %v9174
    %v9176 = vpop.xlane.xlu0 %9175
    %v9177 = vmul.f32 %v9170, %v2826
    %v9178 = vmul.f32 %v9173, %v2826
    %v9179 = vmul.f32 %v9176, %v2826
    %v9180 = vadd.f32 %v9177, 1e-06
    %v9181 = vadd.f32 %v9178, 1e-06
    %v9182 = vadd.f32 %v9179, 1e-06
    %v9183 = vrsqrt.pop %v9180
    %v9184 = vrsqrt.pop %v9181
    %v9185 = vrsqrt.pop %v9182
    %v9186 = vmul.f32 %v9162, %v9183
    %v9187 = vmul.f32 %v9163, %v9184
    %v9188 = vmul.f32 %v9164, %v9185
    %v9189 = vlaneseq
    %v9190 = vshrl.u32 %v9189, 7
    %v9191 = vsub.s32 0, %v9190
    %v9192 = vrot.slane %v9149, %v9191
    %v9193 = vmul.f32 %v9186, %v9192
    %v9194 = vmul.f32 %v9187, %v9192
    %v9195 = vmul.f32 %v9188, %v9192
    %v9196 = vlaneseq
    %v9197 = vshrl.u32 %v9196, 7
    %v9198 = vsub.s32 1, %v9197
    %v9199 = vrot.slane %v9149, %v9198
    %v9200 = vadd.f32 %v9193, %v9199
    %v9201 = vadd.f32 %v9194, %v9199
    %v9202 = vadd.f32 %v9195, %v9199
    %v9203 = vld [vmem:[%s45] sm:$0x3]
    %v9205 = vsel %vm3073, %v9203, 0
    %v9208 = vsel %vm3125, %v5957, 0
    %9210 = vmatprep.subr.mxu0 0.0
    %9211 = vmatpush1.msra.mxu0 %v5955
    %9212 = vmatprep.subr.mxu0 0.0
    %9213 = vmatpush1.msra.mxu0 %v5956
    %9214 = vmatprep.subr.mxu0 0.0
    %9215 = vmatpush1.msra.mxu0 %v9208
    %9216 = vmatprep.subr.mxu0 0.0
    %9217 = vmatpush1.msra.mxu0 0.0
    %9218 = vmatprep.subr.mxu0 0.0
    %9219 = vmatpush1.msra.mxu0 0.0
    %9220 = vmatprep.subr.mxu0 0.0
    %9221 = vmatpush1.msra.mxu0 0.0
    %9222 = vmatprep.subr.mxu0 0.0
    %9223 = vmatpush1.msra.mxu0 0.0
    %9224 = vmatprep.subr.mxu0 0.0
    %9225 = vmatpush1.msra.mxu0 0.0
    %9226 = vmatprep.subr.mxu0 0.0
    %9227 = vmatpush1.msra.mxu0 0.0
    %9228 = vmatprep.subr.mxu0 0.0
    %9229 = vmatpush1.msra.mxu0 0.0
    %9230 = vmatprep.subr.mxu0 0.0
    %9231 = vmatpush1.msra.mxu0 0.0
    %9232 = vmatprep.subr.mxu0 0.0
    %9233 = vmatpush1.msra.mxu0 0.0
    %9234 = vmatprep.subr.mxu0 0.0
    %9235 = vmatpush1.msra.mxu0 0.0
    %9236 = vmatprep.subr.mxu0 0.0
    %9237 = vmatpush1.msra.mxu0 0.0
    %9238 = vmatprep.subr.mxu0 0.0
    %9239 = vmatpush1.msra.mxu0 0.0
    %9240 = vmatprep.subr.mxu0 0.0
    %9241 = vmatpush1.msra.mxu0 0.0
    %9242 = vmatprep.subr.mxu0 0.0
    %9243 = vmatpush1.msra.mxu0 0.0
    %9244 = vmatprep.subr.mxu0 0.0
    %9245 = vmatpush1.msra.mxu0 0.0
    %9246 = vmatprep.subr.mxu0 0.0
    %9247 = vmatpush1.msra.mxu0 0.0
    %9248 = vmatprep.subr.mxu0 0.0
    %9249 = vmatpush1.msra.mxu0 0.0
    %9250 = vmatprep.subr.mxu0 0.0
    %9251 = vmatpush1.msra.mxu0 0.0
    %9252 = vmatprep.subr.mxu0 0.0
    %9253 = vmatpush1.msra.mxu0 0.0
    %9254 = vmatprep.subr.mxu0 0.0
    %9255 = vmatpush1.msra.mxu0 0.0
    %9256 = vmatprep.subr.mxu0 0.0
    %9257 = vmatpush1.msra.mxu0 0.0
    %9258 = vmatprep.subr.mxu0 0.0
    %9259 = vmatpush1.msra.mxu0 0.0
    %9260 = vmatprep.subr.mxu0 0.0
    %9261 = vmatpush1.msra.mxu0 0.0
    %9262 = vmatprep.subr.mxu0 0.0
    %9263 = vmatpush1.msra.mxu0 0.0
    %9264 = vmatprep.subr.mxu0 0.0
    %9265 = vmatpush1.msra.mxu0 0.0
    %9266 = vmatprep.subr.mxu0 0.0
    %9267 = vmatpush1.msra.mxu0 0.0
    %9268 = vmatprep.subr.mxu0 0.0
    %9269 = vmatpush1.msra.mxu0 0.0
    %9270 = vmatprep.subr.mxu0 0.0
    %9271 = vmatpush1.msra.mxu0 0.0
    %9272 = vmatprep.subr.mxu0 0.0
    %9273 = vmatpush1.msra.mxu0 0.0
    %9274 = vmatprep.mubr.f32.mxu0 0.0
    %9275 = vmatmul.mubr.f32.gmra.mrb[0].mxu0 %v9205
    %v9276 = vpop.f32.mrb[0].mxu0
    %v9277 = vadd.f32 0.0, %v9276
    %v9278 = vpop.f32.mrb[0].mxu0
    %9279 = vdwg.mxu0
    %v9281 = vsel %vm3125, %v9202, 0
    %9283 = vmatprep.subr.mxu0 0.0
    %9284 = vmatpush1.msra.mxu0 %v9200
    %9285 = vmatprep.subr.mxu0 0.0
    %9286 = vmatpush1.msra.mxu0 %v9201
    %9287 = vmatprep.subr.mxu0 0.0
    %9288 = vmatpush1.msra.mxu0 %v9281
    %9289 = vmatprep.subr.mxu0 0.0
    %9290 = vmatpush1.msra.mxu0 0.0
    %9291 = vmatprep.subr.mxu0 0.0
    %9292 = vmatpush1.msra.mxu0 0.0
    %9293 = vmatprep.subr.mxu0 0.0
    %9294 = vmatpush1.msra.mxu0 0.0
    %9295 = vmatprep.subr.mxu0 0.0
    %9296 = vmatpush1.msra.mxu0 0.0
    %9297 = vmatprep.subr.mxu0 0.0
    %9298 = vmatpush1.msra.mxu0 0.0
    %9299 = vmatprep.subr.mxu0 0.0
    %9300 = vmatpush1.msra.mxu0 0.0
    %9301 = vmatprep.subr.mxu0 0.0
    %9302 = vmatpush1.msra.mxu0 0.0
    %9303 = vmatprep.subr.mxu0 0.0
    %9304 = vmatpush1.msra.mxu0 0.0
    %9305 = vmatprep.subr.mxu0 0.0
    %9306 = vmatpush1.msra.mxu0 0.0
    %9307 = vmatprep.subr.mxu0 0.0
    %9308 = vmatpush1.msra.mxu0 0.0
    %9309 = vmatprep.subr.mxu0 0.0
    %9310 = vmatpush1.msra.mxu0 0.0
    %9311 = vmatprep.subr.mxu0 0.0
    %9312 = vmatpush1.msra.mxu0 0.0
    %9313 = vmatprep.subr.mxu0 0.0
    %9314 = vmatpush1.msra.mxu0 0.0
    %9315 = vmatprep.subr.mxu0 0.0
    %9316 = vmatpush1.msra.mxu0 0.0
    %9317 = vmatprep.subr.mxu0 0.0
    %9318 = vmatpush1.msra.mxu0 0.0
    %9319 = vmatprep.subr.mxu0 0.0
    %9320 = vmatpush1.msra.mxu0 0.0
    %9321 = vmatprep.subr.mxu0 0.0
    %9322 = vmatpush1.msra.mxu0 0.0
    %9323 = vmatprep.subr.mxu0 0.0
    %9324 = vmatpush1.msra.mxu0 0.0
    %9325 = vmatprep.subr.mxu0 0.0
    %9326 = vmatpush1.msra.mxu0 0.0
    %9327 = vmatprep.subr.mxu0 0.0
    %9328 = vmatpush1.msra.mxu0 0.0
    %9329 = vmatprep.subr.mxu0 0.0
    %9330 = vmatpush1.msra.mxu0 0.0
    %9331 = vmatprep.subr.mxu0 0.0
    %9332 = vmatpush1.msra.mxu0 0.0
    %9333 = vmatprep.subr.mxu0 0.0
    %9334 = vmatpush1.msra.mxu0 0.0
    %9335 = vmatprep.subr.mxu0 0.0
    %9336 = vmatpush1.msra.mxu0 0.0
    %9337 = vmatprep.subr.mxu0 0.0
    %9338 = vmatpush1.msra.mxu0 0.0
    %9339 = vmatprep.subr.mxu0 0.0
    %9340 = vmatpush1.msra.mxu0 0.0
    %9341 = vmatprep.subr.mxu0 0.0
    %9342 = vmatpush1.msra.mxu0 0.0
    %9343 = vmatprep.subr.mxu0 0.0
    %9344 = vmatpush1.msra.mxu0 0.0
    %9345 = vmatprep.subr.mxu0 0.0
    %9346 = vmatpush1.msra.mxu0 0.0
    %9347 = vmatprep.mubr.f32.mxu0 0.0
    %9348 = vmatmul.mubr.f32.gmra.mrb[0].mxu0 %v9205
    %v9349 = vpop.f32.mrb[0].mxu0
    %v9350 = vadd.f32 %v9277, %v9349
    %v9351 = vpop.f32.mrb[0].mxu0
    %9352 = vdwg.mxu0
    %v9353 = vld [vmem:[%s37] sm:$0x3]
    %v9354 = vsel %vm2822, %v9350, 0.0
    %9355 = vadd.xlane.f32.xlu0 %v9354
    %v9356 = vpop.xlane.xlu0 %9355
    %v9357 = vmul.f32 %v9356, %v2826
    %v9358 = vsub.f32 %v9350, %v9357
    %v9359 = vmul.f32 %v9358, %v9358
    %v9360 = vsel %vm2822, %v9359, 0.0
    %9361 = vadd.xlane.f32.xlu0 %v9360
    %v9362 = vpop.xlane.xlu0 %9361
    %v9363 = vmul.f32 %v9362, %v2826
    %v9364 = vadd.f32 %v9363, 1e-05
    %v9365 = vrsqrt.pop %v9364
    %v9366 = vmul.f32 %v9358, %v9365
    %v9367 = vlaneseq
    %v9368 = vshrl.u32 %v9367, 7
    %v9369 = vsub.s32 0, %v9368
    %v9370 = vrot.slane %v9353, %v9369
    %v9371 = vmul.f32 %v9366, %v9370
    %v9372 = vlaneseq
    %v9373 = vshrl.u32 %v9372, 7
    %v9374 = vsub.s32 1, %v9373
    %v9375 = vrot.slane %v9353, %v9374
    %v9376 = vadd.f32 %v9371, %v9375
    %v9377 = vld [vmem:[%s39] sm:$0xff]
    %v9378 = vld [vmem:[%s39 + $0x8] sm:$0xff]
    %v9379 = vld [vmem:[%s39 + $0x10] sm:$0xff]
    %v9380 = vld [vmem:[%s39 + $0x18] sm:$0xff]
    %v9381 = vld [vmem:[%s35] sm:$0x1]
    %v9383 = vlaneseq
    %v9384 = vshrl.u32 %v9383, 7
    %v9385 = vsub.s32 0, %v9384
    %v9386 = vrot.slane %v9381, %v9385
    %v9389 = vsel %vm2815, %v9376, 0
    %9391 = vmatprep.subr.mxu0 0.0
    %9392 = vmatpush1.msra.mxu0 %v9377
    %9393 = vmatprep.subr.mxu0 0.0
    %9394 = vmatpush1.msra.mxu0 %v9378
    %9395 = vmatprep.subr.mxu0 0.0
    %9396 = vmatpush1.msra.mxu0 %v9379
    %9397 = vmatprep.subr.mxu0 0.0
    %9398 = vmatpush1.msra.mxu0 %v9380
    %9399 = vmatprep.subr.mxu0 0.0
    %9400 = vmatpush1.msra.mxu0 0.0
    %9401 = vmatprep.subr.mxu0 0.0
    %9402 = vmatpush1.msra.mxu0 0.0
    %9403 = vmatprep.subr.mxu0 0.0
    %9404 = vmatpush1.msra.mxu0 0.0
    %9405 = vmatprep.subr.mxu0 0.0
    %9406 = vmatpush1.msra.mxu0 0.0
    %9407 = vmatprep.subr.mxu0 0.0
    %9408 = vmatpush1.msra.mxu0 0.0
    %9409 = vmatprep.subr.mxu0 0.0
    %9410 = vmatpush1.msra.mxu0 0.0
    %9411 = vmatprep.subr.mxu0 0.0
    %9412 = vmatpush1.msra.mxu0 0.0
    %9413 = vmatprep.subr.mxu0 0.0
    %9414 = vmatpush1.msra.mxu0 0.0
    %9415 = vmatprep.subr.mxu0 0.0
    %9416 = vmatpush1.msra.mxu0 0.0
    %9417 = vmatprep.subr.mxu0 0.0
    %9418 = vmatpush1.msra.mxu0 0.0
    %9419 = vmatprep.subr.mxu0 0.0
    %9420 = vmatpush1.msra.mxu0 0.0
    %9421 = vmatprep.subr.mxu0 0.0
    %9422 = vmatpush1.msra.mxu0 0.0
    %9423 = vmatprep.subr.mxu0 0.0
    %9424 = vmatpush1.msra.mxu0 0.0
    %9425 = vmatprep.subr.mxu0 0.0
    %9426 = vmatpush1.msra.mxu0 0.0
    %9427 = vmatprep.subr.mxu0 0.0
    %9428 = vmatpush1.msra.mxu0 0.0
    %9429 = vmatprep.subr.mxu0 0.0
    %9430 = vmatpush1.msra.mxu0 0.0
    %9431 = vmatprep.subr.mxu0 0.0
    %9432 = vmatpush1.msra.mxu0 0.0
    %9433 = vmatprep.subr.mxu0 0.0
    %9434 = vmatpush1.msra.mxu0 0.0
    %9435 = vmatprep.subr.mxu0 0.0
    %9436 = vmatpush1.msra.mxu0 0.0
    %9437 = vmatprep.subr.mxu0 0.0
    %9438 = vmatpush1.msra.mxu0 0.0
    %9439 = vmatprep.subr.mxu0 0.0
    %9440 = vmatpush1.msra.mxu0 0.0
    %9441 = vmatprep.subr.mxu0 0.0
    %9442 = vmatpush1.msra.mxu0 0.0
    %9443 = vmatprep.subr.mxu0 0.0
    %9444 = vmatpush1.msra.mxu0 0.0
    %9445 = vmatprep.subr.mxu0 0.0
    %9446 = vmatpush1.msra.mxu0 0.0
    %9447 = vmatprep.subr.mxu0 0.0
    %9448 = vmatpush1.msra.mxu0 0.0
    %9449 = vmatprep.subr.mxu0 0.0
    %9450 = vmatpush1.msra.mxu0 0.0
    %9451 = vmatprep.subr.mxu0 0.0
    %9452 = vmatpush1.msra.mxu0 0.0
    %9453 = vmatprep.subr.mxu0 0.0
    %9454 = vmatpush1.msra.mxu0 0.0
    %9455 = vmatprep.mubr.f32.mxu0 0.0
    %9456 = vmatmul.mubr.f32.gmra.mrb[0].mxu0 %v9389
    %v9457 = vpop.f32.mrb[0].mxu0
    %v9458 = vadd.f32 %v9386, %v9457
    %v9459 = vpop.f32.mrb[0].mxu0
    %9460 = vdwg.mxu0
    %vm9461 = vcmask 82944
    %v9462 = vsel %vm9461, %v9458, -inf
    %9463 = vmax.xlane.f32.xlu0 %v9462
    %v9464 = vpop.xlane.xlu0 %9463
    %v9465 = vsub.f32 %v9458, %v9464
    %v9466 = vmul.f32 %v9465, 1.442695
    %v9467 = vpow.pop %v9466
    %v9468 = vsel %vm9461, %v9467, 0.0
    %9469 = vadd.xlane.f32.xlu0 %v9468
    %v9470 = vpop.xlane.xlu0 %9469
    %v9471 = vlog2.pop %v9470
    %v9472 = vmul.f32 %v9471, 0.6931472
    %v9473 = vadd.f32 %v9464, %v9472
    %9474 = vst.msk [vmem:[#allocation2] sm:$0x3] %vm2822, %v9350
    %9475 = vst.msk [vmem:[#allocation4] sm:$0x3] %vm9461, %v9458
    %v9476 = vsub.f32 %v9458, %v9473
    %9477 = vst.msk [vmem:[#allocation6] sm:$0x3] %vm9461, %v9476
    // Predicated region
    $region142: #{mm_transformer_forward.1} parent=1 // pred_check
      _
    $region143: #{mm_transformer_forward.1} parent=1 // pred_check_branch
      %9479 = sbr.rel (0) target = $region145
    $region144: #{mm_transformer_forward.1} parent=1 // pred_region
      %s9481 = ssub.s32 32, 32
      %9482 = vsyncadd [#allocation3], %s9481
      %s9484 = sshll.u32 [#allocation2], 4
      %s9485 = int_to_ptr.vmem [resolvable:$true] %s9484
      %9487 = dma.vmem_to_hbm [thread:$0]  %s9485, 32, %s71, [#allocation3]
    $region145: #{mm_transformer_forward.1} parent=1 // pred_fallthru
      _
    // Predicated region
    $region146: #{mm_transformer_forward.1} parent=1 // pred_check
      _
    $region147: #{mm_transformer_forward.1} parent=1 // pred_check_branch
      %9489 = sbr.rel (0) target = $region149
    $region148: #{mm_transformer_forward.1} parent=1 // pred_region
      %s9491 = ssub.s32 32, 32
      %9492 = vsyncadd [#allocation5], %s9491
      %s9494 = sshll.u32 [#allocation4], 4
      %s9495 = int_to_ptr.vmem [resolvable:$true] %s9494
      %9497 = dma.vmem_to_hbm [thread:$0]  %s9495, 32, %s73, [#allocation5]
    $region149: #{mm_transformer_forward.1} parent=1 // pred_fallthru
      _
    // Predicated region
    $region150: #{mm_transformer_forward.1} parent=1 // pred_check
      _
    $region151: #{mm_transformer_forward.1} parent=1 // pred_check_branch
      %9499 = sbr.rel (0) target = $region153
    $region152: #{mm_transformer_forward.1} parent=1 // pred_region
      %s9501 = ssub.s32 32, 32
      %9502 = vsyncadd [#allocation5], %s9501
      %s9504 = sshll.u32 [#allocation6], 4
      %s9505 = int_to_ptr.vmem [resolvable:$true] %s9504
      %9507 = dma.vmem_to_hbm [thread:$0]  %s9505, 32, %s75, [#allocation5]
    $region153: #{mm_transformer_forward.1} parent=1 // pred_fallthru
      _
    // Predicated region
    $region154: #{mm_transformer_forward.1} parent=1 // pred_check
      _
    $region155: #{mm_transformer_forward.1} parent=1 // pred_check_branch
      %9509 = sbr.rel (0) target = $region157
    $region156: #{mm_transformer_forward.1} parent=1 // pred_region
      %9510 = dma.done [#allocation3], 32
    $region157: #{mm_transformer_forward.1} parent=1 // pred_fallthru
      _
    // Predicated region
    $region158: #{mm_transformer_forward.1} parent=1 // pred_check
      _
    $region159: #{mm_transformer_forward.1} parent=1 // pred_check_branch
      %9512 = sbr.rel (0) target = $region161
    $region160: #{mm_transformer_forward.1} parent=1 // pred_region
      %9513 = dma.done [#allocation5], 32
    $region161: #{mm_transformer_forward.1} parent=1 // pred_fallthru
      _
    // Predicated region
    $region162: #{mm_transformer_forward.1} parent=1 // pred_check
      _
    $region163: #{mm_transformer_forward.1} parent=1 // pred_check_branch
      %9515 = sbr.rel (0) target = $region165
    $region164: #{mm_transformer_forward.1} parent=1 // pred_region
      %9516 = dma.done [#allocation5], 32
    $region165: #{mm_transformer_forward.1} parent=1 // pred_fallthru
      _
    %9517 = vsyncpa [#allocation3], 1
    %9518 = vsyncpa [#allocation5], 1

</llo_original>
